<compile_context>
chip_gen: v7x
topology: tpu7x:2x2x1
jax: 0.10.0
libtpu: 0.0.40
codegen_flags: <defaults>
</compile_context>

<pallas_src>
import jax
import jax.numpy as jnp
from jax.experimental import pallas as pl
from jax.experimental.pallas import tpu as pltpu

EPS = 1e-5


def _full_spec(shape):
    # One block covering the whole array (tiny shapes, everything fits in VMEM).
    return pl.BlockSpec(shape, lambda i, n=len(shape): (0,) * n)


# ---------------- in-kernel helpers (traced inline) ----------------

def _conv3x3(pad_ref, w_ref, n, h, out_w, cin, cout):
    """3x3 / stride-1 conv as 9 shifted dots.

    pad_ref: [n, h+2, >=out_w+2, cin] zero-padded (bf16) image.
    Returns [n*h*out_w, cout] f32 with rows in (n, h, w) order.
    The dw offset hits the sublane dim, so it is hoisted: one shifted load per dw
    (3 total), then the dh row-window along dim 1 is a free vreg-group select.
    `out_w` must be a multiple of 8 so the reshape is layout preserving.
    """
    acc = None
    for dw in range(3):
        xw = pad_ref[:, :, dw:dw + out_w, :]                   # [n, h+2, out_w, cin]
        for dh in range(3):
            xs = xw[:, dh:dh + h].reshape(n * h * out_w, cin)  # tile-aligned reshape
            d = jnp.dot(xs, w_ref[dh * 3 + dw],
                        preferred_element_type=jnp.float32)    # bf16 x bf16 -> f32
            acc = d if acc is None else acc + d
    return acc


def _bn_relu(y, gamma, beta, count):
    """Training-mode BatchNorm (+ReLU), affine folded into scale/shift (f32)."""
    inv_n = 1.0 / count
    mean = jnp.sum(y, axis=0, keepdims=True) * inv_n
    var = jnp.sum((y - mean) ** 2, axis=0, keepdims=True) * inv_n
    scale = gamma * jax.lax.rsqrt(var + EPS)                   # rsqrt -> EUP
    shift = beta - mean * scale
    return jnp.maximum(y * scale + shift, 0.0)


def _pool2x2_store_padded(y, dst_ref, n, h, w, c):
    """2x2/2 maxpool of y ([n*h*w, c] f32, rows in (n,h,w) order).

    The pooled interior is assembled together with its zero border (left/right
    columns, top/bottom rows, plus any extra read-only zero columns of the
    destination buffer) into ONE value, and the whole padded buffer is written
    with a single wide store -> no separate zero-fill, no narrow column stores.
    """
    nh, nw = h // 2, w // 2
    wbuf = dst_ref.shape[2]
    y5 = y.reshape(n, nh, 2, w, c)                             # tile-aligned reshape
    hp = jnp.maximum(y5[:, :, 0], y5[:, :, 1])                 # pool along H
    zcol = jnp.zeros((n, nh, 1, c), jnp.float32)
    pieces = [zcol]
    for j in range(nw):                                        # pool along W
        pieces.append(jnp.maximum(hp[:, :, 2 * j:2 * j + 1, :],
                                  hp[:, :, 2 * j + 1:2 * j + 2, :]))
    right = wbuf - nw - 1
    if right > 0:
        pieces.append(jnp.zeros((n, nh, right, c), jnp.float32))
    interior = jnp.concatenate(pieces, axis=2)                 # [n, nh, wbuf, c]
    zrow = jnp.zeros((n, 1, wbuf, c), jnp.float32)
    full = jnp.concatenate([zrow, interior, zrow], axis=1)     # [n, nh+2, wbuf, c]
    dst_ref[...] = full.astype(dst_ref.dtype)                  # one full-buffer store


# ---------------- the fused kernel ----------------

def model_two_kernel(xp_ref, w1_ref, w2_ref, w3_ref,
                     g1_ref, b1_ref, g2_ref, b2_ref, g3_ref, b3_ref,
                     fcw_ref, fcb_ref, out_ref,
                     pad2, pad3):
    n, hp1, wp1, c0 = xp_ref.shape
    h1, w1 = hp1 - 2, wp1 - 2
    c1 = w1_ref.shape[2]
    c2 = w2_ref.shape[2]
    c3 = w3_ref.shape[2]
    h2, w2 = h1 // 2, w1 // 2
    h3, w3 = h2 // 2, w2 // 2
    wa = 8                       # aligned conv-3 output window width (>= w3)
    nout = out_ref.shape[1]

    # ---- layer 1: conv3x3 -> BN -> ReLU -> maxpool2x2 (single store into pad2) ----
    y1 = _conv3x3(xp_ref, w1_ref, n, h1, w1, c0, c1)
    y1 = _bn_relu(y1, g1_ref[...], b1_ref[...], float(n * h1 * w1))
    _pool2x2_store_padded(y1, pad2, n, h1, w1, c1)

    # ---- layer 2 ----
    y2 = _conv3x3(pad2, w2_ref, n, h2, w2, c1, c2)
    y2 = _bn_relu(y2, g2_ref[...], b2_ref[...], float(n * h2 * w2))
    _pool2x2_store_padded(y2, pad3, n, h2, w2, c2)

    # ---- layer 3: conv over an 8-wide aligned window; only the first w3 output
    #      columns are valid. BN statistics use a column-validity mask and two
    #      full-tensor reductions; scale/shift/ReLU applied to the whole slab. ----
    acc3 = _conv3x3(pad3, w3_ref, n, h3, wa, c2, c3)           # [n*h3*wa, c3] f32
    col = jax.lax.broadcasted_iota(jnp.int32, acc3.shape, 0) % wa
    validf = (col < w3).astype(jnp.float32)                    # 1.0 on valid columns
    cnt = float(n * h3 * w3)
    mean3 = jnp.sum(acc3 * validf, axis=0, keepdims=True) * (1.0 / cnt)
    d3 = (acc3 - mean3) * validf
    var3 = jnp.sum(d3 * d3, axis=0, keepdims=True) * (1.0 / cnt)
    scale3 = g3_ref[...] * jax.lax.rsqrt(var3 + EPS)
    shift3 = b3_ref[...] - mean3 * scale3
    y3 = jnp.maximum(acc3 * scale3 + shift3, 0.0)              # invalid cols: dropped below

    # ---- FC: batched over n, one [n,c3]x[c3,nout] dot per valid (hh,ww) position.
    #      fc weights were pre-permuted to (h, w, c) column order in the wrapper. ----
    y3b = y3.astype(jnp.bfloat16).reshape(n, h3, wa, c3)       # layout-preserving split
    logits = jnp.zeros((n, nout), jnp.float32)
    for hh in range(h3):
        for ww in range(w3):
            logits = logits + jnp.dot(y3b[:, hh, ww, :], fcw_ref[hh * w3 + ww],
                                      preferred_element_type=jnp.float32)
    logits = logits + fcb_ref[...]

    # ---- batched log-softmax epilogue, single store ----
    m = jnp.max(logits, axis=1, keepdims=True)
    z = logits - m
    lse = jnp.log(jnp.sum(jnp.exp(z), axis=1, keepdims=True))
    out_ref[...] = z - lse


# ---------------- wrapper ----------------

def model_two_forward(x, params):
    n, c0, h1, w1 = x.shape
    h2, w2 = h1 // 2, w1 // 2
    h3, w3 = h2 // 2, w2 // 2
    c1 = params["w1"].shape[0]
    c2 = params["w2"].shape[0]
    c3 = params["w3"].shape[0]
    nout = params["fc_w"].shape[0]

    # Kernel assumes pool-friendly, sublane-aligned spatial dims (true for 16x16).
    assert w1 % 8 == 0 and w2 % 8 == 0 and h1 % 4 == 0 and 0 < w3 <= 8, (h1, w1)

    # One-time layout plumbing on the tiny input / weights (done at trace time).
    x_pad = jnp.pad(jnp.transpose(x, (0, 2, 3, 1)),
                    ((0, 0), (1, 1), (1, 1), (0, 0))).astype(jnp.bfloat16)

    def conv_w(wt):   # OIHW -> [9, Cin, Cout] with index = dh*3 + dw
        co, ci = wt.shape[0], wt.shape[1]
        return jnp.transpose(wt, (2, 3, 1, 0)).reshape(9, ci, co).astype(jnp.bfloat16)

    w1k = conv_w(params["w1"])
    w2k = conv_w(params["w2"])
    w3k = conv_w(params["w3"])
    # fc weight columns are in torch NCHW .view() order (c, h, w); permute once to
    # (h, w, c) so the channels-last activation is consumed without any transpose.
    fcw = (params["fc_w"].reshape(nout, c3, h3, w3)
           .transpose(2, 3, 1, 0).reshape(h3 * w3, c3, nout).astype(jnp.bfloat16))
    fcb = params["fc_b"].reshape(1, nout).astype(jnp.float32)
    g1 = params["g1"].reshape(1, c1).astype(jnp.float32)
    b1 = params["b1"].reshape(1, c1).astype(jnp.float32)
    g2 = params["g2"].reshape(1, c2).astype(jnp.float32)
    b2 = params["b2"].reshape(1, c2).astype(jnp.float32)
    g3 = params["g3"].reshape(1, c3).astype(jnp.float32)
    b3 = params["b3"].reshape(1, c3).astype(jnp.float32)

    wbuf3 = 10  # conv3 reads an 8-wide window starting at dw<=2 -> needs cols 0..9

    inputs = (x_pad, w1k, w2k, w3k, g1, b1, g2, b2, g3, b3, fcw, fcb)

    return pl.pallas_call(
        model_two_kernel,
        out_shape=jax.ShapeDtypeStruct((n, nout), jnp.float32),
        grid=(1,),
        in_specs=[_full_spec(a.shape) for a in inputs],
        out_specs=_full_spec((n, nout)),
        scratch_shapes=[
            pltpu.VMEM((n, h2 + 2, w2 + 2, c1), jnp.bfloat16),   # padded pooled act 1
            pltpu.VMEM((n, h3 + 2, wbuf3, c2), jnp.bfloat16),    # padded pooled act 2
        ],
        # grid=(1,) pins the kernel to one TensorCore; fine for this toy batch.
        compiler_params=pltpu.CompilerParams(dimension_semantics=("arbitrary",)),
    )(*inputs)


# ---------------- pure-JAX f32 reference for correctness check ----------------

def ref_forward(x, params):
    def conv(xx, w):
        return jax.lax.conv_general_dilated(
            xx, w, window_strides=(1, 1), padding=((1, 1), (1, 1)),
            dimension_numbers=("NCHW", "OIHW", "NCHW"))

    def bn(xx, g, b):
        mean = xx.mean(axis=(0, 2, 3), keepdims=True)
        var = ((xx - mean) ** 2).mean(axis=(0, 2, 3), keepdims=True)
        xn = (xx - mean) / jnp.sqrt(var + EPS)
        return xn * g.reshape(1, -1, 1, 1) + b.reshape(1, -1, 1, 1)

    def mp(xx):
        nn, cc, hh, ww = xx.shape
        return xx.reshape(nn, cc, hh // 2, 2, ww // 2, 2).max(axis=(3, 5))

    h = mp(jnp.maximum(bn(conv(x, params["w1"]), params["g1"], params["b1"]), 0.0))
    h = mp(jnp.maximum(bn(conv(h, params["w2"]), params["g2"], params["b2"]), 0.0))
    h = jnp.maximum(bn(conv(h, params["w3"]), params["g3"], params["b3"]), 0.0)
    y = h.reshape(x.shape[0], -1) @ params["fc_w"].T + params["fc_b"]
    return jax.nn.log_softmax(y, axis=1)


# ---------------- main ----------------

if __name__ == "__main__":
    # Small shapes: batch=2, input_channels=4, frame_size=(16,16)
    # -> conv_out dims 4x4, conv_out_dim = 4*4*50 = 800, fc: 800 -> 10.
    key = jax.random.PRNGKey(0)
    kx, k1, k2, k3, k4, k5 = jax.random.split(key, 6)

    x = jax.random.normal(kx, (2, 4, 16, 16), dtype=jnp.float32)

    params = {
        "w1": jax.random.normal(k1, (20, 4, 3, 3), jnp.float32) * 0.1,
        "g1": jnp.ones((20,), jnp.float32), "b1": jnp.zeros((20,), jnp.float32),
        "w2": jax.random.normal(k2, (30, 20, 3, 3), jnp.float32) * 0.1,
        "g2": jnp.ones((30,), jnp.float32), "b2": jnp.zeros((30,), jnp.float32),
        "w3": jax.random.normal(k3, (50, 30, 3, 3), jnp.float32) * 0.1,
        "g3": jnp.ones((50,), jnp.float32), "b3": jnp.zeros((50,), jnp.float32),
        "fc_w": jax.random.normal(k4, (10, 800), jnp.float32) * 0.05,
        "fc_b": jax.random.normal(k5, (10,), jnp.float32) * 0.05,
    }

    out = jax.jit(model_two_forward)(x, params)
    out = jax.block_until_ready(out)
    assert out.shape == (2, 10), out.shape

    ref = jax.block_until_ready(ref_forward(x, params))
    # Kernel uses native bf16 MXU operands (BN stats in f32); reference is pure f32,
    # so allow a slightly wider tolerance on the log-probabilities.
    assert jnp.allclose(out, ref, rtol=2e-2, atol=3e-2), float(jnp.max(jnp.abs(out - ref)))

    print("KERNEL_OK")
</pallas_src>

<mosaic_0001>
module attributes {stable_mosaic.version = 11 : i64} {
  func.func @model_two_kernel(%arg0: i32, %arg1: memref<2x18x18x4xbf16, #tpu.memory_space<vmem>>, %arg2: memref<9x4x20xbf16, #tpu.memory_space<vmem>>, %arg3: memref<9x20x30xbf16, #tpu.memory_space<vmem>>, %arg4: memref<9x30x50xbf16, #tpu.memory_space<vmem>>, %arg5: memref<1x20xf32, #tpu.memory_space<vmem>>, %arg6: memref<1x20xf32, #tpu.memory_space<vmem>>, %arg7: memref<1x30xf32, #tpu.memory_space<vmem>>, %arg8: memref<1x30xf32, #tpu.memory_space<vmem>>, %arg9: memref<1x50xf32, #tpu.memory_space<vmem>>, %arg10: memref<1x50xf32, #tpu.memory_space<vmem>>, %arg11: memref<16x50x10xbf16, #tpu.memory_space<vmem>>, %arg12: memref<1x10xf32, #tpu.memory_space<vmem>>, %arg13: memref<2x10xf32, #tpu.memory_space<vmem>>, %arg14: memref<2x10x10x20xbf16, #tpu.memory_space<vmem>>, %arg15: memref<2x6x10x30xbf16, #tpu.memory_space<vmem>>) attributes {dimension_semantics = [#tpu.dimension_semantics<arbitrary>], iteration_bounds = array<i64: 1>, scalar_prefetch = 0 : i64, scratch_operands = 2 : i64, tpu.core_type = #tpu.core_type<tc>, window_params = [{pipeline_mode = #tpu.pipeline_mode<synchronous>, transform_indices = @transform_0, window_bounds = array<i64: 2, 18, 18, 4>}, {pipeline_mode = #tpu.pipeline_mode<synchronous>, transform_indices = @transform_1, window_bounds = array<i64: 9, 4, 20>}, {pipeline_mode = #tpu.pipeline_mode<synchronous>, transform_indices = @transform_2, window_bounds = array<i64: 9, 20, 30>}, {pipeline_mode = #tpu.pipeline_mode<synchronous>, transform_indices = @transform_3, window_bounds = array<i64: 9, 30, 50>}, {pipeline_mode = #tpu.pipeline_mode<synchronous>, transform_indices = @transform_4, window_bounds = array<i64: 1, 20>}, {pipeline_mode = #tpu.pipeline_mode<synchronous>, transform_indices = @transform_5, window_bounds = array<i64: 1, 20>}, {pipeline_mode = #tpu.pipeline_mode<synchronous>, transform_indices = @transform_6, window_bounds = array<i64: 1, 30>}, {pipeline_mode = #tpu.pipeline_mode<synchronous>, transform_indices = @transform_7, window_bounds = array<i64: 1, 30>}, {pipeline_mode = #tpu.pipeline_mode<synchronous>, transform_indices = @transform_8, window_bounds = array<i64: 1, 50>}, {pipeline_mode = #tpu.pipeline_mode<synchronous>, transform_indices = @transform_9, window_bounds = array<i64: 1, 50>}, {pipeline_mode = #tpu.pipeline_mode<synchronous>, transform_indices = @transform_10, window_bounds = array<i64: 16, 50, 10>}, {pipeline_mode = #tpu.pipeline_mode<synchronous>, transform_indices = @transform_11, window_bounds = array<i64: 1, 10>}, {pipeline_mode = #tpu.pipeline_mode<synchronous>, transform_indices = @transform_12, window_bounds = array<i64: 2, 10>}]} {
    %c0 = arith.constant 0 : index
    %c0_0 = arith.constant 0 : index
    %c0_1 = arith.constant 0 : index
    %c0_2 = arith.constant 0 : index
    %0 = vector.load %arg1[%c0, %c0_0, %c0_1, %c0_2] : memref<2x18x18x4xbf16, #tpu.memory_space<vmem>>, vector<2x18x16x4xbf16>
    %1 = vector.extract_strided_slice %0 {offsets = [0, 0, 0, 0], sizes = [2, 16, 16, 4], strides = [1, 1, 1, 1]} : vector<2x18x16x4xbf16> to vector<2x16x16x4xbf16>
    %2 = vector.shape_cast %1 : vector<2x16x16x4xbf16> to vector<512x4xbf16>
    %c0_3 = arith.constant 0 : index
    %c0_4 = arith.constant 0 : index
    %c0_5 = arith.constant 0 : index
    %3 = vector.load %arg2[%c0_3, %c0_4, %c0_5] : memref<9x4x20xbf16, #tpu.memory_space<vmem>>, vector<1x4x20xbf16>
    %4 = vector.shape_cast %3 : vector<1x4x20xbf16> to vector<4x20xbf16>
    %cst = arith.constant dense<0.000000e+00> : vector<512x20xf32>
    %5 = tpu.matmul %2, %4, %cst {dimension_numbers = #tpu.dot_dimension_numbers<[1], [0], [0], [1], [0, 0, 1, 1], [], []>} : vector<512x4xbf16>, vector<4x20xbf16>, vector<512x20xf32> -> vector<512x20xf32>
    %6 = vector.extract_strided_slice %0 {offsets = [0, 1, 0, 0], sizes = [2, 16, 16, 4], strides = [1, 1, 1, 1]} : vector<2x18x16x4xbf16> to vector<2x16x16x4xbf16>
    %7 = vector.shape_cast %6 : vector<2x16x16x4xbf16> to vector<512x4xbf16>
    %c3 = arith.constant 3 : index
    %c0_6 = arith.constant 0 : index
    %c0_7 = arith.constant 0 : index
    %8 = vector.load %arg2[%c3, %c0_6, %c0_7] : memref<9x4x20xbf16, #tpu.memory_space<vmem>>, vector<1x4x20xbf16>
    %9 = vector.shape_cast %8 : vector<1x4x20xbf16> to vector<4x20xbf16>
    %cst_8 = arith.constant dense<0.000000e+00> : vector<512x20xf32>
    %10 = tpu.matmul %7, %9, %cst_8 {dimension_numbers = #tpu.dot_dimension_numbers<[1], [0], [0], [1], [0, 0, 1, 1], [], []>} : vector<512x4xbf16>, vector<4x20xbf16>, vector<512x20xf32> -> vector<512x20xf32>
    %11 = arith.addf %5, %10 : vector<512x20xf32>
    %12 = vector.extract_strided_slice %0 {offsets = [0, 2, 0, 0], sizes = [2, 16, 16, 4], strides = [1, 1, 1, 1]} : vector<2x18x16x4xbf16> to vector<2x16x16x4xbf16>
    %13 = vector.shape_cast %12 : vector<2x16x16x4xbf16> to vector<512x4xbf16>
    %c6 = arith.constant 6 : index
    %c0_9 = arith.constant 0 : index
    %c0_10 = arith.constant 0 : index
    %14 = vector.load %arg2[%c6, %c0_9, %c0_10] : memref<9x4x20xbf16, #tpu.memory_space<vmem>>, vector<1x4x20xbf16>
    %15 = vector.shape_cast %14 : vector<1x4x20xbf16> to vector<4x20xbf16>
    %cst_11 = arith.constant dense<0.000000e+00> : vector<512x20xf32>
    %16 = tpu.matmul %13, %15, %cst_11 {dimension_numbers = #tpu.dot_dimension_numbers<[1], [0], [0], [1], [0, 0, 1, 1], [], []>} : vector<512x4xbf16>, vector<4x20xbf16>, vector<512x20xf32> -> vector<512x20xf32>
    %17 = arith.addf %11, %16 : vector<512x20xf32>
    %c0_12 = arith.constant 0 : index
    %c0_13 = arith.constant 0 : index
    %c1 = arith.constant 1 : index
    %c0_14 = arith.constant 0 : index
    %18 = vector.load %arg1[%c0_12, %c0_13, %c1, %c0_14] : memref<2x18x18x4xbf16, #tpu.memory_space<vmem>>, vector<2x18x16x4xbf16>
    %19 = vector.extract_strided_slice %18 {offsets = [0, 0, 0, 0], sizes = [2, 16, 16, 4], strides = [1, 1, 1, 1]} : vector<2x18x16x4xbf16> to vector<2x16x16x4xbf16>
    %20 = vector.shape_cast %19 : vector<2x16x16x4xbf16> to vector<512x4xbf16>
    %c1_15 = arith.constant 1 : index
    %c0_16 = arith.constant 0 : index
    %c0_17 = arith.constant 0 : index
    %21 = vector.load %arg2[%c1_15, %c0_16, %c0_17] : memref<9x4x20xbf16, #tpu.memory_space<vmem>>, vector<1x4x20xbf16>
    %22 = vector.shape_cast %21 : vector<1x4x20xbf16> to vector<4x20xbf16>
    %cst_18 = arith.constant dense<0.000000e+00> : vector<512x20xf32>
    %23 = tpu.matmul %20, %22, %cst_18 {dimension_numbers = #tpu.dot_dimension_numbers<[1], [0], [0], [1], [0, 0, 1, 1], [], []>} : vector<512x4xbf16>, vector<4x20xbf16>, vector<512x20xf32> -> vector<512x20xf32>
    %24 = arith.addf %17, %23 : vector<512x20xf32>
    %25 = vector.extract_strided_slice %18 {offsets = [0, 1, 0, 0], sizes = [2, 16, 16, 4], strides = [1, 1, 1, 1]} : vector<2x18x16x4xbf16> to vector<2x16x16x4xbf16>
    %26 = vector.shape_cast %25 : vector<2x16x16x4xbf16> to vector<512x4xbf16>
    %c4 = arith.constant 4 : index
    %c0_19 = arith.constant 0 : index
    %c0_20 = arith.constant 0 : index
    %27 = vector.load %arg2[%c4, %c0_19, %c0_20] : memref<9x4x20xbf16, #tpu.memory_space<vmem>>, vector<1x4x20xbf16>
    %28 = vector.shape_cast %27 : vector<1x4x20xbf16> to vector<4x20xbf16>
    %cst_21 = arith.constant dense<0.000000e+00> : vector<512x20xf32>
    %29 = tpu.matmul %26, %28, %cst_21 {dimension_numbers = #tpu.dot_dimension_numbers<[1], [0], [0], [1], [0, 0, 1, 1], [], []>} : vector<512x4xbf16>, vector<4x20xbf16>, vector<512x20xf32> -> vector<512x20xf32>
    %30 = arith.addf %24, %29 : vector<512x20xf32>
    %31 = vector.extract_strided_slice %18 {offsets = [0, 2, 0, 0], sizes = [2, 16, 16, 4], strides = [1, 1, 1, 1]} : vector<2x18x16x4xbf16> to vector<2x16x16x4xbf16>
    %32 = vector.shape_cast %31 : vector<2x16x16x4xbf16> to vector<512x4xbf16>
    %c7 = arith.constant 7 : index
    %c0_22 = arith.constant 0 : index
    %c0_23 = arith.constant 0 : index
    %33 = vector.load %arg2[%c7, %c0_22, %c0_23] : memref<9x4x20xbf16, #tpu.memory_space<vmem>>, vector<1x4x20xbf16>
    %34 = vector.shape_cast %33 : vector<1x4x20xbf16> to vector<4x20xbf16>
    %cst_24 = arith.constant dense<0.000000e+00> : vector<512x20xf32>
    %35 = tpu.matmul %32, %34, %cst_24 {dimension_numbers = #tpu.dot_dimension_numbers<[1], [0], [0], [1], [0, 0, 1, 1], [], []>} : vector<512x4xbf16>, vector<4x20xbf16>, vector<512x20xf32> -> vector<512x20xf32>
    %36 = arith.addf %30, %35 : vector<512x20xf32>
    %c0_25 = arith.constant 0 : index
    %c0_26 = arith.constant 0 : index
    %c2 = arith.constant 2 : index
    %c0_27 = arith.constant 0 : index
    %37 = vector.load %arg1[%c0_25, %c0_26, %c2, %c0_27] : memref<2x18x18x4xbf16, #tpu.memory_space<vmem>>, vector<2x18x16x4xbf16>
    %38 = vector.extract_strided_slice %37 {offsets = [0, 0, 0, 0], sizes = [2, 16, 16, 4], strides = [1, 1, 1, 1]} : vector<2x18x16x4xbf16> to vector<2x16x16x4xbf16>
    %39 = vector.shape_cast %38 : vector<2x16x16x4xbf16> to vector<512x4xbf16>
    %c2_28 = arith.constant 2 : index
    %c0_29 = arith.constant 0 : index
    %c0_30 = arith.constant 0 : index
    %40 = vector.load %arg2[%c2_28, %c0_29, %c0_30] : memref<9x4x20xbf16, #tpu.memory_space<vmem>>, vector<1x4x20xbf16>
    %41 = vector.shape_cast %40 : vector<1x4x20xbf16> to vector<4x20xbf16>
    %cst_31 = arith.constant dense<0.000000e+00> : vector<512x20xf32>
    %42 = tpu.matmul %39, %41, %cst_31 {dimension_numbers = #tpu.dot_dimension_numbers<[1], [0], [0], [1], [0, 0, 1, 1], [], []>} : vector<512x4xbf16>, vector<4x20xbf16>, vector<512x20xf32> -> vector<512x20xf32>
    %43 = arith.addf %36, %42 : vector<512x20xf32>
    %44 = vector.extract_strided_slice %37 {offsets = [0, 1, 0, 0], sizes = [2, 16, 16, 4], strides = [1, 1, 1, 1]} : vector<2x18x16x4xbf16> to vector<2x16x16x4xbf16>
    %45 = vector.shape_cast %44 : vector<2x16x16x4xbf16> to vector<512x4xbf16>
    %c5 = arith.constant 5 : index
    %c0_32 = arith.constant 0 : index
    %c0_33 = arith.constant 0 : index
    %46 = vector.load %arg2[%c5, %c0_32, %c0_33] : memref<9x4x20xbf16, #tpu.memory_space<vmem>>, vector<1x4x20xbf16>
    %47 = vector.shape_cast %46 : vector<1x4x20xbf16> to vector<4x20xbf16>
    %cst_34 = arith.constant dense<0.000000e+00> : vector<512x20xf32>
    %48 = tpu.matmul %45, %47, %cst_34 {dimension_numbers = #tpu.dot_dimension_numbers<[1], [0], [0], [1], [0, 0, 1, 1], [], []>} : vector<512x4xbf16>, vector<4x20xbf16>, vector<512x20xf32> -> vector<512x20xf32>
    %49 = arith.addf %43, %48 : vector<512x20xf32>
    %50 = vector.extract_strided_slice %37 {offsets = [0, 2, 0, 0], sizes = [2, 16, 16, 4], strides = [1, 1, 1, 1]} : vector<2x18x16x4xbf16> to vector<2x16x16x4xbf16>
    %51 = vector.shape_cast %50 : vector<2x16x16x4xbf16> to vector<512x4xbf16>
    %c8 = arith.constant 8 : index
    %c0_35 = arith.constant 0 : index
    %c0_36 = arith.constant 0 : index
    %52 = vector.load %arg2[%c8, %c0_35, %c0_36] : memref<9x4x20xbf16, #tpu.memory_space<vmem>>, vector<1x4x20xbf16>
    %53 = vector.shape_cast %52 : vector<1x4x20xbf16> to vector<4x20xbf16>
    %cst_37 = arith.constant dense<0.000000e+00> : vector<512x20xf32>
    %54 = tpu.matmul %51, %53, %cst_37 {dimension_numbers = #tpu.dot_dimension_numbers<[1], [0], [0], [1], [0, 0, 1, 1], [], []>} : vector<512x4xbf16>, vector<4x20xbf16>, vector<512x20xf32> -> vector<512x20xf32>
    %55 = arith.addf %49, %54 : vector<512x20xf32>
    %c0_38 = arith.constant 0 : index
    %c0_39 = arith.constant 0 : index
    %56 = vector.load %arg5[%c0_38, %c0_39] : memref<1x20xf32, #tpu.memory_space<vmem>>, vector<1x20xf32>
    %c0_40 = arith.constant 0 : index
    %c0_41 = arith.constant 0 : index
    %57 = vector.load %arg6[%c0_40, %c0_41] : memref<1x20xf32, #tpu.memory_space<vmem>>, vector<1x20xf32>
    %cst_42 = arith.constant dense<0.000000e+00> : vector<20xf32>
    %58 = vector.multi_reduction <add>, %55, %cst_42 [0] : vector<512x20xf32> to vector<20xf32>
    %59 = vector.shape_cast %58 : vector<20xf32> to vector<1x20xf32>
    %cst_43 = arith.constant 0.001953125 : f32
    %60 = vector.broadcast %cst_43 : f32 to vector<1x20xf32>
    %61 = arith.mulf %59, %60 : vector<1x20xf32>
    %62 = vector.broadcast %61 : vector<1x20xf32> to vector<512x20xf32>
    %63 = arith.subf %55, %62 : vector<512x20xf32>
    %64 = arith.mulf %63, %63 : vector<512x20xf32>
    %cst_44 = arith.constant dense<0.000000e+00> : vector<20xf32>
    %65 = vector.multi_reduction <add>, %64, %cst_44 [0] : vector<512x20xf32> to vector<20xf32>
    %66 = vector.shape_cast %65 : vector<20xf32> to vector<1x20xf32>
    %cst_45 = arith.constant 0.001953125 : f32
    %67 = vector.broadcast %cst_45 : f32 to vector<1x20xf32>
    %68 = arith.mulf %66, %67 : vector<1x20xf32>
    %cst_46 = arith.constant 9.99999974E-6 : f32
    %69 = vector.broadcast %cst_46 : f32 to vector<1x20xf32>
    %70 = arith.addf %68, %69 : vector<1x20xf32>
    %71 = math.rsqrt %70 : vector<1x20xf32>
    %72 = arith.mulf %56, %71 : vector<1x20xf32>
    %73 = arith.mulf %61, %72 : vector<1x20xf32>
    %74 = arith.subf %57, %73 : vector<1x20xf32>
    %75 = vector.broadcast %72 : vector<1x20xf32> to vector<512x20xf32>
    %76 = arith.mulf %55, %75 : vector<512x20xf32>
    %77 = vector.broadcast %74 : vector<1x20xf32> to vector<512x20xf32>
    %78 = arith.addf %76, %77 : vector<512x20xf32>
    %cst_47 = arith.constant 0.000000e+00 : f32
    %79 = vector.broadcast %cst_47 : f32 to vector<512x20xf32>
    %80 = arith.maximumf %78, %79 : vector<512x20xf32>
    %81 = vector.shape_cast %80 : vector<512x20xf32> to vector<2x8x2x16x20xf32>
    %82 = vector.extract_strided_slice %81 {offsets = [0, 0, 0, 0, 0], sizes = [2, 8, 1, 16, 20], strides = [1, 1, 1, 1, 1]} : vector<2x8x2x16x20xf32> to vector<2x8x1x16x20xf32>
    %83 = vector.shape_cast %82 : vector<2x8x1x16x20xf32> to vector<2x8x16x20xf32>
    %84 = vector.extract_strided_slice %81 {offsets = [0, 0, 1, 0, 0], sizes = [2, 8, 1, 16, 20], strides = [1, 1, 1, 1, 1]} : vector<2x8x2x16x20xf32> to vector<2x8x1x16x20xf32>
    %85 = vector.shape_cast %84 : vector<2x8x1x16x20xf32> to vector<2x8x16x20xf32>
    %86 = arith.maximumf %83, %85 : vector<2x8x16x20xf32>
    %cst_48 = arith.constant 0.000000e+00 : f32
    %87 = vector.broadcast %cst_48 : f32 to vector<2x8x1x20xf32>
    %88 = vector.extract_strided_slice %86 {offsets = [0, 0, 0, 0], sizes = [2, 8, 1, 20], strides = [1, 1, 1, 1]} : vector<2x8x16x20xf32> to vector<2x8x1x20xf32>
    %89 = vector.extract_strided_slice %86 {offsets = [0, 0, 1, 0], sizes = [2, 8, 1, 20], strides = [1, 1, 1, 1]} : vector<2x8x16x20xf32> to vector<2x8x1x20xf32>
    %90 = arith.maximumf %88, %89 : vector<2x8x1x20xf32>
    %91 = vector.extract_strided_slice %86 {offsets = [0, 0, 2, 0], sizes = [2, 8, 1, 20], strides = [1, 1, 1, 1]} : vector<2x8x16x20xf32> to vector<2x8x1x20xf32>
    %92 = vector.extract_strided_slice %86 {offsets = [0, 0, 3, 0], sizes = [2, 8, 1, 20], strides = [1, 1, 1, 1]} : vector<2x8x16x20xf32> to vector<2x8x1x20xf32>
    %93 = arith.maximumf %91, %92 : vector<2x8x1x20xf32>
    %94 = vector.extract_strided_slice %86 {offsets = [0, 0, 4, 0], sizes = [2, 8, 1, 20], strides = [1, 1, 1, 1]} : vector<2x8x16x20xf32> to vector<2x8x1x20xf32>
    %95 = vector.extract_strided_slice %86 {offsets = [0, 0, 5, 0], sizes = [2, 8, 1, 20], strides = [1, 1, 1, 1]} : vector<2x8x16x20xf32> to vector<2x8x1x20xf32>
    %96 = arith.maximumf %94, %95 : vector<2x8x1x20xf32>
    %97 = vector.extract_strided_slice %86 {offsets = [0, 0, 6, 0], sizes = [2, 8, 1, 20], strides = [1, 1, 1, 1]} : vector<2x8x16x20xf32> to vector<2x8x1x20xf32>
    %98 = vector.extract_strided_slice %86 {offsets = [0, 0, 7, 0], sizes = [2, 8, 1, 20], strides = [1, 1, 1, 1]} : vector<2x8x16x20xf32> to vector<2x8x1x20xf32>
    %99 = arith.maximumf %97, %98 : vector<2x8x1x20xf32>
    %100 = vector.extract_strided_slice %86 {offsets = [0, 0, 8, 0], sizes = [2, 8, 1, 20], strides = [1, 1, 1, 1]} : vector<2x8x16x20xf32> to vector<2x8x1x20xf32>
    %101 = vector.extract_strided_slice %86 {offsets = [0, 0, 9, 0], sizes = [2, 8, 1, 20], strides = [1, 1, 1, 1]} : vector<2x8x16x20xf32> to vector<2x8x1x20xf32>
    %102 = arith.maximumf %100, %101 : vector<2x8x1x20xf32>
    %103 = vector.extract_strided_slice %86 {offsets = [0, 0, 10, 0], sizes = [2, 8, 1, 20], strides = [1, 1, 1, 1]} : vector<2x8x16x20xf32> to vector<2x8x1x20xf32>
    %104 = vector.extract_strided_slice %86 {offsets = [0, 0, 11, 0], sizes = [2, 8, 1, 20], strides = [1, 1, 1, 1]} : vector<2x8x16x20xf32> to vector<2x8x1x20xf32>
    %105 = arith.maximumf %103, %104 : vector<2x8x1x20xf32>
    %106 = vector.extract_strided_slice %86 {offsets = [0, 0, 12, 0], sizes = [2, 8, 1, 20], strides = [1, 1, 1, 1]} : vector<2x8x16x20xf32> to vector<2x8x1x20xf32>
    %107 = vector.extract_strided_slice %86 {offsets = [0, 0, 13, 0], sizes = [2, 8, 1, 20], strides = [1, 1, 1, 1]} : vector<2x8x16x20xf32> to vector<2x8x1x20xf32>
    %108 = arith.maximumf %106, %107 : vector<2x8x1x20xf32>
    %109 = vector.extract_strided_slice %86 {offsets = [0, 0, 14, 0], sizes = [2, 8, 1, 20], strides = [1, 1, 1, 1]} : vector<2x8x16x20xf32> to vector<2x8x1x20xf32>
    %110 = vector.extract_strided_slice %86 {offsets = [0, 0, 15, 0], sizes = [2, 8, 1, 20], strides = [1, 1, 1, 1]} : vector<2x8x16x20xf32> to vector<2x8x1x20xf32>
    %111 = arith.maximumf %109, %110 : vector<2x8x1x20xf32>
    %cst_49 = arith.constant 0.000000e+00 : f32
    %112 = vector.broadcast %cst_49 : f32 to vector<2x8x1x20xf32>
    %113 = tpu.concatenate %87, %90, %93, %96, %99, %102, %105, %108, %111, %112 in 2 : vector<2x8x1x20xf32>, vector<2x8x1x20xf32>, vector<2x8x1x20xf32>, vector<2x8x1x20xf32>, vector<2x8x1x20xf32>, vector<2x8x1x20xf32>, vector<2x8x1x20xf32>, vector<2x8x1x20xf32>, vector<2x8x1x20xf32>, vector<2x8x1x20xf32> -> vector<2x8x10x20xf32>
    %cst_50 = arith.constant 0.000000e+00 : f32
    %114 = vector.broadcast %cst_50 : f32 to vector<2x1x10x20xf32>
    %115 = tpu.concatenate %114, %113, %114 in 1 : vector<2x1x10x20xf32>, vector<2x8x10x20xf32>, vector<2x1x10x20xf32> -> vector<2x10x10x20xf32>
    %116 = arith.truncf %115 : vector<2x10x10x20xf32> to vector<2x10x10x20xbf16>
    %c0_51 = arith.constant 0 : index
    %c0_52 = arith.constant 0 : index
    %c0_53 = arith.constant 0 : index
    %c0_54 = arith.constant 0 : index
    %117 = vector.load %arg14[%c0_51, %c0_52, %c0_53, %c0_54] : memref<2x10x10x20xbf16, #tpu.memory_space<vmem>>, vector<2x10x10x20xbf16>
    tpu.vector_store %arg14[%c0_51, %c0_52, %c0_53, %c0_54], %116 {strides = array<i32>} : memref<2x10x10x20xbf16, #tpu.memory_space<vmem>>, vector<2x10x10x20xbf16>,
    %c0_55 = arith.constant 0 : index
    %c0_56 = arith.constant 0 : index
    %c0_57 = arith.constant 0 : index
    %c0_58 = arith.constant 0 : index
    %118 = vector.load %arg14[%c0_55, %c0_56, %c0_57, %c0_58] : memref<2x10x10x20xbf16, #tpu.memory_space<vmem>>, vector<2x10x8x20xbf16>
    %119 = vector.extract_strided_slice %118 {offsets = [0, 0, 0, 0], sizes = [2, 8, 8, 20], strides = [1, 1, 1, 1]} : vector<2x10x8x20xbf16> to vector<2x8x8x20xbf16>
    %120 = vector.shape_cast %119 : vector<2x8x8x20xbf16> to vector<128x20xbf16>
    %c0_59 = arith.constant 0 : index
    %c0_60 = arith.constant 0 : index
    %c0_61 = arith.constant 0 : index
    %121 = vector.load %arg3[%c0_59, %c0_60, %c0_61] : memref<9x20x30xbf16, #tpu.memory_space<vmem>>, vector<1x20x30xbf16>
    %122 = vector.shape_cast %121 : vector<1x20x30xbf16> to vector<20x30xbf16>
    %cst_62 = arith.constant dense<0.000000e+00> : vector<128x30xf32>
    %123 = tpu.matmul %120, %122, %cst_62 {dimension_numbers = #tpu.dot_dimension_numbers<[1], [0], [0], [1], [0, 0, 1, 1], [], []>} : vector<128x20xbf16>, vector<20x30xbf16>, vector<128x30xf32> -> vector<128x30xf32>
    %124 = vector.extract_strided_slice %118 {offsets = [0, 1, 0, 0], sizes = [2, 8, 8, 20], strides = [1, 1, 1, 1]} : vector<2x10x8x20xbf16> to vector<2x8x8x20xbf16>
    %125 = vector.shape_cast %124 : vector<2x8x8x20xbf16> to vector<128x20xbf16>
    %c3_63 = arith.constant 3 : index
    %c0_64 = arith.constant 0 : index
    %c0_65 = arith.constant 0 : index
    %126 = vector.load %arg3[%c3_63, %c0_64, %c0_65] : memref<9x20x30xbf16, #tpu.memory_space<vmem>>, vector<1x20x30xbf16>
    %127 = vector.shape_cast %126 : vector<1x20x30xbf16> to vector<20x30xbf16>
    %cst_66 = arith.constant dense<0.000000e+00> : vector<128x30xf32>
    %128 = tpu.matmul %125, %127, %cst_66 {dimension_numbers = #tpu.dot_dimension_numbers<[1], [0], [0], [1], [0, 0, 1, 1], [], []>} : vector<128x20xbf16>, vector<20x30xbf16>, vector<128x30xf32> -> vector<128x30xf32>
    %129 = arith.addf %123, %128 : vector<128x30xf32>
    %130 = vector.extract_strided_slice %118 {offsets = [0, 2, 0, 0], sizes = [2, 8, 8, 20], strides = [1, 1, 1, 1]} : vector<2x10x8x20xbf16> to vector<2x8x8x20xbf16>
    %131 = vector.shape_cast %130 : vector<2x8x8x20xbf16> to vector<128x20xbf16>
    %c6_67 = arith.constant 6 : index
    %c0_68 = arith.constant 0 : index
    %c0_69 = arith.constant 0 : index
    %132 = vector.load %arg3[%c6_67, %c0_68, %c0_69] : memref<9x20x30xbf16, #tpu.memory_space<vmem>>, vector<1x20x30xbf16>
    %133 = vector.shape_cast %132 : vector<1x20x30xbf16> to vector<20x30xbf16>
    %cst_70 = arith.constant dense<0.000000e+00> : vector<128x30xf32>
    %134 = tpu.matmul %131, %133, %cst_70 {dimension_numbers = #tpu.dot_dimension_numbers<[1], [0], [0], [1], [0, 0, 1, 1], [], []>} : vector<128x20xbf16>, vector<20x30xbf16>, vector<128x30xf32> -> vector<128x30xf32>
    %135 = arith.addf %129, %134 : vector<128x30xf32>
    %c0_71 = arith.constant 0 : index
    %c0_72 = arith.constant 0 : index
    %c1_73 = arith.constant 1 : index
    %c0_74 = arith.constant 0 : index
    %136 = vector.load %arg14[%c0_71, %c0_72, %c1_73, %c0_74] : memref<2x10x10x20xbf16, #tpu.memory_space<vmem>>, vector<2x10x8x20xbf16>
    %137 = vector.extract_strided_slice %136 {offsets = [0, 0, 0, 0], sizes = [2, 8, 8, 20], strides = [1, 1, 1, 1]} : vector<2x10x8x20xbf16> to vector<2x8x8x20xbf16>
    %138 = vector.shape_cast %137 : vector<2x8x8x20xbf16> to vector<128x20xbf16>
    %c1_75 = arith.constant 1 : index
    %c0_76 = arith.constant 0 : index
    %c0_77 = arith.constant 0 : index
    %139 = vector.load %arg3[%c1_75, %c0_76, %c0_77] : memref<9x20x30xbf16, #tpu.memory_space<vmem>>, vector<1x20x30xbf16>
    %140 = vector.shape_cast %139 : vector<1x20x30xbf16> to vector<20x30xbf16>
    %cst_78 = arith.constant dense<0.000000e+00> : vector<128x30xf32>
    %141 = tpu.matmul %138, %140, %cst_78 {dimension_numbers = #tpu.dot_dimension_numbers<[1], [0], [0], [1], [0, 0, 1, 1], [], []>} : vector<128x20xbf16>, vector<20x30xbf16>, vector<128x30xf32> -> vector<128x30xf32>
    %142 = arith.addf %135, %141 : vector<128x30xf32>
    %143 = vector.extract_strided_slice %136 {offsets = [0, 1, 0, 0], sizes = [2, 8, 8, 20], strides = [1, 1, 1, 1]} : vector<2x10x8x20xbf16> to vector<2x8x8x20xbf16>
    %144 = vector.shape_cast %143 : vector<2x8x8x20xbf16> to vector<128x20xbf16>
    %c4_79 = arith.constant 4 : index
    %c0_80 = arith.constant 0 : index
    %c0_81 = arith.constant 0 : index
    %145 = vector.load %arg3[%c4_79, %c0_80, %c0_81] : memref<9x20x30xbf16, #tpu.memory_space<vmem>>, vector<1x20x30xbf16>
    %146 = vector.shape_cast %145 : vector<1x20x30xbf16> to vector<20x30xbf16>
    %cst_82 = arith.constant dense<0.000000e+00> : vector<128x30xf32>
    %147 = tpu.matmul %144, %146, %cst_82 {dimension_numbers = #tpu.dot_dimension_numbers<[1], [0], [0], [1], [0, 0, 1, 1], [], []>} : vector<128x20xbf16>, vector<20x30xbf16>, vector<128x30xf32> -> vector<128x30xf32>
    %148 = arith.addf %142, %147 : vector<128x30xf32>
    %149 = vector.extract_strided_slice %136 {offsets = [0, 2, 0, 0], sizes = [2, 8, 8, 20], strides = [1, 1, 1, 1]} : vector<2x10x8x20xbf16> to vector<2x8x8x20xbf16>
    %150 = vector.shape_cast %149 : vector<2x8x8x20xbf16> to vector<128x20xbf16>
    %c7_83 = arith.constant 7 : index
    %c0_84 = arith.constant 0 : index
    %c0_85 = arith.constant 0 : index
    %151 = vector.load %arg3[%c7_83, %c0_84, %c0_85] : memref<9x20x30xbf16, #tpu.memory_space<vmem>>, vector<1x20x30xbf16>
    %152 = vector.shape_cast %151 : vector<1x20x30xbf16> to vector<20x30xbf16>
    %cst_86 = arith.constant dense<0.000000e+00> : vector<128x30xf32>
    %153 = tpu.matmul %150, %152, %cst_86 {dimension_numbers = #tpu.dot_dimension_numbers<[1], [0], [0], [1], [0, 0, 1, 1], [], []>} : vector<128x20xbf16>, vector<20x30xbf16>, vector<128x30xf32> -> vector<128x30xf32>
    %154 = arith.addf %148, %153 : vector<128x30xf32>
    %c0_87 = arith.constant 0 : index
    %c0_88 = arith.constant 0 : index
    %c2_89 = arith.constant 2 : index
    %c0_90 = arith.constant 0 : index
    %155 = vector.load %arg14[%c0_87, %c0_88, %c2_89, %c0_90] : memref<2x10x10x20xbf16, #tpu.memory_space<vmem>>, vector<2x10x8x20xbf16>
    %156 = vector.extract_strided_slice %155 {offsets = [0, 0, 0, 0], sizes = [2, 8, 8, 20], strides = [1, 1, 1, 1]} : vector<2x10x8x20xbf16> to vector<2x8x8x20xbf16>
    %157 = vector.shape_cast %156 : vector<2x8x8x20xbf16> to vector<128x20xbf16>
    %c2_91 = arith.constant 2 : index
    %c0_92 = arith.constant 0 : index
    %c0_93 = arith.constant 0 : index
    %158 = vector.load %arg3[%c2_91, %c0_92, %c0_93] : memref<9x20x30xbf16, #tpu.memory_space<vmem>>, vector<1x20x30xbf16>
    %159 = vector.shape_cast %158 : vector<1x20x30xbf16> to vector<20x30xbf16>
    %cst_94 = arith.constant dense<0.000000e+00> : vector<128x30xf32>
    %160 = tpu.matmul %157, %159, %cst_94 {dimension_numbers = #tpu.dot_dimension_numbers<[1], [0], [0], [1], [0, 0, 1, 1], [], []>} : vector<128x20xbf16>, vector<20x30xbf16>, vector<128x30xf32> -> vector<128x30xf32>
    %161 = arith.addf %154, %160 : vector<128x30xf32>
    %162 = vector.extract_strided_slice %155 {offsets = [0, 1, 0, 0], sizes = [2, 8, 8, 20], strides = [1, 1, 1, 1]} : vector<2x10x8x20xbf16> to vector<2x8x8x20xbf16>
    %163 = vector.shape_cast %162 : vector<2x8x8x20xbf16> to vector<128x20xbf16>
    %c5_95 = arith.constant 5 : index
    %c0_96 = arith.constant 0 : index
    %c0_97 = arith.constant 0 : index
    %164 = vector.load %arg3[%c5_95, %c0_96, %c0_97] : memref<9x20x30xbf16, #tpu.memory_space<vmem>>, vector<1x20x30xbf16>
    %165 = vector.shape_cast %164 : vector<1x20x30xbf16> to vector<20x30xbf16>
    %cst_98 = arith.constant dense<0.000000e+00> : vector<128x30xf32>
    %166 = tpu.matmul %163, %165, %cst_98 {dimension_numbers = #tpu.dot_dimension_numbers<[1], [0], [0], [1], [0, 0, 1, 1], [], []>} : vector<128x20xbf16>, vector<20x30xbf16>, vector<128x30xf32> -> vector<128x30xf32>
    %167 = arith.addf %161, %166 : vector<128x30xf32>
    %168 = vector.extract_strided_slice %155 {offsets = [0, 2, 0, 0], sizes = [2, 8, 8, 20], strides = [1, 1, 1, 1]} : vector<2x10x8x20xbf16> to vector<2x8x8x20xbf16>
    %169 = vector.shape_cast %168 : vector<2x8x8x20xbf16> to vector<128x20xbf16>
    %c8_99 = arith.constant 8 : index
    %c0_100 = arith.constant 0 : index
    %c0_101 = arith.constant 0 : index
    %170 = vector.load %arg3[%c8_99, %c0_100, %c0_101] : memref<9x20x30xbf16, #tpu.memory_space<vmem>>, vector<1x20x30xbf16>
    %171 = vector.shape_cast %170 : vector<1x20x30xbf16> to vector<20x30xbf16>
    %cst_102 = arith.constant dense<0.000000e+00> : vector<128x30xf32>
    %172 = tpu.matmul %169, %171, %cst_102 {dimension_numbers = #tpu.dot_dimension_numbers<[1], [0], [0], [1], [0, 0, 1, 1], [], []>} : vector<128x20xbf16>, vector<20x30xbf16>, vector<128x30xf32> -> vector<128x30xf32>
    %173 = arith.addf %167, %172 : vector<128x30xf32>
    %c0_103 = arith.constant 0 : index
    %c0_104 = arith.constant 0 : index
    %174 = vector.load %arg7[%c0_103, %c0_104] : memref<1x30xf32, #tpu.memory_space<vmem>>, vector<1x30xf32>
    %c0_105 = arith.constant 0 : index
    %c0_106 = arith.constant 0 : index
    %175 = vector.load %arg8[%c0_105, %c0_106] : memref<1x30xf32, #tpu.memory_space<vmem>>, vector<1x30xf32>
    %cst_107 = arith.constant dense<0.000000e+00> : vector<30xf32>
    %176 = vector.multi_reduction <add>, %173, %cst_107 [0] : vector<128x30xf32> to vector<30xf32>
    %177 = vector.shape_cast %176 : vector<30xf32> to vector<1x30xf32>
    %cst_108 = arith.constant 7.812500e-03 : f32
    %178 = vector.broadcast %cst_108 : f32 to vector<1x30xf32>
    %179 = arith.mulf %177, %178 : vector<1x30xf32>
    %180 = vector.broadcast %179 : vector<1x30xf32> to vector<128x30xf32>
    %181 = arith.subf %173, %180 : vector<128x30xf32>
    %182 = arith.mulf %181, %181 : vector<128x30xf32>
    %cst_109 = arith.constant dense<0.000000e+00> : vector<30xf32>
    %183 = vector.multi_reduction <add>, %182, %cst_109 [0] : vector<128x30xf32> to vector<30xf32>
    %184 = vector.shape_cast %183 : vector<30xf32> to vector<1x30xf32>
    %cst_110 = arith.constant 7.812500e-03 : f32
    %185 = vector.broadcast %cst_110 : f32 to vector<1x30xf32>
    %186 = arith.mulf %184, %185 : vector<1x30xf32>
    %cst_111 = arith.constant 9.99999974E-6 : f32
    %187 = vector.broadcast %cst_111 : f32 to vector<1x30xf32>
    %188 = arith.addf %186, %187 : vector<1x30xf32>
    %189 = math.rsqrt %188 : vector<1x30xf32>
    %190 = arith.mulf %174, %189 : vector<1x30xf32>
    %191 = arith.mulf %179, %190 : vector<1x30xf32>
    %192 = arith.subf %175, %191 : vector<1x30xf32>
    %193 = vector.broadcast %190 : vector<1x30xf32> to vector<128x30xf32>
    %194 = arith.mulf %173, %193 : vector<128x30xf32>
    %195 = vector.broadcast %192 : vector<1x30xf32> to vector<128x30xf32>
    %196 = arith.addf %194, %195 : vector<128x30xf32>
    %cst_112 = arith.constant 0.000000e+00 : f32
    %197 = vector.broadcast %cst_112 : f32 to vector<128x30xf32>
    %198 = arith.maximumf %196, %197 : vector<128x30xf32>
    %199 = vector.shape_cast %198 : vector<128x30xf32> to vector<2x4x2x8x30xf32>
    %200 = vector.extract_strided_slice %199 {offsets = [0, 0, 0, 0, 0], sizes = [2, 4, 1, 8, 30], strides = [1, 1, 1, 1, 1]} : vector<2x4x2x8x30xf32> to vector<2x4x1x8x30xf32>
    %201 = vector.shape_cast %200 : vector<2x4x1x8x30xf32> to vector<2x4x8x30xf32>
    %202 = vector.extract_strided_slice %199 {offsets = [0, 0, 1, 0, 0], sizes = [2, 4, 1, 8, 30], strides = [1, 1, 1, 1, 1]} : vector<2x4x2x8x30xf32> to vector<2x4x1x8x30xf32>
    %203 = vector.shape_cast %202 : vector<2x4x1x8x30xf32> to vector<2x4x8x30xf32>
    %204 = arith.maximumf %201, %203 : vector<2x4x8x30xf32>
    %cst_113 = arith.constant 0.000000e+00 : f32
    %205 = vector.broadcast %cst_113 : f32 to vector<2x4x1x30xf32>
    %206 = vector.extract_strided_slice %204 {offsets = [0, 0, 0, 0], sizes = [2, 4, 1, 30], strides = [1, 1, 1, 1]} : vector<2x4x8x30xf32> to vector<2x4x1x30xf32>
    %207 = vector.extract_strided_slice %204 {offsets = [0, 0, 1, 0], sizes = [2, 4, 1, 30], strides = [1, 1, 1, 1]} : vector<2x4x8x30xf32> to vector<2x4x1x30xf32>
    %208 = arith.maximumf %206, %207 : vector<2x4x1x30xf32>
    %209 = vector.extract_strided_slice %204 {offsets = [0, 0, 2, 0], sizes = [2, 4, 1, 30], strides = [1, 1, 1, 1]} : vector<2x4x8x30xf32> to vector<2x4x1x30xf32>
    %210 = vector.extract_strided_slice %204 {offsets = [0, 0, 3, 0], sizes = [2, 4, 1, 30], strides = [1, 1, 1, 1]} : vector<2x4x8x30xf32> to vector<2x4x1x30xf32>
    %211 = arith.maximumf %209, %210 : vector<2x4x1x30xf32>
    %212 = vector.extract_strided_slice %204 {offsets = [0, 0, 4, 0], sizes = [2, 4, 1, 30], strides = [1, 1, 1, 1]} : vector<2x4x8x30xf32> to vector<2x4x1x30xf32>
    %213 = vector.extract_strided_slice %204 {offsets = [0, 0, 5, 0], sizes = [2, 4, 1, 30], strides = [1, 1, 1, 1]} : vector<2x4x8x30xf32> to vector<2x4x1x30xf32>
    %214 = arith.maximumf %212, %213 : vector<2x4x1x30xf32>
    %215 = vector.extract_strided_slice %204 {offsets = [0, 0, 6, 0], sizes = [2, 4, 1, 30], strides = [1, 1, 1, 1]} : vector<2x4x8x30xf32> to vector<2x4x1x30xf32>
    %216 = vector.extract_strided_slice %204 {offsets = [0, 0, 7, 0], sizes = [2, 4, 1, 30], strides = [1, 1, 1, 1]} : vector<2x4x8x30xf32> to vector<2x4x1x30xf32>
    %217 = arith.maximumf %215, %216 : vector<2x4x1x30xf32>
    %cst_114 = arith.constant 0.000000e+00 : f32
    %218 = vector.broadcast %cst_114 : f32 to vector<2x4x5x30xf32>
    %219 = tpu.concatenate %205, %208, %211, %214, %217, %218 in 2 : vector<2x4x1x30xf32>, vector<2x4x1x30xf32>, vector<2x4x1x30xf32>, vector<2x4x1x30xf32>, vector<2x4x1x30xf32>, vector<2x4x5x30xf32> -> vector<2x4x10x30xf32>
    %cst_115 = arith.constant 0.000000e+00 : f32
    %220 = vector.broadcast %cst_115 : f32 to vector<2x1x10x30xf32>
    %221 = tpu.concatenate %220, %219, %220 in 1 : vector<2x1x10x30xf32>, vector<2x4x10x30xf32>, vector<2x1x10x30xf32> -> vector<2x6x10x30xf32>
    %222 = arith.truncf %221 : vector<2x6x10x30xf32> to vector<2x6x10x30xbf16>
    %c0_116 = arith.constant 0 : index
    %c0_117 = arith.constant 0 : index
    %c0_118 = arith.constant 0 : index
    %c0_119 = arith.constant 0 : index
    %223 = vector.load %arg15[%c0_116, %c0_117, %c0_118, %c0_119] : memref<2x6x10x30xbf16, #tpu.memory_space<vmem>>, vector<2x6x10x30xbf16>
    tpu.vector_store %arg15[%c0_116, %c0_117, %c0_118, %c0_119], %222 {strides = array<i32>} : memref<2x6x10x30xbf16, #tpu.memory_space<vmem>>, vector<2x6x10x30xbf16>,
    %c0_120 = arith.constant 0 : index
    %c0_121 = arith.constant 0 : index
    %c0_122 = arith.constant 0 : index
    %c0_123 = arith.constant 0 : index
    %224 = vector.load %arg15[%c0_120, %c0_121, %c0_122, %c0_123] : memref<2x6x10x30xbf16, #tpu.memory_space<vmem>>, vector<2x6x8x30xbf16>
    %225 = vector.extract_strided_slice %224 {offsets = [0, 0, 0, 0], sizes = [2, 4, 8, 30], strides = [1, 1, 1, 1]} : vector<2x6x8x30xbf16> to vector<2x4x8x30xbf16>
    %226 = vector.shape_cast %225 : vector<2x4x8x30xbf16> to vector<64x30xbf16>
    %c0_124 = arith.constant 0 : index
    %c0_125 = arith.constant 0 : index
    %c0_126 = arith.constant 0 : index
    %227 = vector.load %arg4[%c0_124, %c0_125, %c0_126] : memref<9x30x50xbf16, #tpu.memory_space<vmem>>, vector<1x30x50xbf16>
    %228 = vector.shape_cast %227 : vector<1x30x50xbf16> to vector<30x50xbf16>
    %cst_127 = arith.constant dense<0.000000e+00> : vector<64x50xf32>
    %229 = tpu.matmul %226, %228, %cst_127 {dimension_numbers = #tpu.dot_dimension_numbers<[1], [0], [0], [1], [0, 0, 1, 1], [], []>} : vector<64x30xbf16>, vector<30x50xbf16>, vector<64x50xf32> -> vector<64x50xf32>
    %230 = vector.extract_strided_slice %224 {offsets = [0, 1, 0, 0], sizes = [2, 4, 8, 30], strides = [1, 1, 1, 1]} : vector<2x6x8x30xbf16> to vector<2x4x8x30xbf16>
    %231 = vector.shape_cast %230 : vector<2x4x8x30xbf16> to vector<64x30xbf16>
    %c3_128 = arith.constant 3 : index
    %c0_129 = arith.constant 0 : index
    %c0_130 = arith.constant 0 : index
    %232 = vector.load %arg4[%c3_128, %c0_129, %c0_130] : memref<9x30x50xbf16, #tpu.memory_space<vmem>>, vector<1x30x50xbf16>
    %233 = vector.shape_cast %232 : vector<1x30x50xbf16> to vector<30x50xbf16>
    %cst_131 = arith.constant dense<0.000000e+00> : vector<64x50xf32>
    %234 = tpu.matmul %231, %233, %cst_131 {dimension_numbers = #tpu.dot_dimension_numbers<[1], [0], [0], [1], [0, 0, 1, 1], [], []>} : vector<64x30xbf16>, vector<30x50xbf16>, vector<64x50xf32> -> vector<64x50xf32>
    %235 = arith.addf %229, %234 : vector<64x50xf32>
    %236 = vector.extract_strided_slice %224 {offsets = [0, 2, 0, 0], sizes = [2, 4, 8, 30], strides = [1, 1, 1, 1]} : vector<2x6x8x30xbf16> to vector<2x4x8x30xbf16>
    %237 = vector.shape_cast %236 : vector<2x4x8x30xbf16> to vector<64x30xbf16>
    %c6_132 = arith.constant 6 : index
    %c0_133 = arith.constant 0 : index
    %c0_134 = arith.constant 0 : index
    %238 = vector.load %arg4[%c6_132, %c0_133, %c0_134] : memref<9x30x50xbf16, #tpu.memory_space<vmem>>, vector<1x30x50xbf16>
    %239 = vector.shape_cast %238 : vector<1x30x50xbf16> to vector<30x50xbf16>
    %cst_135 = arith.constant dense<0.000000e+00> : vector<64x50xf32>
    %240 = tpu.matmul %237, %239, %cst_135 {dimension_numbers = #tpu.dot_dimension_numbers<[1], [0], [0], [1], [0, 0, 1, 1], [], []>} : vector<64x30xbf16>, vector<30x50xbf16>, vector<64x50xf32> -> vector<64x50xf32>
    %241 = arith.addf %235, %240 : vector<64x50xf32>
    %c0_136 = arith.constant 0 : index
    %c0_137 = arith.constant 0 : index
    %c1_138 = arith.constant 1 : index
    %c0_139 = arith.constant 0 : index
    %242 = vector.load %arg15[%c0_136, %c0_137, %c1_138, %c0_139] : memref<2x6x10x30xbf16, #tpu.memory_space<vmem>>, vector<2x6x8x30xbf16>
    %243 = vector.extract_strided_slice %242 {offsets = [0, 0, 0, 0], sizes = [2, 4, 8, 30], strides = [1, 1, 1, 1]} : vector<2x6x8x30xbf16> to vector<2x4x8x30xbf16>
    %244 = vector.shape_cast %243 : vector<2x4x8x30xbf16> to vector<64x30xbf16>
    %c1_140 = arith.constant 1 : index
    %c0_141 = arith.constant 0 : index
    %c0_142 = arith.constant 0 : index
    %245 = vector.load %arg4[%c1_140, %c0_141, %c0_142] : memref<9x30x50xbf16, #tpu.memory_space<vmem>>, vector<1x30x50xbf16>
    %246 = vector.shape_cast %245 : vector<1x30x50xbf16> to vector<30x50xbf16>
    %cst_143 = arith.constant dense<0.000000e+00> : vector<64x50xf32>
    %247 = tpu.matmul %244, %246, %cst_143 {dimension_numbers = #tpu.dot_dimension_numbers<[1], [0], [0], [1], [0, 0, 1, 1], [], []>} : vector<64x30xbf16>, vector<30x50xbf16>, vector<64x50xf32> -> vector<64x50xf32>
    %248 = arith.addf %241, %247 : vector<64x50xf32>
    %249 = vector.extract_strided_slice %242 {offsets = [0, 1, 0, 0], sizes = [2, 4, 8, 30], strides = [1, 1, 1, 1]} : vector<2x6x8x30xbf16> to vector<2x4x8x30xbf16>
    %250 = vector.shape_cast %249 : vector<2x4x8x30xbf16> to vector<64x30xbf16>
    %c4_144 = arith.constant 4 : index
    %c0_145 = arith.constant 0 : index
    %c0_146 = arith.constant 0 : index
    %251 = vector.load %arg4[%c4_144, %c0_145, %c0_146] : memref<9x30x50xbf16, #tpu.memory_space<vmem>>, vector<1x30x50xbf16>
    %252 = vector.shape_cast %251 : vector<1x30x50xbf16> to vector<30x50xbf16>
    %cst_147 = arith.constant dense<0.000000e+00> : vector<64x50xf32>
    %253 = tpu.matmul %250, %252, %cst_147 {dimension_numbers = #tpu.dot_dimension_numbers<[1], [0], [0], [1], [0, 0, 1, 1], [], []>} : vector<64x30xbf16>, vector<30x50xbf16>, vector<64x50xf32> -> vector<64x50xf32>
    %254 = arith.addf %248, %253 : vector<64x50xf32>
    %255 = vector.extract_strided_slice %242 {offsets = [0, 2, 0, 0], sizes = [2, 4, 8, 30], strides = [1, 1, 1, 1]} : vector<2x6x8x30xbf16> to vector<2x4x8x30xbf16>
    %256 = vector.shape_cast %255 : vector<2x4x8x30xbf16> to vector<64x30xbf16>
    %c7_148 = arith.constant 7 : index
    %c0_149 = arith.constant 0 : index
    %c0_150 = arith.constant 0 : index
    %257 = vector.load %arg4[%c7_148, %c0_149, %c0_150] : memref<9x30x50xbf16, #tpu.memory_space<vmem>>, vector<1x30x50xbf16>
    %258 = vector.shape_cast %257 : vector<1x30x50xbf16> to vector<30x50xbf16>
    %cst_151 = arith.constant dense<0.000000e+00> : vector<64x50xf32>
    %259 = tpu.matmul %256, %258, %cst_151 {dimension_numbers = #tpu.dot_dimension_numbers<[1], [0], [0], [1], [0, 0, 1, 1], [], []>} : vector<64x30xbf16>, vector<30x50xbf16>, vector<64x50xf32> -> vector<64x50xf32>
    %260 = arith.addf %254, %259 : vector<64x50xf32>
    %c0_152 = arith.constant 0 : index
    %c0_153 = arith.constant 0 : index
    %c2_154 = arith.constant 2 : index
    %c0_155 = arith.constant 0 : index
    %261 = vector.load %arg15[%c0_152, %c0_153, %c2_154, %c0_155] : memref<2x6x10x30xbf16, #tpu.memory_space<vmem>>, vector<2x6x8x30xbf16>
    %262 = vector.extract_strided_slice %261 {offsets = [0, 0, 0, 0], sizes = [2, 4, 8, 30], strides = [1, 1, 1, 1]} : vector<2x6x8x30xbf16> to vector<2x4x8x30xbf16>
    %263 = vector.shape_cast %262 : vector<2x4x8x30xbf16> to vector<64x30xbf16>
    %c2_156 = arith.constant 2 : index
    %c0_157 = arith.constant 0 : index
    %c0_158 = arith.constant 0 : index
    %264 = vector.load %arg4[%c2_156, %c0_157, %c0_158] : memref<9x30x50xbf16, #tpu.memory_space<vmem>>, vector<1x30x50xbf16>
    %265 = vector.shape_cast %264 : vector<1x30x50xbf16> to vector<30x50xbf16>
    %cst_159 = arith.constant dense<0.000000e+00> : vector<64x50xf32>
    %266 = tpu.matmul %263, %265, %cst_159 {dimension_numbers = #tpu.dot_dimension_numbers<[1], [0], [0], [1], [0, 0, 1, 1], [], []>} : vector<64x30xbf16>, vector<30x50xbf16>, vector<64x50xf32> -> vector<64x50xf32>
    %267 = arith.addf %260, %266 : vector<64x50xf32>
    %268 = vector.extract_strided_slice %261 {offsets = [0, 1, 0, 0], sizes = [2, 4, 8, 30], strides = [1, 1, 1, 1]} : vector<2x6x8x30xbf16> to vector<2x4x8x30xbf16>
    %269 = vector.shape_cast %268 : vector<2x4x8x30xbf16> to vector<64x30xbf16>
    %c5_160 = arith.constant 5 : index
    %c0_161 = arith.constant 0 : index
    %c0_162 = arith.constant 0 : index
    %270 = vector.load %arg4[%c5_160, %c0_161, %c0_162] : memref<9x30x50xbf16, #tpu.memory_space<vmem>>, vector<1x30x50xbf16>
    %271 = vector.shape_cast %270 : vector<1x30x50xbf16> to vector<30x50xbf16>
    %cst_163 = arith.constant dense<0.000000e+00> : vector<64x50xf32>
    %272 = tpu.matmul %269, %271, %cst_163 {dimension_numbers = #tpu.dot_dimension_numbers<[1], [0], [0], [1], [0, 0, 1, 1], [], []>} : vector<64x30xbf16>, vector<30x50xbf16>, vector<64x50xf32> -> vector<64x50xf32>
    %273 = arith.addf %267, %272 : vector<64x50xf32>
    %274 = vector.extract_strided_slice %261 {offsets = [0, 2, 0, 0], sizes = [2, 4, 8, 30], strides = [1, 1, 1, 1]} : vector<2x6x8x30xbf16> to vector<2x4x8x30xbf16>
    %275 = vector.shape_cast %274 : vector<2x4x8x30xbf16> to vector<64x30xbf16>
    %c8_164 = arith.constant 8 : index
    %c0_165 = arith.constant 0 : index
    %c0_166 = arith.constant 0 : index
    %276 = vector.load %arg4[%c8_164, %c0_165, %c0_166] : memref<9x30x50xbf16, #tpu.memory_space<vmem>>, vector<1x30x50xbf16>
    %277 = vector.shape_cast %276 : vector<1x30x50xbf16> to vector<30x50xbf16>
    %cst_167 = arith.constant dense<0.000000e+00> : vector<64x50xf32>
    %278 = tpu.matmul %275, %277, %cst_167 {dimension_numbers = #tpu.dot_dimension_numbers<[1], [0], [0], [1], [0, 0, 1, 1], [], []>} : vector<64x30xbf16>, vector<30x50xbf16>, vector<64x50xf32> -> vector<64x50xf32>
    %279 = arith.addf %273, %278 : vector<64x50xf32>
    %280 = tpu.iota {dimensions = array<i32: 0>} : vector<64x50xi32>
    %c8_i32 = arith.constant 8 : i32
    %c0_i32 = arith.constant 0 : i32
    %281 = arith.cmpi eq, %c8_i32, %c0_i32 : i32
    %c1_i32 = arith.constant 1 : i32
    %282 = arith.select %281, %c1_i32, %c8_i32 : i32
    %283 = vector.broadcast %282 : i32 to vector<64x50xi32>
    %284 = arith.remsi %280, %283 : vector<64x50xi32>
    %c0_i32_168 = arith.constant 0 : i32
    %285 = vector.broadcast %c0_i32_168 : i32 to vector<64x50xi32>
    %286 = arith.cmpi ne, %284, %285 : vector<64x50xi32>
    %c0_i32_169 = arith.constant 0 : i32
    %287 = vector.broadcast %c0_i32_169 : i32 to vector<64x50xi32>
    %288 = arith.cmpi slt, %284, %287 : vector<64x50xi32>
    %c0_i32_170 = arith.constant 0 : i32
    %289 = arith.cmpi slt, %282, %c0_i32_170 : i32
    %290 = vector.broadcast %289 : i1 to vector<64x50xi1>
    %291 = vector.broadcast %290 : vector<64x50xi1> to vector<64x50xi1>
    %292 = arith.xori %288, %291 : vector<64x50xi1>
    %293 = arith.andi %292, %286 : vector<64x50xi1>
    %294 = vector.broadcast %282 : i32 to vector<64x50xi32>
    %295 = arith.addi %284, %294 : vector<64x50xi32>
    %296 = arith.select %293, %295, %284 : vector<64x50xi1>, vector<64x50xi32>
    %c4_i32 = arith.constant 4 : i32
    %297 = vector.broadcast %c4_i32 : i32 to vector<64x50xi32>
    %298 = arith.cmpi slt, %296, %297 : vector<64x50xi32>
    %299 = arith.extui %298 : vector<64x50xi1> to vector<64x50xi32>
    %300 = arith.sitofp %299 : vector<64x50xi32> to vector<64x50xf32>
    %301 = arith.mulf %279, %300 : vector<64x50xf32>
    %cst_171 = arith.constant dense<0.000000e+00> : vector<50xf32>
    %302 = vector.multi_reduction <add>, %301, %cst_171 [0] : vector<64x50xf32> to vector<50xf32>
    %303 = vector.shape_cast %302 : vector<50xf32> to vector<1x50xf32>
    %cst_172 = arith.constant 3.125000e-02 : f32
    %304 = vector.broadcast %cst_172 : f32 to vector<1x50xf32>
    %305 = arith.mulf %303, %304 : vector<1x50xf32>
    %306 = vector.broadcast %305 : vector<1x50xf32> to vector<64x50xf32>
    %307 = arith.subf %279, %306 : vector<64x50xf32>
    %308 = arith.mulf %307, %300 : vector<64x50xf32>
    %309 = arith.mulf %308, %308 : vector<64x50xf32>
    %cst_173 = arith.constant dense<0.000000e+00> : vector<50xf32>
    %310 = vector.multi_reduction <add>, %309, %cst_173 [0] : vector<64x50xf32> to vector<50xf32>
    %311 = vector.shape_cast %310 : vector<50xf32> to vector<1x50xf32>
    %cst_174 = arith.constant 3.125000e-02 : f32
    %312 = vector.broadcast %cst_174 : f32 to vector<1x50xf32>
    %313 = arith.mulf %311, %312 : vector<1x50xf32>
    %c0_175 = arith.constant 0 : index
    %c0_176 = arith.constant 0 : index
    %314 = vector.load %arg9[%c0_175, %c0_176] : memref<1x50xf32, #tpu.memory_space<vmem>>, vector<1x50xf32>
    %cst_177 = arith.constant 9.99999974E-6 : f32
    %315 = vector.broadcast %cst_177 : f32 to vector<1x50xf32>
    %316 = arith.addf %313, %315 : vector<1x50xf32>
    %317 = math.rsqrt %316 : vector<1x50xf32>
    %318 = arith.mulf %314, %317 : vector<1x50xf32>
    %c0_178 = arith.constant 0 : index
    %c0_179 = arith.constant 0 : index
    %319 = vector.load %arg10[%c0_178, %c0_179] : memref<1x50xf32, #tpu.memory_space<vmem>>, vector<1x50xf32>
    %320 = arith.mulf %305, %318 : vector<1x50xf32>
    %321 = arith.subf %319, %320 : vector<1x50xf32>
    %322 = vector.broadcast %318 : vector<1x50xf32> to vector<64x50xf32>
    %323 = arith.mulf %279, %322 : vector<64x50xf32>
    %324 = vector.broadcast %321 : vector<1x50xf32> to vector<64x50xf32>
    %325 = arith.addf %323, %324 : vector<64x50xf32>
    %cst_180 = arith.constant 0.000000e+00 : f32
    %326 = vector.broadcast %cst_180 : f32 to vector<64x50xf32>
    %327 = arith.maximumf %325, %326 : vector<64x50xf32>
    %328 = arith.truncf %327 : vector<64x50xf32> to vector<64x50xbf16>
    %329 = vector.shape_cast %328 : vector<64x50xbf16> to vector<2x4x8x50xbf16>
    %cst_181 = arith.constant 0.000000e+00 : f32
    %330 = vector.broadcast %cst_181 : f32 to vector<2x10xf32>
    %331 = vector.extract_strided_slice %329 {offsets = [0, 0, 0, 0], sizes = [2, 1, 1, 50], strides = [1, 1, 1, 1]} : vector<2x4x8x50xbf16> to vector<2x1x1x50xbf16>
    %332 = vector.shape_cast %331 : vector<2x1x1x50xbf16> to vector<2x50xbf16>
    %c0_182 = arith.constant 0 : index
    %c0_183 = arith.constant 0 : index
    %c0_184 = arith.constant 0 : index
    %333 = vector.load %arg11[%c0_182, %c0_183, %c0_184] : memref<16x50x10xbf16, #tpu.memory_space<vmem>>, vector<1x50x10xbf16>
    %334 = vector.shape_cast %333 : vector<1x50x10xbf16> to vector<50x10xbf16>
    %cst_185 = arith.constant dense<0.000000e+00> : vector<2x10xf32>
    %335 = tpu.matmul %332, %334, %cst_185 {dimension_numbers = #tpu.dot_dimension_numbers<[1], [0], [0], [1], [0, 0, 1, 1], [], []>} : vector<2x50xbf16>, vector<50x10xbf16>, vector<2x10xf32> -> vector<2x10xf32>
    %336 = arith.addf %330, %335 : vector<2x10xf32>
    %337 = vector.extract_strided_slice %329 {offsets = [0, 0, 1, 0], sizes = [2, 1, 1, 50], strides = [1, 1, 1, 1]} : vector<2x4x8x50xbf16> to vector<2x1x1x50xbf16>
    %338 = vector.shape_cast %337 : vector<2x1x1x50xbf16> to vector<2x50xbf16>
    %c1_186 = arith.constant 1 : index
    %c0_187 = arith.constant 0 : index
    %c0_188 = arith.constant 0 : index
    %339 = vector.load %arg11[%c1_186, %c0_187, %c0_188] : memref<16x50x10xbf16, #tpu.memory_space<vmem>>, vector<1x50x10xbf16>
    %340 = vector.shape_cast %339 : vector<1x50x10xbf16> to vector<50x10xbf16>
    %cst_189 = arith.constant dense<0.000000e+00> : vector<2x10xf32>
    %341 = tpu.matmul %338, %340, %cst_189 {dimension_numbers = #tpu.dot_dimension_numbers<[1], [0], [0], [1], [0, 0, 1, 1], [], []>} : vector<2x50xbf16>, vector<50x10xbf16>, vector<2x10xf32> -> vector<2x10xf32>
    %342 = arith.addf %336, %341 : vector<2x10xf32>
    %343 = vector.extract_strided_slice %329 {offsets = [0, 0, 2, 0], sizes = [2, 1, 1, 50], strides = [1, 1, 1, 1]} : vector<2x4x8x50xbf16> to vector<2x1x1x50xbf16>
    %344 = vector.shape_cast %343 : vector<2x1x1x50xbf16> to vector<2x50xbf16>
    %c2_190 = arith.constant 2 : index
    %c0_191 = arith.constant 0 : index
    %c0_192 = arith.constant 0 : index
    %345 = vector.load %arg11[%c2_190, %c0_191, %c0_192] : memref<16x50x10xbf16, #tpu.memory_space<vmem>>, vector<1x50x10xbf16>
    %346 = vector.shape_cast %345 : vector<1x50x10xbf16> to vector<50x10xbf16>
    %cst_193 = arith.constant dense<0.000000e+00> : vector<2x10xf32>
    %347 = tpu.matmul %344, %346, %cst_193 {dimension_numbers = #tpu.dot_dimension_numbers<[1], [0], [0], [1], [0, 0, 1, 1], [], []>} : vector<2x50xbf16>, vector<50x10xbf16>, vector<2x10xf32> -> vector<2x10xf32>
    %348 = arith.addf %342, %347 : vector<2x10xf32>
    %349 = vector.extract_strided_slice %329 {offsets = [0, 0, 3, 0], sizes = [2, 1, 1, 50], strides = [1, 1, 1, 1]} : vector<2x4x8x50xbf16> to vector<2x1x1x50xbf16>
    %350 = vector.shape_cast %349 : vector<2x1x1x50xbf16> to vector<2x50xbf16>
    %c3_194 = arith.constant 3 : index
    %c0_195 = arith.constant 0 : index
    %c0_196 = arith.constant 0 : index
    %351 = vector.load %arg11[%c3_194, %c0_195, %c0_196] : memref<16x50x10xbf16, #tpu.memory_space<vmem>>, vector<1x50x10xbf16>
    %352 = vector.shape_cast %351 : vector<1x50x10xbf16> to vector<50x10xbf16>
    %cst_197 = arith.constant dense<0.000000e+00> : vector<2x10xf32>
    %353 = tpu.matmul %350, %352, %cst_197 {dimension_numbers = #tpu.dot_dimension_numbers<[1], [0], [0], [1], [0, 0, 1, 1], [], []>} : vector<2x50xbf16>, vector<50x10xbf16>, vector<2x10xf32> -> vector<2x10xf32>
    %354 = arith.addf %348, %353 : vector<2x10xf32>
    %355 = vector.extract_strided_slice %329 {offsets = [0, 1, 0, 0], sizes = [2, 1, 1, 50], strides = [1, 1, 1, 1]} : vector<2x4x8x50xbf16> to vector<2x1x1x50xbf16>
    %356 = vector.shape_cast %355 : vector<2x1x1x50xbf16> to vector<2x50xbf16>
    %c4_198 = arith.constant 4 : index
    %c0_199 = arith.constant 0 : index
    %c0_200 = arith.constant 0 : index
    %357 = vector.load %arg11[%c4_198, %c0_199, %c0_200] : memref<16x50x10xbf16, #tpu.memory_space<vmem>>, vector<1x50x10xbf16>
    %358 = vector.shape_cast %357 : vector<1x50x10xbf16> to vector<50x10xbf16>
    %cst_201 = arith.constant dense<0.000000e+00> : vector<2x10xf32>
    %359 = tpu.matmul %356, %358, %cst_201 {dimension_numbers = #tpu.dot_dimension_numbers<[1], [0], [0], [1], [0, 0, 1, 1], [], []>} : vector<2x50xbf16>, vector<50x10xbf16>, vector<2x10xf32> -> vector<2x10xf32>
    %360 = arith.addf %354, %359 : vector<2x10xf32>
    %361 = vector.extract_strided_slice %329 {offsets = [0, 1, 1, 0], sizes = [2, 1, 1, 50], strides = [1, 1, 1, 1]} : vector<2x4x8x50xbf16> to vector<2x1x1x50xbf16>
    %362 = vector.shape_cast %361 : vector<2x1x1x50xbf16> to vector<2x50xbf16>
    %c5_202 = arith.constant 5 : index
    %c0_203 = arith.constant 0 : index
    %c0_204 = arith.constant 0 : index
    %363 = vector.load %arg11[%c5_202, %c0_203, %c0_204] : memref<16x50x10xbf16, #tpu.memory_space<vmem>>, vector<1x50x10xbf16>
    %364 = vector.shape_cast %363 : vector<1x50x10xbf16> to vector<50x10xbf16>
    %cst_205 = arith.constant dense<0.000000e+00> : vector<2x10xf32>
    %365 = tpu.matmul %362, %364, %cst_205 {dimension_numbers = #tpu.dot_dimension_numbers<[1], [0], [0], [1], [0, 0, 1, 1], [], []>} : vector<2x50xbf16>, vector<50x10xbf16>, vector<2x10xf32> -> vector<2x10xf32>
    %366 = arith.addf %360, %365 : vector<2x10xf32>
    %367 = vector.extract_strided_slice %329 {offsets = [0, 1, 2, 0], sizes = [2, 1, 1, 50], strides = [1, 1, 1, 1]} : vector<2x4x8x50xbf16> to vector<2x1x1x50xbf16>
    %368 = vector.shape_cast %367 : vector<2x1x1x50xbf16> to vector<2x50xbf16>
    %c6_206 = arith.constant 6 : index
    %c0_207 = arith.constant 0 : index
    %c0_208 = arith.constant 0 : index
    %369 = vector.load %arg11[%c6_206, %c0_207, %c0_208] : memref<16x50x10xbf16, #tpu.memory_space<vmem>>, vector<1x50x10xbf16>
    %370 = vector.shape_cast %369 : vector<1x50x10xbf16> to vector<50x10xbf16>
    %cst_209 = arith.constant dense<0.000000e+00> : vector<2x10xf32>
    %371 = tpu.matmul %368, %370, %cst_209 {dimension_numbers = #tpu.dot_dimension_numbers<[1], [0], [0], [1], [0, 0, 1, 1], [], []>} : vector<2x50xbf16>, vector<50x10xbf16>, vector<2x10xf32> -> vector<2x10xf32>
    %372 = arith.addf %366, %371 : vector<2x10xf32>
    %373 = vector.extract_strided_slice %329 {offsets = [0, 1, 3, 0], sizes = [2, 1, 1, 50], strides = [1, 1, 1, 1]} : vector<2x4x8x50xbf16> to vector<2x1x1x50xbf16>
    %374 = vector.shape_cast %373 : vector<2x1x1x50xbf16> to vector<2x50xbf16>
    %c7_210 = arith.constant 7 : index
    %c0_211 = arith.constant 0 : index
    %c0_212 = arith.constant 0 : index
    %375 = vector.load %arg11[%c7_210, %c0_211, %c0_212] : memref<16x50x10xbf16, #tpu.memory_space<vmem>>, vector<1x50x10xbf16>
    %376 = vector.shape_cast %375 : vector<1x50x10xbf16> to vector<50x10xbf16>
    %cst_213 = arith.constant dense<0.000000e+00> : vector<2x10xf32>
    %377 = tpu.matmul %374, %376, %cst_213 {dimension_numbers = #tpu.dot_dimension_numbers<[1], [0], [0], [1], [0, 0, 1, 1], [], []>} : vector<2x50xbf16>, vector<50x10xbf16>, vector<2x10xf32> -> vector<2x10xf32>
    %378 = arith.addf %372, %377 : vector<2x10xf32>
    %379 = vector.extract_strided_slice %329 {offsets = [0, 2, 0, 0], sizes = [2, 1, 1, 50], strides = [1, 1, 1, 1]} : vector<2x4x8x50xbf16> to vector<2x1x1x50xbf16>
    %380 = vector.shape_cast %379 : vector<2x1x1x50xbf16> to vector<2x50xbf16>
    %c8_214 = arith.constant 8 : index
    %c0_215 = arith.constant 0 : index
    %c0_216 = arith.constant 0 : index
    %381 = vector.load %arg11[%c8_214, %c0_215, %c0_216] : memref<16x50x10xbf16, #tpu.memory_space<vmem>>, vector<1x50x10xbf16>
    %382 = vector.shape_cast %381 : vector<1x50x10xbf16> to vector<50x10xbf16>
    %cst_217 = arith.constant dense<0.000000e+00> : vector<2x10xf32>
    %383 = tpu.matmul %380, %382, %cst_217 {dimension_numbers = #tpu.dot_dimension_numbers<[1], [0], [0], [1], [0, 0, 1, 1], [], []>} : vector<2x50xbf16>, vector<50x10xbf16>, vector<2x10xf32> -> vector<2x10xf32>
    %384 = arith.addf %378, %383 : vector<2x10xf32>
    %385 = vector.extract_strided_slice %329 {offsets = [0, 2, 1, 0], sizes = [2, 1, 1, 50], strides = [1, 1, 1, 1]} : vector<2x4x8x50xbf16> to vector<2x1x1x50xbf16>
    %386 = vector.shape_cast %385 : vector<2x1x1x50xbf16> to vector<2x50xbf16>
    %c9 = arith.constant 9 : index
    %c0_218 = arith.constant 0 : index
    %c0_219 = arith.constant 0 : index
    %387 = vector.load %arg11[%c9, %c0_218, %c0_219] : memref<16x50x10xbf16, #tpu.memory_space<vmem>>, vector<1x50x10xbf16>
    %388 = vector.shape_cast %387 : vector<1x50x10xbf16> to vector<50x10xbf16>
    %cst_220 = arith.constant dense<0.000000e+00> : vector<2x10xf32>
    %389 = tpu.matmul %386, %388, %cst_220 {dimension_numbers = #tpu.dot_dimension_numbers<[1], [0], [0], [1], [0, 0, 1, 1], [], []>} : vector<2x50xbf16>, vector<50x10xbf16>, vector<2x10xf32> -> vector<2x10xf32>
    %390 = arith.addf %384, %389 : vector<2x10xf32>
    %391 = vector.extract_strided_slice %329 {offsets = [0, 2, 2, 0], sizes = [2, 1, 1, 50], strides = [1, 1, 1, 1]} : vector<2x4x8x50xbf16> to vector<2x1x1x50xbf16>
    %392 = vector.shape_cast %391 : vector<2x1x1x50xbf16> to vector<2x50xbf16>
    %c10 = arith.constant 10 : index
    %c0_221 = arith.constant 0 : index
    %c0_222 = arith.constant 0 : index
    %393 = vector.load %arg11[%c10, %c0_221, %c0_222] : memref<16x50x10xbf16, #tpu.memory_space<vmem>>, vector<1x50x10xbf16>
    %394 = vector.shape_cast %393 : vector<1x50x10xbf16> to vector<50x10xbf16>
    %cst_223 = arith.constant dense<0.000000e+00> : vector<2x10xf32>
    %395 = tpu.matmul %392, %394, %cst_223 {dimension_numbers = #tpu.dot_dimension_numbers<[1], [0], [0], [1], [0, 0, 1, 1], [], []>} : vector<2x50xbf16>, vector<50x10xbf16>, vector<2x10xf32> -> vector<2x10xf32>
    %396 = arith.addf %390, %395 : vector<2x10xf32>
    %397 = vector.extract_strided_slice %329 {offsets = [0, 2, 3, 0], sizes = [2, 1, 1, 50], strides = [1, 1, 1, 1]} : vector<2x4x8x50xbf16> to vector<2x1x1x50xbf16>
    %398 = vector.shape_cast %397 : vector<2x1x1x50xbf16> to vector<2x50xbf16>
    %c11 = arith.constant 11 : index
    %c0_224 = arith.constant 0 : index
    %c0_225 = arith.constant 0 : index
    %399 = vector.load %arg11[%c11, %c0_224, %c0_225] : memref<16x50x10xbf16, #tpu.memory_space<vmem>>, vector<1x50x10xbf16>
    %400 = vector.shape_cast %399 : vector<1x50x10xbf16> to vector<50x10xbf16>
    %cst_226 = arith.constant dense<0.000000e+00> : vector<2x10xf32>
    %401 = tpu.matmul %398, %400, %cst_226 {dimension_numbers = #tpu.dot_dimension_numbers<[1], [0], [0], [1], [0, 0, 1, 1], [], []>} : vector<2x50xbf16>, vector<50x10xbf16>, vector<2x10xf32> -> vector<2x10xf32>
    %402 = arith.addf %396, %401 : vector<2x10xf32>
    %403 = vector.extract_strided_slice %329 {offsets = [0, 3, 0, 0], sizes = [2, 1, 1, 50], strides = [1, 1, 1, 1]} : vector<2x4x8x50xbf16> to vector<2x1x1x50xbf16>
    %404 = vector.shape_cast %403 : vector<2x1x1x50xbf16> to vector<2x50xbf16>
    %c12 = arith.constant 12 : index
    %c0_227 = arith.constant 0 : index
    %c0_228 = arith.constant 0 : index
    %405 = vector.load %arg11[%c12, %c0_227, %c0_228] : memref<16x50x10xbf16, #tpu.memory_space<vmem>>, vector<1x50x10xbf16>
    %406 = vector.shape_cast %405 : vector<1x50x10xbf16> to vector<50x10xbf16>
    %cst_229 = arith.constant dense<0.000000e+00> : vector<2x10xf32>
    %407 = tpu.matmul %404, %406, %cst_229 {dimension_numbers = #tpu.dot_dimension_numbers<[1], [0], [0], [1], [0, 0, 1, 1], [], []>} : vector<2x50xbf16>, vector<50x10xbf16>, vector<2x10xf32> -> vector<2x10xf32>
    %408 = arith.addf %402, %407 : vector<2x10xf32>
    %409 = vector.extract_strided_slice %329 {offsets = [0, 3, 1, 0], sizes = [2, 1, 1, 50], strides = [1, 1, 1, 1]} : vector<2x4x8x50xbf16> to vector<2x1x1x50xbf16>
    %410 = vector.shape_cast %409 : vector<2x1x1x50xbf16> to vector<2x50xbf16>
    %c13 = arith.constant 13 : index
    %c0_230 = arith.constant 0 : index
    %c0_231 = arith.constant 0 : index
    %411 = vector.load %arg11[%c13, %c0_230, %c0_231] : memref<16x50x10xbf16, #tpu.memory_space<vmem>>, vector<1x50x10xbf16>
    %412 = vector.shape_cast %411 : vector<1x50x10xbf16> to vector<50x10xbf16>
    %cst_232 = arith.constant dense<0.000000e+00> : vector<2x10xf32>
    %413 = tpu.matmul %410, %412, %cst_232 {dimension_numbers = #tpu.dot_dimension_numbers<[1], [0], [0], [1], [0, 0, 1, 1], [], []>} : vector<2x50xbf16>, vector<50x10xbf16>, vector<2x10xf32> -> vector<2x10xf32>
    %414 = arith.addf %408, %413 : vector<2x10xf32>
    %415 = vector.extract_strided_slice %329 {offsets = [0, 3, 2, 0], sizes = [2, 1, 1, 50], strides = [1, 1, 1, 1]} : vector<2x4x8x50xbf16> to vector<2x1x1x50xbf16>
    %416 = vector.shape_cast %415 : vector<2x1x1x50xbf16> to vector<2x50xbf16>
    %c14 = arith.constant 14 : index
    %c0_233 = arith.constant 0 : index
    %c0_234 = arith.constant 0 : index
    %417 = vector.load %arg11[%c14, %c0_233, %c0_234] : memref<16x50x10xbf16, #tpu.memory_space<vmem>>, vector<1x50x10xbf16>
    %418 = vector.shape_cast %417 : vector<1x50x10xbf16> to vector<50x10xbf16>
    %cst_235 = arith.constant dense<0.000000e+00> : vector<2x10xf32>
    %419 = tpu.matmul %416, %418, %cst_235 {dimension_numbers = #tpu.dot_dimension_numbers<[1], [0], [0], [1], [0, 0, 1, 1], [], []>} : vector<2x50xbf16>, vector<50x10xbf16>, vector<2x10xf32> -> vector<2x10xf32>
    %420 = arith.addf %414, %419 : vector<2x10xf32>
    %421 = vector.extract_strided_slice %329 {offsets = [0, 3, 3, 0], sizes = [2, 1, 1, 50], strides = [1, 1, 1, 1]} : vector<2x4x8x50xbf16> to vector<2x1x1x50xbf16>
    %422 = vector.shape_cast %421 : vector<2x1x1x50xbf16> to vector<2x50xbf16>
    %c15 = arith.constant 15 : index
    %c0_236 = arith.constant 0 : index
    %c0_237 = arith.constant 0 : index
    %423 = vector.load %arg11[%c15, %c0_236, %c0_237] : memref<16x50x10xbf16, #tpu.memory_space<vmem>>, vector<1x50x10xbf16>
    %424 = vector.shape_cast %423 : vector<1x50x10xbf16> to vector<50x10xbf16>
    %cst_238 = arith.constant dense<0.000000e+00> : vector<2x10xf32>
    %425 = tpu.matmul %422, %424, %cst_238 {dimension_numbers = #tpu.dot_dimension_numbers<[1], [0], [0], [1], [0, 0, 1, 1], [], []>} : vector<2x50xbf16>, vector<50x10xbf16>, vector<2x10xf32> -> vector<2x10xf32>
    %426 = arith.addf %420, %425 : vector<2x10xf32>
    %c0_239 = arith.constant 0 : index
    %c0_240 = arith.constant 0 : index
    %427 = vector.load %arg12[%c0_239, %c0_240] : memref<1x10xf32, #tpu.memory_space<vmem>>, vector<1x10xf32>
    %428 = vector.broadcast %427 : vector<1x10xf32> to vector<2x10xf32>
    %429 = arith.addf %426, %428 : vector<2x10xf32>
    %cst_241 = arith.constant dense<0xFF800000> : vector<2xf32>
    %430 = vector.multi_reduction <maximumf>, %429, %cst_241 [1] : vector<2x10xf32> to vector<2xf32>
    %431 = vector.shape_cast %430 : vector<2xf32> to vector<2x1xf32>
    %432 = vector.broadcast %431 : vector<2x1xf32> to vector<2x10xf32>
    %433 = arith.subf %429, %432 : vector<2x10xf32>
    %434 = math.exp %433 : vector<2x10xf32>
    %cst_242 = arith.constant dense<0.000000e+00> : vector<2xf32>
    %435 = vector.multi_reduction <add>, %434, %cst_242 [1] : vector<2x10xf32> to vector<2xf32>
    %436 = vector.shape_cast %435 : vector<2xf32> to vector<2x1xf32>
    %437 = math.log %436 : vector<2x1xf32>
    %438 = vector.broadcast %437 : vector<2x1xf32> to vector<2x10xf32>
    %439 = arith.subf %433, %438 : vector<2x10xf32>
    %c0_243 = arith.constant 0 : index
    %c0_244 = arith.constant 0 : index
    %440 = vector.load %arg13[%c0_243, %c0_244] : memref<2x10xf32, #tpu.memory_space<vmem>>, vector<2x10xf32>
    tpu.vector_store %arg13[%c0_243, %c0_244], %439 {strides = array<i32>} : memref<2x10xf32, #tpu.memory_space<vmem>>, vector<2x10xf32>,
    return
  }
  func.func @transform_0(%arg0: i32) -> (i32, i32, i32, i32) {
    %c0_i32 = arith.constant 0 : i32
    %c0_i32_0 = arith.constant 0 : i32
    %c0_i32_1 = arith.constant 0 : i32
    %c0_i32_2 = arith.constant 0 : i32
    %c0_i32_3 = arith.constant 0 : i32
    return %c0_i32, %c0_i32_0, %c0_i32_1, %c0_i32_2 : i32, i32, i32, i32
  }
  func.func @transform_1(%arg0: i32) -> (i32, i32, i32) {
    %c0_i32 = arith.constant 0 : i32
    %c0_i32_0 = arith.constant 0 : i32
    %c0_i32_1 = arith.constant 0 : i32
    %c0_i32_2 = arith.constant 0 : i32
    return %c0_i32, %c0_i32_0, %c0_i32_1 : i32, i32, i32
  }
  func.func @transform_2(%arg0: i32) -> (i32, i32, i32) {
    %c0_i32 = arith.constant 0 : i32
    %c0_i32_0 = arith.constant 0 : i32
    %c0_i32_1 = arith.constant 0 : i32
    %c0_i32_2 = arith.constant 0 : i32
    return %c0_i32, %c0_i32_0, %c0_i32_1 : i32, i32, i32
  }
  func.func @transform_3(%arg0: i32) -> (i32, i32, i32) {
    %c0_i32 = arith.constant 0 : i32
    %c0_i32_0 = arith.constant 0 : i32
    %c0_i32_1 = arith.constant 0 : i32
    %c0_i32_2 = arith.constant 0 : i32
    return %c0_i32, %c0_i32_0, %c0_i32_1 : i32, i32, i32
  }
  func.func @transform_4(%arg0: i32) -> (i32, i32) {
    %c0_i32 = arith.constant 0 : i32
    %c0_i32_0 = arith.constant 0 : i32
    %c0_i32_1 = arith.constant 0 : i32
    return %c0_i32, %c0_i32_0 : i32, i32
  }
  func.func @transform_5(%arg0: i32) -> (i32, i32) {
    %c0_i32 = arith.constant 0 : i32
    %c0_i32_0 = arith.constant 0 : i32
    %c0_i32_1 = arith.constant 0 : i32
    return %c0_i32, %c0_i32_0 : i32, i32
  }
  func.func @transform_6(%arg0: i32) -> (i32, i32) {
    %c0_i32 = arith.constant 0 : i32
    %c0_i32_0 = arith.constant 0 : i32
    %c0_i32_1 = arith.constant 0 : i32
    return %c0_i32, %c0_i32_0 : i32, i32
  }
  func.func @transform_7(%arg0: i32) -> (i32, i32) {
    %c0_i32 = arith.constant 0 : i32
    %c0_i32_0 = arith.constant 0 : i32
    %c0_i32_1 = arith.constant 0 : i32
    return %c0_i32, %c0_i32_0 : i32, i32
  }
  func.func @transform_8(%arg0: i32) -> (i32, i32) {
    %c0_i32 = arith.constant 0 : i32
    %c0_i32_0 = arith.constant 0 : i32
    %c0_i32_1 = arith.constant 0 : i32
    return %c0_i32, %c0_i32_0 : i32, i32
  }
  func.func @transform_9(%arg0: i32) -> (i32, i32) {
    %c0_i32 = arith.constant 0 : i32
    %c0_i32_0 = arith.constant 0 : i32
    %c0_i32_1 = arith.constant 0 : i32
    return %c0_i32, %c0_i32_0 : i32, i32
  }
  func.func @transform_10(%arg0: i32) -> (i32, i32, i32) {
    %c0_i32 = arith.constant 0 : i32
    %c0_i32_0 = arith.constant 0 : i32
    %c0_i32_1 = arith.constant 0 : i32
    %c0_i32_2 = arith.constant 0 : i32
    return %c0_i32, %c0_i32_0, %c0_i32_1 : i32, i32, i32
  }
  func.func @transform_11(%arg0: i32) -> (i32, i32) {
    %c0_i32 = arith.constant 0 : i32
    %c0_i32_0 = arith.constant 0 : i32
    %c0_i32_1 = arith.constant 0 : i32
    return %c0_i32, %c0_i32_0 : i32, i32
  }
  func.func @transform_12(%arg0: i32) -> (i32, i32) {
    %c0_i32 = arith.constant 0 : i32
    %c0_i32_0 = arith.constant 0 : i32
    %c0_i32_1 = arith.constant 0 : i32
    return %c0_i32, %c0_i32_0 : i32, i32
  }
}

</mosaic_0001>

<llo_original>
// kernel: model_two_forward.1
$region0: #{model_two_forward.1}
  #allocation0 [shape = 'u32[]', space=smem, size = 0x4, offset = 0x4, fixed_abs, tag = 'smem constant byte address 0x4 - core index']
  #allocation1 [shape = 'u32[144,128]{1,0:T(1,128)}', space=vmem, size = 0x12000, scoped, tag = 'internal scratch']
  #allocation2 [shape = 'bf16[2,10,10,20]{3,2,1,0:T(8,128)(2,1)}', space=vmem, size = 0x14000, scoped, tag = 'scratch operand']
  #allocation3 [shape = 'bf16[2,6,10,30]{3,2,1,0:T(8,128)(2,1)}', space=vmem, size = 0xc000, scoped, tag = 'scratch operand']
  %s0 = inlined_call_operand.vmem [shape: bf16[2,18,18,4], index: 0, kind: input, shape index: {}]
  %s1 = inlined_call_operand.vmem [shape: bf16[9,4,20], index: 1, kind: input, shape index: {}]
  %s2 = inlined_call_operand.vmem [shape: bf16[9,20,30], index: 2, kind: input, shape index: {}]
  %s3 = inlined_call_operand.vmem [shape: bf16[9,30,50], index: 3, kind: input, shape index: {}]
  %s4 = inlined_call_operand.vmem [shape: f32[1,20], index: 4, kind: input, shape index: {}]
  %s5 = inlined_call_operand.vmem [shape: f32[1,20], index: 5, kind: input, shape index: {}]
  %s6 = inlined_call_operand.vmem [shape: f32[1,30], index: 6, kind: input, shape index: {}]
  %s7 = inlined_call_operand.vmem [shape: f32[1,30], index: 7, kind: input, shape index: {}]
  %s8 = inlined_call_operand.vmem [shape: f32[1,50], index: 8, kind: input, shape index: {}]
  %s9 = inlined_call_operand.vmem [shape: f32[1,50], index: 9, kind: input, shape index: {}]
  %s10 = inlined_call_operand.vmem [shape: bf16[16,50,10], index: 10, kind: input, shape index: {}]
  %s11 = inlined_call_operand.vmem [shape: f32[1,10], index: 11, kind: input, shape index: {}]
  %s12 = inlined_call_operand.hbm [shape: f32[2,10], index: 12, kind: output, shape index: {}]
  %s13 = sld [smem:[#allocation0]]
  $region58: #{model_two_forward.1} parent=0
    _
  %s15 = ssub.s32 1, %s13
  %s16 = scalar_select 0, %s15, %s13
  $region1: #{model_two_forward.1} parent=0
    #allocation4 [shape = 'u8[1024]{0}', space=vmem, size = 0x400, scoped, tag = 'output window, operand 0, single buffered']
    #allocation5 [shape = 's32[1]{0}', space=sflag, size = 0x4, scoped, tag = 'scoped memory for model_two_forward.1']
    %17 = vsyncpa [#allocation5], 0
    // Predicated region
    $region2: #{model_two_forward.1} parent=1 // pred_check
      _
    $region3: #{model_two_forward.1} parent=1 // pred_check_branch
      %19 = sbr.rel (0) target = $region5
    $region4: #{model_two_forward.1} parent=1 // pred_region
      _
    $region5: #{model_two_forward.1} parent=1 // pred_fallthru
      _
    // Predicated region
    $region6: #{model_two_forward.1} parent=1 // pred_check
      _
    $region7: #{model_two_forward.1} parent=1 // pred_check_branch
      %21 = sbr.rel (0) target = $region9
    $region8: #{model_two_forward.1} parent=1 // pred_region
      _
    $region9: #{model_two_forward.1} parent=1 // pred_fallthru
      _
    // Predicated region
    $region10: #{model_two_forward.1} parent=1 // pred_check
      _
    $region11: #{model_two_forward.1} parent=1 // pred_check_branch
      %23 = sbr.rel (0) target = $region13
    $region12: #{model_two_forward.1} parent=1 // pred_region
      _
    $region13: #{model_two_forward.1} parent=1 // pred_fallthru
      _
    // Predicated region
    $region14: #{model_two_forward.1} parent=1 // pred_check
      _
    $region15: #{model_two_forward.1} parent=1 // pred_check_branch
      %25 = sbr.rel (0) target = $region17
    $region16: #{model_two_forward.1} parent=1 // pred_region
      _
    $region17: #{model_two_forward.1} parent=1 // pred_fallthru
      _
    // Predicated region
    $region18: #{model_two_forward.1} parent=1 // pred_check
      _
    $region19: #{model_two_forward.1} parent=1 // pred_check_branch
      %27 = sbr.rel (0) target = $region21
    $region20: #{model_two_forward.1} parent=1 // pred_region
      _
    $region21: #{model_two_forward.1} parent=1 // pred_fallthru
      _
    // Predicated region
    $region22: #{model_two_forward.1} parent=1 // pred_check
      _
    $region23: #{model_two_forward.1} parent=1 // pred_check_branch
      %29 = sbr.rel (0) target = $region25
    $region24: #{model_two_forward.1} parent=1 // pred_region
      _
    $region25: #{model_two_forward.1} parent=1 // pred_fallthru
      _
    // Predicated region
    $region26: #{model_two_forward.1} parent=1 // pred_check
      _
    $region27: #{model_two_forward.1} parent=1 // pred_check_branch
      %31 = sbr.rel (0) target = $region29
    $region28: #{model_two_forward.1} parent=1 // pred_region
      _
    $region29: #{model_two_forward.1} parent=1 // pred_fallthru
      _
    // Predicated region
    $region30: #{model_two_forward.1} parent=1 // pred_check
      _
    $region31: #{model_two_forward.1} parent=1 // pred_check_branch
      %33 = sbr.rel (0) target = $region33
    $region32: #{model_two_forward.1} parent=1 // pred_region
      _
    $region33: #{model_two_forward.1} parent=1 // pred_fallthru
      _
    // Predicated region
    $region34: #{model_two_forward.1} parent=1 // pred_check
      _
    $region35: #{model_two_forward.1} parent=1 // pred_check_branch
      %35 = sbr.rel (0) target = $region37
    $region36: #{model_two_forward.1} parent=1 // pred_region
      _
    $region37: #{model_two_forward.1} parent=1 // pred_fallthru
      _
    // Predicated region
    $region38: #{model_two_forward.1} parent=1 // pred_check
      _
    $region39: #{model_two_forward.1} parent=1 // pred_check_branch
      %37 = sbr.rel (0) target = $region41
    $region40: #{model_two_forward.1} parent=1 // pred_region
      _
    $region41: #{model_two_forward.1} parent=1 // pred_fallthru
      _
    // Predicated region
    $region42: #{model_two_forward.1} parent=1 // pred_check
      _
    $region43: #{model_two_forward.1} parent=1 // pred_check_branch
      %39 = sbr.rel (0) target = $region45
    $region44: #{model_two_forward.1} parent=1 // pred_region
      _
    $region45: #{model_two_forward.1} parent=1 // pred_fallthru
      _
    // Predicated region
    $region46: #{model_two_forward.1} parent=1 // pred_check
      _
    $region47: #{model_two_forward.1} parent=1 // pred_check_branch
      %41 = sbr.rel (0) target = $region49
    $region48: #{model_two_forward.1} parent=1 // pred_region
      _
    $region49: #{model_two_forward.1} parent=1 // pred_fallthru
      _
    %v43 = vld [vmem:[%s0] sm:$0xf]
    %v44 = vld [vmem:[%s0 + $0x4] sm:$0xf]
    %v45 = vld [vmem:[%s0 + $0xc] sm:$0xf]
    %v46 = vld [vmem:[%s0 + $0x10] sm:$0xf]
    %v47 = vld [vmem:[%s0 + $0x18] sm:$0xf]
    %v48 = vld [vmem:[%s0 + $0x1c] sm:$0xf]
    %v49 = vld [vmem:[%s0 + $0x24] sm:$0xf]
    %v50 = vld [vmem:[%s0 + $0x28] sm:$0xf]
    %v51 = vld [vmem:[%s0 + $0x30] sm:$0xf]
    %v52 = vld [vmem:[%s0 + $0x34] sm:$0xf]
    %v53 = vld [vmem:[%s0 + $0x3c] sm:$0xf]
    %v54 = vld [vmem:[%s0 + $0x40] sm:$0xf]
    %v55 = vld [vmem:[%s0 + $0x48] sm:$0xf]
    %v56 = vld [vmem:[%s0 + $0x4c] sm:$0xf]
    %v57 = vld [vmem:[%s0 + $0x54] sm:$0xf]
    %v58 = vld [vmem:[%s0 + $0x58] sm:$0xf]
    %v59 = vld [vmem:[%s0 + $0x60] sm:$0xf]
    %v60 = vld [vmem:[%s0 + $0x64] sm:$0xf]
    %v61 = vld [vmem:[%s0 + $0x6c] sm:$0xf]
    %v62 = vld [vmem:[%s0 + $0x70] sm:$0xf]
    %v63 = vld [vmem:[%s0 + $0x78] sm:$0xf]
    %v64 = vld [vmem:[%s0 + $0x7c] sm:$0xf]
    %v65 = vld [vmem:[%s0 + $0x84] sm:$0xf]
    %v66 = vld [vmem:[%s0 + $0x88] sm:$0xf]
    %v67 = vld [vmem:[%s0 + $0x90] sm:$0xf]
    %v68 = vld [vmem:[%s0 + $0x94] sm:$0xf]
    %v69 = vld [vmem:[%s0 + $0x9c] sm:$0xf]
    %v70 = vld [vmem:[%s0 + $0xa0] sm:$0xf]
    %v71 = vld [vmem:[%s0 + $0xa8] sm:$0xf]
    %v72 = vld [vmem:[%s0 + $0xac] sm:$0xf]
    %v73 = vld [vmem:[%s0 + $0xb4] sm:$0xf]
    %v74 = vld [vmem:[%s0 + $0xb8] sm:$0xf]
    %v75 = vld [vmem:[%s0 + $0xc0] sm:$0xf]
    %v76 = vld [vmem:[%s0 + $0xc4] sm:$0xf]
    %v77 = vld [vmem:[%s0 + $0xcc] sm:$0xf]
    %v78 = vld [vmem:[%s0 + $0xd0] sm:$0xf]
    %v79 = vld [vmem:[%s0 + $0xd8] sm:$0xf]
    %v80 = vld [vmem:[%s0 + $0xdc] sm:$0xf]
    %v81 = vld [vmem:[%s0 + $0xe4] sm:$0xf]
    %v82 = vld [vmem:[%s0 + $0xe8] sm:$0xf]
    %v83 = vld [vmem:[%s0 + $0xf0] sm:$0xf]
    %v84 = vld [vmem:[%s0 + $0xf4] sm:$0xf]
    %v85 = vld [vmem:[%s0 + $0xfc] sm:$0xf]
    %v86 = vld [vmem:[%s0 + $0x100] sm:$0xf]
    %v87 = vld [vmem:[%s0 + $0x108] sm:$0xf]
    %v88 = vld [vmem:[%s0 + $0x10c] sm:$0xf]
    %v89 = vld [vmem:[%s0 + $0x114] sm:$0xf]
    %v90 = vld [vmem:[%s0 + $0x118] sm:$0xf]
    %v91 = vld [vmem:[%s0 + $0x120] sm:$0xf]
    %v92 = vld [vmem:[%s0 + $0x124] sm:$0xf]
    %v93 = vld [vmem:[%s0 + $0x12c] sm:$0xf]
    %v94 = vld [vmem:[%s0 + $0x130] sm:$0xf]
    %v95 = vld [vmem:[%s0 + $0x138] sm:$0xf]
    %v96 = vld [vmem:[%s0 + $0x13c] sm:$0xf]
    %v97 = vld [vmem:[%s0 + $0x144] sm:$0xf]
    %v98 = vld [vmem:[%s0 + $0x148] sm:$0xf]
    %v99 = vld [vmem:[%s0 + $0x150] sm:$0xf]
    %v100 = vld [vmem:[%s0 + $0x154] sm:$0xf]
    %v101 = vld [vmem:[%s0 + $0x15c] sm:$0xf]
    %v102 = vld [vmem:[%s0 + $0x160] sm:$0xf]
    %v103 = vld [vmem:[%s0 + $0x168] sm:$0xf]
    %v104 = vld [vmem:[%s0 + $0x16c] sm:$0xf]
    %v105 = vld [vmem:[%s0 + $0x174] sm:$0xf]
    %v106 = vld [vmem:[%s0 + $0x178] sm:$0xf]
    %v107 = vld [vmem:[%s0 + $0x180] sm:$0xf]
    %v108 = vld [vmem:[%s0 + $0x184] sm:$0xf]
    %v109 = vld [vmem:[%s0 + $0x18c] sm:$0xf]
    %v110 = vld [vmem:[%s0 + $0x190] sm:$0xf]
    %v111 = vld [vmem:[%s0 + $0x198] sm:$0xf]
    %v112 = vld [vmem:[%s0 + $0x19c] sm:$0xf]
    %v113 = vld [vmem:[%s0 + $0x1a4] sm:$0xf]
    %v114 = vld [vmem:[%s0 + $0x1a8] sm:$0xf]
    %v115 = vld [vmem:[%s1] sm:$0x3]
    %s116 = scalar_lea.vmem %s1, 6
    %v117 = vld [vmem:[%s116] sm:$0x3]
    %v182 = vunpack.c.l.b16 %v45
    %v183 = vunpack.c.l.b16 %v46
    %v184 = vunpack.c.l.b16 %v47
    %v185 = vunpack.c.l.b16 %v48
    %v186 = vunpack.c.l.b16 %v49
    %v187 = vunpack.c.l.b16 %v50
    %v188 = vunpack.c.l.b16 %v51
    %v189 = vunpack.c.l.b16 %v52
    %v190 = vunpack.c.l.b16 %v53
    %v191 = vunpack.c.l.b16 %v54
    %v192 = vunpack.c.l.b16 %v55
    %v193 = vunpack.c.l.b16 %v56
    %v194 = vunpack.c.l.b16 %v57
    %v195 = vunpack.c.l.b16 %v58
    %v196 = vunpack.c.l.b16 %v59
    %v197 = vunpack.c.l.b16 %v60
    %v198 = vunpack.c.l.b16 %v61
    %v199 = vunpack.c.l.b16 %v62
    %v200 = vunpack.c.l.b16 %v63
    %v201 = vunpack.c.l.b16 %v64
    %v202 = vunpack.c.l.b16 %v65
    %v203 = vunpack.c.l.b16 %v66
    %v204 = vunpack.c.l.b16 %v67
    %v205 = vunpack.c.l.b16 %v68
    %v206 = vunpack.c.l.b16 %v69
    %v207 = vunpack.c.l.b16 %v70
    %v208 = vunpack.c.l.b16 %v71
    %v209 = vunpack.c.l.b16 %v72
    %v210 = vunpack.c.l.b16 %v73
    %v211 = vunpack.c.l.b16 %v74
    %v212 = vunpack.c.l.b16 %v75
    %v213 = vunpack.c.l.b16 %v76
    %v214 = vunpack.c.l.b16 %v81
    %v215 = vunpack.c.l.b16 %v82
    %v216 = vunpack.c.l.b16 %v83
    %v217 = vunpack.c.l.b16 %v84
    %v218 = vunpack.c.l.b16 %v85
    %v219 = vunpack.c.l.b16 %v86
    %v220 = vunpack.c.l.b16 %v87
    %v221 = vunpack.c.l.b16 %v88
    %v222 = vunpack.c.l.b16 %v89
    %v223 = vunpack.c.l.b16 %v90
    %v224 = vunpack.c.l.b16 %v91
    %v225 = vunpack.c.l.b16 %v92
    %v226 = vunpack.c.l.b16 %v93
    %v227 = vunpack.c.l.b16 %v94
    %v228 = vunpack.c.l.b16 %v95
    %v229 = vunpack.c.l.b16 %v96
    %v230 = vunpack.c.l.b16 %v97
    %v231 = vunpack.c.l.b16 %v98
    %v232 = vunpack.c.l.b16 %v99
    %v233 = vunpack.c.l.b16 %v100
    %v234 = vunpack.c.l.b16 %v101
    %v235 = vunpack.c.l.b16 %v102
    %v236 = vunpack.c.l.b16 %v103
    %v237 = vunpack.c.l.b16 %v104
    %v238 = vunpack.c.l.b16 %v105
    %v239 = vunpack.c.l.b16 %v106
    %v240 = vunpack.c.l.b16 %v107
    %v241 = vunpack.c.l.b16 %v108
    %v242 = vunpack.c.l.b16 %v109
    %v243 = vunpack.c.l.b16 %v110
    %v244 = vunpack.c.l.b16 %v111
    %v245 = vunpack.c.l.b16 %v112
    %v246 = vpack.c.b16 %v183, %v182
    %v247 = vpack.c.b16 %v185, %v184
    %v248 = vpack.c.b16 %v187, %v186
    %v249 = vpack.c.b16 %v189, %v188
    %v250 = vpack.c.b16 %v191, %v190
    %v251 = vpack.c.b16 %v193, %v192
    %v252 = vpack.c.b16 %v195, %v194
    %v253 = vpack.c.b16 %v197, %v196
    %v254 = vpack.c.b16 %v199, %v198
    %v255 = vpack.c.b16 %v201, %v200
    %v256 = vpack.c.b16 %v203, %v202
    %v257 = vpack.c.b16 %v205, %v204
    %v258 = vpack.c.b16 %v207, %v206
    %v259 = vpack.c.b16 %v209, %v208
    %v260 = vpack.c.b16 %v211, %v210
    %v261 = vpack.c.b16 %v213, %v212
    %v262 = vpack.c.b16 %v215, %v214
    %v263 = vpack.c.b16 %v217, %v216
    %v264 = vpack.c.b16 %v219, %v218
    %v265 = vpack.c.b16 %v221, %v220
    %v266 = vpack.c.b16 %v223, %v222
    %v267 = vpack.c.b16 %v225, %v224
    %v268 = vpack.c.b16 %v227, %v226
    %v269 = vpack.c.b16 %v229, %v228
    %v270 = vpack.c.b16 %v231, %v230
    %v271 = vpack.c.b16 %v233, %v232
    %v272 = vpack.c.b16 %v235, %v234
    %v273 = vpack.c.b16 %v237, %v236
    %v274 = vpack.c.b16 %v239, %v238
    %v275 = vpack.c.b16 %v241, %v240
    %v276 = vpack.c.b16 %v243, %v242
    %v277 = vpack.c.b16 %v245, %v244
    %vm278 = vcmask 31744
    %v280 = vsel %vm278, %v246, 0
    %v283 = vsel %vm278, %v247, 0
    %v286 = vsel %vm278, %v248, 0
    %v289 = vsel %vm278, %v249, 0
    %v292 = vsel %vm278, %v250, 0
    %v295 = vsel %vm278, %v251, 0
    %v298 = vsel %vm278, %v252, 0
    %v301 = vsel %vm278, %v253, 0
    %v304 = vsel %vm278, %v254, 0
    %v307 = vsel %vm278, %v255, 0
    %v310 = vsel %vm278, %v256, 0
    %v313 = vsel %vm278, %v257, 0
    %v316 = vsel %vm278, %v258, 0
    %v319 = vsel %vm278, %v259, 0
    %v322 = vsel %vm278, %v260, 0
    %v325 = vsel %vm278, %v261, 0
    %v328 = vsel %vm278, %v262, 0
    %v331 = vsel %vm278, %v263, 0
    %v334 = vsel %vm278, %v264, 0
    %v337 = vsel %vm278, %v265, 0
    %v340 = vsel %vm278, %v266, 0
    %v343 = vsel %vm278, %v267, 0
    %v346 = vsel %vm278, %v268, 0
    %v349 = vsel %vm278, %v269, 0
    %v352 = vsel %vm278, %v270, 0
    %v355 = vsel %vm278, %v271, 0
    %v358 = vsel %vm278, %v272, 0
    %v361 = vsel %vm278, %v273, 0
    %v364 = vsel %vm278, %v274, 0
    %v367 = vsel %vm278, %v275, 0
    %v370 = vsel %vm278, %v276, 0
    %v373 = vsel %vm278, %v277, 0
    %vm375 = vcmask 1041408
    %v377 = vsel %vm375, %v117, 0
    %379 = vmatprep.subr.bf16.mxu0 0
    %380 = vmatpush1.bf16.msra.mxu0 %v377
    %381 = vmatprep.subr.bf16.mxu0 0
    %382 = vmatpush1.bf16.msra.mxu0 0
    %383 = vmatprep.subr.bf16.mxu0 0
    %384 = vmatpush1.bf16.msra.mxu0 0
    %385 = vmatprep.subr.bf16.mxu0 0
    %386 = vmatpush1.bf16.msra.mxu0 0
    %387 = vmatprep.subr.bf16.mxu0 0
    %388 = vmatpush1.bf16.msra.mxu0 0
    %389 = vmatprep.subr.bf16.mxu0 0
    %390 = vmatpush1.bf16.msra.mxu0 0
    %391 = vmatprep.subr.bf16.mxu0 0
    %392 = vmatpush1.bf16.msra.mxu0 0
    %393 = vmatprep.subr.bf16.mxu0 0
    %394 = vmatpush1.bf16.msra.mxu0 0
    %395 = vmatprep.subr.bf16.mxu0 0
    %396 = vmatpush1.bf16.msra.mxu0 0
    %397 = vmatprep.subr.bf16.mxu0 0
    %398 = vmatpush1.bf16.msra.mxu0 0
    %399 = vmatprep.subr.bf16.mxu0 0
    %400 = vmatpush1.bf16.msra.mxu0 0
    %401 = vmatprep.subr.bf16.mxu0 0
    %402 = vmatpush1.bf16.msra.mxu0 0
    %403 = vmatprep.subr.bf16.mxu0 0
    %404 = vmatpush1.bf16.msra.mxu0 0
    %405 = vmatprep.subr.bf16.mxu0 0
    %406 = vmatpush1.bf16.msra.mxu0 0
    %407 = vmatprep.subr.bf16.mxu0 0
    %408 = vmatpush1.bf16.msra.mxu0 0
    %409 = vmatprep.subr.bf16.mxu0 0
    %410 = vmatpush1.bf16.msra.mxu0 0
    %411 = vmatprep.mubr.bf16.mxu0 0
    %412 = vmatmul.mubr.bf16.gmra.mrb[0].mxu0 %v280
    %v413 = vpop.f32.mrb[0].mxu0
    %v414 = vadd.f32 0.0, %v413
    %v415 = vpop.f32.mrb[0].mxu0
    %v416 = vpop.f32.mrb[0].mxu0
    %v417 = vadd.f32 0.0, %v416
    %v418 = vpop.f32.mrb[0].mxu0
    %419 = vmatprep.mubr.bf16.mxu0 0
    %420 = vmatmul.mubr.bf16.gmra.mrb[0].mxu0 %v283
    %v421 = vpop.f32.mrb[0].mxu0
    %v422 = vadd.f32 0.0, %v421
    %v423 = vpop.f32.mrb[0].mxu0
    %v424 = vpop.f32.mrb[0].mxu0
    %v425 = vadd.f32 0.0, %v424
    %v426 = vpop.f32.mrb[0].mxu0
    %427 = vmatprep.mubr.bf16.mxu0 0
    %428 = vmatmul.mubr.bf16.gmra.mrb[0].mxu0 %v286
    %v429 = vpop.f32.mrb[0].mxu0
    %v430 = vadd.f32 0.0, %v429
    %v431 = vpop.f32.mrb[0].mxu0
    %v432 = vpop.f32.mrb[0].mxu0
    %v433 = vadd.f32 0.0, %v432
    %v434 = vpop.f32.mrb[0].mxu0
    %435 = vmatprep.mubr.bf16.mxu0 0
    %436 = vmatmul.mubr.bf16.gmra.mrb[0].mxu0 %v289
    %v437 = vpop.f32.mrb[0].mxu0
    %v438 = vadd.f32 0.0, %v437
    %v439 = vpop.f32.mrb[0].mxu0
    %v440 = vpop.f32.mrb[0].mxu0
    %v441 = vadd.f32 0.0, %v440
    %v442 = vpop.f32.mrb[0].mxu0
    %443 = vmatprep.mubr.bf16.mxu0 0
    %444 = vmatmul.mubr.bf16.gmra.mrb[0].mxu0 %v292
    %v445 = vpop.f32.mrb[0].mxu0
    %v446 = vadd.f32 0.0, %v445
    %v447 = vpop.f32.mrb[0].mxu0
    %v448 = vpop.f32.mrb[0].mxu0
    %v449 = vadd.f32 0.0, %v448
    %v450 = vpop.f32.mrb[0].mxu0
    %451 = vmatprep.mubr.bf16.mxu0 0
    %452 = vmatmul.mubr.bf16.gmra.mrb[0].mxu0 %v295
    %v453 = vpop.f32.mrb[0].mxu0
    %v454 = vadd.f32 0.0, %v453
    %v455 = vpop.f32.mrb[0].mxu0
    %v456 = vpop.f32.mrb[0].mxu0
    %v457 = vadd.f32 0.0, %v456
    %v458 = vpop.f32.mrb[0].mxu0
    %459 = vmatprep.mubr.bf16.mxu0 0
    %460 = vmatmul.mubr.bf16.gmra.mrb[0].mxu0 %v298
    %v461 = vpop.f32.mrb[0].mxu0
    %v462 = vadd.f32 0.0, %v461
    %v463 = vpop.f32.mrb[0].mxu0
    %v464 = vpop.f32.mrb[0].mxu0
    %v465 = vadd.f32 0.0, %v464
    %v466 = vpop.f32.mrb[0].mxu0
    %467 = vmatprep.mubr.bf16.mxu0 0
    %468 = vmatmul.mubr.bf16.gmra.mrb[0].mxu0 %v301
    %v469 = vpop.f32.mrb[0].mxu0
    %v470 = vadd.f32 0.0, %v469
    %v471 = vpop.f32.mrb[0].mxu0
    %v472 = vpop.f32.mrb[0].mxu0
    %v473 = vadd.f32 0.0, %v472
    %v474 = vpop.f32.mrb[0].mxu0
    %475 = vmatprep.mubr.bf16.mxu0 0
    %476 = vmatmul.mubr.bf16.gmra.mrb[0].mxu0 %v304
    %v477 = vpop.f32.mrb[0].mxu0
    %v478 = vadd.f32 0.0, %v477
    %v479 = vpop.f32.mrb[0].mxu0
    %v480 = vpop.f32.mrb[0].mxu0
    %v481 = vadd.f32 0.0, %v480
    %v482 = vpop.f32.mrb[0].mxu0
    %483 = vmatprep.mubr.bf16.mxu0 0
    %484 = vmatmul.mubr.bf16.gmra.mrb[0].mxu0 %v307
    %v485 = vpop.f32.mrb[0].mxu0
    %v486 = vadd.f32 0.0, %v485
    %v487 = vpop.f32.mrb[0].mxu0
    %v488 = vpop.f32.mrb[0].mxu0
    %v489 = vadd.f32 0.0, %v488
    %v490 = vpop.f32.mrb[0].mxu0
    %491 = vmatprep.mubr.bf16.mxu0 0
    %492 = vmatmul.mubr.bf16.gmra.mrb[0].mxu0 %v310
    %v493 = vpop.f32.mrb[0].mxu0
    %v494 = vadd.f32 0.0, %v493
    %v495 = vpop.f32.mrb[0].mxu0
    %v496 = vpop.f32.mrb[0].mxu0
    %v497 = vadd.f32 0.0, %v496
    %v498 = vpop.f32.mrb[0].mxu0
    %499 = vmatprep.mubr.bf16.mxu0 0
    %500 = vmatmul.mubr.bf16.gmra.mrb[0].mxu0 %v313
    %v501 = vpop.f32.mrb[0].mxu0
    %v502 = vadd.f32 0.0, %v501
    %v503 = vpop.f32.mrb[0].mxu0
    %v504 = vpop.f32.mrb[0].mxu0
    %v505 = vadd.f32 0.0, %v504
    %v506 = vpop.f32.mrb[0].mxu0
    %507 = vmatprep.mubr.bf16.mxu0 0
    %508 = vmatmul.mubr.bf16.gmra.mrb[0].mxu0 %v316
    %v509 = vpop.f32.mrb[0].mxu0
    %v510 = vadd.f32 0.0, %v509
    %v511 = vpop.f32.mrb[0].mxu0
    %v512 = vpop.f32.mrb[0].mxu0
    %v513 = vadd.f32 0.0, %v512
    %v514 = vpop.f32.mrb[0].mxu0
    %515 = vmatprep.mubr.bf16.mxu0 0
    %516 = vmatmul.mubr.bf16.gmra.mrb[0].mxu0 %v319
    %v517 = vpop.f32.mrb[0].mxu0
    %v518 = vadd.f32 0.0, %v517
    %v519 = vpop.f32.mrb[0].mxu0
    %v520 = vpop.f32.mrb[0].mxu0
    %v521 = vadd.f32 0.0, %v520
    %v522 = vpop.f32.mrb[0].mxu0
    %523 = vmatprep.mubr.bf16.mxu0 0
    %524 = vmatmul.mubr.bf16.gmra.mrb[0].mxu0 %v322
    %v525 = vpop.f32.mrb[0].mxu0
    %v526 = vadd.f32 0.0, %v525
    %v527 = vpop.f32.mrb[0].mxu0
    %v528 = vpop.f32.mrb[0].mxu0
    %v529 = vadd.f32 0.0, %v528
    %v530 = vpop.f32.mrb[0].mxu0
    %531 = vmatprep.mubr.bf16.mxu0 0
    %532 = vmatmul.mubr.bf16.gmra.mrb[0].mxu0 %v325
    %v533 = vpop.f32.mrb[0].mxu0
    %v534 = vadd.f32 0.0, %v533
    %v535 = vpop.f32.mrb[0].mxu0
    %v536 = vpop.f32.mrb[0].mxu0
    %v537 = vadd.f32 0.0, %v536
    %v538 = vpop.f32.mrb[0].mxu0
    %539 = vmatprep.mubr.bf16.mxu0 0
    %540 = vmatmul.mubr.bf16.gmra.mrb[0].mxu0 %v328
    %v541 = vpop.f32.mrb[0].mxu0
    %v542 = vadd.f32 0.0, %v541
    %v543 = vpop.f32.mrb[0].mxu0
    %v544 = vpop.f32.mrb[0].mxu0
    %v545 = vadd.f32 0.0, %v544
    %v546 = vpop.f32.mrb[0].mxu0
    %547 = vmatprep.mubr.bf16.mxu0 0
    %548 = vmatmul.mubr.bf16.gmra.mrb[0].mxu0 %v331
    %v549 = vpop.f32.mrb[0].mxu0
    %v550 = vadd.f32 0.0, %v549
    %v551 = vpop.f32.mrb[0].mxu0
    %v552 = vpop.f32.mrb[0].mxu0
    %v553 = vadd.f32 0.0, %v552
    %v554 = vpop.f32.mrb[0].mxu0
    %555 = vmatprep.mubr.bf16.mxu0 0
    %556 = vmatmul.mubr.bf16.gmra.mrb[0].mxu0 %v334
    %v557 = vpop.f32.mrb[0].mxu0
    %v558 = vadd.f32 0.0, %v557
    %v559 = vpop.f32.mrb[0].mxu0
    %v560 = vpop.f32.mrb[0].mxu0
    %v561 = vadd.f32 0.0, %v560
    %v562 = vpop.f32.mrb[0].mxu0
    %563 = vmatprep.mubr.bf16.mxu0 0
    %564 = vmatmul.mubr.bf16.gmra.mrb[0].mxu0 %v337
    %v565 = vpop.f32.mrb[0].mxu0
    %v566 = vadd.f32 0.0, %v565
    %v567 = vpop.f32.mrb[0].mxu0
    %v568 = vpop.f32.mrb[0].mxu0
    %v569 = vadd.f32 0.0, %v568
    %v570 = vpop.f32.mrb[0].mxu0
    %571 = vmatprep.mubr.bf16.mxu0 0
    %572 = vmatmul.mubr.bf16.gmra.mrb[0].mxu0 %v340
    %v573 = vpop.f32.mrb[0].mxu0
    %v574 = vadd.f32 0.0, %v573
    %v575 = vpop.f32.mrb[0].mxu0
    %v576 = vpop.f32.mrb[0].mxu0
    %v577 = vadd.f32 0.0, %v576
    %v578 = vpop.f32.mrb[0].mxu0
    %579 = vmatprep.mubr.bf16.mxu0 0
    %580 = vmatmul.mubr.bf16.gmra.mrb[0].mxu0 %v343
    %v581 = vpop.f32.mrb[0].mxu0
    %v582 = vadd.f32 0.0, %v581
    %v583 = vpop.f32.mrb[0].mxu0
    %v584 = vpop.f32.mrb[0].mxu0
    %v585 = vadd.f32 0.0, %v584
    %v586 = vpop.f32.mrb[0].mxu0
    %587 = vmatprep.mubr.bf16.mxu0 0
    %588 = vmatmul.mubr.bf16.gmra.mrb[0].mxu0 %v346
    %v589 = vpop.f32.mrb[0].mxu0
    %v590 = vadd.f32 0.0, %v589
    %v591 = vpop.f32.mrb[0].mxu0
    %v592 = vpop.f32.mrb[0].mxu0
    %v593 = vadd.f32 0.0, %v592
    %v594 = vpop.f32.mrb[0].mxu0
    %595 = vmatprep.mubr.bf16.mxu0 0
    %596 = vmatmul.mubr.bf16.gmra.mrb[0].mxu0 %v349
    %v597 = vpop.f32.mrb[0].mxu0
    %v598 = vadd.f32 0.0, %v597
    %v599 = vpop.f32.mrb[0].mxu0
    %v600 = vpop.f32.mrb[0].mxu0
    %v601 = vadd.f32 0.0, %v600
    %v602 = vpop.f32.mrb[0].mxu0
    %603 = vmatprep.mubr.bf16.mxu0 0
    %604 = vmatmul.mubr.bf16.gmra.mrb[0].mxu0 %v352
    %v605 = vpop.f32.mrb[0].mxu0
    %v606 = vadd.f32 0.0, %v605
    %v607 = vpop.f32.mrb[0].mxu0
    %v608 = vpop.f32.mrb[0].mxu0
    %v609 = vadd.f32 0.0, %v608
    %v610 = vpop.f32.mrb[0].mxu0
    %611 = vmatprep.mubr.bf16.mxu0 0
    %612 = vmatmul.mubr.bf16.gmra.mrb[0].mxu0 %v355
    %v613 = vpop.f32.mrb[0].mxu0
    %v614 = vadd.f32 0.0, %v613
    %v615 = vpop.f32.mrb[0].mxu0
    %v616 = vpop.f32.mrb[0].mxu0
    %v617 = vadd.f32 0.0, %v616
    %v618 = vpop.f32.mrb[0].mxu0
    %619 = vmatprep.mubr.bf16.mxu0 0
    %620 = vmatmul.mubr.bf16.gmra.mrb[0].mxu0 %v358
    %v621 = vpop.f32.mrb[0].mxu0
    %v622 = vadd.f32 0.0, %v621
    %v623 = vpop.f32.mrb[0].mxu0
    %v624 = vpop.f32.mrb[0].mxu0
    %v625 = vadd.f32 0.0, %v624
    %v626 = vpop.f32.mrb[0].mxu0
    %627 = vmatprep.mubr.bf16.mxu0 0
    %628 = vmatmul.mubr.bf16.gmra.mrb[0].mxu0 %v361
    %v629 = vpop.f32.mrb[0].mxu0
    %v630 = vadd.f32 0.0, %v629
    %v631 = vpop.f32.mrb[0].mxu0
    %v632 = vpop.f32.mrb[0].mxu0
    %v633 = vadd.f32 0.0, %v632
    %v634 = vpop.f32.mrb[0].mxu0
    %635 = vmatprep.mubr.bf16.mxu0 0
    %636 = vmatmul.mubr.bf16.gmra.mrb[0].mxu0 %v364
    %v637 = vpop.f32.mrb[0].mxu0
    %v638 = vadd.f32 0.0, %v637
    %v639 = vpop.f32.mrb[0].mxu0
    %v640 = vpop.f32.mrb[0].mxu0
    %v641 = vadd.f32 0.0, %v640
    %v642 = vpop.f32.mrb[0].mxu0
    %643 = vmatprep.mubr.bf16.mxu0 0
    %644 = vmatmul.mubr.bf16.gmra.mrb[0].mxu0 %v367
    %v645 = vpop.f32.mrb[0].mxu0
    %v646 = vadd.f32 0.0, %v645
    %v647 = vpop.f32.mrb[0].mxu0
    %v648 = vpop.f32.mrb[0].mxu0
    %v649 = vadd.f32 0.0, %v648
    %v650 = vpop.f32.mrb[0].mxu0
    %651 = vmatprep.mubr.bf16.mxu0 0
    %652 = vmatmul.mubr.bf16.gmra.mrb[0].mxu0 %v370
    %v653 = vpop.f32.mrb[0].mxu0
    %v654 = vadd.f32 0.0, %v653
    %v655 = vpop.f32.mrb[0].mxu0
    %v656 = vpop.f32.mrb[0].mxu0
    %v657 = vadd.f32 0.0, %v656
    %v658 = vpop.f32.mrb[0].mxu0
    %659 = vmatprep.mubr.bf16.mxu0 0
    %660 = vmatmul.mubr.bf16.gmra.mrb[0].mxu0 %v373
    %v661 = vpop.f32.mrb[0].mxu0
    %v662 = vadd.f32 0.0, %v661
    %v663 = vpop.f32.mrb[0].mxu0
    %v664 = vpop.f32.mrb[0].mxu0
    %v665 = vadd.f32 0.0, %v664
    %v666 = vpop.f32.mrb[0].mxu0
    %667 = vdwg.mxu0
    %v672 = vunpack.c.l.b16 %v43
    %v673 = vunpack.c.l.b16 %v44
    %v674 = vunpack.c.l.b16 %v79
    %v675 = vunpack.c.l.b16 %v80
    %v676 = vpack.c.b16 %v673, %v672
    %v677 = vpack.c.b16 %v675, %v674
    %v679 = vsel %vm278, %v676, 0
    %v682 = vsel %vm278, %v677, 0
    %v685 = vsel %vm375, %v115, 0
    %687 = vmatprep.subr.bf16.mxu0 0
    %688 = vmatpush1.bf16.msra.mxu0 %v685
    %689 = vmatprep.subr.bf16.mxu0 0
    %690 = vmatpush1.bf16.msra.mxu0 0
    %691 = vmatprep.subr.bf16.mxu0 0
    %692 = vmatpush1.bf16.msra.mxu0 0
    %693 = vmatprep.subr.bf16.mxu0 0
    %694 = vmatpush1.bf16.msra.mxu0 0
    %695 = vmatprep.subr.bf16.mxu0 0
    %696 = vmatpush1.bf16.msra.mxu0 0
    %697 = vmatprep.subr.bf16.mxu0 0
    %698 = vmatpush1.bf16.msra.mxu0 0
    %699 = vmatprep.subr.bf16.mxu0 0
    %700 = vmatpush1.bf16.msra.mxu0 0
    %701 = vmatprep.subr.bf16.mxu0 0
    %702 = vmatpush1.bf16.msra.mxu0 0
    %703 = vmatprep.subr.bf16.mxu0 0
    %704 = vmatpush1.bf16.msra.mxu0 0
    %705 = vmatprep.subr.bf16.mxu0 0
    %706 = vmatpush1.bf16.msra.mxu0 0
    %707 = vmatprep.subr.bf16.mxu0 0
    %708 = vmatpush1.bf16.msra.mxu0 0
    %709 = vmatprep.subr.bf16.mxu0 0
    %710 = vmatpush1.bf16.msra.mxu0 0
    %711 = vmatprep.subr.bf16.mxu0 0
    %712 = vmatpush1.bf16.msra.mxu0 0
    %713 = vmatprep.subr.bf16.mxu0 0
    %714 = vmatpush1.bf16.msra.mxu0 0
    %715 = vmatprep.subr.bf16.mxu0 0
    %716 = vmatpush1.bf16.msra.mxu0 0
    %717 = vmatprep.subr.bf16.mxu0 0
    %718 = vmatpush1.bf16.msra.mxu0 0
    %719 = vmatprep.mubr.bf16.mxu0 0
    %720 = vmatmul.mubr.bf16.gmra.mrb[0].mxu0 %v679
    %v721 = vpop.f32.mrb[0].mxu0
    %v722 = vadd.f32 %v414, %v721
    %v723 = vpop.f32.mrb[0].mxu0
    %v724 = vpop.f32.mrb[0].mxu0
    %v725 = vadd.f32 %v417, %v724
    %v726 = vpop.f32.mrb[0].mxu0
    %727 = vmatprep.mubr.bf16.mxu0 0
    %728 = vmatmul.mubr.bf16.gmra.mrb[0].mxu0 %v280
    %v729 = vpop.f32.mrb[0].mxu0
    %v730 = vadd.f32 %v422, %v729
    %v731 = vpop.f32.mrb[0].mxu0
    %v732 = vpop.f32.mrb[0].mxu0
    %v733 = vadd.f32 %v425, %v732
    %v734 = vpop.f32.mrb[0].mxu0
    %735 = vmatprep.mubr.bf16.mxu0 0
    %736 = vmatmul.mubr.bf16.gmra.mrb[0].mxu0 %v283
    %v737 = vpop.f32.mrb[0].mxu0
    %v738 = vadd.f32 %v430, %v737
    %v739 = vpop.f32.mrb[0].mxu0
    %v740 = vpop.f32.mrb[0].mxu0
    %v741 = vadd.f32 %v433, %v740
    %v742 = vpop.f32.mrb[0].mxu0
    %743 = vmatprep.mubr.bf16.mxu0 0
    %744 = vmatmul.mubr.bf16.gmra.mrb[0].mxu0 %v286
    %v745 = vpop.f32.mrb[0].mxu0
    %v746 = vadd.f32 %v438, %v745
    %v747 = vpop.f32.mrb[0].mxu0
    %v748 = vpop.f32.mrb[0].mxu0
    %v749 = vadd.f32 %v441, %v748
    %v750 = vpop.f32.mrb[0].mxu0
    %751 = vmatprep.mubr.bf16.mxu0 0
    %752 = vmatmul.mubr.bf16.gmra.mrb[0].mxu0 %v289
    %v753 = vpop.f32.mrb[0].mxu0
    %v754 = vadd.f32 %v446, %v753
    %v755 = vpop.f32.mrb[0].mxu0
    %v756 = vpop.f32.mrb[0].mxu0
    %v757 = vadd.f32 %v449, %v756
    %v758 = vpop.f32.mrb[0].mxu0
    %759 = vmatprep.mubr.bf16.mxu0 0
    %760 = vmatmul.mubr.bf16.gmra.mrb[0].mxu0 %v292
    %v761 = vpop.f32.mrb[0].mxu0
    %v762 = vadd.f32 %v454, %v761
    %v763 = vpop.f32.mrb[0].mxu0
    %v764 = vpop.f32.mrb[0].mxu0
    %v765 = vadd.f32 %v457, %v764
    %v766 = vpop.f32.mrb[0].mxu0
    %767 = vmatprep.mubr.bf16.mxu0 0
    %768 = vmatmul.mubr.bf16.gmra.mrb[0].mxu0 %v295
    %v769 = vpop.f32.mrb[0].mxu0
    %v770 = vadd.f32 %v462, %v769
    %v771 = vpop.f32.mrb[0].mxu0
    %v772 = vpop.f32.mrb[0].mxu0
    %v773 = vadd.f32 %v465, %v772
    %v774 = vpop.f32.mrb[0].mxu0
    %775 = vmatprep.mubr.bf16.mxu0 0
    %776 = vmatmul.mubr.bf16.gmra.mrb[0].mxu0 %v298
    %v777 = vpop.f32.mrb[0].mxu0
    %v778 = vadd.f32 %v470, %v777
    %v779 = vpop.f32.mrb[0].mxu0
    %v780 = vpop.f32.mrb[0].mxu0
    %v781 = vadd.f32 %v473, %v780
    %v782 = vpop.f32.mrb[0].mxu0
    %783 = vmatprep.mubr.bf16.mxu0 0
    %784 = vmatmul.mubr.bf16.gmra.mrb[0].mxu0 %v301
    %v785 = vpop.f32.mrb[0].mxu0
    %v786 = vadd.f32 %v478, %v785
    %v787 = vpop.f32.mrb[0].mxu0
    %v788 = vpop.f32.mrb[0].mxu0
    %v789 = vadd.f32 %v481, %v788
    %v790 = vpop.f32.mrb[0].mxu0
    %791 = vmatprep.mubr.bf16.mxu0 0
    %792 = vmatmul.mubr.bf16.gmra.mrb[0].mxu0 %v304
    %v793 = vpop.f32.mrb[0].mxu0
    %v794 = vadd.f32 %v486, %v793
    %v795 = vpop.f32.mrb[0].mxu0
    %v796 = vpop.f32.mrb[0].mxu0
    %v797 = vadd.f32 %v489, %v796
    %v798 = vpop.f32.mrb[0].mxu0
    %799 = vmatprep.mubr.bf16.mxu0 0
    %800 = vmatmul.mubr.bf16.gmra.mrb[0].mxu0 %v307
    %v801 = vpop.f32.mrb[0].mxu0
    %v802 = vadd.f32 %v494, %v801
    %v803 = vpop.f32.mrb[0].mxu0
    %v804 = vpop.f32.mrb[0].mxu0
    %v805 = vadd.f32 %v497, %v804
    %v806 = vpop.f32.mrb[0].mxu0
    %807 = vmatprep.mubr.bf16.mxu0 0
    %808 = vmatmul.mubr.bf16.gmra.mrb[0].mxu0 %v310
    %v809 = vpop.f32.mrb[0].mxu0
    %v810 = vadd.f32 %v502, %v809
    %v811 = vpop.f32.mrb[0].mxu0
    %v812 = vpop.f32.mrb[0].mxu0
    %v813 = vadd.f32 %v505, %v812
    %v814 = vpop.f32.mrb[0].mxu0
    %815 = vmatprep.mubr.bf16.mxu0 0
    %816 = vmatmul.mubr.bf16.gmra.mrb[0].mxu0 %v313
    %v817 = vpop.f32.mrb[0].mxu0
    %v818 = vadd.f32 %v510, %v817
    %v819 = vpop.f32.mrb[0].mxu0
    %v820 = vpop.f32.mrb[0].mxu0
    %v821 = vadd.f32 %v513, %v820
    %v822 = vpop.f32.mrb[0].mxu0
    %823 = vmatprep.mubr.bf16.mxu0 0
    %824 = vmatmul.mubr.bf16.gmra.mrb[0].mxu0 %v316
    %v825 = vpop.f32.mrb[0].mxu0
    %v826 = vadd.f32 %v518, %v825
    %v827 = vpop.f32.mrb[0].mxu0
    %v828 = vpop.f32.mrb[0].mxu0
    %v829 = vadd.f32 %v521, %v828
    %v830 = vpop.f32.mrb[0].mxu0
    %831 = vmatprep.mubr.bf16.mxu0 0
    %832 = vmatmul.mubr.bf16.gmra.mrb[0].mxu0 %v319
    %v833 = vpop.f32.mrb[0].mxu0
    %v834 = vadd.f32 %v526, %v833
    %v835 = vpop.f32.mrb[0].mxu0
    %v836 = vpop.f32.mrb[0].mxu0
    %v837 = vadd.f32 %v529, %v836
    %v838 = vpop.f32.mrb[0].mxu0
    %839 = vmatprep.mubr.bf16.mxu0 0
    %840 = vmatmul.mubr.bf16.gmra.mrb[0].mxu0 %v322
    %v841 = vpop.f32.mrb[0].mxu0
    %v842 = vadd.f32 %v534, %v841
    %v843 = vpop.f32.mrb[0].mxu0
    %v844 = vpop.f32.mrb[0].mxu0
    %v845 = vadd.f32 %v537, %v844
    %v846 = vpop.f32.mrb[0].mxu0
    %847 = vmatprep.mubr.bf16.mxu0 0
    %848 = vmatmul.mubr.bf16.gmra.mrb[0].mxu0 %v682
    %v849 = vpop.f32.mrb[0].mxu0
    %v850 = vadd.f32 %v542, %v849
    %v851 = vpop.f32.mrb[0].mxu0
    %v852 = vpop.f32.mrb[0].mxu0
    %v853 = vadd.f32 %v545, %v852
    %v854 = vpop.f32.mrb[0].mxu0
    %855 = vmatprep.mubr.bf16.mxu0 0
    %856 = vmatmul.mubr.bf16.gmra.mrb[0].mxu0 %v328
    %v857 = vpop.f32.mrb[0].mxu0
    %v858 = vadd.f32 %v550, %v857
    %v859 = vpop.f32.mrb[0].mxu0
    %v860 = vpop.f32.mrb[0].mxu0
    %v861 = vadd.f32 %v553, %v860
    %v862 = vpop.f32.mrb[0].mxu0
    %863 = vmatprep.mubr.bf16.mxu0 0
    %864 = vmatmul.mubr.bf16.gmra.mrb[0].mxu0 %v331
    %v865 = vpop.f32.mrb[0].mxu0
    %v866 = vadd.f32 %v558, %v865
    %v867 = vpop.f32.mrb[0].mxu0
    %v868 = vpop.f32.mrb[0].mxu0
    %v869 = vadd.f32 %v561, %v868
    %v870 = vpop.f32.mrb[0].mxu0
    %871 = vmatprep.mubr.bf16.mxu0 0
    %872 = vmatmul.mubr.bf16.gmra.mrb[0].mxu0 %v334
    %v873 = vpop.f32.mrb[0].mxu0
    %v874 = vadd.f32 %v566, %v873
    %v875 = vpop.f32.mrb[0].mxu0
    %v876 = vpop.f32.mrb[0].mxu0
    %v877 = vadd.f32 %v569, %v876
    %v878 = vpop.f32.mrb[0].mxu0
    %879 = vmatprep.mubr.bf16.mxu0 0
    %880 = vmatmul.mubr.bf16.gmra.mrb[0].mxu0 %v337
    %v881 = vpop.f32.mrb[0].mxu0
    %v882 = vadd.f32 %v574, %v881
    %v883 = vpop.f32.mrb[0].mxu0
    %v884 = vpop.f32.mrb[0].mxu0
    %v885 = vadd.f32 %v577, %v884
    %v886 = vpop.f32.mrb[0].mxu0
    %887 = vmatprep.mubr.bf16.mxu0 0
    %888 = vmatmul.mubr.bf16.gmra.mrb[0].mxu0 %v340
    %v889 = vpop.f32.mrb[0].mxu0
    %v890 = vadd.f32 %v582, %v889
    %v891 = vpop.f32.mrb[0].mxu0
    %v892 = vpop.f32.mrb[0].mxu0
    %v893 = vadd.f32 %v585, %v892
    %v894 = vpop.f32.mrb[0].mxu0
    %895 = vmatprep.mubr.bf16.mxu0 0
    %896 = vmatmul.mubr.bf16.gmra.mrb[0].mxu0 %v343
    %v897 = vpop.f32.mrb[0].mxu0
    %v898 = vadd.f32 %v590, %v897
    %v899 = vpop.f32.mrb[0].mxu0
    %v900 = vpop.f32.mrb[0].mxu0
    %v901 = vadd.f32 %v593, %v900
    %v902 = vpop.f32.mrb[0].mxu0
    %903 = vmatprep.mubr.bf16.mxu0 0
    %904 = vmatmul.mubr.bf16.gmra.mrb[0].mxu0 %v346
    %v905 = vpop.f32.mrb[0].mxu0
    %v906 = vadd.f32 %v598, %v905
    %v907 = vpop.f32.mrb[0].mxu0
    %v908 = vpop.f32.mrb[0].mxu0
    %v909 = vadd.f32 %v601, %v908
    %v910 = vpop.f32.mrb[0].mxu0
    %911 = vmatprep.mubr.bf16.mxu0 0
    %912 = vmatmul.mubr.bf16.gmra.mrb[0].mxu0 %v349
    %v913 = vpop.f32.mrb[0].mxu0
    %v914 = vadd.f32 %v606, %v913
    %v915 = vpop.f32.mrb[0].mxu0
    %v916 = vpop.f32.mrb[0].mxu0
    %v917 = vadd.f32 %v609, %v916
    %v918 = vpop.f32.mrb[0].mxu0
    %919 = vmatprep.mubr.bf16.mxu0 0
    %920 = vmatmul.mubr.bf16.gmra.mrb[0].mxu0 %v352
    %v921 = vpop.f32.mrb[0].mxu0
    %v922 = vadd.f32 %v614, %v921
    %v923 = vpop.f32.mrb[0].mxu0
    %v924 = vpop.f32.mrb[0].mxu0
    %v925 = vadd.f32 %v617, %v924
    %v926 = vpop.f32.mrb[0].mxu0
    %927 = vmatprep.mubr.bf16.mxu0 0
    %928 = vmatmul.mubr.bf16.gmra.mrb[0].mxu0 %v355
    %v929 = vpop.f32.mrb[0].mxu0
    %v930 = vadd.f32 %v622, %v929
    %v931 = vpop.f32.mrb[0].mxu0
    %v932 = vpop.f32.mrb[0].mxu0
    %v933 = vadd.f32 %v625, %v932
    %v934 = vpop.f32.mrb[0].mxu0
    %935 = vmatprep.mubr.bf16.mxu0 0
    %936 = vmatmul.mubr.bf16.gmra.mrb[0].mxu0 %v358
    %v937 = vpop.f32.mrb[0].mxu0
    %v938 = vadd.f32 %v630, %v937
    %v939 = vpop.f32.mrb[0].mxu0
    %v940 = vpop.f32.mrb[0].mxu0
    %v941 = vadd.f32 %v633, %v940
    %v942 = vpop.f32.mrb[0].mxu0
    %943 = vmatprep.mubr.bf16.mxu0 0
    %944 = vmatmul.mubr.bf16.gmra.mrb[0].mxu0 %v361
    %v945 = vpop.f32.mrb[0].mxu0
    %v946 = vadd.f32 %v638, %v945
    %v947 = vpop.f32.mrb[0].mxu0
    %v948 = vpop.f32.mrb[0].mxu0
    %v949 = vadd.f32 %v641, %v948
    %v950 = vpop.f32.mrb[0].mxu0
    %951 = vmatprep.mubr.bf16.mxu0 0
    %952 = vmatmul.mubr.bf16.gmra.mrb[0].mxu0 %v364
    %v953 = vpop.f32.mrb[0].mxu0
    %v954 = vadd.f32 %v646, %v953
    %v955 = vpop.f32.mrb[0].mxu0
    %v956 = vpop.f32.mrb[0].mxu0
    %v957 = vadd.f32 %v649, %v956
    %v958 = vpop.f32.mrb[0].mxu0
    %959 = vmatprep.mubr.bf16.mxu0 0
    %960 = vmatmul.mubr.bf16.gmra.mrb[0].mxu0 %v367
    %v961 = vpop.f32.mrb[0].mxu0
    %v962 = vadd.f32 %v654, %v961
    %v963 = vpop.f32.mrb[0].mxu0
    %v964 = vpop.f32.mrb[0].mxu0
    %v965 = vadd.f32 %v657, %v964
    %v966 = vpop.f32.mrb[0].mxu0
    %967 = vmatprep.mubr.bf16.mxu0 0
    %968 = vmatmul.mubr.bf16.gmra.mrb[0].mxu0 %v370
    %v969 = vpop.f32.mrb[0].mxu0
    %v970 = vadd.f32 %v662, %v969
    %v971 = vpop.f32.mrb[0].mxu0
    %v972 = vpop.f32.mrb[0].mxu0
    %v973 = vadd.f32 %v665, %v972
    %v974 = vpop.f32.mrb[0].mxu0
    %975 = vdwg.mxu0
    %s976 = scalar_lea.vmem %s1, 12
    %v977 = vld [vmem:[%s976] sm:$0x3]
    %v982 = vunpack.c.l.b16 %v77
    %v983 = vunpack.c.l.b16 %v78
    %v984 = vunpack.c.l.b16 %v113
    %v985 = vunpack.c.l.b16 %v114
    %v986 = vpack.c.b16 %v983, %v982
    %v987 = vpack.c.b16 %v985, %v984
    %v989 = vsel %vm278, %v986, 0
    %v992 = vsel %vm278, %v987, 0
    %v995 = vsel %vm375, %v977, 0
    %997 = vmatprep.subr.bf16.mxu0 0
    %998 = vmatpush1.bf16.msra.mxu0 %v995
    %999 = vmatprep.subr.bf16.mxu0 0
    %1000 = vmatpush1.bf16.msra.mxu0 0
    %1001 = vmatprep.subr.bf16.mxu0 0
    %1002 = vmatpush1.bf16.msra.mxu0 0
    %1003 = vmatprep.subr.bf16.mxu0 0
    %1004 = vmatpush1.bf16.msra.mxu0 0
    %1005 = vmatprep.subr.bf16.mxu0 0
    %1006 = vmatpush1.bf16.msra.mxu0 0
    %1007 = vmatprep.subr.bf16.mxu0 0
    %1008 = vmatpush1.bf16.msra.mxu0 0
    %1009 = vmatprep.subr.bf16.mxu0 0
    %1010 = vmatpush1.bf16.msra.mxu0 0
    %1011 = vmatprep.subr.bf16.mxu0 0
    %1012 = vmatpush1.bf16.msra.mxu0 0
    %1013 = vmatprep.subr.bf16.mxu0 0
    %1014 = vmatpush1.bf16.msra.mxu0 0
    %1015 = vmatprep.subr.bf16.mxu0 0
    %1016 = vmatpush1.bf16.msra.mxu0 0
    %1017 = vmatprep.subr.bf16.mxu0 0
    %1018 = vmatpush1.bf16.msra.mxu0 0
    %1019 = vmatprep.subr.bf16.mxu0 0
    %1020 = vmatpush1.bf16.msra.mxu0 0
    %1021 = vmatprep.subr.bf16.mxu0 0
    %1022 = vmatpush1.bf16.msra.mxu0 0
    %1023 = vmatprep.subr.bf16.mxu0 0
    %1024 = vmatpush1.bf16.msra.mxu0 0
    %1025 = vmatprep.subr.bf16.mxu0 0
    %1026 = vmatpush1.bf16.msra.mxu0 0
    %1027 = vmatprep.subr.bf16.mxu0 0
    %1028 = vmatpush1.bf16.msra.mxu0 0
    %1029 = vmatprep.mubr.bf16.mxu0 0
    %1030 = vmatmul.mubr.bf16.gmra.mrb[0].mxu0 %v283
    %v1031 = vpop.f32.mrb[0].mxu0
    %v1032 = vadd.f32 0.0, %v1031
    %v1033 = vpop.f32.mrb[0].mxu0
    %v1034 = vpop.f32.mrb[0].mxu0
    %v1035 = vadd.f32 0.0, %v1034
    %v1036 = vpop.f32.mrb[0].mxu0
    %1037 = vmatprep.mubr.bf16.mxu0 0
    %1038 = vmatmul.mubr.bf16.gmra.mrb[0].mxu0 %v286
    %v1039 = vpop.f32.mrb[0].mxu0
    %v1040 = vadd.f32 0.0, %v1039
    %v1041 = vpop.f32.mrb[0].mxu0
    %v1042 = vpop.f32.mrb[0].mxu0
    %v1043 = vadd.f32 0.0, %v1042
    %v1044 = vpop.f32.mrb[0].mxu0
    %1045 = vmatprep.mubr.bf16.mxu0 0
    %1046 = vmatmul.mubr.bf16.gmra.mrb[0].mxu0 %v289
    %v1047 = vpop.f32.mrb[0].mxu0
    %v1048 = vadd.f32 0.0, %v1047
    %v1049 = vpop.f32.mrb[0].mxu0
    %v1050 = vpop.f32.mrb[0].mxu0
    %v1051 = vadd.f32 0.0, %v1050
    %v1052 = vpop.f32.mrb[0].mxu0
    %1053 = vmatprep.mubr.bf16.mxu0 0
    %1054 = vmatmul.mubr.bf16.gmra.mrb[0].mxu0 %v292
    %v1055 = vpop.f32.mrb[0].mxu0
    %v1056 = vadd.f32 0.0, %v1055
    %v1057 = vpop.f32.mrb[0].mxu0
    %v1058 = vpop.f32.mrb[0].mxu0
    %v1059 = vadd.f32 0.0, %v1058
    %v1060 = vpop.f32.mrb[0].mxu0
    %1061 = vmatprep.mubr.bf16.mxu0 0
    %1062 = vmatmul.mubr.bf16.gmra.mrb[0].mxu0 %v295
    %v1063 = vpop.f32.mrb[0].mxu0
    %v1064 = vadd.f32 0.0, %v1063
    %v1065 = vpop.f32.mrb[0].mxu0
    %v1066 = vpop.f32.mrb[0].mxu0
    %v1067 = vadd.f32 0.0, %v1066
    %v1068 = vpop.f32.mrb[0].mxu0
    %1069 = vmatprep.mubr.bf16.mxu0 0
    %1070 = vmatmul.mubr.bf16.gmra.mrb[0].mxu0 %v298
    %v1071 = vpop.f32.mrb[0].mxu0
    %v1072 = vadd.f32 0.0, %v1071
    %v1073 = vpop.f32.mrb[0].mxu0
    %v1074 = vpop.f32.mrb[0].mxu0
    %v1075 = vadd.f32 0.0, %v1074
    %v1076 = vpop.f32.mrb[0].mxu0
    %1077 = vmatprep.mubr.bf16.mxu0 0
    %1078 = vmatmul.mubr.bf16.gmra.mrb[0].mxu0 %v301
    %v1079 = vpop.f32.mrb[0].mxu0
    %v1080 = vadd.f32 0.0, %v1079
    %v1081 = vpop.f32.mrb[0].mxu0
    %v1082 = vpop.f32.mrb[0].mxu0
    %v1083 = vadd.f32 0.0, %v1082
    %v1084 = vpop.f32.mrb[0].mxu0
    %1085 = vmatprep.mubr.bf16.mxu0 0
    %1086 = vmatmul.mubr.bf16.gmra.mrb[0].mxu0 %v304
    %v1087 = vpop.f32.mrb[0].mxu0
    %v1088 = vadd.f32 0.0, %v1087
    %v1089 = vpop.f32.mrb[0].mxu0
    %v1090 = vpop.f32.mrb[0].mxu0
    %v1091 = vadd.f32 0.0, %v1090
    %v1092 = vpop.f32.mrb[0].mxu0
    %1093 = vmatprep.mubr.bf16.mxu0 0
    %1094 = vmatmul.mubr.bf16.gmra.mrb[0].mxu0 %v307
    %v1095 = vpop.f32.mrb[0].mxu0
    %v1096 = vadd.f32 0.0, %v1095
    %v1097 = vpop.f32.mrb[0].mxu0
    %v1098 = vpop.f32.mrb[0].mxu0
    %v1099 = vadd.f32 0.0, %v1098
    %v1100 = vpop.f32.mrb[0].mxu0
    %1101 = vmatprep.mubr.bf16.mxu0 0
    %1102 = vmatmul.mubr.bf16.gmra.mrb[0].mxu0 %v310
    %v1103 = vpop.f32.mrb[0].mxu0
    %v1104 = vadd.f32 0.0, %v1103
    %v1105 = vpop.f32.mrb[0].mxu0
    %v1106 = vpop.f32.mrb[0].mxu0
    %v1107 = vadd.f32 0.0, %v1106
    %v1108 = vpop.f32.mrb[0].mxu0
    %1109 = vmatprep.mubr.bf16.mxu0 0
    %1110 = vmatmul.mubr.bf16.gmra.mrb[0].mxu0 %v313
    %v1111 = vpop.f32.mrb[0].mxu0
    %v1112 = vadd.f32 0.0, %v1111
    %v1113 = vpop.f32.mrb[0].mxu0
    %v1114 = vpop.f32.mrb[0].mxu0
    %v1115 = vadd.f32 0.0, %v1114
    %v1116 = vpop.f32.mrb[0].mxu0
    %1117 = vmatprep.mubr.bf16.mxu0 0
    %1118 = vmatmul.mubr.bf16.gmra.mrb[0].mxu0 %v316
    %v1119 = vpop.f32.mrb[0].mxu0
    %v1120 = vadd.f32 0.0, %v1119
    %v1121 = vpop.f32.mrb[0].mxu0
    %v1122 = vpop.f32.mrb[0].mxu0
    %v1123 = vadd.f32 0.0, %v1122
    %v1124 = vpop.f32.mrb[0].mxu0
    %1125 = vmatprep.mubr.bf16.mxu0 0
    %1126 = vmatmul.mubr.bf16.gmra.mrb[0].mxu0 %v319
    %v1127 = vpop.f32.mrb[0].mxu0
    %v1128 = vadd.f32 0.0, %v1127
    %v1129 = vpop.f32.mrb[0].mxu0
    %v1130 = vpop.f32.mrb[0].mxu0
    %v1131 = vadd.f32 0.0, %v1130
    %v1132 = vpop.f32.mrb[0].mxu0
    %1133 = vmatprep.mubr.bf16.mxu0 0
    %1134 = vmatmul.mubr.bf16.gmra.mrb[0].mxu0 %v322
    %v1135 = vpop.f32.mrb[0].mxu0
    %v1136 = vadd.f32 0.0, %v1135
    %v1137 = vpop.f32.mrb[0].mxu0
    %v1138 = vpop.f32.mrb[0].mxu0
    %v1139 = vadd.f32 0.0, %v1138
    %v1140 = vpop.f32.mrb[0].mxu0
    %1141 = vmatprep.mubr.bf16.mxu0 0
    %1142 = vmatmul.mubr.bf16.gmra.mrb[0].mxu0 %v325
    %v1143 = vpop.f32.mrb[0].mxu0
    %v1144 = vadd.f32 0.0, %v1143
    %v1145 = vpop.f32.mrb[0].mxu0
    %v1146 = vpop.f32.mrb[0].mxu0
    %v1147 = vadd.f32 0.0, %v1146
    %v1148 = vpop.f32.mrb[0].mxu0
    %1149 = vmatprep.mubr.bf16.mxu0 0
    %1150 = vmatmul.mubr.bf16.gmra.mrb[0].mxu0 %v989
    %v1151 = vpop.f32.mrb[0].mxu0
    %v1152 = vadd.f32 0.0, %v1151
    %v1153 = vpop.f32.mrb[0].mxu0
    %v1154 = vpop.f32.mrb[0].mxu0
    %v1155 = vadd.f32 0.0, %v1154
    %v1156 = vpop.f32.mrb[0].mxu0
    %1157 = vmatprep.mubr.bf16.mxu0 0
    %1158 = vmatmul.mubr.bf16.gmra.mrb[0].mxu0 %v331
    %v1159 = vpop.f32.mrb[0].mxu0
    %v1160 = vadd.f32 0.0, %v1159
    %v1161 = vpop.f32.mrb[0].mxu0
    %v1162 = vpop.f32.mrb[0].mxu0
    %v1163 = vadd.f32 0.0, %v1162
    %v1164 = vpop.f32.mrb[0].mxu0
    %1165 = vmatprep.mubr.bf16.mxu0 0
    %1166 = vmatmul.mubr.bf16.gmra.mrb[0].mxu0 %v334
    %v1167 = vpop.f32.mrb[0].mxu0
    %v1168 = vadd.f32 0.0, %v1167
    %v1169 = vpop.f32.mrb[0].mxu0
    %v1170 = vpop.f32.mrb[0].mxu0
    %v1171 = vadd.f32 0.0, %v1170
    %v1172 = vpop.f32.mrb[0].mxu0
    %1173 = vmatprep.mubr.bf16.mxu0 0
    %1174 = vmatmul.mubr.bf16.gmra.mrb[0].mxu0 %v337
    %v1175 = vpop.f32.mrb[0].mxu0
    %v1176 = vadd.f32 0.0, %v1175
    %v1177 = vpop.f32.mrb[0].mxu0
    %v1178 = vpop.f32.mrb[0].mxu0
    %v1179 = vadd.f32 0.0, %v1178
    %v1180 = vpop.f32.mrb[0].mxu0
    %1181 = vmatprep.mubr.bf16.mxu0 0
    %1182 = vmatmul.mubr.bf16.gmra.mrb[0].mxu0 %v340
    %v1183 = vpop.f32.mrb[0].mxu0
    %v1184 = vadd.f32 0.0, %v1183
    %v1185 = vpop.f32.mrb[0].mxu0
    %v1186 = vpop.f32.mrb[0].mxu0
    %v1187 = vadd.f32 0.0, %v1186
    %v1188 = vpop.f32.mrb[0].mxu0
    %1189 = vmatprep.mubr.bf16.mxu0 0
    %1190 = vmatmul.mubr.bf16.gmra.mrb[0].mxu0 %v343
    %v1191 = vpop.f32.mrb[0].mxu0
    %v1192 = vadd.f32 0.0, %v1191
    %v1193 = vpop.f32.mrb[0].mxu0
    %v1194 = vpop.f32.mrb[0].mxu0
    %v1195 = vadd.f32 0.0, %v1194
    %v1196 = vpop.f32.mrb[0].mxu0
    %1197 = vmatprep.mubr.bf16.mxu0 0
    %1198 = vmatmul.mubr.bf16.gmra.mrb[0].mxu0 %v346
    %v1199 = vpop.f32.mrb[0].mxu0
    %v1200 = vadd.f32 0.0, %v1199
    %v1201 = vpop.f32.mrb[0].mxu0
    %v1202 = vpop.f32.mrb[0].mxu0
    %v1203 = vadd.f32 0.0, %v1202
    %v1204 = vpop.f32.mrb[0].mxu0
    %1205 = vmatprep.mubr.bf16.mxu0 0
    %1206 = vmatmul.mubr.bf16.gmra.mrb[0].mxu0 %v349
    %v1207 = vpop.f32.mrb[0].mxu0
    %v1208 = vadd.f32 0.0, %v1207
    %v1209 = vpop.f32.mrb[0].mxu0
    %v1210 = vpop.f32.mrb[0].mxu0
    %v1211 = vadd.f32 0.0, %v1210
    %v1212 = vpop.f32.mrb[0].mxu0
    %1213 = vmatprep.mubr.bf16.mxu0 0
    %1214 = vmatmul.mubr.bf16.gmra.mrb[0].mxu0 %v352
    %v1215 = vpop.f32.mrb[0].mxu0
    %v1216 = vadd.f32 0.0, %v1215
    %v1217 = vpop.f32.mrb[0].mxu0
    %v1218 = vpop.f32.mrb[0].mxu0
    %v1219 = vadd.f32 0.0, %v1218
    %v1220 = vpop.f32.mrb[0].mxu0
    %1221 = vmatprep.mubr.bf16.mxu0 0
    %1222 = vmatmul.mubr.bf16.gmra.mrb[0].mxu0 %v355
    %v1223 = vpop.f32.mrb[0].mxu0
    %v1224 = vadd.f32 0.0, %v1223
    %v1225 = vpop.f32.mrb[0].mxu0
    %v1226 = vpop.f32.mrb[0].mxu0
    %v1227 = vadd.f32 0.0, %v1226
    %v1228 = vpop.f32.mrb[0].mxu0
    %1229 = vmatprep.mubr.bf16.mxu0 0
    %1230 = vmatmul.mubr.bf16.gmra.mrb[0].mxu0 %v358
    %v1231 = vpop.f32.mrb[0].mxu0
    %v1232 = vadd.f32 0.0, %v1231
    %v1233 = vpop.f32.mrb[0].mxu0
    %v1234 = vpop.f32.mrb[0].mxu0
    %v1235 = vadd.f32 0.0, %v1234
    %v1236 = vpop.f32.mrb[0].mxu0
    %1237 = vmatprep.mubr.bf16.mxu0 0
    %1238 = vmatmul.mubr.bf16.gmra.mrb[0].mxu0 %v361
    %v1239 = vpop.f32.mrb[0].mxu0
    %v1240 = vadd.f32 0.0, %v1239
    %v1241 = vpop.f32.mrb[0].mxu0
    %v1242 = vpop.f32.mrb[0].mxu0
    %v1243 = vadd.f32 0.0, %v1242
    %v1244 = vpop.f32.mrb[0].mxu0
    %1245 = vmatprep.mubr.bf16.mxu0 0
    %1246 = vmatmul.mubr.bf16.gmra.mrb[0].mxu0 %v364
    %v1247 = vpop.f32.mrb[0].mxu0
    %v1248 = vadd.f32 0.0, %v1247
    %v1249 = vpop.f32.mrb[0].mxu0
    %v1250 = vpop.f32.mrb[0].mxu0
    %v1251 = vadd.f32 0.0, %v1250
    %v1252 = vpop.f32.mrb[0].mxu0
    %1253 = vmatprep.mubr.bf16.mxu0 0
    %1254 = vmatmul.mubr.bf16.gmra.mrb[0].mxu0 %v367
    %v1255 = vpop.f32.mrb[0].mxu0
    %v1256 = vadd.f32 0.0, %v1255
    %v1257 = vpop.f32.mrb[0].mxu0
    %v1258 = vpop.f32.mrb[0].mxu0
    %v1259 = vadd.f32 0.0, %v1258
    %v1260 = vpop.f32.mrb[0].mxu0
    %1261 = vmatprep.mubr.bf16.mxu0 0
    %1262 = vmatmul.mubr.bf16.gmra.mrb[0].mxu0 %v370
    %v1263 = vpop.f32.mrb[0].mxu0
    %v1264 = vadd.f32 0.0, %v1263
    %v1265 = vpop.f32.mrb[0].mxu0
    %v1266 = vpop.f32.mrb[0].mxu0
    %v1267 = vadd.f32 0.0, %v1266
    %v1268 = vpop.f32.mrb[0].mxu0
    %1269 = vmatprep.mubr.bf16.mxu0 0
    %1270 = vmatmul.mubr.bf16.gmra.mrb[0].mxu0 %v373
    %v1271 = vpop.f32.mrb[0].mxu0
    %v1272 = vadd.f32 0.0, %v1271
    %v1273 = vpop.f32.mrb[0].mxu0
    %v1274 = vpop.f32.mrb[0].mxu0
    %v1275 = vadd.f32 0.0, %v1274
    %v1276 = vpop.f32.mrb[0].mxu0
    %1277 = vmatprep.mubr.bf16.mxu0 0
    %1278 = vmatmul.mubr.bf16.gmra.mrb[0].mxu0 %v992
    %v1279 = vpop.f32.mrb[0].mxu0
    %v1280 = vadd.f32 0.0, %v1279
    %v1281 = vpop.f32.mrb[0].mxu0
    %v1282 = vpop.f32.mrb[0].mxu0
    %v1283 = vadd.f32 0.0, %v1282
    %v1284 = vpop.f32.mrb[0].mxu0
    %1285 = vdwg.mxu0
    %v1286 = vadd.f32 %v722, %v1032
    %v1287 = vadd.f32 %v725, %v1035
    %v1288 = vadd.f32 %v730, %v1040
    %v1289 = vadd.f32 %v733, %v1043
    %v1290 = vadd.f32 %v738, %v1048
    %v1291 = vadd.f32 %v741, %v1051
    %v1292 = vadd.f32 %v746, %v1056
    %v1293 = vadd.f32 %v749, %v1059
    %v1294 = vadd.f32 %v754, %v1064
    %v1295 = vadd.f32 %v757, %v1067
    %v1296 = vadd.f32 %v762, %v1072
    %v1297 = vadd.f32 %v765, %v1075
    %v1298 = vadd.f32 %v770, %v1080
    %v1299 = vadd.f32 %v773, %v1083
    %v1300 = vadd.f32 %v778, %v1088
    %v1301 = vadd.f32 %v781, %v1091
    %v1302 = vadd.f32 %v786, %v1096
    %v1303 = vadd.f32 %v789, %v1099
    %v1304 = vadd.f32 %v794, %v1104
    %v1305 = vadd.f32 %v797, %v1107
    %v1306 = vadd.f32 %v802, %v1112
    %v1307 = vadd.f32 %v805, %v1115
    %v1308 = vadd.f32 %v810, %v1120
    %v1309 = vadd.f32 %v813, %v1123
    %v1310 = vadd.f32 %v818, %v1128
    %v1311 = vadd.f32 %v821, %v1131
    %v1312 = vadd.f32 %v826, %v1136
    %v1313 = vadd.f32 %v829, %v1139
    %v1314 = vadd.f32 %v834, %v1144
    %v1315 = vadd.f32 %v837, %v1147
    %v1316 = vadd.f32 %v842, %v1152
    %v1317 = vadd.f32 %v845, %v1155
    %v1318 = vadd.f32 %v850, %v1160
    %v1319 = vadd.f32 %v853, %v1163
    %v1320 = vadd.f32 %v858, %v1168
    %v1321 = vadd.f32 %v861, %v1171
    %v1322 = vadd.f32 %v866, %v1176
    %v1323 = vadd.f32 %v869, %v1179
    %v1324 = vadd.f32 %v874, %v1184
    %v1325 = vadd.f32 %v877, %v1187
    %v1326 = vadd.f32 %v882, %v1192
    %v1327 = vadd.f32 %v885, %v1195
    %v1328 = vadd.f32 %v890, %v1200
    %v1329 = vadd.f32 %v893, %v1203
    %v1330 = vadd.f32 %v898, %v1208
    %v1331 = vadd.f32 %v901, %v1211
    %v1332 = vadd.f32 %v906, %v1216
    %v1333 = vadd.f32 %v909, %v1219
    %v1334 = vadd.f32 %v914, %v1224
    %v1335 = vadd.f32 %v917, %v1227
    %v1336 = vadd.f32 %v922, %v1232
    %v1337 = vadd.f32 %v925, %v1235
    %v1338 = vadd.f32 %v930, %v1240
    %v1339 = vadd.f32 %v933, %v1243
    %v1340 = vadd.f32 %v938, %v1248
    %v1341 = vadd.f32 %v941, %v1251
    %v1342 = vadd.f32 %v946, %v1256
    %v1343 = vadd.f32 %v949, %v1259
    %v1344 = vadd.f32 %v954, %v1264
    %v1345 = vadd.f32 %v957, %v1267
    %v1346 = vadd.f32 %v962, %v1272
    %v1347 = vadd.f32 %v965, %v1275
    %v1348 = vadd.f32 %v970, %v1280
    %v1349 = vadd.f32 %v973, %v1283
    %v1350 = vld [vmem:[%s0] sm:$0xf]
    %v1351 = vld [vmem:[%s0 + $0x4] sm:$0xf]
    %v1352 = vld [vmem:[%s0 + $0x8] sm:$0x1]
    %v1353 = vld [vmem:[%s0 + $0xc] sm:$0xf]
    %v1354 = vld [vmem:[%s0 + $0x10] sm:$0xf]
    %v1355 = vld [vmem:[%s0 + $0x14] sm:$0x1]
    %v1356 = vld [vmem:[%s0 + $0x18] sm:$0xf]
    %v1357 = vld [vmem:[%s0 + $0x1c] sm:$0xf]
    %v1358 = vld [vmem:[%s0 + $0x20] sm:$0x1]
    %v1359 = vld [vmem:[%s0 + $0x24] sm:$0xf]
    %v1360 = vld [vmem:[%s0 + $0x28] sm:$0xf]
    %v1361 = vld [vmem:[%s0 + $0x2c] sm:$0x1]
    %v1362 = vld [vmem:[%s0 + $0x30] sm:$0xf]
    %v1363 = vld [vmem:[%s0 + $0x34] sm:$0xf]
    %v1364 = vld [vmem:[%s0 + $0x38] sm:$0x1]
    %v1365 = vld [vmem:[%s0 + $0x3c] sm:$0xf]
    %v1366 = vld [vmem:[%s0 + $0x40] sm:$0xf]
    %v1367 = vld [vmem:[%s0 + $0x44] sm:$0x1]
    %v1368 = vld [vmem:[%s0 + $0x48] sm:$0xf]
    %v1369 = vld [vmem:[%s0 + $0x4c] sm:$0xf]
    %v1370 = vld [vmem:[%s0 + $0x50] sm:$0x1]
    %v1371 = vld [vmem:[%s0 + $0x54] sm:$0xf]
    %v1372 = vld [vmem:[%s0 + $0x58] sm:$0xf]
    %v1373 = vld [vmem:[%s0 + $0x5c] sm:$0x1]
    %v1374 = vld [vmem:[%s0 + $0x60] sm:$0xf]
    %v1375 = vld [vmem:[%s0 + $0x64] sm:$0xf]
    %v1376 = vld [vmem:[%s0 + $0x68] sm:$0x1]
    %v1377 = vld [vmem:[%s0 + $0x6c] sm:$0xf]
    %v1378 = vld [vmem:[%s0 + $0x70] sm:$0xf]
    %v1379 = vld [vmem:[%s0 + $0x74] sm:$0x1]
    %v1380 = vld [vmem:[%s0 + $0x78] sm:$0xf]
    %v1381 = vld [vmem:[%s0 + $0x7c] sm:$0xf]
    %v1382 = vld [vmem:[%s0 + $0x80] sm:$0x1]
    %v1383 = vld [vmem:[%s0 + $0x84] sm:$0xf]
    %v1384 = vld [vmem:[%s0 + $0x88] sm:$0xf]
    %v1385 = vld [vmem:[%s0 + $0x8c] sm:$0x1]
    %v1386 = vld [vmem:[%s0 + $0x90] sm:$0xf]
    %v1387 = vld [vmem:[%s0 + $0x94] sm:$0xf]
    %v1388 = vld [vmem:[%s0 + $0x98] sm:$0x1]
    %v1389 = vld [vmem:[%s0 + $0x9c] sm:$0xf]
    %v1390 = vld [vmem:[%s0 + $0xa0] sm:$0xf]
    %v1391 = vld [vmem:[%s0 + $0xa4] sm:$0x1]
    %v1392 = vld [vmem:[%s0 + $0xa8] sm:$0xf]
    %v1393 = vld [vmem:[%s0 + $0xac] sm:$0xf]
    %v1394 = vld [vmem:[%s0 + $0xb0] sm:$0x1]
    %v1395 = vld [vmem:[%s0 + $0xb4] sm:$0xf]
    %v1396 = vld [vmem:[%s0 + $0xb8] sm:$0xf]
    %v1397 = vld [vmem:[%s0 + $0xbc] sm:$0x1]
    %v1398 = vld [vmem:[%s0 + $0xc0] sm:$0xf]
    %v1399 = vld [vmem:[%s0 + $0xc4] sm:$0xf]
    %v1400 = vld [vmem:[%s0 + $0xc8] sm:$0x1]
    %v1401 = vld [vmem:[%s0 + $0xcc] sm:$0xf]
    %v1402 = vld [vmem:[%s0 + $0xd0] sm:$0xf]
    %v1403 = vld [vmem:[%s0 + $0xd4] sm:$0x1]
    %v1404 = vld [vmem:[%s0 + $0xd8] sm:$0xf]
    %v1405 = vld [vmem:[%s0 + $0xdc] sm:$0xf]
    %v1406 = vld [vmem:[%s0 + $0xe0] sm:$0x1]
    %v1407 = vld [vmem:[%s0 + $0xe4] sm:$0xf]
    %v1408 = vld [vmem:[%s0 + $0xe8] sm:$0xf]
    %v1409 = vld [vmem:[%s0 + $0xec] sm:$0x1]
    %v1410 = vld [vmem:[%s0 + $0xf0] sm:$0xf]
    %v1411 = vld [vmem:[%s0 + $0xf4] sm:$0xf]
    %v1412 = vld [vmem:[%s0 + $0xf8] sm:$0x1]
    %v1413 = vld [vmem:[%s0 + $0xfc] sm:$0xf]
    %v1414 = vld [vmem:[%s0 + $0x100] sm:$0xf]
    %v1415 = vld [vmem:[%s0 + $0x104] sm:$0x1]
    %v1416 = vld [vmem:[%s0 + $0x108] sm:$0xf]
    %v1417 = vld [vmem:[%s0 + $0x10c] sm:$0xf]
    %v1418 = vld [vmem:[%s0 + $0x110] sm:$0x1]
    %v1419 = vld [vmem:[%s0 + $0x114] sm:$0xf]
    %v1420 = vld [vmem:[%s0 + $0x118] sm:$0xf]
    %v1421 = vld [vmem:[%s0 + $0x11c] sm:$0x1]
    %v1422 = vld [vmem:[%s0 + $0x120] sm:$0xf]
    %v1423 = vld [vmem:[%s0 + $0x124] sm:$0xf]
    %v1424 = vld [vmem:[%s0 + $0x128] sm:$0x1]
    %v1425 = vld [vmem:[%s0 + $0x12c] sm:$0xf]
    %v1426 = vld [vmem:[%s0 + $0x130] sm:$0xf]
    %v1427 = vld [vmem:[%s0 + $0x134] sm:$0x1]
    %v1428 = vld [vmem:[%s0 + $0x138] sm:$0xf]
    %v1429 = vld [vmem:[%s0 + $0x13c] sm:$0xf]
    %v1430 = vld [vmem:[%s0 + $0x140] sm:$0x1]
    %v1431 = vld [vmem:[%s0 + $0x144] sm:$0xf]
    %v1432 = vld [vmem:[%s0 + $0x148] sm:$0xf]
    %v1433 = vld [vmem:[%s0 + $0x14c] sm:$0x1]
    %v1434 = vld [vmem:[%s0 + $0x150] sm:$0xf]
    %v1435 = vld [vmem:[%s0 + $0x154] sm:$0xf]
    %v1436 = vld [vmem:[%s0 + $0x158] sm:$0x1]
    %v1437 = vld [vmem:[%s0 + $0x15c] sm:$0xf]
    %v1438 = vld [vmem:[%s0 + $0x160] sm:$0xf]
    %v1439 = vld [vmem:[%s0 + $0x164] sm:$0x1]
    %v1440 = vld [vmem:[%s0 + $0x168] sm:$0xf]
    %v1441 = vld [vmem:[%s0 + $0x16c] sm:$0xf]
    %v1442 = vld [vmem:[%s0 + $0x170] sm:$0x1]
    %v1443 = vld [vmem:[%s0 + $0x174] sm:$0xf]
    %v1444 = vld [vmem:[%s0 + $0x178] sm:$0xf]
    %v1445 = vld [vmem:[%s0 + $0x17c] sm:$0x1]
    %v1446 = vld [vmem:[%s0 + $0x180] sm:$0xf]
    %v1447 = vld [vmem:[%s0 + $0x184] sm:$0xf]
    %v1448 = vld [vmem:[%s0 + $0x188] sm:$0x1]
    %v1449 = vld [vmem:[%s0 + $0x18c] sm:$0xf]
    %v1450 = vld [vmem:[%s0 + $0x190] sm:$0xf]
    %v1451 = vld [vmem:[%s0 + $0x194] sm:$0x1]
    %v1452 = vld [vmem:[%s0 + $0x198] sm:$0xf]
    %v1453 = vld [vmem:[%s0 + $0x19c] sm:$0xf]
    %v1454 = vld [vmem:[%s0 + $0x1a0] sm:$0x1]
    %v1455 = vld [vmem:[%s0 + $0x1a4] sm:$0xf]
    %v1456 = vld [vmem:[%s0 + $0x1a8] sm:$0xf]
    %v1457 = vld [vmem:[%s0 + $0x1ac] sm:$0x1]
    %vm1458 = vsmask.f32 3328
    %vm1459 = vsmask.f32 7440
    %vm1460 = vmor %vm1458, %vm1459
    %v1462 = vshrl.u32 %v1350, 16
    %v1464 = vrot.slane %v1462, 4
    %v1465 = vshll.u32 %v1350, 16
    %v1467 = vrot.slane %v1465, 5
    %v1468 = vor.u32 %v1464, %v1467
    %v1469 = vrot.slane %v1468, 4
    %v1471 = vshll.u32 %v1351, 16
    %v1473 = vrot.slane %v1471, 5
    %v1474 = vsel %vm1460, %v1469, %v1473
    %v1475 = vshrl.u32 %v1351, 16
    %v1477 = vrot.slane %v1475, 4
    %v1478 = vor.u32 %v1477, %v1473
    %v1479 = vrot.slane %v1478, 4
    %v1481 = vshll.u32 %v1352, 16
    %v1483 = vrot.slane %v1481, 5
    %v1484 = vsel %vm1460, %v1479, %v1483
    %v1486 = vshrl.u32 %v1353, 16
    %v1488 = vrot.slane %v1486, 4
    %v1489 = vshll.u32 %v1353, 16
    %v1491 = vrot.slane %v1489, 5
    %v1492 = vor.u32 %v1488, %v1491
    %v1493 = vrot.slane %v1492, 4
    %v1495 = vshll.u32 %v1354, 16
    %v1497 = vrot.slane %v1495, 5
    %v1498 = vsel %vm1460, %v1493, %v1497
    %v1499 = vshrl.u32 %v1354, 16
    %v1501 = vrot.slane %v1499, 4
    %v1502 = vor.u32 %v1501, %v1497
    %v1503 = vrot.slane %v1502, 4
    %v1505 = vshll.u32 %v1355, 16
    %v1507 = vrot.slane %v1505, 5
    %v1508 = vsel %vm1460, %v1503, %v1507
    %v1510 = vshrl.u32 %v1356, 16
    %v1512 = vrot.slane %v1510, 4
    %v1513 = vshll.u32 %v1356, 16
    %v1515 = vrot.slane %v1513, 5
    %v1516 = vor.u32 %v1512, %v1515
    %v1517 = vrot.slane %v1516, 4
    %v1519 = vshll.u32 %v1357, 16
    %v1521 = vrot.slane %v1519, 5
    %v1522 = vsel %vm1460, %v1517, %v1521
    %v1523 = vshrl.u32 %v1357, 16
    %v1525 = vrot.slane %v1523, 4
    %v1526 = vor.u32 %v1525, %v1521
    %v1527 = vrot.slane %v1526, 4
    %v1529 = vshll.u32 %v1358, 16
    %v1531 = vrot.slane %v1529, 5
    %v1532 = vsel %vm1460, %v1527, %v1531
    %v1534 = vshrl.u32 %v1359, 16
    %v1536 = vrot.slane %v1534, 4
    %v1537 = vshll.u32 %v1359, 16
    %v1539 = vrot.slane %v1537, 5
    %v1540 = vor.u32 %v1536, %v1539
    %v1541 = vrot.slane %v1540, 4
    %v1543 = vshll.u32 %v1360, 16
    %v1545 = vrot.slane %v1543, 5
    %v1546 = vsel %vm1460, %v1541, %v1545
    %v1547 = vshrl.u32 %v1360, 16
    %v1549 = vrot.slane %v1547, 4
    %v1550 = vor.u32 %v1549, %v1545
    %v1551 = vrot.slane %v1550, 4
    %v1553 = vshll.u32 %v1361, 16
    %v1555 = vrot.slane %v1553, 5
    %v1556 = vsel %vm1460, %v1551, %v1555
    %v1558 = vshrl.u32 %v1362, 16
    %v1560 = vrot.slane %v1558, 4
    %v1561 = vshll.u32 %v1362, 16
    %v1563 = vrot.slane %v1561, 5
    %v1564 = vor.u32 %v1560, %v1563
    %v1565 = vrot.slane %v1564, 4
    %v1567 = vshll.u32 %v1363, 16
    %v1569 = vrot.slane %v1567, 5
    %v1570 = vsel %vm1460, %v1565, %v1569
    %v1571 = vshrl.u32 %v1363, 16
    %v1573 = vrot.slane %v1571, 4
    %v1574 = vor.u32 %v1573, %v1569
    %v1575 = vrot.slane %v1574, 4
    %v1577 = vshll.u32 %v1364, 16
    %v1579 = vrot.slane %v1577, 5
    %v1580 = vsel %vm1460, %v1575, %v1579
    %v1582 = vshrl.u32 %v1365, 16
    %v1584 = vrot.slane %v1582, 4
    %v1585 = vshll.u32 %v1365, 16
    %v1587 = vrot.slane %v1585, 5
    %v1588 = vor.u32 %v1584, %v1587
    %v1589 = vrot.slane %v1588, 4
    %v1591 = vshll.u32 %v1366, 16
    %v1593 = vrot.slane %v1591, 5
    %v1594 = vsel %vm1460, %v1589, %v1593
    %v1595 = vshrl.u32 %v1366, 16
    %v1597 = vrot.slane %v1595, 4
    %v1598 = vor.u32 %v1597, %v1593
    %v1599 = vrot.slane %v1598, 4
    %v1601 = vshll.u32 %v1367, 16
    %v1603 = vrot.slane %v1601, 5
    %v1604 = vsel %vm1460, %v1599, %v1603
    %v1606 = vshrl.u32 %v1368, 16
    %v1608 = vrot.slane %v1606, 4
    %v1609 = vshll.u32 %v1368, 16
    %v1611 = vrot.slane %v1609, 5
    %v1612 = vor.u32 %v1608, %v1611
    %v1613 = vrot.slane %v1612, 4
    %v1615 = vshll.u32 %v1369, 16
    %v1617 = vrot.slane %v1615, 5
    %v1618 = vsel %vm1460, %v1613, %v1617
    %v1619 = vshrl.u32 %v1369, 16
    %v1621 = vrot.slane %v1619, 4
    %v1622 = vor.u32 %v1621, %v1617
    %v1623 = vrot.slane %v1622, 4
    %v1625 = vshll.u32 %v1370, 16
    %v1627 = vrot.slane %v1625, 5
    %v1628 = vsel %vm1460, %v1623, %v1627
    %v1630 = vshrl.u32 %v1371, 16
    %v1632 = vrot.slane %v1630, 4
    %v1633 = vshll.u32 %v1371, 16
    %v1635 = vrot.slane %v1633, 5
    %v1636 = vor.u32 %v1632, %v1635
    %v1637 = vrot.slane %v1636, 4
    %v1639 = vshll.u32 %v1372, 16
    %v1641 = vrot.slane %v1639, 5
    %v1642 = vsel %vm1460, %v1637, %v1641
    %v1643 = vshrl.u32 %v1372, 16
    %v1645 = vrot.slane %v1643, 4
    %v1646 = vor.u32 %v1645, %v1641
    %v1647 = vrot.slane %v1646, 4
    %v1649 = vshll.u32 %v1373, 16
    %v1651 = vrot.slane %v1649, 5
    %v1652 = vsel %vm1460, %v1647, %v1651
    %v1654 = vshrl.u32 %v1374, 16
    %v1656 = vrot.slane %v1654, 4
    %v1657 = vshll.u32 %v1374, 16
    %v1659 = vrot.slane %v1657, 5
    %v1660 = vor.u32 %v1656, %v1659
    %v1661 = vrot.slane %v1660, 4
    %v1663 = vshll.u32 %v1375, 16
    %v1665 = vrot.slane %v1663, 5
    %v1666 = vsel %vm1460, %v1661, %v1665
    %v1667 = vshrl.u32 %v1375, 16
    %v1669 = vrot.slane %v1667, 4
    %v1670 = vor.u32 %v1669, %v1665
    %v1671 = vrot.slane %v1670, 4
    %v1673 = vshll.u32 %v1376, 16
    %v1675 = vrot.slane %v1673, 5
    %v1676 = vsel %vm1460, %v1671, %v1675
    %v1678 = vshrl.u32 %v1377, 16
    %v1680 = vrot.slane %v1678, 4
    %v1681 = vshll.u32 %v1377, 16
    %v1683 = vrot.slane %v1681, 5
    %v1684 = vor.u32 %v1680, %v1683
    %v1685 = vrot.slane %v1684, 4
    %v1687 = vshll.u32 %v1378, 16
    %v1689 = vrot.slane %v1687, 5
    %v1690 = vsel %vm1460, %v1685, %v1689
    %v1691 = vshrl.u32 %v1378, 16
    %v1693 = vrot.slane %v1691, 4
    %v1694 = vor.u32 %v1693, %v1689
    %v1695 = vrot.slane %v1694, 4
    %v1697 = vshll.u32 %v1379, 16
    %v1699 = vrot.slane %v1697, 5
    %v1700 = vsel %vm1460, %v1695, %v1699
    %v1702 = vshrl.u32 %v1380, 16
    %v1704 = vrot.slane %v1702, 4
    %v1705 = vshll.u32 %v1380, 16
    %v1707 = vrot.slane %v1705, 5
    %v1708 = vor.u32 %v1704, %v1707
    %v1709 = vrot.slane %v1708, 4
    %v1711 = vshll.u32 %v1381, 16
    %v1713 = vrot.slane %v1711, 5
    %v1714 = vsel %vm1460, %v1709, %v1713
    %v1715 = vshrl.u32 %v1381, 16
    %v1717 = vrot.slane %v1715, 4
    %v1718 = vor.u32 %v1717, %v1713
    %v1719 = vrot.slane %v1718, 4
    %v1721 = vshll.u32 %v1382, 16
    %v1723 = vrot.slane %v1721, 5
    %v1724 = vsel %vm1460, %v1719, %v1723
    %v1726 = vshrl.u32 %v1383, 16
    %v1728 = vrot.slane %v1726, 4
    %v1729 = vshll.u32 %v1383, 16
    %v1731 = vrot.slane %v1729, 5
    %v1732 = vor.u32 %v1728, %v1731
    %v1733 = vrot.slane %v1732, 4
    %v1735 = vshll.u32 %v1384, 16
    %v1737 = vrot.slane %v1735, 5
    %v1738 = vsel %vm1460, %v1733, %v1737
    %v1739 = vshrl.u32 %v1384, 16
    %v1741 = vrot.slane %v1739, 4
    %v1742 = vor.u32 %v1741, %v1737
    %v1743 = vrot.slane %v1742, 4
    %v1745 = vshll.u32 %v1385, 16
    %v1747 = vrot.slane %v1745, 5
    %v1748 = vsel %vm1460, %v1743, %v1747
    %v1750 = vshrl.u32 %v1386, 16
    %v1752 = vrot.slane %v1750, 4
    %v1753 = vshll.u32 %v1386, 16
    %v1755 = vrot.slane %v1753, 5
    %v1756 = vor.u32 %v1752, %v1755
    %v1757 = vrot.slane %v1756, 4
    %v1759 = vshll.u32 %v1387, 16
    %v1761 = vrot.slane %v1759, 5
    %v1762 = vsel %vm1460, %v1757, %v1761
    %v1763 = vshrl.u32 %v1387, 16
    %v1765 = vrot.slane %v1763, 4
    %v1766 = vor.u32 %v1765, %v1761
    %v1767 = vrot.slane %v1766, 4
    %v1769 = vshll.u32 %v1388, 16
    %v1771 = vrot.slane %v1769, 5
    %v1772 = vsel %vm1460, %v1767, %v1771
    %v1774 = vshrl.u32 %v1389, 16
    %v1776 = vrot.slane %v1774, 4
    %v1777 = vshll.u32 %v1389, 16
    %v1779 = vrot.slane %v1777, 5
    %v1780 = vor.u32 %v1776, %v1779
    %v1781 = vrot.slane %v1780, 4
    %v1783 = vshll.u32 %v1390, 16
    %v1785 = vrot.slane %v1783, 5
    %v1786 = vsel %vm1460, %v1781, %v1785
    %v1787 = vshrl.u32 %v1390, 16
    %v1789 = vrot.slane %v1787, 4
    %v1790 = vor.u32 %v1789, %v1785
    %v1791 = vrot.slane %v1790, 4
    %v1793 = vshll.u32 %v1391, 16
    %v1795 = vrot.slane %v1793, 5
    %v1796 = vsel %vm1460, %v1791, %v1795
    %v1798 = vshrl.u32 %v1392, 16
    %v1800 = vrot.slane %v1798, 4
    %v1801 = vshll.u32 %v1392, 16
    %v1803 = vrot.slane %v1801, 5
    %v1804 = vor.u32 %v1800, %v1803
    %v1805 = vrot.slane %v1804, 4
    %v1807 = vshll.u32 %v1393, 16
    %v1809 = vrot.slane %v1807, 5
    %v1810 = vsel %vm1460, %v1805, %v1809
    %v1811 = vshrl.u32 %v1393, 16
    %v1813 = vrot.slane %v1811, 4
    %v1814 = vor.u32 %v1813, %v1809
    %v1815 = vrot.slane %v1814, 4
    %v1817 = vshll.u32 %v1394, 16
    %v1819 = vrot.slane %v1817, 5
    %v1820 = vsel %vm1460, %v1815, %v1819
    %v1822 = vshrl.u32 %v1395, 16
    %v1824 = vrot.slane %v1822, 4
    %v1825 = vshll.u32 %v1395, 16
    %v1827 = vrot.slane %v1825, 5
    %v1828 = vor.u32 %v1824, %v1827
    %v1829 = vrot.slane %v1828, 4
    %v1831 = vshll.u32 %v1396, 16
    %v1833 = vrot.slane %v1831, 5
    %v1834 = vsel %vm1460, %v1829, %v1833
    %v1835 = vshrl.u32 %v1396, 16
    %v1837 = vrot.slane %v1835, 4
    %v1838 = vor.u32 %v1837, %v1833
    %v1839 = vrot.slane %v1838, 4
    %v1841 = vshll.u32 %v1397, 16
    %v1843 = vrot.slane %v1841, 5
    %v1844 = vsel %vm1460, %v1839, %v1843
    %v1846 = vshrl.u32 %v1404, 16
    %v1848 = vrot.slane %v1846, 4
    %v1849 = vshll.u32 %v1404, 16
    %v1851 = vrot.slane %v1849, 5
    %v1852 = vor.u32 %v1848, %v1851
    %v1853 = vrot.slane %v1852, 4
    %v1855 = vshll.u32 %v1405, 16
    %v1857 = vrot.slane %v1855, 5
    %v1858 = vsel %vm1460, %v1853, %v1857
    %v1859 = vshrl.u32 %v1405, 16
    %v1861 = vrot.slane %v1859, 4
    %v1862 = vor.u32 %v1861, %v1857
    %v1863 = vrot.slane %v1862, 4
    %v1865 = vshll.u32 %v1406, 16
    %v1867 = vrot.slane %v1865, 5
    %v1868 = vsel %vm1460, %v1863, %v1867
    %v1870 = vshrl.u32 %v1407, 16
    %v1872 = vrot.slane %v1870, 4
    %v1873 = vshll.u32 %v1407, 16
    %v1875 = vrot.slane %v1873, 5
    %v1876 = vor.u32 %v1872, %v1875
    %v1877 = vrot.slane %v1876, 4
    %v1879 = vshll.u32 %v1408, 16
    %v1881 = vrot.slane %v1879, 5
    %v1882 = vsel %vm1460, %v1877, %v1881
    %v1883 = vshrl.u32 %v1408, 16
    %v1885 = vrot.slane %v1883, 4
    %v1886 = vor.u32 %v1885, %v1881
    %v1887 = vrot.slane %v1886, 4
    %v1889 = vshll.u32 %v1409, 16
    %v1891 = vrot.slane %v1889, 5
    %v1892 = vsel %vm1460, %v1887, %v1891
    %v1894 = vshrl.u32 %v1410, 16
    %v1896 = vrot.slane %v1894, 4
    %v1897 = vshll.u32 %v1410, 16
    %v1899 = vrot.slane %v1897, 5
    %v1900 = vor.u32 %v1896, %v1899
    %v1901 = vrot.slane %v1900, 4
    %v1903 = vshll.u32 %v1411, 16
    %v1905 = vrot.slane %v1903, 5
    %v1906 = vsel %vm1460, %v1901, %v1905
    %v1907 = vshrl.u32 %v1411, 16
    %v1909 = vrot.slane %v1907, 4
    %v1910 = vor.u32 %v1909, %v1905
    %v1911 = vrot.slane %v1910, 4
    %v1913 = vshll.u32 %v1412, 16
    %v1915 = vrot.slane %v1913, 5
    %v1916 = vsel %vm1460, %v1911, %v1915
    %v1918 = vshrl.u32 %v1413, 16
    %v1920 = vrot.slane %v1918, 4
    %v1921 = vshll.u32 %v1413, 16
    %v1923 = vrot.slane %v1921, 5
    %v1924 = vor.u32 %v1920, %v1923
    %v1925 = vrot.slane %v1924, 4
    %v1927 = vshll.u32 %v1414, 16
    %v1929 = vrot.slane %v1927, 5
    %v1930 = vsel %vm1460, %v1925, %v1929
    %v1931 = vshrl.u32 %v1414, 16
    %v1933 = vrot.slane %v1931, 4
    %v1934 = vor.u32 %v1933, %v1929
    %v1935 = vrot.slane %v1934, 4
    %v1937 = vshll.u32 %v1415, 16
    %v1939 = vrot.slane %v1937, 5
    %v1940 = vsel %vm1460, %v1935, %v1939
    %v1942 = vshrl.u32 %v1416, 16
    %v1944 = vrot.slane %v1942, 4
    %v1945 = vshll.u32 %v1416, 16
    %v1947 = vrot.slane %v1945, 5
    %v1948 = vor.u32 %v1944, %v1947
    %v1949 = vrot.slane %v1948, 4
    %v1951 = vshll.u32 %v1417, 16
    %v1953 = vrot.slane %v1951, 5
    %v1954 = vsel %vm1460, %v1949, %v1953
    %v1955 = vshrl.u32 %v1417, 16
    %v1957 = vrot.slane %v1955, 4
    %v1958 = vor.u32 %v1957, %v1953
    %v1959 = vrot.slane %v1958, 4
    %v1961 = vshll.u32 %v1418, 16
    %v1963 = vrot.slane %v1961, 5
    %v1964 = vsel %vm1460, %v1959, %v1963
    %v1966 = vshrl.u32 %v1419, 16
    %v1968 = vrot.slane %v1966, 4
    %v1969 = vshll.u32 %v1419, 16
    %v1971 = vrot.slane %v1969, 5
    %v1972 = vor.u32 %v1968, %v1971
    %v1973 = vrot.slane %v1972, 4
    %v1975 = vshll.u32 %v1420, 16
    %v1977 = vrot.slane %v1975, 5
    %v1978 = vsel %vm1460, %v1973, %v1977
    %v1979 = vshrl.u32 %v1420, 16
    %v1981 = vrot.slane %v1979, 4
    %v1982 = vor.u32 %v1981, %v1977
    %v1983 = vrot.slane %v1982, 4
    %v1985 = vshll.u32 %v1421, 16
    %v1987 = vrot.slane %v1985, 5
    %v1988 = vsel %vm1460, %v1983, %v1987
    %v1990 = vshrl.u32 %v1422, 16
    %v1992 = vrot.slane %v1990, 4
    %v1993 = vshll.u32 %v1422, 16
    %v1995 = vrot.slane %v1993, 5
    %v1996 = vor.u32 %v1992, %v1995
    %v1997 = vrot.slane %v1996, 4
    %v1999 = vshll.u32 %v1423, 16
    %v2001 = vrot.slane %v1999, 5
    %v2002 = vsel %vm1460, %v1997, %v2001
    %v2003 = vshrl.u32 %v1423, 16
    %v2005 = vrot.slane %v2003, 4
    %v2006 = vor.u32 %v2005, %v2001
    %v2007 = vrot.slane %v2006, 4
    %v2009 = vshll.u32 %v1424, 16
    %v2011 = vrot.slane %v2009, 5
    %v2012 = vsel %vm1460, %v2007, %v2011
    %v2014 = vshrl.u32 %v1425, 16
    %v2016 = vrot.slane %v2014, 4
    %v2017 = vshll.u32 %v1425, 16
    %v2019 = vrot.slane %v2017, 5
    %v2020 = vor.u32 %v2016, %v2019
    %v2021 = vrot.slane %v2020, 4
    %v2023 = vshll.u32 %v1426, 16
    %v2025 = vrot.slane %v2023, 5
    %v2026 = vsel %vm1460, %v2021, %v2025
    %v2027 = vshrl.u32 %v1426, 16
    %v2029 = vrot.slane %v2027, 4
    %v2030 = vor.u32 %v2029, %v2025
    %v2031 = vrot.slane %v2030, 4
    %v2033 = vshll.u32 %v1427, 16
    %v2035 = vrot.slane %v2033, 5
    %v2036 = vsel %vm1460, %v2031, %v2035
    %v2038 = vshrl.u32 %v1428, 16
    %v2040 = vrot.slane %v2038, 4
    %v2041 = vshll.u32 %v1428, 16
    %v2043 = vrot.slane %v2041, 5
    %v2044 = vor.u32 %v2040, %v2043
    %v2045 = vrot.slane %v2044, 4
    %v2047 = vshll.u32 %v1429, 16
    %v2049 = vrot.slane %v2047, 5
    %v2050 = vsel %vm1460, %v2045, %v2049
    %v2051 = vshrl.u32 %v1429, 16
    %v2053 = vrot.slane %v2051, 4
    %v2054 = vor.u32 %v2053, %v2049
    %v2055 = vrot.slane %v2054, 4
    %v2057 = vshll.u32 %v1430, 16
    %v2059 = vrot.slane %v2057, 5
    %v2060 = vsel %vm1460, %v2055, %v2059
    %v2062 = vshrl.u32 %v1431, 16
    %v2064 = vrot.slane %v2062, 4
    %v2065 = vshll.u32 %v1431, 16
    %v2067 = vrot.slane %v2065, 5
    %v2068 = vor.u32 %v2064, %v2067
    %v2069 = vrot.slane %v2068, 4
    %v2071 = vshll.u32 %v1432, 16
    %v2073 = vrot.slane %v2071, 5
    %v2074 = vsel %vm1460, %v2069, %v2073
    %v2075 = vshrl.u32 %v1432, 16
    %v2077 = vrot.slane %v2075, 4
    %v2078 = vor.u32 %v2077, %v2073
    %v2079 = vrot.slane %v2078, 4
    %v2081 = vshll.u32 %v1433, 16
    %v2083 = vrot.slane %v2081, 5
    %v2084 = vsel %vm1460, %v2079, %v2083
    %v2086 = vshrl.u32 %v1434, 16
    %v2088 = vrot.slane %v2086, 4
    %v2089 = vshll.u32 %v1434, 16
    %v2091 = vrot.slane %v2089, 5
    %v2092 = vor.u32 %v2088, %v2091
    %v2093 = vrot.slane %v2092, 4
    %v2095 = vshll.u32 %v1435, 16
    %v2097 = vrot.slane %v2095, 5
    %v2098 = vsel %vm1460, %v2093, %v2097
    %v2099 = vshrl.u32 %v1435, 16
    %v2101 = vrot.slane %v2099, 4
    %v2102 = vor.u32 %v2101, %v2097
    %v2103 = vrot.slane %v2102, 4
    %v2105 = vshll.u32 %v1436, 16
    %v2107 = vrot.slane %v2105, 5
    %v2108 = vsel %vm1460, %v2103, %v2107
    %v2110 = vshrl.u32 %v1437, 16
    %v2112 = vrot.slane %v2110, 4
    %v2113 = vshll.u32 %v1437, 16
    %v2115 = vrot.slane %v2113, 5
    %v2116 = vor.u32 %v2112, %v2115
    %v2117 = vrot.slane %v2116, 4
    %v2119 = vshll.u32 %v1438, 16
    %v2121 = vrot.slane %v2119, 5
    %v2122 = vsel %vm1460, %v2117, %v2121
    %v2123 = vshrl.u32 %v1438, 16
    %v2125 = vrot.slane %v2123, 4
    %v2126 = vor.u32 %v2125, %v2121
    %v2127 = vrot.slane %v2126, 4
    %v2129 = vshll.u32 %v1439, 16
    %v2131 = vrot.slane %v2129, 5
    %v2132 = vsel %vm1460, %v2127, %v2131
    %v2134 = vshrl.u32 %v1440, 16
    %v2136 = vrot.slane %v2134, 4
    %v2137 = vshll.u32 %v1440, 16
    %v2139 = vrot.slane %v2137, 5
    %v2140 = vor.u32 %v2136, %v2139
    %v2141 = vrot.slane %v2140, 4
    %v2143 = vshll.u32 %v1441, 16
    %v2145 = vrot.slane %v2143, 5
    %v2146 = vsel %vm1460, %v2141, %v2145
    %v2147 = vshrl.u32 %v1441, 16
    %v2149 = vrot.slane %v2147, 4
    %v2150 = vor.u32 %v2149, %v2145
    %v2151 = vrot.slane %v2150, 4
    %v2153 = vshll.u32 %v1442, 16
    %v2155 = vrot.slane %v2153, 5
    %v2156 = vsel %vm1460, %v2151, %v2155
    %v2158 = vshrl.u32 %v1443, 16
    %v2160 = vrot.slane %v2158, 4
    %v2161 = vshll.u32 %v1443, 16
    %v2163 = vrot.slane %v2161, 5
    %v2164 = vor.u32 %v2160, %v2163
    %v2165 = vrot.slane %v2164, 4
    %v2167 = vshll.u32 %v1444, 16
    %v2169 = vrot.slane %v2167, 5
    %v2170 = vsel %vm1460, %v2165, %v2169
    %v2171 = vshrl.u32 %v1444, 16
    %v2173 = vrot.slane %v2171, 4
    %v2174 = vor.u32 %v2173, %v2169
    %v2175 = vrot.slane %v2174, 4
    %v2177 = vshll.u32 %v1445, 16
    %v2179 = vrot.slane %v2177, 5
    %v2180 = vsel %vm1460, %v2175, %v2179
    %v2182 = vshrl.u32 %v1446, 16
    %v2184 = vrot.slane %v2182, 4
    %v2185 = vshll.u32 %v1446, 16
    %v2187 = vrot.slane %v2185, 5
    %v2188 = vor.u32 %v2184, %v2187
    %v2189 = vrot.slane %v2188, 4
    %v2191 = vshll.u32 %v1447, 16
    %v2193 = vrot.slane %v2191, 5
    %v2194 = vsel %vm1460, %v2189, %v2193
    %v2195 = vshrl.u32 %v1447, 16
    %v2197 = vrot.slane %v2195, 4
    %v2198 = vor.u32 %v2197, %v2193
    %v2199 = vrot.slane %v2198, 4
    %v2201 = vshll.u32 %v1448, 16
    %v2203 = vrot.slane %v2201, 5
    %v2204 = vsel %vm1460, %v2199, %v2203
    %v2206 = vshrl.u32 %v1449, 16
    %v2208 = vrot.slane %v2206, 4
    %v2209 = vshll.u32 %v1449, 16
    %v2211 = vrot.slane %v2209, 5
    %v2212 = vor.u32 %v2208, %v2211
    %v2213 = vrot.slane %v2212, 4
    %v2215 = vshll.u32 %v1450, 16
    %v2217 = vrot.slane %v2215, 5
    %v2218 = vsel %vm1460, %v2213, %v2217
    %v2219 = vshrl.u32 %v1450, 16
    %v2221 = vrot.slane %v2219, 4
    %v2222 = vor.u32 %v2221, %v2217
    %v2223 = vrot.slane %v2222, 4
    %v2225 = vshll.u32 %v1451, 16
    %v2227 = vrot.slane %v2225, 5
    %v2228 = vsel %vm1460, %v2223, %v2227
    %s2229 = scalar_lea.vmem %s1, 2
    %v2230 = vld [vmem:[%s2229] sm:$0x3]
    %v2231 = vunpack.c.l.b16 %v1474
    %v2232 = vunpack.c.l.b16 %v1484
    %v2233 = vunpack.c.l.b16 %v1498
    %v2234 = vunpack.c.l.b16 %v1508
    %v2235 = vunpack.c.l.b16 %v1522
    %v2236 = vunpack.c.l.b16 %v1532
    %v2237 = vunpack.c.l.b16 %v1546
    %v2238 = vunpack.c.l.b16 %v1556
    %v2239 = vunpack.c.l.b16 %v1570
    %v2240 = vunpack.c.l.b16 %v1580
    %v2241 = vunpack.c.l.b16 %v1594
    %v2242 = vunpack.c.l.b16 %v1604
    %v2243 = vunpack.c.l.b16 %v1618
    %v2244 = vunpack.c.l.b16 %v1628
    %v2245 = vunpack.c.l.b16 %v1642
    %v2246 = vunpack.c.l.b16 %v1652
    %v2247 = vunpack.c.l.b16 %v1666
    %v2248 = vunpack.c.l.b16 %v1676
    %v2249 = vunpack.c.l.b16 %v1690
    %v2250 = vunpack.c.l.b16 %v1700
    %v2251 = vunpack.c.l.b16 %v1714
    %v2252 = vunpack.c.l.b16 %v1724
    %v2253 = vunpack.c.l.b16 %v1738
    %v2254 = vunpack.c.l.b16 %v1748
    %v2255 = vunpack.c.l.b16 %v1762
    %v2256 = vunpack.c.l.b16 %v1772
    %v2257 = vunpack.c.l.b16 %v1786
    %v2258 = vunpack.c.l.b16 %v1796
    %v2259 = vunpack.c.l.b16 %v1810
    %v2260 = vunpack.c.l.b16 %v1820
    %v2261 = vunpack.c.l.b16 %v1834
    %v2262 = vunpack.c.l.b16 %v1844
    %v2263 = vunpack.c.l.b16 %v1858
    %v2264 = vunpack.c.l.b16 %v1868
    %v2265 = vunpack.c.l.b16 %v1882
    %v2266 = vunpack.c.l.b16 %v1892
    %v2267 = vunpack.c.l.b16 %v1906
    %v2268 = vunpack.c.l.b16 %v1916
    %v2269 = vunpack.c.l.b16 %v1930
    %v2270 = vunpack.c.l.b16 %v1940
    %v2271 = vunpack.c.l.b16 %v1954
    %v2272 = vunpack.c.l.b16 %v1964
    %v2273 = vunpack.c.l.b16 %v1978
    %v2274 = vunpack.c.l.b16 %v1988
    %v2275 = vunpack.c.l.b16 %v2002
    %v2276 = vunpack.c.l.b16 %v2012
    %v2277 = vunpack.c.l.b16 %v2026
    %v2278 = vunpack.c.l.b16 %v2036
    %v2279 = vunpack.c.l.b16 %v2050
    %v2280 = vunpack.c.l.b16 %v2060
    %v2281 = vunpack.c.l.b16 %v2074
    %v2282 = vunpack.c.l.b16 %v2084
    %v2283 = vunpack.c.l.b16 %v2098
    %v2284 = vunpack.c.l.b16 %v2108
    %v2285 = vunpack.c.l.b16 %v2122
    %v2286 = vunpack.c.l.b16 %v2132
    %v2287 = vunpack.c.l.b16 %v2146
    %v2288 = vunpack.c.l.b16 %v2156
    %v2289 = vunpack.c.l.b16 %v2170
    %v2290 = vunpack.c.l.b16 %v2180
    %v2291 = vunpack.c.l.b16 %v2194
    %v2292 = vunpack.c.l.b16 %v2204
    %v2293 = vunpack.c.l.b16 %v2218
    %v2294 = vunpack.c.l.b16 %v2228
    %v2295 = vpack.c.b16 %v2232, %v2231
    %v2296 = vpack.c.b16 %v2234, %v2233
    %v2297 = vpack.c.b16 %v2236, %v2235
    %v2298 = vpack.c.b16 %v2238, %v2237
    %v2299 = vpack.c.b16 %v2240, %v2239
    %v2300 = vpack.c.b16 %v2242, %v2241
    %v2301 = vpack.c.b16 %v2244, %v2243
    %v2302 = vpack.c.b16 %v2246, %v2245
    %v2303 = vpack.c.b16 %v2248, %v2247
    %v2304 = vpack.c.b16 %v2250, %v2249
    %v2305 = vpack.c.b16 %v2252, %v2251
    %v2306 = vpack.c.b16 %v2254, %v2253
    %v2307 = vpack.c.b16 %v2256, %v2255
    %v2308 = vpack.c.b16 %v2258, %v2257
    %v2309 = vpack.c.b16 %v2260, %v2259
    %v2310 = vpack.c.b16 %v2262, %v2261
    %v2311 = vpack.c.b16 %v2264, %v2263
    %v2312 = vpack.c.b16 %v2266, %v2265
    %v2313 = vpack.c.b16 %v2268, %v2267
    %v2314 = vpack.c.b16 %v2270, %v2269
    %v2315 = vpack.c.b16 %v2272, %v2271
    %v2316 = vpack.c.b16 %v2274, %v2273
    %v2317 = vpack.c.b16 %v2276, %v2275
    %v2318 = vpack.c.b16 %v2278, %v2277
    %v2319 = vpack.c.b16 %v2280, %v2279
    %v2320 = vpack.c.b16 %v2282, %v2281
    %v2321 = vpack.c.b16 %v2284, %v2283
    %v2322 = vpack.c.b16 %v2286, %v2285
    %v2323 = vpack.c.b16 %v2288, %v2287
    %v2324 = vpack.c.b16 %v2290, %v2289
    %v2325 = vpack.c.b16 %v2292, %v2291
    %v2326 = vpack.c.b16 %v2294, %v2293
    %v2328 = vsel %vm278, %v2295, 0
    %v2331 = vsel %vm278, %v2296, 0
    %v2334 = vsel %vm278, %v2297, 0
    %v2337 = vsel %vm278, %v2298, 0
    %v2340 = vsel %vm278, %v2299, 0
    %v2343 = vsel %vm278, %v2300, 0
    %v2346 = vsel %vm278, %v2301, 0
    %v2349 = vsel %vm278, %v2302, 0
    %v2352 = vsel %vm278, %v2303, 0
    %v2355 = vsel %vm278, %v2304, 0
    %v2358 = vsel %vm278, %v2305, 0
    %v2361 = vsel %vm278, %v2306, 0
    %v2364 = vsel %vm278, %v2307, 0
    %v2367 = vsel %vm278, %v2308, 0
    %v2370 = vsel %vm278, %v2309, 0
    %v2373 = vsel %vm278, %v2310, 0
    %v2376 = vsel %vm278, %v2311, 0
    %v2379 = vsel %vm278, %v2312, 0
    %v2382 = vsel %vm278, %v2313, 0
    %v2385 = vsel %vm278, %v2314, 0
    %v2388 = vsel %vm278, %v2315, 0
    %v2391 = vsel %vm278, %v2316, 0
    %v2394 = vsel %vm278, %v2317, 0
    %v2397 = vsel %vm278, %v2318, 0
    %v2400 = vsel %vm278, %v2319, 0
    %v2403 = vsel %vm278, %v2320, 0
    %v2406 = vsel %vm278, %v2321, 0
    %v2409 = vsel %vm278, %v2322, 0
    %v2412 = vsel %vm278, %v2323, 0
    %v2415 = vsel %vm278, %v2324, 0
    %v2418 = vsel %vm278, %v2325, 0
    %v2421 = vsel %vm278, %v2326, 0
    %v2424 = vsel %vm375, %v2230, 0
    %2426 = vmatprep.subr.bf16.mxu0 0
    %2427 = vmatpush1.bf16.msra.mxu0 %v2424
    %2428 = vmatprep.subr.bf16.mxu0 0
    %2429 = vmatpush1.bf16.msra.mxu0 0
    %2430 = vmatprep.subr.bf16.mxu0 0
    %2431 = vmatpush1.bf16.msra.mxu0 0
    %2432 = vmatprep.subr.bf16.mxu0 0
    %2433 = vmatpush1.bf16.msra.mxu0 0
    %2434 = vmatprep.subr.bf16.mxu0 0
    %2435 = vmatpush1.bf16.msra.mxu0 0
    %2436 = vmatprep.subr.bf16.mxu0 0
    %2437 = vmatpush1.bf16.msra.mxu0 0
    %2438 = vmatprep.subr.bf16.mxu0 0
    %2439 = vmatpush1.bf16.msra.mxu0 0
    %2440 = vmatprep.subr.bf16.mxu0 0
    %2441 = vmatpush1.bf16.msra.mxu0 0
    %2442 = vmatprep.subr.bf16.mxu0 0
    %2443 = vmatpush1.bf16.msra.mxu0 0
    %2444 = vmatprep.subr.bf16.mxu0 0
    %2445 = vmatpush1.bf16.msra.mxu0 0
    %2446 = vmatprep.subr.bf16.mxu0 0
    %2447 = vmatpush1.bf16.msra.mxu0 0
    %2448 = vmatprep.subr.bf16.mxu0 0
    %2449 = vmatpush1.bf16.msra.mxu0 0
    %2450 = vmatprep.subr.bf16.mxu0 0
    %2451 = vmatpush1.bf16.msra.mxu0 0
    %2452 = vmatprep.subr.bf16.mxu0 0
    %2453 = vmatpush1.bf16.msra.mxu0 0
    %2454 = vmatprep.subr.bf16.mxu0 0
    %2455 = vmatpush1.bf16.msra.mxu0 0
    %2456 = vmatprep.subr.bf16.mxu0 0
    %2457 = vmatpush1.bf16.msra.mxu0 0
    %2458 = vmatprep.mubr.bf16.mxu0 0
    %2459 = vmatmul.mubr.bf16.gmra.mrb[0].mxu0 %v2328
    %v2460 = vpop.f32.mrb[0].mxu0
    %v2461 = vadd.f32 0.0, %v2460
    %v2462 = vpop.f32.mrb[0].mxu0
    %v2463 = vpop.f32.mrb[0].mxu0
    %v2464 = vadd.f32 0.0, %v2463
    %v2465 = vpop.f32.mrb[0].mxu0
    %2466 = vmatprep.mubr.bf16.mxu0 0
    %2467 = vmatmul.mubr.bf16.gmra.mrb[0].mxu0 %v2331
    %v2468 = vpop.f32.mrb[0].mxu0
    %v2469 = vadd.f32 0.0, %v2468
    %v2470 = vpop.f32.mrb[0].mxu0
    %v2471 = vpop.f32.mrb[0].mxu0
    %v2472 = vadd.f32 0.0, %v2471
    %v2473 = vpop.f32.mrb[0].mxu0
    %2474 = vmatprep.mubr.bf16.mxu0 0
    %2475 = vmatmul.mubr.bf16.gmra.mrb[0].mxu0 %v2334
    %v2476 = vpop.f32.mrb[0].mxu0
    %v2477 = vadd.f32 0.0, %v2476
    %v2478 = vpop.f32.mrb[0].mxu0
    %v2479 = vpop.f32.mrb[0].mxu0
    %v2480 = vadd.f32 0.0, %v2479
    %v2481 = vpop.f32.mrb[0].mxu0
    %2482 = vmatprep.mubr.bf16.mxu0 0
    %2483 = vmatmul.mubr.bf16.gmra.mrb[0].mxu0 %v2337
    %v2484 = vpop.f32.mrb[0].mxu0
    %v2485 = vadd.f32 0.0, %v2484
    %v2486 = vpop.f32.mrb[0].mxu0
    %v2487 = vpop.f32.mrb[0].mxu0
    %v2488 = vadd.f32 0.0, %v2487
    %v2489 = vpop.f32.mrb[0].mxu0
    %2490 = vmatprep.mubr.bf16.mxu0 0
    %2491 = vmatmul.mubr.bf16.gmra.mrb[0].mxu0 %v2340
    %v2492 = vpop.f32.mrb[0].mxu0
    %v2493 = vadd.f32 0.0, %v2492
    %v2494 = vpop.f32.mrb[0].mxu0
    %v2495 = vpop.f32.mrb[0].mxu0
    %v2496 = vadd.f32 0.0, %v2495
    %v2497 = vpop.f32.mrb[0].mxu0
    %2498 = vmatprep.mubr.bf16.mxu0 0
    %2499 = vmatmul.mubr.bf16.gmra.mrb[0].mxu0 %v2343
    %v2500 = vpop.f32.mrb[0].mxu0
    %v2501 = vadd.f32 0.0, %v2500
    %v2502 = vpop.f32.mrb[0].mxu0
    %v2503 = vpop.f32.mrb[0].mxu0
    %v2504 = vadd.f32 0.0, %v2503
    %v2505 = vpop.f32.mrb[0].mxu0
    %2506 = vmatprep.mubr.bf16.mxu0 0
    %2507 = vmatmul.mubr.bf16.gmra.mrb[0].mxu0 %v2346
    %v2508 = vpop.f32.mrb[0].mxu0
    %v2509 = vadd.f32 0.0, %v2508
    %v2510 = vpop.f32.mrb[0].mxu0
    %v2511 = vpop.f32.mrb[0].mxu0
    %v2512 = vadd.f32 0.0, %v2511
    %v2513 = vpop.f32.mrb[0].mxu0
    %2514 = vmatprep.mubr.bf16.mxu0 0
    %2515 = vmatmul.mubr.bf16.gmra.mrb[0].mxu0 %v2349
    %v2516 = vpop.f32.mrb[0].mxu0
    %v2517 = vadd.f32 0.0, %v2516
    %v2518 = vpop.f32.mrb[0].mxu0
    %v2519 = vpop.f32.mrb[0].mxu0
    %v2520 = vadd.f32 0.0, %v2519
    %v2521 = vpop.f32.mrb[0].mxu0
    %2522 = vmatprep.mubr.bf16.mxu0 0
    %2523 = vmatmul.mubr.bf16.gmra.mrb[0].mxu0 %v2352
    %v2524 = vpop.f32.mrb[0].mxu0
    %v2525 = vadd.f32 0.0, %v2524
    %v2526 = vpop.f32.mrb[0].mxu0
    %v2527 = vpop.f32.mrb[0].mxu0
    %v2528 = vadd.f32 0.0, %v2527
    %v2529 = vpop.f32.mrb[0].mxu0
    %2530 = vmatprep.mubr.bf16.mxu0 0
    %2531 = vmatmul.mubr.bf16.gmra.mrb[0].mxu0 %v2355
    %v2532 = vpop.f32.mrb[0].mxu0
    %v2533 = vadd.f32 0.0, %v2532
    %v2534 = vpop.f32.mrb[0].mxu0
    %v2535 = vpop.f32.mrb[0].mxu0
    %v2536 = vadd.f32 0.0, %v2535
    %v2537 = vpop.f32.mrb[0].mxu0
    %2538 = vmatprep.mubr.bf16.mxu0 0
    %2539 = vmatmul.mubr.bf16.gmra.mrb[0].mxu0 %v2358
    %v2540 = vpop.f32.mrb[0].mxu0
    %v2541 = vadd.f32 0.0, %v2540
    %v2542 = vpop.f32.mrb[0].mxu0
    %v2543 = vpop.f32.mrb[0].mxu0
    %v2544 = vadd.f32 0.0, %v2543
    %v2545 = vpop.f32.mrb[0].mxu0
    %2546 = vmatprep.mubr.bf16.mxu0 0
    %2547 = vmatmul.mubr.bf16.gmra.mrb[0].mxu0 %v2361
    %v2548 = vpop.f32.mrb[0].mxu0
    %v2549 = vadd.f32 0.0, %v2548
    %v2550 = vpop.f32.mrb[0].mxu0
    %v2551 = vpop.f32.mrb[0].mxu0
    %v2552 = vadd.f32 0.0, %v2551
    %v2553 = vpop.f32.mrb[0].mxu0
    %2554 = vmatprep.mubr.bf16.mxu0 0
    %2555 = vmatmul.mubr.bf16.gmra.mrb[0].mxu0 %v2364
    %v2556 = vpop.f32.mrb[0].mxu0
    %v2557 = vadd.f32 0.0, %v2556
    %v2558 = vpop.f32.mrb[0].mxu0
    %v2559 = vpop.f32.mrb[0].mxu0
    %v2560 = vadd.f32 0.0, %v2559
    %v2561 = vpop.f32.mrb[0].mxu0
    %2562 = vmatprep.mubr.bf16.mxu0 0
    %2563 = vmatmul.mubr.bf16.gmra.mrb[0].mxu0 %v2367
    %v2564 = vpop.f32.mrb[0].mxu0
    %v2565 = vadd.f32 0.0, %v2564
    %v2566 = vpop.f32.mrb[0].mxu0
    %v2567 = vpop.f32.mrb[0].mxu0
    %v2568 = vadd.f32 0.0, %v2567
    %v2569 = vpop.f32.mrb[0].mxu0
    %2570 = vmatprep.mubr.bf16.mxu0 0
    %2571 = vmatmul.mubr.bf16.gmra.mrb[0].mxu0 %v2370
    %v2572 = vpop.f32.mrb[0].mxu0
    %v2573 = vadd.f32 0.0, %v2572
    %v2574 = vpop.f32.mrb[0].mxu0
    %v2575 = vpop.f32.mrb[0].mxu0
    %v2576 = vadd.f32 0.0, %v2575
    %v2577 = vpop.f32.mrb[0].mxu0
    %2578 = vmatprep.mubr.bf16.mxu0 0
    %2579 = vmatmul.mubr.bf16.gmra.mrb[0].mxu0 %v2373
    %v2580 = vpop.f32.mrb[0].mxu0
    %v2581 = vadd.f32 0.0, %v2580
    %v2582 = vpop.f32.mrb[0].mxu0
    %v2583 = vpop.f32.mrb[0].mxu0
    %v2584 = vadd.f32 0.0, %v2583
    %v2585 = vpop.f32.mrb[0].mxu0
    %2586 = vmatprep.mubr.bf16.mxu0 0
    %2587 = vmatmul.mubr.bf16.gmra.mrb[0].mxu0 %v2376
    %v2588 = vpop.f32.mrb[0].mxu0
    %v2589 = vadd.f32 0.0, %v2588
    %v2590 = vpop.f32.mrb[0].mxu0
    %v2591 = vpop.f32.mrb[0].mxu0
    %v2592 = vadd.f32 0.0, %v2591
    %v2593 = vpop.f32.mrb[0].mxu0
    %2594 = vmatprep.mubr.bf16.mxu0 0
    %2595 = vmatmul.mubr.bf16.gmra.mrb[0].mxu0 %v2379
    %v2596 = vpop.f32.mrb[0].mxu0
    %v2597 = vadd.f32 0.0, %v2596
    %v2598 = vpop.f32.mrb[0].mxu0
    %v2599 = vpop.f32.mrb[0].mxu0
    %v2600 = vadd.f32 0.0, %v2599
    %v2601 = vpop.f32.mrb[0].mxu0
    %2602 = vmatprep.mubr.bf16.mxu0 0
    %2603 = vmatmul.mubr.bf16.gmra.mrb[0].mxu0 %v2382
    %v2604 = vpop.f32.mrb[0].mxu0
    %v2605 = vadd.f32 0.0, %v2604
    %v2606 = vpop.f32.mrb[0].mxu0
    %v2607 = vpop.f32.mrb[0].mxu0
    %v2608 = vadd.f32 0.0, %v2607
    %v2609 = vpop.f32.mrb[0].mxu0
    %2610 = vmatprep.mubr.bf16.mxu0 0
    %2611 = vmatmul.mubr.bf16.gmra.mrb[0].mxu0 %v2385
    %v2612 = vpop.f32.mrb[0].mxu0
    %v2613 = vadd.f32 0.0, %v2612
    %v2614 = vpop.f32.mrb[0].mxu0
    %v2615 = vpop.f32.mrb[0].mxu0
    %v2616 = vadd.f32 0.0, %v2615
    %v2617 = vpop.f32.mrb[0].mxu0
    %2618 = vmatprep.mubr.bf16.mxu0 0
    %2619 = vmatmul.mubr.bf16.gmra.mrb[0].mxu0 %v2388
    %v2620 = vpop.f32.mrb[0].mxu0
    %v2621 = vadd.f32 0.0, %v2620
    %v2622 = vpop.f32.mrb[0].mxu0
    %v2623 = vpop.f32.mrb[0].mxu0
    %v2624 = vadd.f32 0.0, %v2623
    %v2625 = vpop.f32.mrb[0].mxu0
    %2626 = vmatprep.mubr.bf16.mxu0 0
    %2627 = vmatmul.mubr.bf16.gmra.mrb[0].mxu0 %v2391
    %v2628 = vpop.f32.mrb[0].mxu0
    %v2629 = vadd.f32 0.0, %v2628
    %v2630 = vpop.f32.mrb[0].mxu0
    %v2631 = vpop.f32.mrb[0].mxu0
    %v2632 = vadd.f32 0.0, %v2631
    %v2633 = vpop.f32.mrb[0].mxu0
    %2634 = vmatprep.mubr.bf16.mxu0 0
    %2635 = vmatmul.mubr.bf16.gmra.mrb[0].mxu0 %v2394
    %v2636 = vpop.f32.mrb[0].mxu0
    %v2637 = vadd.f32 0.0, %v2636
    %v2638 = vpop.f32.mrb[0].mxu0
    %v2639 = vpop.f32.mrb[0].mxu0
    %v2640 = vadd.f32 0.0, %v2639
    %v2641 = vpop.f32.mrb[0].mxu0
    %2642 = vmatprep.mubr.bf16.mxu0 0
    %2643 = vmatmul.mubr.bf16.gmra.mrb[0].mxu0 %v2397
    %v2644 = vpop.f32.mrb[0].mxu0
    %v2645 = vadd.f32 0.0, %v2644
    %v2646 = vpop.f32.mrb[0].mxu0
    %v2647 = vpop.f32.mrb[0].mxu0
    %v2648 = vadd.f32 0.0, %v2647
    %v2649 = vpop.f32.mrb[0].mxu0
    %2650 = vmatprep.mubr.bf16.mxu0 0
    %2651 = vmatmul.mubr.bf16.gmra.mrb[0].mxu0 %v2400
    %v2652 = vpop.f32.mrb[0].mxu0
    %v2653 = vadd.f32 0.0, %v2652
    %v2654 = vpop.f32.mrb[0].mxu0
    %v2655 = vpop.f32.mrb[0].mxu0
    %v2656 = vadd.f32 0.0, %v2655
    %v2657 = vpop.f32.mrb[0].mxu0
    %2658 = vmatprep.mubr.bf16.mxu0 0
    %2659 = vmatmul.mubr.bf16.gmra.mrb[0].mxu0 %v2403
    %v2660 = vpop.f32.mrb[0].mxu0
    %v2661 = vadd.f32 0.0, %v2660
    %v2662 = vpop.f32.mrb[0].mxu0
    %v2663 = vpop.f32.mrb[0].mxu0
    %v2664 = vadd.f32 0.0, %v2663
    %v2665 = vpop.f32.mrb[0].mxu0
    %2666 = vmatprep.mubr.bf16.mxu0 0
    %2667 = vmatmul.mubr.bf16.gmra.mrb[0].mxu0 %v2406
    %v2668 = vpop.f32.mrb[0].mxu0
    %v2669 = vadd.f32 0.0, %v2668
    %v2670 = vpop.f32.mrb[0].mxu0
    %v2671 = vpop.f32.mrb[0].mxu0
    %v2672 = vadd.f32 0.0, %v2671
    %v2673 = vpop.f32.mrb[0].mxu0
    %2674 = vmatprep.mubr.bf16.mxu0 0
    %2675 = vmatmul.mubr.bf16.gmra.mrb[0].mxu0 %v2409
    %v2676 = vpop.f32.mrb[0].mxu0
    %v2677 = vadd.f32 0.0, %v2676
    %v2678 = vpop.f32.mrb[0].mxu0
    %v2679 = vpop.f32.mrb[0].mxu0
    %v2680 = vadd.f32 0.0, %v2679
    %v2681 = vpop.f32.mrb[0].mxu0
    %2682 = vmatprep.mubr.bf16.mxu0 0
    %2683 = vmatmul.mubr.bf16.gmra.mrb[0].mxu0 %v2412
    %v2684 = vpop.f32.mrb[0].mxu0
    %v2685 = vadd.f32 0.0, %v2684
    %v2686 = vpop.f32.mrb[0].mxu0
    %v2687 = vpop.f32.mrb[0].mxu0
    %v2688 = vadd.f32 0.0, %v2687
    %v2689 = vpop.f32.mrb[0].mxu0
    %2690 = vmatprep.mubr.bf16.mxu0 0
    %2691 = vmatmul.mubr.bf16.gmra.mrb[0].mxu0 %v2415
    %v2692 = vpop.f32.mrb[0].mxu0
    %v2693 = vadd.f32 0.0, %v2692
    %v2694 = vpop.f32.mrb[0].mxu0
    %v2695 = vpop.f32.mrb[0].mxu0
    %v2696 = vadd.f32 0.0, %v2695
    %v2697 = vpop.f32.mrb[0].mxu0
    %2698 = vmatprep.mubr.bf16.mxu0 0
    %2699 = vmatmul.mubr.bf16.gmra.mrb[0].mxu0 %v2418
    %v2700 = vpop.f32.mrb[0].mxu0
    %v2701 = vadd.f32 0.0, %v2700
    %v2702 = vpop.f32.mrb[0].mxu0
    %v2703 = vpop.f32.mrb[0].mxu0
    %v2704 = vadd.f32 0.0, %v2703
    %v2705 = vpop.f32.mrb[0].mxu0
    %2706 = vmatprep.mubr.bf16.mxu0 0
    %2707 = vmatmul.mubr.bf16.gmra.mrb[0].mxu0 %v2421
    %v2708 = vpop.f32.mrb[0].mxu0
    %v2709 = vadd.f32 0.0, %v2708
    %v2710 = vpop.f32.mrb[0].mxu0
    %v2711 = vpop.f32.mrb[0].mxu0
    %v2712 = vadd.f32 0.0, %v2711
    %v2713 = vpop.f32.mrb[0].mxu0
    %2714 = vdwg.mxu0
    %v2715 = vadd.f32 %v1286, %v2461
    %v2716 = vadd.f32 %v1287, %v2464
    %v2717 = vadd.f32 %v1288, %v2469
    %v2718 = vadd.f32 %v1289, %v2472
    %v2719 = vadd.f32 %v1290, %v2477
    %v2720 = vadd.f32 %v1291, %v2480
    %v2721 = vadd.f32 %v1292, %v2485
    %v2722 = vadd.f32 %v1293, %v2488
    %v2723 = vadd.f32 %v1294, %v2493
    %v2724 = vadd.f32 %v1295, %v2496
    %v2725 = vadd.f32 %v1296, %v2501
    %v2726 = vadd.f32 %v1297, %v2504
    %v2727 = vadd.f32 %v1298, %v2509
    %v2728 = vadd.f32 %v1299, %v2512
    %v2729 = vadd.f32 %v1300, %v2517
    %v2730 = vadd.f32 %v1301, %v2520
    %v2731 = vadd.f32 %v1302, %v2525
    %v2732 = vadd.f32 %v1303, %v2528
    %v2733 = vadd.f32 %v1304, %v2533
    %v2734 = vadd.f32 %v1305, %v2536
    %v2735 = vadd.f32 %v1306, %v2541
    %v2736 = vadd.f32 %v1307, %v2544
    %v2737 = vadd.f32 %v1308, %v2549
    %v2738 = vadd.f32 %v1309, %v2552
    %v2739 = vadd.f32 %v1310, %v2557
    %v2740 = vadd.f32 %v1311, %v2560
    %v2741 = vadd.f32 %v1312, %v2565
    %v2742 = vadd.f32 %v1313, %v2568
    %v2743 = vadd.f32 %v1314, %v2573
    %v2744 = vadd.f32 %v1315, %v2576
    %v2745 = vadd.f32 %v1316, %v2581
    %v2746 = vadd.f32 %v1317, %v2584
    %v2747 = vadd.f32 %v1318, %v2589
    %v2748 = vadd.f32 %v1319, %v2592
    %v2749 = vadd.f32 %v1320, %v2597
    %v2750 = vadd.f32 %v1321, %v2600
    %v2751 = vadd.f32 %v1322, %v2605
    %v2752 = vadd.f32 %v1323, %v2608
    %v2753 = vadd.f32 %v1324, %v2613
    %v2754 = vadd.f32 %v1325, %v2616
    %v2755 = vadd.f32 %v1326, %v2621
    %v2756 = vadd.f32 %v1327, %v2624
    %v2757 = vadd.f32 %v1328, %v2629
    %v2758 = vadd.f32 %v1329, %v2632
    %v2759 = vadd.f32 %v1330, %v2637
    %v2760 = vadd.f32 %v1331, %v2640
    %v2761 = vadd.f32 %v1332, %v2645
    %v2762 = vadd.f32 %v1333, %v2648
    %v2763 = vadd.f32 %v1334, %v2653
    %v2764 = vadd.f32 %v1335, %v2656
    %v2765 = vadd.f32 %v1336, %v2661
    %v2766 = vadd.f32 %v1337, %v2664
    %v2767 = vadd.f32 %v1338, %v2669
    %v2768 = vadd.f32 %v1339, %v2672
    %v2769 = vadd.f32 %v1340, %v2677
    %v2770 = vadd.f32 %v1341, %v2680
    %v2771 = vadd.f32 %v1342, %v2685
    %v2772 = vadd.f32 %v1343, %v2688
    %v2773 = vadd.f32 %v1344, %v2693
    %v2774 = vadd.f32 %v1345, %v2696
    %v2775 = vadd.f32 %v1346, %v2701
    %v2776 = vadd.f32 %v1347, %v2704
    %v2777 = vadd.f32 %v1348, %v2709
    %v2778 = vadd.f32 %v1349, %v2712
    %v2780 = vshrl.u32 %v1398, 16
    %v2782 = vrot.slane %v2780, 4
    %v2783 = vshll.u32 %v1398, 16
    %v2785 = vrot.slane %v2783, 5
    %v2786 = vor.u32 %v2782, %v2785
    %v2787 = vrot.slane %v2786, 4
    %v2789 = vshll.u32 %v1399, 16
    %v2791 = vrot.slane %v2789, 5
    %v2792 = vsel %vm1460, %v2787, %v2791
    %v2793 = vshrl.u32 %v1399, 16
    %v2795 = vrot.slane %v2793, 4
    %v2796 = vor.u32 %v2795, %v2791
    %v2797 = vrot.slane %v2796, 4
    %v2799 = vshll.u32 %v1400, 16
    %v2801 = vrot.slane %v2799, 5
    %v2802 = vsel %vm1460, %v2797, %v2801
    %v2804 = vshrl.u32 %v1452, 16
    %v2806 = vrot.slane %v2804, 4
    %v2807 = vshll.u32 %v1452, 16
    %v2809 = vrot.slane %v2807, 5
    %v2810 = vor.u32 %v2806, %v2809
    %v2811 = vrot.slane %v2810, 4
    %v2813 = vshll.u32 %v1453, 16
    %v2815 = vrot.slane %v2813, 5
    %v2816 = vsel %vm1460, %v2811, %v2815
    %v2817 = vshrl.u32 %v1453, 16
    %v2819 = vrot.slane %v2817, 4
    %v2820 = vor.u32 %v2819, %v2815
    %v2821 = vrot.slane %v2820, 4
    %v2823 = vshll.u32 %v1454, 16
    %v2825 = vrot.slane %v2823, 5
    %v2826 = vsel %vm1460, %v2821, %v2825
    %s2827 = scalar_lea.vmem %s1, 8
    %v2828 = vld [vmem:[%s2827] sm:$0x3]
    %v2829 = vunpack.c.l.b16 %v2792
    %v2830 = vunpack.c.l.b16 %v2802
    %v2831 = vunpack.c.l.b16 %v2816
    %v2832 = vunpack.c.l.b16 %v2826
    %v2833 = vpack.c.b16 %v2830, %v2829
    %v2834 = vpack.c.b16 %v2832, %v2831
    %v2836 = vsel %vm278, %v2833, 0
    %v2839 = vsel %vm278, %v2834, 0
    %v2842 = vsel %vm375, %v2828, 0
    %2844 = vmatprep.subr.bf16.mxu0 0
    %2845 = vmatpush1.bf16.msra.mxu0 %v2842
    %2846 = vmatprep.subr.bf16.mxu0 0
    %2847 = vmatpush1.bf16.msra.mxu0 0
    %2848 = vmatprep.subr.bf16.mxu0 0
    %2849 = vmatpush1.bf16.msra.mxu0 0
    %2850 = vmatprep.subr.bf16.mxu0 0
    %2851 = vmatpush1.bf16.msra.mxu0 0
    %2852 = vmatprep.subr.bf16.mxu0 0
    %2853 = vmatpush1.bf16.msra.mxu0 0
    %2854 = vmatprep.subr.bf16.mxu0 0
    %2855 = vmatpush1.bf16.msra.mxu0 0
    %2856 = vmatprep.subr.bf16.mxu0 0
    %2857 = vmatpush1.bf16.msra.mxu0 0
    %2858 = vmatprep.subr.bf16.mxu0 0
    %2859 = vmatpush1.bf16.msra.mxu0 0
    %2860 = vmatprep.subr.bf16.mxu0 0
    %2861 = vmatpush1.bf16.msra.mxu0 0
    %2862 = vmatprep.subr.bf16.mxu0 0
    %2863 = vmatpush1.bf16.msra.mxu0 0
    %2864 = vmatprep.subr.bf16.mxu0 0
    %2865 = vmatpush1.bf16.msra.mxu0 0
    %2866 = vmatprep.subr.bf16.mxu0 0
    %2867 = vmatpush1.bf16.msra.mxu0 0
    %2868 = vmatprep.subr.bf16.mxu0 0
    %2869 = vmatpush1.bf16.msra.mxu0 0
    %2870 = vmatprep.subr.bf16.mxu0 0
    %2871 = vmatpush1.bf16.msra.mxu0 0
    %2872 = vmatprep.subr.bf16.mxu0 0
    %2873 = vmatpush1.bf16.msra.mxu0 0
    %2874 = vmatprep.subr.bf16.mxu0 0
    %2875 = vmatpush1.bf16.msra.mxu0 0
    %2876 = vmatprep.mubr.bf16.mxu0 0
    %2877 = vmatmul.mubr.bf16.gmra.mrb[0].mxu0 %v2331
    %v2878 = vpop.f32.mrb[0].mxu0
    %v2879 = vadd.f32 0.0, %v2878
    %v2880 = vpop.f32.mrb[0].mxu0
    %v2881 = vpop.f32.mrb[0].mxu0
    %v2882 = vadd.f32 0.0, %v2881
    %v2883 = vpop.f32.mrb[0].mxu0
    %2884 = vmatprep.mubr.bf16.mxu0 0
    %2885 = vmatmul.mubr.bf16.gmra.mrb[0].mxu0 %v2334
    %v2886 = vpop.f32.mrb[0].mxu0
    %v2887 = vadd.f32 0.0, %v2886
    %v2888 = vpop.f32.mrb[0].mxu0
    %v2889 = vpop.f32.mrb[0].mxu0
    %v2890 = vadd.f32 0.0, %v2889
    %v2891 = vpop.f32.mrb[0].mxu0
    %2892 = vmatprep.mubr.bf16.mxu0 0
    %2893 = vmatmul.mubr.bf16.gmra.mrb[0].mxu0 %v2337
    %v2894 = vpop.f32.mrb[0].mxu0
    %v2895 = vadd.f32 0.0, %v2894
    %v2896 = vpop.f32.mrb[0].mxu0
    %v2897 = vpop.f32.mrb[0].mxu0
    %v2898 = vadd.f32 0.0, %v2897
    %v2899 = vpop.f32.mrb[0].mxu0
    %2900 = vmatprep.mubr.bf16.mxu0 0
    %2901 = vmatmul.mubr.bf16.gmra.mrb[0].mxu0 %v2340
    %v2902 = vpop.f32.mrb[0].mxu0
    %v2903 = vadd.f32 0.0, %v2902
    %v2904 = vpop.f32.mrb[0].mxu0
    %v2905 = vpop.f32.mrb[0].mxu0
    %v2906 = vadd.f32 0.0, %v2905
    %v2907 = vpop.f32.mrb[0].mxu0
    %2908 = vmatprep.mubr.bf16.mxu0 0
    %2909 = vmatmul.mubr.bf16.gmra.mrb[0].mxu0 %v2343
    %v2910 = vpop.f32.mrb[0].mxu0
    %v2911 = vadd.f32 0.0, %v2910
    %v2912 = vpop.f32.mrb[0].mxu0
    %v2913 = vpop.f32.mrb[0].mxu0
    %v2914 = vadd.f32 0.0, %v2913
    %v2915 = vpop.f32.mrb[0].mxu0
    %2916 = vmatprep.mubr.bf16.mxu0 0
    %2917 = vmatmul.mubr.bf16.gmra.mrb[0].mxu0 %v2346
    %v2918 = vpop.f32.mrb[0].mxu0
    %v2919 = vadd.f32 0.0, %v2918
    %v2920 = vpop.f32.mrb[0].mxu0
    %v2921 = vpop.f32.mrb[0].mxu0
    %v2922 = vadd.f32 0.0, %v2921
    %v2923 = vpop.f32.mrb[0].mxu0
    %2924 = vmatprep.mubr.bf16.mxu0 0
    %2925 = vmatmul.mubr.bf16.gmra.mrb[0].mxu0 %v2349
    %v2926 = vpop.f32.mrb[0].mxu0
    %v2927 = vadd.f32 0.0, %v2926
    %v2928 = vpop.f32.mrb[0].mxu0
    %v2929 = vpop.f32.mrb[0].mxu0
    %v2930 = vadd.f32 0.0, %v2929
    %v2931 = vpop.f32.mrb[0].mxu0
    %2932 = vmatprep.mubr.bf16.mxu0 0
    %2933 = vmatmul.mubr.bf16.gmra.mrb[0].mxu0 %v2352
    %v2934 = vpop.f32.mrb[0].mxu0
    %v2935 = vadd.f32 0.0, %v2934
    %v2936 = vpop.f32.mrb[0].mxu0
    %v2937 = vpop.f32.mrb[0].mxu0
    %v2938 = vadd.f32 0.0, %v2937
    %v2939 = vpop.f32.mrb[0].mxu0
    %2940 = vmatprep.mubr.bf16.mxu0 0
    %2941 = vmatmul.mubr.bf16.gmra.mrb[0].mxu0 %v2355
    %v2942 = vpop.f32.mrb[0].mxu0
    %v2943 = vadd.f32 0.0, %v2942
    %v2944 = vpop.f32.mrb[0].mxu0
    %v2945 = vpop.f32.mrb[0].mxu0
    %v2946 = vadd.f32 0.0, %v2945
    %v2947 = vpop.f32.mrb[0].mxu0
    %2948 = vmatprep.mubr.bf16.mxu0 0
    %2949 = vmatmul.mubr.bf16.gmra.mrb[0].mxu0 %v2358
    %v2950 = vpop.f32.mrb[0].mxu0
    %v2951 = vadd.f32 0.0, %v2950
    %v2952 = vpop.f32.mrb[0].mxu0
    %v2953 = vpop.f32.mrb[0].mxu0
    %v2954 = vadd.f32 0.0, %v2953
    %v2955 = vpop.f32.mrb[0].mxu0
    %2956 = vmatprep.mubr.bf16.mxu0 0
    %2957 = vmatmul.mubr.bf16.gmra.mrb[0].mxu0 %v2361
    %v2958 = vpop.f32.mrb[0].mxu0
    %v2959 = vadd.f32 0.0, %v2958
    %v2960 = vpop.f32.mrb[0].mxu0
    %v2961 = vpop.f32.mrb[0].mxu0
    %v2962 = vadd.f32 0.0, %v2961
    %v2963 = vpop.f32.mrb[0].mxu0
    %2964 = vmatprep.mubr.bf16.mxu0 0
    %2965 = vmatmul.mubr.bf16.gmra.mrb[0].mxu0 %v2364
    %v2966 = vpop.f32.mrb[0].mxu0
    %v2967 = vadd.f32 0.0, %v2966
    %v2968 = vpop.f32.mrb[0].mxu0
    %v2969 = vpop.f32.mrb[0].mxu0
    %v2970 = vadd.f32 0.0, %v2969
    %v2971 = vpop.f32.mrb[0].mxu0
    %2972 = vmatprep.mubr.bf16.mxu0 0
    %2973 = vmatmul.mubr.bf16.gmra.mrb[0].mxu0 %v2367
    %v2974 = vpop.f32.mrb[0].mxu0
    %v2975 = vadd.f32 0.0, %v2974
    %v2976 = vpop.f32.mrb[0].mxu0
    %v2977 = vpop.f32.mrb[0].mxu0
    %v2978 = vadd.f32 0.0, %v2977
    %v2979 = vpop.f32.mrb[0].mxu0
    %2980 = vmatprep.mubr.bf16.mxu0 0
    %2981 = vmatmul.mubr.bf16.gmra.mrb[0].mxu0 %v2370
    %v2982 = vpop.f32.mrb[0].mxu0
    %v2983 = vadd.f32 0.0, %v2982
    %v2984 = vpop.f32.mrb[0].mxu0
    %v2985 = vpop.f32.mrb[0].mxu0
    %v2986 = vadd.f32 0.0, %v2985
    %v2987 = vpop.f32.mrb[0].mxu0
    %2988 = vmatprep.mubr.bf16.mxu0 0
    %2989 = vmatmul.mubr.bf16.gmra.mrb[0].mxu0 %v2373
    %v2990 = vpop.f32.mrb[0].mxu0
    %v2991 = vadd.f32 0.0, %v2990
    %v2992 = vpop.f32.mrb[0].mxu0
    %v2993 = vpop.f32.mrb[0].mxu0
    %v2994 = vadd.f32 0.0, %v2993
    %v2995 = vpop.f32.mrb[0].mxu0
    %2996 = vmatprep.mubr.bf16.mxu0 0
    %2997 = vmatmul.mubr.bf16.gmra.mrb[0].mxu0 %v2836
    %v2998 = vpop.f32.mrb[0].mxu0
    %v2999 = vadd.f32 0.0, %v2998
    %v3000 = vpop.f32.mrb[0].mxu0
    %v3001 = vpop.f32.mrb[0].mxu0
    %v3002 = vadd.f32 0.0, %v3001
    %v3003 = vpop.f32.mrb[0].mxu0
    %3004 = vmatprep.mubr.bf16.mxu0 0
    %3005 = vmatmul.mubr.bf16.gmra.mrb[0].mxu0 %v2379
    %v3006 = vpop.f32.mrb[0].mxu0
    %v3007 = vadd.f32 0.0, %v3006
    %v3008 = vpop.f32.mrb[0].mxu0
    %v3009 = vpop.f32.mrb[0].mxu0
    %v3010 = vadd.f32 0.0, %v3009
    %v3011 = vpop.f32.mrb[0].mxu0
    %3012 = vmatprep.mubr.bf16.mxu0 0
    %3013 = vmatmul.mubr.bf16.gmra.mrb[0].mxu0 %v2382
    %v3014 = vpop.f32.mrb[0].mxu0
    %v3015 = vadd.f32 0.0, %v3014
    %v3016 = vpop.f32.mrb[0].mxu0
    %v3017 = vpop.f32.mrb[0].mxu0
    %v3018 = vadd.f32 0.0, %v3017
    %v3019 = vpop.f32.mrb[0].mxu0
    %3020 = vmatprep.mubr.bf16.mxu0 0
    %3021 = vmatmul.mubr.bf16.gmra.mrb[0].mxu0 %v2385
    %v3022 = vpop.f32.mrb[0].mxu0
    %v3023 = vadd.f32 0.0, %v3022
    %v3024 = vpop.f32.mrb[0].mxu0
    %v3025 = vpop.f32.mrb[0].mxu0
    %v3026 = vadd.f32 0.0, %v3025
    %v3027 = vpop.f32.mrb[0].mxu0
    %3028 = vmatprep.mubr.bf16.mxu0 0
    %3029 = vmatmul.mubr.bf16.gmra.mrb[0].mxu0 %v2388
    %v3030 = vpop.f32.mrb[0].mxu0
    %v3031 = vadd.f32 0.0, %v3030
    %v3032 = vpop.f32.mrb[0].mxu0
    %v3033 = vpop.f32.mrb[0].mxu0
    %v3034 = vadd.f32 0.0, %v3033
    %v3035 = vpop.f32.mrb[0].mxu0
    %3036 = vmatprep.mubr.bf16.mxu0 0
    %3037 = vmatmul.mubr.bf16.gmra.mrb[0].mxu0 %v2391
    %v3038 = vpop.f32.mrb[0].mxu0
    %v3039 = vadd.f32 0.0, %v3038
    %v3040 = vpop.f32.mrb[0].mxu0
    %v3041 = vpop.f32.mrb[0].mxu0
    %v3042 = vadd.f32 0.0, %v3041
    %v3043 = vpop.f32.mrb[0].mxu0
    %3044 = vmatprep.mubr.bf16.mxu0 0
    %3045 = vmatmul.mubr.bf16.gmra.mrb[0].mxu0 %v2394
    %v3046 = vpop.f32.mrb[0].mxu0
    %v3047 = vadd.f32 0.0, %v3046
    %v3048 = vpop.f32.mrb[0].mxu0
    %v3049 = vpop.f32.mrb[0].mxu0
    %v3050 = vadd.f32 0.0, %v3049
    %v3051 = vpop.f32.mrb[0].mxu0
    %3052 = vmatprep.mubr.bf16.mxu0 0
    %3053 = vmatmul.mubr.bf16.gmra.mrb[0].mxu0 %v2397
    %v3054 = vpop.f32.mrb[0].mxu0
    %v3055 = vadd.f32 0.0, %v3054
    %v3056 = vpop.f32.mrb[0].mxu0
    %v3057 = vpop.f32.mrb[0].mxu0
    %v3058 = vadd.f32 0.0, %v3057
    %v3059 = vpop.f32.mrb[0].mxu0
    %3060 = vmatprep.mubr.bf16.mxu0 0
    %3061 = vmatmul.mubr.bf16.gmra.mrb[0].mxu0 %v2400
    %v3062 = vpop.f32.mrb[0].mxu0
    %v3063 = vadd.f32 0.0, %v3062
    %v3064 = vpop.f32.mrb[0].mxu0
    %v3065 = vpop.f32.mrb[0].mxu0
    %v3066 = vadd.f32 0.0, %v3065
    %v3067 = vpop.f32.mrb[0].mxu0
    %3068 = vmatprep.mubr.bf16.mxu0 0
    %3069 = vmatmul.mubr.bf16.gmra.mrb[0].mxu0 %v2403
    %v3070 = vpop.f32.mrb[0].mxu0
    %v3071 = vadd.f32 0.0, %v3070
    %v3072 = vpop.f32.mrb[0].mxu0
    %v3073 = vpop.f32.mrb[0].mxu0
    %v3074 = vadd.f32 0.0, %v3073
    %v3075 = vpop.f32.mrb[0].mxu0
    %3076 = vmatprep.mubr.bf16.mxu0 0
    %3077 = vmatmul.mubr.bf16.gmra.mrb[0].mxu0 %v2406
    %v3078 = vpop.f32.mrb[0].mxu0
    %v3079 = vadd.f32 0.0, %v3078
    %v3080 = vpop.f32.mrb[0].mxu0
    %v3081 = vpop.f32.mrb[0].mxu0
    %v3082 = vadd.f32 0.0, %v3081
    %v3083 = vpop.f32.mrb[0].mxu0
    %3084 = vmatprep.mubr.bf16.mxu0 0
    %3085 = vmatmul.mubr.bf16.gmra.mrb[0].mxu0 %v2409
    %v3086 = vpop.f32.mrb[0].mxu0
    %v3087 = vadd.f32 0.0, %v3086
    %v3088 = vpop.f32.mrb[0].mxu0
    %v3089 = vpop.f32.mrb[0].mxu0
    %v3090 = vadd.f32 0.0, %v3089
    %v3091 = vpop.f32.mrb[0].mxu0
    %3092 = vmatprep.mubr.bf16.mxu0 0
    %3093 = vmatmul.mubr.bf16.gmra.mrb[0].mxu0 %v2412
    %v3094 = vpop.f32.mrb[0].mxu0
    %v3095 = vadd.f32 0.0, %v3094
    %v3096 = vpop.f32.mrb[0].mxu0
    %v3097 = vpop.f32.mrb[0].mxu0
    %v3098 = vadd.f32 0.0, %v3097
    %v3099 = vpop.f32.mrb[0].mxu0
    %3100 = vmatprep.mubr.bf16.mxu0 0
    %3101 = vmatmul.mubr.bf16.gmra.mrb[0].mxu0 %v2415
    %v3102 = vpop.f32.mrb[0].mxu0
    %v3103 = vadd.f32 0.0, %v3102
    %v3104 = vpop.f32.mrb[0].mxu0
    %v3105 = vpop.f32.mrb[0].mxu0
    %v3106 = vadd.f32 0.0, %v3105
    %v3107 = vpop.f32.mrb[0].mxu0
    %3108 = vmatprep.mubr.bf16.mxu0 0
    %3109 = vmatmul.mubr.bf16.gmra.mrb[0].mxu0 %v2418
    %v3110 = vpop.f32.mrb[0].mxu0
    %v3111 = vadd.f32 0.0, %v3110
    %v3112 = vpop.f32.mrb[0].mxu0
    %v3113 = vpop.f32.mrb[0].mxu0
    %v3114 = vadd.f32 0.0, %v3113
    %v3115 = vpop.f32.mrb[0].mxu0
    %3116 = vmatprep.mubr.bf16.mxu0 0
    %3117 = vmatmul.mubr.bf16.gmra.mrb[0].mxu0 %v2421
    %v3118 = vpop.f32.mrb[0].mxu0
    %v3119 = vadd.f32 0.0, %v3118
    %v3120 = vpop.f32.mrb[0].mxu0
    %v3121 = vpop.f32.mrb[0].mxu0
    %v3122 = vadd.f32 0.0, %v3121
    %v3123 = vpop.f32.mrb[0].mxu0
    %3124 = vmatprep.mubr.bf16.mxu0 0
    %3125 = vmatmul.mubr.bf16.gmra.mrb[0].mxu0 %v2839
    %v3126 = vpop.f32.mrb[0].mxu0
    %v3127 = vadd.f32 0.0, %v3126
    %v3128 = vpop.f32.mrb[0].mxu0
    %v3129 = vpop.f32.mrb[0].mxu0
    %v3130 = vadd.f32 0.0, %v3129
    %v3131 = vpop.f32.mrb[0].mxu0
    %3132 = vdwg.mxu0
    %v3133 = vadd.f32 %v2715, %v2879
    %v3134 = vadd.f32 %v2716, %v2882
    %v3135 = vadd.f32 %v2717, %v2887
    %v3136 = vadd.f32 %v2718, %v2890
    %v3137 = vadd.f32 %v2719, %v2895
    %v3138 = vadd.f32 %v2720, %v2898
    %v3139 = vadd.f32 %v2721, %v2903
    %v3140 = vadd.f32 %v2722, %v2906
    %v3141 = vadd.f32 %v2723, %v2911
    %v3142 = vadd.f32 %v2724, %v2914
    %v3143 = vadd.f32 %v2725, %v2919
    %v3144 = vadd.f32 %v2726, %v2922
    %v3145 = vadd.f32 %v2727, %v2927
    %v3146 = vadd.f32 %v2728, %v2930
    %v3147 = vadd.f32 %v2729, %v2935
    %v3148 = vadd.f32 %v2730, %v2938
    %v3149 = vadd.f32 %v2731, %v2943
    %v3150 = vadd.f32 %v2732, %v2946
    %v3151 = vadd.f32 %v2733, %v2951
    %v3152 = vadd.f32 %v2734, %v2954
    %v3153 = vadd.f32 %v2735, %v2959
    %v3154 = vadd.f32 %v2736, %v2962
    %v3155 = vadd.f32 %v2737, %v2967
    %v3156 = vadd.f32 %v2738, %v2970
    %v3157 = vadd.f32 %v2739, %v2975
    %v3158 = vadd.f32 %v2740, %v2978
    %v3159 = vadd.f32 %v2741, %v2983
    %v3160 = vadd.f32 %v2742, %v2986
    %v3161 = vadd.f32 %v2743, %v2991
    %v3162 = vadd.f32 %v2744, %v2994
    %v3163 = vadd.f32 %v2745, %v2999
    %v3164 = vadd.f32 %v2746, %v3002
    %v3165 = vadd.f32 %v2747, %v3007
    %v3166 = vadd.f32 %v2748, %v3010
    %v3167 = vadd.f32 %v2749, %v3015
    %v3168 = vadd.f32 %v2750, %v3018
    %v3169 = vadd.f32 %v2751, %v3023
    %v3170 = vadd.f32 %v2752, %v3026
    %v3171 = vadd.f32 %v2753, %v3031
    %v3172 = vadd.f32 %v2754, %v3034
    %v3173 = vadd.f32 %v2755, %v3039
    %v3174 = vadd.f32 %v2756, %v3042
    %v3175 = vadd.f32 %v2757, %v3047
    %v3176 = vadd.f32 %v2758, %v3050
    %v3177 = vadd.f32 %v2759, %v3055
    %v3178 = vadd.f32 %v2760, %v3058
    %v3179 = vadd.f32 %v2761, %v3063
    %v3180 = vadd.f32 %v2762, %v3066
    %v3181 = vadd.f32 %v2763, %v3071
    %v3182 = vadd.f32 %v2764, %v3074
    %v3183 = vadd.f32 %v2765, %v3079
    %v3184 = vadd.f32 %v2766, %v3082
    %v3185 = vadd.f32 %v2767, %v3087
    %v3186 = vadd.f32 %v2768, %v3090
    %v3187 = vadd.f32 %v2769, %v3095
    %v3188 = vadd.f32 %v2770, %v3098
    %v3189 = vadd.f32 %v2771, %v3103
    %v3190 = vadd.f32 %v2772, %v3106
    %v3191 = vadd.f32 %v2773, %v3111
    %v3192 = vadd.f32 %v2774, %v3114
    %v3193 = vadd.f32 %v2775, %v3119
    %v3194 = vadd.f32 %v2776, %v3122
    %v3195 = vadd.f32 %v2777, %v3127
    %v3196 = vadd.f32 %v2778, %v3130
    %v3198 = vshrl.u32 %v1401, 16
    %v3200 = vrot.slane %v3198, 4
    %v3201 = vshll.u32 %v1401, 16
    %v3203 = vrot.slane %v3201, 5
    %v3204 = vor.u32 %v3200, %v3203
    %v3205 = vrot.slane %v3204, 4
    %v3207 = vshll.u32 %v1402, 16
    %v3209 = vrot.slane %v3207, 5
    %v3210 = vsel %vm1460, %v3205, %v3209
    %v3211 = vshrl.u32 %v1402, 16
    %v3213 = vrot.slane %v3211, 4
    %v3214 = vor.u32 %v3213, %v3209
    %v3215 = vrot.slane %v3214, 4
    %v3217 = vshll.u32 %v1403, 16
    %v3219 = vrot.slane %v3217, 5
    %v3220 = vsel %vm1460, %v3215, %v3219
    %v3222 = vshrl.u32 %v1455, 16
    %v3224 = vrot.slane %v3222, 4
    %v3225 = vshll.u32 %v1455, 16
    %v3227 = vrot.slane %v3225, 5
    %v3228 = vor.u32 %v3224, %v3227
    %v3229 = vrot.slane %v3228, 4
    %v3231 = vshll.u32 %v1456, 16
    %v3233 = vrot.slane %v3231, 5
    %v3234 = vsel %vm1460, %v3229, %v3233
    %v3235 = vshrl.u32 %v1456, 16
    %v3237 = vrot.slane %v3235, 4
    %v3238 = vor.u32 %v3237, %v3233
    %v3239 = vrot.slane %v3238, 4
    %v3241 = vshll.u32 %v1457, 16
    %v3243 = vrot.slane %v3241, 5
    %v3244 = vsel %vm1460, %v3239, %v3243
    %s3245 = scalar_lea.vmem %s1, 14
    %v3246 = vld [vmem:[%s3245] sm:$0x3]
    %v3247 = vunpack.c.l.b16 %v3210
    %v3248 = vunpack.c.l.b16 %v3220
    %v3249 = vunpack.c.l.b16 %v3234
    %v3250 = vunpack.c.l.b16 %v3244
    %v3251 = vpack.c.b16 %v3248, %v3247
    %v3252 = vpack.c.b16 %v3250, %v3249
    %v3254 = vsel %vm278, %v3251, 0
    %v3257 = vsel %vm278, %v3252, 0
    %v3260 = vsel %vm375, %v3246, 0
    %3262 = vmatprep.subr.bf16.mxu0 0
    %3263 = vmatpush1.bf16.msra.mxu0 %v3260
    %3264 = vmatprep.subr.bf16.mxu0 0
    %3265 = vmatpush1.bf16.msra.mxu0 0
    %3266 = vmatprep.subr.bf16.mxu0 0
    %3267 = vmatpush1.bf16.msra.mxu0 0
    %3268 = vmatprep.subr.bf16.mxu0 0
    %3269 = vmatpush1.bf16.msra.mxu0 0
    %3270 = vmatprep.subr.bf16.mxu0 0
    %3271 = vmatpush1.bf16.msra.mxu0 0
    %3272 = vmatprep.subr.bf16.mxu0 0
    %3273 = vmatpush1.bf16.msra.mxu0 0
    %3274 = vmatprep.subr.bf16.mxu0 0
    %3275 = vmatpush1.bf16.msra.mxu0 0
    %3276 = vmatprep.subr.bf16.mxu0 0
    %3277 = vmatpush1.bf16.msra.mxu0 0
    %3278 = vmatprep.subr.bf16.mxu0 0
    %3279 = vmatpush1.bf16.msra.mxu0 0
    %3280 = vmatprep.subr.bf16.mxu0 0
    %3281 = vmatpush1.bf16.msra.mxu0 0
    %3282 = vmatprep.subr.bf16.mxu0 0
    %3283 = vmatpush1.bf16.msra.mxu0 0
    %3284 = vmatprep.subr.bf16.mxu0 0
    %3285 = vmatpush1.bf16.msra.mxu0 0
    %3286 = vmatprep.subr.bf16.mxu0 0
    %3287 = vmatpush1.bf16.msra.mxu0 0
    %3288 = vmatprep.subr.bf16.mxu0 0
    %3289 = vmatpush1.bf16.msra.mxu0 0
    %3290 = vmatprep.subr.bf16.mxu0 0
    %3291 = vmatpush1.bf16.msra.mxu0 0
    %3292 = vmatprep.subr.bf16.mxu0 0
    %3293 = vmatpush1.bf16.msra.mxu0 0
    %3294 = vmatprep.mubr.bf16.mxu0 0
    %3295 = vmatmul.mubr.bf16.gmra.mrb[0].mxu0 %v2334
    %v3296 = vpop.f32.mrb[0].mxu0
    %v3297 = vadd.f32 0.0, %v3296
    %v3298 = vpop.f32.mrb[0].mxu0
    %v3299 = vpop.f32.mrb[0].mxu0
    %v3300 = vadd.f32 0.0, %v3299
    %v3301 = vpop.f32.mrb[0].mxu0
    %3302 = vmatprep.mubr.bf16.mxu0 0
    %3303 = vmatmul.mubr.bf16.gmra.mrb[0].mxu0 %v2337
    %v3304 = vpop.f32.mrb[0].mxu0
    %v3305 = vadd.f32 0.0, %v3304
    %v3306 = vpop.f32.mrb[0].mxu0
    %v3307 = vpop.f32.mrb[0].mxu0
    %v3308 = vadd.f32 0.0, %v3307
    %v3309 = vpop.f32.mrb[0].mxu0
    %3310 = vmatprep.mubr.bf16.mxu0 0
    %3311 = vmatmul.mubr.bf16.gmra.mrb[0].mxu0 %v2340
    %v3312 = vpop.f32.mrb[0].mxu0
    %v3313 = vadd.f32 0.0, %v3312
    %v3314 = vpop.f32.mrb[0].mxu0
    %v3315 = vpop.f32.mrb[0].mxu0
    %v3316 = vadd.f32 0.0, %v3315
    %v3317 = vpop.f32.mrb[0].mxu0
    %3318 = vmatprep.mubr.bf16.mxu0 0
    %3319 = vmatmul.mubr.bf16.gmra.mrb[0].mxu0 %v2343
    %v3320 = vpop.f32.mrb[0].mxu0
    %v3321 = vadd.f32 0.0, %v3320
    %v3322 = vpop.f32.mrb[0].mxu0
    %v3323 = vpop.f32.mrb[0].mxu0
    %v3324 = vadd.f32 0.0, %v3323
    %v3325 = vpop.f32.mrb[0].mxu0
    %3326 = vmatprep.mubr.bf16.mxu0 0
    %3327 = vmatmul.mubr.bf16.gmra.mrb[0].mxu0 %v2346
    %v3328 = vpop.f32.mrb[0].mxu0
    %v3329 = vadd.f32 0.0, %v3328
    %v3330 = vpop.f32.mrb[0].mxu0
    %v3331 = vpop.f32.mrb[0].mxu0
    %v3332 = vadd.f32 0.0, %v3331
    %v3333 = vpop.f32.mrb[0].mxu0
    %3334 = vmatprep.mubr.bf16.mxu0 0
    %3335 = vmatmul.mubr.bf16.gmra.mrb[0].mxu0 %v2349
    %v3336 = vpop.f32.mrb[0].mxu0
    %v3337 = vadd.f32 0.0, %v3336
    %v3338 = vpop.f32.mrb[0].mxu0
    %v3339 = vpop.f32.mrb[0].mxu0
    %v3340 = vadd.f32 0.0, %v3339
    %v3341 = vpop.f32.mrb[0].mxu0
    %3342 = vmatprep.mubr.bf16.mxu0 0
    %3343 = vmatmul.mubr.bf16.gmra.mrb[0].mxu0 %v2352
    %v3344 = vpop.f32.mrb[0].mxu0
    %v3345 = vadd.f32 0.0, %v3344
    %v3346 = vpop.f32.mrb[0].mxu0
    %v3347 = vpop.f32.mrb[0].mxu0
    %v3348 = vadd.f32 0.0, %v3347
    %v3349 = vpop.f32.mrb[0].mxu0
    %3350 = vmatprep.mubr.bf16.mxu0 0
    %3351 = vmatmul.mubr.bf16.gmra.mrb[0].mxu0 %v2355
    %v3352 = vpop.f32.mrb[0].mxu0
    %v3353 = vadd.f32 0.0, %v3352
    %v3354 = vpop.f32.mrb[0].mxu0
    %v3355 = vpop.f32.mrb[0].mxu0
    %v3356 = vadd.f32 0.0, %v3355
    %v3357 = vpop.f32.mrb[0].mxu0
    %3358 = vmatprep.mubr.bf16.mxu0 0
    %3359 = vmatmul.mubr.bf16.gmra.mrb[0].mxu0 %v2358
    %v3360 = vpop.f32.mrb[0].mxu0
    %v3361 = vadd.f32 0.0, %v3360
    %v3362 = vpop.f32.mrb[0].mxu0
    %v3363 = vpop.f32.mrb[0].mxu0
    %v3364 = vadd.f32 0.0, %v3363
    %v3365 = vpop.f32.mrb[0].mxu0
    %3366 = vmatprep.mubr.bf16.mxu0 0
    %3367 = vmatmul.mubr.bf16.gmra.mrb[0].mxu0 %v2361
    %v3368 = vpop.f32.mrb[0].mxu0
    %v3369 = vadd.f32 0.0, %v3368
    %v3370 = vpop.f32.mrb[0].mxu0
    %v3371 = vpop.f32.mrb[0].mxu0
    %v3372 = vadd.f32 0.0, %v3371
    %v3373 = vpop.f32.mrb[0].mxu0
    %3374 = vmatprep.mubr.bf16.mxu0 0
    %3375 = vmatmul.mubr.bf16.gmra.mrb[0].mxu0 %v2364
    %v3376 = vpop.f32.mrb[0].mxu0
    %v3377 = vadd.f32 0.0, %v3376
    %v3378 = vpop.f32.mrb[0].mxu0
    %v3379 = vpop.f32.mrb[0].mxu0
    %v3380 = vadd.f32 0.0, %v3379
    %v3381 = vpop.f32.mrb[0].mxu0
    %3382 = vmatprep.mubr.bf16.mxu0 0
    %3383 = vmatmul.mubr.bf16.gmra.mrb[0].mxu0 %v2367
    %v3384 = vpop.f32.mrb[0].mxu0
    %v3385 = vadd.f32 0.0, %v3384
    %v3386 = vpop.f32.mrb[0].mxu0
    %v3387 = vpop.f32.mrb[0].mxu0
    %v3388 = vadd.f32 0.0, %v3387
    %v3389 = vpop.f32.mrb[0].mxu0
    %3390 = vmatprep.mubr.bf16.mxu0 0
    %3391 = vmatmul.mubr.bf16.gmra.mrb[0].mxu0 %v2370
    %v3392 = vpop.f32.mrb[0].mxu0
    %v3393 = vadd.f32 0.0, %v3392
    %v3394 = vpop.f32.mrb[0].mxu0
    %v3395 = vpop.f32.mrb[0].mxu0
    %v3396 = vadd.f32 0.0, %v3395
    %v3397 = vpop.f32.mrb[0].mxu0
    %3398 = vmatprep.mubr.bf16.mxu0 0
    %3399 = vmatmul.mubr.bf16.gmra.mrb[0].mxu0 %v2373
    %v3400 = vpop.f32.mrb[0].mxu0
    %v3401 = vadd.f32 0.0, %v3400
    %v3402 = vpop.f32.mrb[0].mxu0
    %v3403 = vpop.f32.mrb[0].mxu0
    %v3404 = vadd.f32 0.0, %v3403
    %v3405 = vpop.f32.mrb[0].mxu0
    %3406 = vmatprep.mubr.bf16.mxu0 0
    %3407 = vmatmul.mubr.bf16.gmra.mrb[0].mxu0 %v2836
    %v3408 = vpop.f32.mrb[0].mxu0
    %v3409 = vadd.f32 0.0, %v3408
    %v3410 = vpop.f32.mrb[0].mxu0
    %v3411 = vpop.f32.mrb[0].mxu0
    %v3412 = vadd.f32 0.0, %v3411
    %v3413 = vpop.f32.mrb[0].mxu0
    %3414 = vmatprep.mubr.bf16.mxu0 0
    %3415 = vmatmul.mubr.bf16.gmra.mrb[0].mxu0 %v3254
    %v3416 = vpop.f32.mrb[0].mxu0
    %v3417 = vadd.f32 0.0, %v3416
    %v3418 = vpop.f32.mrb[0].mxu0
    %v3419 = vpop.f32.mrb[0].mxu0
    %v3420 = vadd.f32 0.0, %v3419
    %v3421 = vpop.f32.mrb[0].mxu0
    %3422 = vmatprep.mubr.bf16.mxu0 0
    %3423 = vmatmul.mubr.bf16.gmra.mrb[0].mxu0 %v2382
    %v3424 = vpop.f32.mrb[0].mxu0
    %v3425 = vadd.f32 0.0, %v3424
    %v3426 = vpop.f32.mrb[0].mxu0
    %v3427 = vpop.f32.mrb[0].mxu0
    %v3428 = vadd.f32 0.0, %v3427
    %v3429 = vpop.f32.mrb[0].mxu0
    %3430 = vmatprep.mubr.bf16.mxu0 0
    %3431 = vmatmul.mubr.bf16.gmra.mrb[0].mxu0 %v2385
    %v3432 = vpop.f32.mrb[0].mxu0
    %v3433 = vadd.f32 0.0, %v3432
    %v3434 = vpop.f32.mrb[0].mxu0
    %v3435 = vpop.f32.mrb[0].mxu0
    %v3436 = vadd.f32 0.0, %v3435
    %v3437 = vpop.f32.mrb[0].mxu0
    %3438 = vmatprep.mubr.bf16.mxu0 0
    %3439 = vmatmul.mubr.bf16.gmra.mrb[0].mxu0 %v2388
    %v3440 = vpop.f32.mrb[0].mxu0
    %v3441 = vadd.f32 0.0, %v3440
    %v3442 = vpop.f32.mrb[0].mxu0
    %v3443 = vpop.f32.mrb[0].mxu0
    %v3444 = vadd.f32 0.0, %v3443
    %v3445 = vpop.f32.mrb[0].mxu0
    %3446 = vmatprep.mubr.bf16.mxu0 0
    %3447 = vmatmul.mubr.bf16.gmra.mrb[0].mxu0 %v2391
    %v3448 = vpop.f32.mrb[0].mxu0
    %v3449 = vadd.f32 0.0, %v3448
    %v3450 = vpop.f32.mrb[0].mxu0
    %v3451 = vpop.f32.mrb[0].mxu0
    %v3452 = vadd.f32 0.0, %v3451
    %v3453 = vpop.f32.mrb[0].mxu0
    %3454 = vmatprep.mubr.bf16.mxu0 0
    %3455 = vmatmul.mubr.bf16.gmra.mrb[0].mxu0 %v2394
    %v3456 = vpop.f32.mrb[0].mxu0
    %v3457 = vadd.f32 0.0, %v3456
    %v3458 = vpop.f32.mrb[0].mxu0
    %v3459 = vpop.f32.mrb[0].mxu0
    %v3460 = vadd.f32 0.0, %v3459
    %v3461 = vpop.f32.mrb[0].mxu0
    %3462 = vmatprep.mubr.bf16.mxu0 0
    %3463 = vmatmul.mubr.bf16.gmra.mrb[0].mxu0 %v2397
    %v3464 = vpop.f32.mrb[0].mxu0
    %v3465 = vadd.f32 0.0, %v3464
    %v3466 = vpop.f32.mrb[0].mxu0
    %v3467 = vpop.f32.mrb[0].mxu0
    %v3468 = vadd.f32 0.0, %v3467
    %v3469 = vpop.f32.mrb[0].mxu0
    %3470 = vmatprep.mubr.bf16.mxu0 0
    %3471 = vmatmul.mubr.bf16.gmra.mrb[0].mxu0 %v2400
    %v3472 = vpop.f32.mrb[0].mxu0
    %v3473 = vadd.f32 0.0, %v3472
    %v3474 = vpop.f32.mrb[0].mxu0
    %v3475 = vpop.f32.mrb[0].mxu0
    %v3476 = vadd.f32 0.0, %v3475
    %v3477 = vpop.f32.mrb[0].mxu0
    %3478 = vmatprep.mubr.bf16.mxu0 0
    %3479 = vmatmul.mubr.bf16.gmra.mrb[0].mxu0 %v2403
    %v3480 = vpop.f32.mrb[0].mxu0
    %v3481 = vadd.f32 0.0, %v3480
    %v3482 = vpop.f32.mrb[0].mxu0
    %v3483 = vpop.f32.mrb[0].mxu0
    %v3484 = vadd.f32 0.0, %v3483
    %v3485 = vpop.f32.mrb[0].mxu0
    %3486 = vmatprep.mubr.bf16.mxu0 0
    %3487 = vmatmul.mubr.bf16.gmra.mrb[0].mxu0 %v2406
    %v3488 = vpop.f32.mrb[0].mxu0
    %v3489 = vadd.f32 0.0, %v3488
    %v3490 = vpop.f32.mrb[0].mxu0
    %v3491 = vpop.f32.mrb[0].mxu0
    %v3492 = vadd.f32 0.0, %v3491
    %v3493 = vpop.f32.mrb[0].mxu0
    %3494 = vmatprep.mubr.bf16.mxu0 0
    %3495 = vmatmul.mubr.bf16.gmra.mrb[0].mxu0 %v2409
    %v3496 = vpop.f32.mrb[0].mxu0
    %v3497 = vadd.f32 0.0, %v3496
    %v3498 = vpop.f32.mrb[0].mxu0
    %v3499 = vpop.f32.mrb[0].mxu0
    %v3500 = vadd.f32 0.0, %v3499
    %v3501 = vpop.f32.mrb[0].mxu0
    %3502 = vmatprep.mubr.bf16.mxu0 0
    %3503 = vmatmul.mubr.bf16.gmra.mrb[0].mxu0 %v2412
    %v3504 = vpop.f32.mrb[0].mxu0
    %v3505 = vadd.f32 0.0, %v3504
    %v3506 = vpop.f32.mrb[0].mxu0
    %v3507 = vpop.f32.mrb[0].mxu0
    %v3508 = vadd.f32 0.0, %v3507
    %v3509 = vpop.f32.mrb[0].mxu0
    %3510 = vmatprep.mubr.bf16.mxu0 0
    %3511 = vmatmul.mubr.bf16.gmra.mrb[0].mxu0 %v2415
    %v3512 = vpop.f32.mrb[0].mxu0
    %v3513 = vadd.f32 0.0, %v3512
    %v3514 = vpop.f32.mrb[0].mxu0
    %v3515 = vpop.f32.mrb[0].mxu0
    %v3516 = vadd.f32 0.0, %v3515
    %v3517 = vpop.f32.mrb[0].mxu0
    %3518 = vmatprep.mubr.bf16.mxu0 0
    %3519 = vmatmul.mubr.bf16.gmra.mrb[0].mxu0 %v2418
    %v3520 = vpop.f32.mrb[0].mxu0
    %v3521 = vadd.f32 0.0, %v3520
    %v3522 = vpop.f32.mrb[0].mxu0
    %v3523 = vpop.f32.mrb[0].mxu0
    %v3524 = vadd.f32 0.0, %v3523
    %v3525 = vpop.f32.mrb[0].mxu0
    %3526 = vmatprep.mubr.bf16.mxu0 0
    %3527 = vmatmul.mubr.bf16.gmra.mrb[0].mxu0 %v2421
    %v3528 = vpop.f32.mrb[0].mxu0
    %v3529 = vadd.f32 0.0, %v3528
    %v3530 = vpop.f32.mrb[0].mxu0
    %v3531 = vpop.f32.mrb[0].mxu0
    %v3532 = vadd.f32 0.0, %v3531
    %v3533 = vpop.f32.mrb[0].mxu0
    %3534 = vmatprep.mubr.bf16.mxu0 0
    %3535 = vmatmul.mubr.bf16.gmra.mrb[0].mxu0 %v2839
    %v3536 = vpop.f32.mrb[0].mxu0
    %v3537 = vadd.f32 0.0, %v3536
    %v3538 = vpop.f32.mrb[0].mxu0
    %v3539 = vpop.f32.mrb[0].mxu0
    %v3540 = vadd.f32 0.0, %v3539
    %v3541 = vpop.f32.mrb[0].mxu0
    %3542 = vmatprep.mubr.bf16.mxu0 0
    %3543 = vmatmul.mubr.bf16.gmra.mrb[0].mxu0 %v3257
    %v3544 = vpop.f32.mrb[0].mxu0
    %v3545 = vadd.f32 0.0, %v3544
    %v3546 = vpop.f32.mrb[0].mxu0
    %v3547 = vpop.f32.mrb[0].mxu0
    %v3548 = vadd.f32 0.0, %v3547
    %v3549 = vpop.f32.mrb[0].mxu0
    %3550 = vdwg.mxu0
    %v3551 = vadd.f32 %v3133, %v3297
    %v3552 = vadd.f32 %v3134, %v3300
    %v3553 = vadd.f32 %v3135, %v3305
    %v3554 = vadd.f32 %v3136, %v3308
    %v3555 = vadd.f32 %v3137, %v3313
    %v3556 = vadd.f32 %v3138, %v3316
    %v3557 = vadd.f32 %v3139, %v3321
    %v3558 = vadd.f32 %v3140, %v3324
    %v3559 = vadd.f32 %v3141, %v3329
    %v3560 = vadd.f32 %v3142, %v3332
    %v3561 = vadd.f32 %v3143, %v3337
    %v3562 = vadd.f32 %v3144, %v3340
    %v3563 = vadd.f32 %v3145, %v3345
    %v3564 = vadd.f32 %v3146, %v3348
    %v3565 = vadd.f32 %v3147, %v3353
    %v3566 = vadd.f32 %v3148, %v3356
    %v3567 = vadd.f32 %v3149, %v3361
    %v3568 = vadd.f32 %v3150, %v3364
    %v3569 = vadd.f32 %v3151, %v3369
    %v3570 = vadd.f32 %v3152, %v3372
    %v3571 = vadd.f32 %v3153, %v3377
    %v3572 = vadd.f32 %v3154, %v3380
    %v3573 = vadd.f32 %v3155, %v3385
    %v3574 = vadd.f32 %v3156, %v3388
    %v3575 = vadd.f32 %v3157, %v3393
    %v3576 = vadd.f32 %v3158, %v3396
    %v3577 = vadd.f32 %v3159, %v3401
    %v3578 = vadd.f32 %v3160, %v3404
    %v3579 = vadd.f32 %v3161, %v3409
    %v3580 = vadd.f32 %v3162, %v3412
    %v3581 = vadd.f32 %v3163, %v3417
    %v3582 = vadd.f32 %v3164, %v3420
    %v3583 = vadd.f32 %v3165, %v3425
    %v3584 = vadd.f32 %v3166, %v3428
    %v3585 = vadd.f32 %v3167, %v3433
    %v3586 = vadd.f32 %v3168, %v3436
    %v3587 = vadd.f32 %v3169, %v3441
    %v3588 = vadd.f32 %v3170, %v3444
    %v3589 = vadd.f32 %v3171, %v3449
    %v3590 = vadd.f32 %v3172, %v3452
    %v3591 = vadd.f32 %v3173, %v3457
    %v3592 = vadd.f32 %v3174, %v3460
    %v3593 = vadd.f32 %v3175, %v3465
    %v3594 = vadd.f32 %v3176, %v3468
    %v3595 = vadd.f32 %v3177, %v3473
    %v3596 = vadd.f32 %v3178, %v3476
    %v3597 = vadd.f32 %v3179, %v3481
    %v3598 = vadd.f32 %v3180, %v3484
    %v3599 = vadd.f32 %v3181, %v3489
    %v3600 = vadd.f32 %v3182, %v3492
    %v3601 = vadd.f32 %v3183, %v3497
    %v3602 = vadd.f32 %v3184, %v3500
    %v3603 = vadd.f32 %v3185, %v3505
    %v3604 = vadd.f32 %v3186, %v3508
    %v3605 = vadd.f32 %v3187, %v3513
    %v3606 = vadd.f32 %v3188, %v3516
    %v3607 = vadd.f32 %v3189, %v3521
    %v3608 = vadd.f32 %v3190, %v3524
    %v3609 = vadd.f32 %v3191, %v3529
    %v3610 = vadd.f32 %v3192, %v3532
    %v3611 = vadd.f32 %v3193, %v3537
    %v3612 = vadd.f32 %v3194, %v3540
    %v3613 = vadd.f32 %v3195, %v3545
    %v3614 = vadd.f32 %v3196, %v3548
    %v3615 = vld [vmem:[%s0] sm:$0xe]
    %v3616 = vld [vmem:[%s0 + $0xc] sm:$0xe]
    %v3617 = vld [vmem:[%s0 + $0x18] sm:$0xe]
    %v3618 = vld [vmem:[%s0 + $0x24] sm:$0xe]
    %v3619 = vld [vmem:[%s0 + $0x30] sm:$0xe]
    %v3620 = vld [vmem:[%s0 + $0x3c] sm:$0xe]
    %v3621 = vld [vmem:[%s0 + $0x48] sm:$0xe]
    %v3622 = vld [vmem:[%s0 + $0x54] sm:$0xe]
    %v3623 = vld [vmem:[%s0 + $0x60] sm:$0xe]
    %v3624 = vld [vmem:[%s0 + $0x6c] sm:$0xe]
    %v3625 = vld [vmem:[%s0 + $0x78] sm:$0xe]
    %v3626 = vld [vmem:[%s0 + $0x84] sm:$0xe]
    %v3627 = vld [vmem:[%s0 + $0x90] sm:$0xe]
    %v3628 = vld [vmem:[%s0 + $0x9c] sm:$0xe]
    %v3629 = vld [vmem:[%s0 + $0xa8] sm:$0xe]
    %v3630 = vld [vmem:[%s0 + $0xb4] sm:$0xe]
    %v3631 = vld [vmem:[%s0 + $0xc0] sm:$0xe]
    %v3632 = vld [vmem:[%s0 + $0xcc] sm:$0xe]
    %v3633 = vld [vmem:[%s0 + $0xd8] sm:$0xe]
    %v3634 = vld [vmem:[%s0 + $0xe4] sm:$0xe]
    %v3635 = vld [vmem:[%s0 + $0xf0] sm:$0xe]
    %v3636 = vld [vmem:[%s0 + $0xfc] sm:$0xe]
    %v3637 = vld [vmem:[%s0 + $0x108] sm:$0xe]
    %v3638 = vld [vmem:[%s0 + $0x114] sm:$0xe]
    %v3639 = vld [vmem:[%s0 + $0x120] sm:$0xe]
    %v3640 = vld [vmem:[%s0 + $0x12c] sm:$0xe]
    %v3641 = vld [vmem:[%s0 + $0x138] sm:$0xe]
    %v3642 = vld [vmem:[%s0 + $0x144] sm:$0xe]
    %v3643 = vld [vmem:[%s0 + $0x150] sm:$0xe]
    %v3644 = vld [vmem:[%s0 + $0x15c] sm:$0xe]
    %v3645 = vld [vmem:[%s0 + $0x168] sm:$0xe]
    %v3646 = vld [vmem:[%s0 + $0x174] sm:$0xe]
    %v3647 = vld [vmem:[%s0 + $0x180] sm:$0xe]
    %v3648 = vld [vmem:[%s0 + $0x18c] sm:$0xe]
    %v3649 = vld [vmem:[%s0 + $0x198] sm:$0xe]
    %v3650 = vld [vmem:[%s0 + $0x1a4] sm:$0xe]
    %vm3747 = vcmask 1042432
    %vm3748 = vcmask 1046532
    %vm3749 = vmor %vm3747, %vm3748
    %v3750 = vrot.slane %v3615, 5
    %v3751 = vrot.slane %v3750, 4
    %v3752 = vrot.slane %v1351, 5
    %v3753 = vsel %vm3749, %v3751, %v3752
    %v3754 = vrot.slane %v3752, 4
    %v3755 = vrot.slane %v1352, 5
    %v3756 = vsel %vm3749, %v3754, %v3755
    %v3757 = vrot.slane %v3616, 5
    %v3758 = vrot.slane %v3757, 4
    %v3759 = vrot.slane %v1354, 5
    %v3760 = vsel %vm3749, %v3758, %v3759
    %v3761 = vrot.slane %v3759, 4
    %v3762 = vrot.slane %v1355, 5
    %v3763 = vsel %vm3749, %v3761, %v3762
    %v3764 = vrot.slane %v3617, 5
    %v3765 = vrot.slane %v3764, 4
    %v3766 = vrot.slane %v1357, 5
    %v3767 = vsel %vm3749, %v3765, %v3766
    %v3768 = vrot.slane %v3766, 4
    %v3769 = vrot.slane %v1358, 5
    %v3770 = vsel %vm3749, %v3768, %v3769
    %v3771 = vrot.slane %v3618, 5
    %v3772 = vrot.slane %v3771, 4
    %v3773 = vrot.slane %v1360, 5
    %v3774 = vsel %vm3749, %v3772, %v3773
    %v3775 = vrot.slane %v3773, 4
    %v3776 = vrot.slane %v1361, 5
    %v3777 = vsel %vm3749, %v3775, %v3776
    %v3778 = vrot.slane %v3619, 5
    %v3779 = vrot.slane %v3778, 4
    %v3780 = vrot.slane %v1363, 5
    %v3781 = vsel %vm3749, %v3779, %v3780
    %v3782 = vrot.slane %v3780, 4
    %v3783 = vrot.slane %v1364, 5
    %v3784 = vsel %vm3749, %v3782, %v3783
    %v3785 = vrot.slane %v3620, 5
    %v3786 = vrot.slane %v3785, 4
    %v3787 = vrot.slane %v1366, 5
    %v3788 = vsel %vm3749, %v3786, %v3787
    %v3789 = vrot.slane %v3787, 4
    %v3790 = vrot.slane %v1367, 5
    %v3791 = vsel %vm3749, %v3789, %v3790
    %v3792 = vrot.slane %v3621, 5
    %v3793 = vrot.slane %v3792, 4
    %v3794 = vrot.slane %v1369, 5
    %v3795 = vsel %vm3749, %v3793, %v3794
    %v3796 = vrot.slane %v3794, 4
    %v3797 = vrot.slane %v1370, 5
    %v3798 = vsel %vm3749, %v3796, %v3797
    %v3799 = vrot.slane %v3622, 5
    %v3800 = vrot.slane %v3799, 4
    %v3801 = vrot.slane %v1372, 5
    %v3802 = vsel %vm3749, %v3800, %v3801
    %v3803 = vrot.slane %v3801, 4
    %v3804 = vrot.slane %v1373, 5
    %v3805 = vsel %vm3749, %v3803, %v3804
    %v3806 = vrot.slane %v3623, 5
    %v3807 = vrot.slane %v3806, 4
    %v3808 = vrot.slane %v1375, 5
    %v3809 = vsel %vm3749, %v3807, %v3808
    %v3810 = vrot.slane %v3808, 4
    %v3811 = vrot.slane %v1376, 5
    %v3812 = vsel %vm3749, %v3810, %v3811
    %v3813 = vrot.slane %v3624, 5
    %v3814 = vrot.slane %v3813, 4
    %v3815 = vrot.slane %v1378, 5
    %v3816 = vsel %vm3749, %v3814, %v3815
    %v3817 = vrot.slane %v3815, 4
    %v3818 = vrot.slane %v1379, 5
    %v3819 = vsel %vm3749, %v3817, %v3818
    %v3820 = vrot.slane %v3625, 5
    %v3821 = vrot.slane %v3820, 4
    %v3822 = vrot.slane %v1381, 5
    %v3823 = vsel %vm3749, %v3821, %v3822
    %v3824 = vrot.slane %v3822, 4
    %v3825 = vrot.slane %v1382, 5
    %v3826 = vsel %vm3749, %v3824, %v3825
    %v3827 = vrot.slane %v3626, 5
    %v3828 = vrot.slane %v3827, 4
    %v3829 = vrot.slane %v1384, 5
    %v3830 = vsel %vm3749, %v3828, %v3829
    %v3831 = vrot.slane %v3829, 4
    %v3832 = vrot.slane %v1385, 5
    %v3833 = vsel %vm3749, %v3831, %v3832
    %v3834 = vrot.slane %v3627, 5
    %v3835 = vrot.slane %v3834, 4
    %v3836 = vrot.slane %v1387, 5
    %v3837 = vsel %vm3749, %v3835, %v3836
    %v3838 = vrot.slane %v3836, 4
    %v3839 = vrot.slane %v1388, 5
    %v3840 = vsel %vm3749, %v3838, %v3839
    %v3841 = vrot.slane %v3628, 5
    %v3842 = vrot.slane %v3841, 4
    %v3843 = vrot.slane %v1390, 5
    %v3844 = vsel %vm3749, %v3842, %v3843
    %v3845 = vrot.slane %v3843, 4
    %v3846 = vrot.slane %v1391, 5
    %v3847 = vsel %vm3749, %v3845, %v3846
    %v3848 = vrot.slane %v3629, 5
    %v3849 = vrot.slane %v3848, 4
    %v3850 = vrot.slane %v1393, 5
    %v3851 = vsel %vm3749, %v3849, %v3850
    %v3852 = vrot.slane %v3850, 4
    %v3853 = vrot.slane %v1394, 5
    %v3854 = vsel %vm3749, %v3852, %v3853
    %v3855 = vrot.slane %v3630, 5
    %v3856 = vrot.slane %v3855, 4
    %v3857 = vrot.slane %v1396, 5
    %v3858 = vsel %vm3749, %v3856, %v3857
    %v3859 = vrot.slane %v3857, 4
    %v3860 = vrot.slane %v1397, 5
    %v3861 = vsel %vm3749, %v3859, %v3860
    %v3862 = vrot.slane %v3633, 5
    %v3863 = vrot.slane %v3862, 4
    %v3864 = vrot.slane %v1405, 5
    %v3865 = vsel %vm3749, %v3863, %v3864
    %v3866 = vrot.slane %v3864, 4
    %v3867 = vrot.slane %v1406, 5
    %v3868 = vsel %vm3749, %v3866, %v3867
    %v3869 = vrot.slane %v3634, 5
    %v3870 = vrot.slane %v3869, 4
    %v3871 = vrot.slane %v1408, 5
    %v3872 = vsel %vm3749, %v3870, %v3871
    %v3873 = vrot.slane %v3871, 4
    %v3874 = vrot.slane %v1409, 5
    %v3875 = vsel %vm3749, %v3873, %v3874
    %v3876 = vrot.slane %v3635, 5
    %v3877 = vrot.slane %v3876, 4
    %v3878 = vrot.slane %v1411, 5
    %v3879 = vsel %vm3749, %v3877, %v3878
    %v3880 = vrot.slane %v3878, 4
    %v3881 = vrot.slane %v1412, 5
    %v3882 = vsel %vm3749, %v3880, %v3881
    %v3883 = vrot.slane %v3636, 5
    %v3884 = vrot.slane %v3883, 4
    %v3885 = vrot.slane %v1414, 5
    %v3886 = vsel %vm3749, %v3884, %v3885
    %v3887 = vrot.slane %v3885, 4
    %v3888 = vrot.slane %v1415, 5
    %v3889 = vsel %vm3749, %v3887, %v3888
    %v3890 = vrot.slane %v3637, 5
    %v3891 = vrot.slane %v3890, 4
    %v3892 = vrot.slane %v1417, 5
    %v3893 = vsel %vm3749, %v3891, %v3892
    %v3894 = vrot.slane %v3892, 4
    %v3895 = vrot.slane %v1418, 5
    %v3896 = vsel %vm3749, %v3894, %v3895
    %v3897 = vrot.slane %v3638, 5
    %v3898 = vrot.slane %v3897, 4
    %v3899 = vrot.slane %v1420, 5
    %v3900 = vsel %vm3749, %v3898, %v3899
    %v3901 = vrot.slane %v3899, 4
    %v3902 = vrot.slane %v1421, 5
    %v3903 = vsel %vm3749, %v3901, %v3902
    %v3904 = vrot.slane %v3639, 5
    %v3905 = vrot.slane %v3904, 4
    %v3906 = vrot.slane %v1423, 5
    %v3907 = vsel %vm3749, %v3905, %v3906
    %v3908 = vrot.slane %v3906, 4
    %v3909 = vrot.slane %v1424, 5
    %v3910 = vsel %vm3749, %v3908, %v3909
    %v3911 = vrot.slane %v3640, 5
    %v3912 = vrot.slane %v3911, 4
    %v3913 = vrot.slane %v1426, 5
    %v3914 = vsel %vm3749, %v3912, %v3913
    %v3915 = vrot.slane %v3913, 4
    %v3916 = vrot.slane %v1427, 5
    %v3917 = vsel %vm3749, %v3915, %v3916
    %v3918 = vrot.slane %v3641, 5
    %v3919 = vrot.slane %v3918, 4
    %v3920 = vrot.slane %v1429, 5
    %v3921 = vsel %vm3749, %v3919, %v3920
    %v3922 = vrot.slane %v3920, 4
    %v3923 = vrot.slane %v1430, 5
    %v3924 = vsel %vm3749, %v3922, %v3923
    %v3925 = vrot.slane %v3642, 5
    %v3926 = vrot.slane %v3925, 4
    %v3927 = vrot.slane %v1432, 5
    %v3928 = vsel %vm3749, %v3926, %v3927
    %v3929 = vrot.slane %v3927, 4
    %v3930 = vrot.slane %v1433, 5
    %v3931 = vsel %vm3749, %v3929, %v3930
    %v3932 = vrot.slane %v3643, 5
    %v3933 = vrot.slane %v3932, 4
    %v3934 = vrot.slane %v1435, 5
    %v3935 = vsel %vm3749, %v3933, %v3934
    %v3936 = vrot.slane %v3934, 4
    %v3937 = vrot.slane %v1436, 5
    %v3938 = vsel %vm3749, %v3936, %v3937
    %v3939 = vrot.slane %v3644, 5
    %v3940 = vrot.slane %v3939, 4
    %v3941 = vrot.slane %v1438, 5
    %v3942 = vsel %vm3749, %v3940, %v3941
    %v3943 = vrot.slane %v3941, 4
    %v3944 = vrot.slane %v1439, 5
    %v3945 = vsel %vm3749, %v3943, %v3944
    %v3946 = vrot.slane %v3645, 5
    %v3947 = vrot.slane %v3946, 4
    %v3948 = vrot.slane %v1441, 5
    %v3949 = vsel %vm3749, %v3947, %v3948
    %v3950 = vrot.slane %v3948, 4
    %v3951 = vrot.slane %v1442, 5
    %v3952 = vsel %vm3749, %v3950, %v3951
    %v3953 = vrot.slane %v3646, 5
    %v3954 = vrot.slane %v3953, 4
    %v3955 = vrot.slane %v1444, 5
    %v3956 = vsel %vm3749, %v3954, %v3955
    %v3957 = vrot.slane %v3955, 4
    %v3958 = vrot.slane %v1445, 5
    %v3959 = vsel %vm3749, %v3957, %v3958
    %v3960 = vrot.slane %v3647, 5
    %v3961 = vrot.slane %v3960, 4
    %v3962 = vrot.slane %v1447, 5
    %v3963 = vsel %vm3749, %v3961, %v3962
    %v3964 = vrot.slane %v3962, 4
    %v3965 = vrot.slane %v1448, 5
    %v3966 = vsel %vm3749, %v3964, %v3965
    %v3967 = vrot.slane %v3648, 5
    %v3968 = vrot.slane %v3967, 4
    %v3969 = vrot.slane %v1450, 5
    %v3970 = vsel %vm3749, %v3968, %v3969
    %v3971 = vrot.slane %v3969, 4
    %v3972 = vrot.slane %v1451, 5
    %v3973 = vsel %vm3749, %v3971, %v3972
    %s3974 = scalar_lea.vmem %s1, 4
    %v3975 = vld [vmem:[%s3974] sm:$0x3]
    %v3976 = vunpack.c.l.b16 %v3753
    %v3977 = vunpack.c.l.b16 %v3756
    %v3978 = vunpack.c.l.b16 %v3760
    %v3979 = vunpack.c.l.b16 %v3763
    %v3980 = vunpack.c.l.b16 %v3767
    %v3981 = vunpack.c.l.b16 %v3770
    %v3982 = vunpack.c.l.b16 %v3774
    %v3983 = vunpack.c.l.b16 %v3777
    %v3984 = vunpack.c.l.b16 %v3781
    %v3985 = vunpack.c.l.b16 %v3784
    %v3986 = vunpack.c.l.b16 %v3788
    %v3987 = vunpack.c.l.b16 %v3791
    %v3988 = vunpack.c.l.b16 %v3795
    %v3989 = vunpack.c.l.b16 %v3798
    %v3990 = vunpack.c.l.b16 %v3802
    %v3991 = vunpack.c.l.b16 %v3805
    %v3992 = vunpack.c.l.b16 %v3809
    %v3993 = vunpack.c.l.b16 %v3812
    %v3994 = vunpack.c.l.b16 %v3816
    %v3995 = vunpack.c.l.b16 %v3819
    %v3996 = vunpack.c.l.b16 %v3823
    %v3997 = vunpack.c.l.b16 %v3826
    %v3998 = vunpack.c.l.b16 %v3830
    %v3999 = vunpack.c.l.b16 %v3833
    %v4000 = vunpack.c.l.b16 %v3837
    %v4001 = vunpack.c.l.b16 %v3840
    %v4002 = vunpack.c.l.b16 %v3844
    %v4003 = vunpack.c.l.b16 %v3847
    %v4004 = vunpack.c.l.b16 %v3851
    %v4005 = vunpack.c.l.b16 %v3854
    %v4006 = vunpack.c.l.b16 %v3858
    %v4007 = vunpack.c.l.b16 %v3861
    %v4008 = vunpack.c.l.b16 %v3865
    %v4009 = vunpack.c.l.b16 %v3868
    %v4010 = vunpack.c.l.b16 %v3872
    %v4011 = vunpack.c.l.b16 %v3875
    %v4012 = vunpack.c.l.b16 %v3879
    %v4013 = vunpack.c.l.b16 %v3882
    %v4014 = vunpack.c.l.b16 %v3886
    %v4015 = vunpack.c.l.b16 %v3889
    %v4016 = vunpack.c.l.b16 %v3893
    %v4017 = vunpack.c.l.b16 %v3896
    %v4018 = vunpack.c.l.b16 %v3900
    %v4019 = vunpack.c.l.b16 %v3903
    %v4020 = vunpack.c.l.b16 %v3907
    %v4021 = vunpack.c.l.b16 %v3910
    %v4022 = vunpack.c.l.b16 %v3914
    %v4023 = vunpack.c.l.b16 %v3917
    %v4024 = vunpack.c.l.b16 %v3921
    %v4025 = vunpack.c.l.b16 %v3924
    %v4026 = vunpack.c.l.b16 %v3928
    %v4027 = vunpack.c.l.b16 %v3931
    %v4028 = vunpack.c.l.b16 %v3935
    %v4029 = vunpack.c.l.b16 %v3938
    %v4030 = vunpack.c.l.b16 %v3942
    %v4031 = vunpack.c.l.b16 %v3945
    %v4032 = vunpack.c.l.b16 %v3949
    %v4033 = vunpack.c.l.b16 %v3952
    %v4034 = vunpack.c.l.b16 %v3956
    %v4035 = vunpack.c.l.b16 %v3959
    %v4036 = vunpack.c.l.b16 %v3963
    %v4037 = vunpack.c.l.b16 %v3966
    %v4038 = vunpack.c.l.b16 %v3970
    %v4039 = vunpack.c.l.b16 %v3973
    %v4040 = vpack.c.b16 %v3977, %v3976
    %v4041 = vpack.c.b16 %v3979, %v3978
    %v4042 = vpack.c.b16 %v3981, %v3980
    %v4043 = vpack.c.b16 %v3983, %v3982
    %v4044 = vpack.c.b16 %v3985, %v3984
    %v4045 = vpack.c.b16 %v3987, %v3986
    %v4046 = vpack.c.b16 %v3989, %v3988
    %v4047 = vpack.c.b16 %v3991, %v3990
    %v4048 = vpack.c.b16 %v3993, %v3992
    %v4049 = vpack.c.b16 %v3995, %v3994
    %v4050 = vpack.c.b16 %v3997, %v3996
    %v4051 = vpack.c.b16 %v3999, %v3998
    %v4052 = vpack.c.b16 %v4001, %v4000
    %v4053 = vpack.c.b16 %v4003, %v4002
    %v4054 = vpack.c.b16 %v4005, %v4004
    %v4055 = vpack.c.b16 %v4007, %v4006
    %v4056 = vpack.c.b16 %v4009, %v4008
    %v4057 = vpack.c.b16 %v4011, %v4010
    %v4058 = vpack.c.b16 %v4013, %v4012
    %v4059 = vpack.c.b16 %v4015, %v4014
    %v4060 = vpack.c.b16 %v4017, %v4016
    %v4061 = vpack.c.b16 %v4019, %v4018
    %v4062 = vpack.c.b16 %v4021, %v4020
    %v4063 = vpack.c.b16 %v4023, %v4022
    %v4064 = vpack.c.b16 %v4025, %v4024
    %v4065 = vpack.c.b16 %v4027, %v4026
    %v4066 = vpack.c.b16 %v4029, %v4028
    %v4067 = vpack.c.b16 %v4031, %v4030
    %v4068 = vpack.c.b16 %v4033, %v4032
    %v4069 = vpack.c.b16 %v4035, %v4034
    %v4070 = vpack.c.b16 %v4037, %v4036
    %v4071 = vpack.c.b16 %v4039, %v4038
    %v4073 = vsel %vm278, %v4040, 0
    %v4076 = vsel %vm278, %v4041, 0
    %v4079 = vsel %vm278, %v4042, 0
    %v4082 = vsel %vm278, %v4043, 0
    %v4085 = vsel %vm278, %v4044, 0
    %v4088 = vsel %vm278, %v4045, 0
    %v4091 = vsel %vm278, %v4046, 0
    %v4094 = vsel %vm278, %v4047, 0
    %v4097 = vsel %vm278, %v4048, 0
    %v4100 = vsel %vm278, %v4049, 0
    %v4103 = vsel %vm278, %v4050, 0
    %v4106 = vsel %vm278, %v4051, 0
    %v4109 = vsel %vm278, %v4052, 0
    %v4112 = vsel %vm278, %v4053, 0
    %v4115 = vsel %vm278, %v4054, 0
    %v4118 = vsel %vm278, %v4055, 0
    %v4121 = vsel %vm278, %v4056, 0
    %v4124 = vsel %vm278, %v4057, 0
    %v4127 = vsel %vm278, %v4058, 0
    %v4130 = vsel %vm278, %v4059, 0
    %v4133 = vsel %vm278, %v4060, 0
    %v4136 = vsel %vm278, %v4061, 0
    %v4139 = vsel %vm278, %v4062, 0
    %v4142 = vsel %vm278, %v4063, 0
    %v4145 = vsel %vm278, %v4064, 0
    %v4148 = vsel %vm278, %v4065, 0
    %v4151 = vsel %vm278, %v4066, 0
    %v4154 = vsel %vm278, %v4067, 0
    %v4157 = vsel %vm278, %v4068, 0
    %v4160 = vsel %vm278, %v4069, 0
    %v4163 = vsel %vm278, %v4070, 0
    %v4166 = vsel %vm278, %v4071, 0
    %v4169 = vsel %vm375, %v3975, 0
    %4171 = vmatprep.subr.bf16.mxu0 0
    %4172 = vmatpush1.bf16.msra.mxu0 %v4169
    %4173 = vmatprep.subr.bf16.mxu0 0
    %4174 = vmatpush1.bf16.msra.mxu0 0
    %4175 = vmatprep.subr.bf16.mxu0 0
    %4176 = vmatpush1.bf16.msra.mxu0 0
    %4177 = vmatprep.subr.bf16.mxu0 0
    %4178 = vmatpush1.bf16.msra.mxu0 0
    %4179 = vmatprep.subr.bf16.mxu0 0
    %4180 = vmatpush1.bf16.msra.mxu0 0
    %4181 = vmatprep.subr.bf16.mxu0 0
    %4182 = vmatpush1.bf16.msra.mxu0 0
    %4183 = vmatprep.subr.bf16.mxu0 0
    %4184 = vmatpush1.bf16.msra.mxu0 0
    %4185 = vmatprep.subr.bf16.mxu0 0
    %4186 = vmatpush1.bf16.msra.mxu0 0
    %4187 = vmatprep.subr.bf16.mxu0 0
    %4188 = vmatpush1.bf16.msra.mxu0 0
    %4189 = vmatprep.subr.bf16.mxu0 0
    %4190 = vmatpush1.bf16.msra.mxu0 0
    %4191 = vmatprep.subr.bf16.mxu0 0
    %4192 = vmatpush1.bf16.msra.mxu0 0
    %4193 = vmatprep.subr.bf16.mxu0 0
    %4194 = vmatpush1.bf16.msra.mxu0 0
    %4195 = vmatprep.subr.bf16.mxu0 0
    %4196 = vmatpush1.bf16.msra.mxu0 0
    %4197 = vmatprep.subr.bf16.mxu0 0
    %4198 = vmatpush1.bf16.msra.mxu0 0
    %4199 = vmatprep.subr.bf16.mxu0 0
    %4200 = vmatpush1.bf16.msra.mxu0 0
    %4201 = vmatprep.subr.bf16.mxu0 0
    %4202 = vmatpush1.bf16.msra.mxu0 0
    %4203 = vmatprep.mubr.bf16.mxu0 0
    %4204 = vmatmul.mubr.bf16.gmra.mrb[0].mxu0 %v4073
    %v4205 = vpop.f32.mrb[0].mxu0
    %v4206 = vadd.f32 0.0, %v4205
    %v4207 = vpop.f32.mrb[0].mxu0
    %v4208 = vpop.f32.mrb[0].mxu0
    %v4209 = vadd.f32 0.0, %v4208
    %v4210 = vpop.f32.mrb[0].mxu0
    %4211 = vmatprep.mubr.bf16.mxu0 0
    %4212 = vmatmul.mubr.bf16.gmra.mrb[0].mxu0 %v4076
    %v4213 = vpop.f32.mrb[0].mxu0
    %v4214 = vadd.f32 0.0, %v4213
    %v4215 = vpop.f32.mrb[0].mxu0
    %v4216 = vpop.f32.mrb[0].mxu0
    %v4217 = vadd.f32 0.0, %v4216
    %v4218 = vpop.f32.mrb[0].mxu0
    %4219 = vmatprep.mubr.bf16.mxu0 0
    %4220 = vmatmul.mubr.bf16.gmra.mrb[0].mxu0 %v4079
    %v4221 = vpop.f32.mrb[0].mxu0
    %v4222 = vadd.f32 0.0, %v4221
    %v4223 = vpop.f32.mrb[0].mxu0
    %v4224 = vpop.f32.mrb[0].mxu0
    %v4225 = vadd.f32 0.0, %v4224
    %v4226 = vpop.f32.mrb[0].mxu0
    %4227 = vmatprep.mubr.bf16.mxu0 0
    %4228 = vmatmul.mubr.bf16.gmra.mrb[0].mxu0 %v4082
    %v4229 = vpop.f32.mrb[0].mxu0
    %v4230 = vadd.f32 0.0, %v4229
    %v4231 = vpop.f32.mrb[0].mxu0
    %v4232 = vpop.f32.mrb[0].mxu0
    %v4233 = vadd.f32 0.0, %v4232
    %v4234 = vpop.f32.mrb[0].mxu0
    %4235 = vmatprep.mubr.bf16.mxu0 0
    %4236 = vmatmul.mubr.bf16.gmra.mrb[0].mxu0 %v4085
    %v4237 = vpop.f32.mrb[0].mxu0
    %v4238 = vadd.f32 0.0, %v4237
    %v4239 = vpop.f32.mrb[0].mxu0
    %v4240 = vpop.f32.mrb[0].mxu0
    %v4241 = vadd.f32 0.0, %v4240
    %v4242 = vpop.f32.mrb[0].mxu0
    %4243 = vmatprep.mubr.bf16.mxu0 0
    %4244 = vmatmul.mubr.bf16.gmra.mrb[0].mxu0 %v4088
    %v4245 = vpop.f32.mrb[0].mxu0
    %v4246 = vadd.f32 0.0, %v4245
    %v4247 = vpop.f32.mrb[0].mxu0
    %v4248 = vpop.f32.mrb[0].mxu0
    %v4249 = vadd.f32 0.0, %v4248
    %v4250 = vpop.f32.mrb[0].mxu0
    %4251 = vmatprep.mubr.bf16.mxu0 0
    %4252 = vmatmul.mubr.bf16.gmra.mrb[0].mxu0 %v4091
    %v4253 = vpop.f32.mrb[0].mxu0
    %v4254 = vadd.f32 0.0, %v4253
    %v4255 = vpop.f32.mrb[0].mxu0
    %v4256 = vpop.f32.mrb[0].mxu0
    %v4257 = vadd.f32 0.0, %v4256
    %v4258 = vpop.f32.mrb[0].mxu0
    %4259 = vmatprep.mubr.bf16.mxu0 0
    %4260 = vmatmul.mubr.bf16.gmra.mrb[0].mxu0 %v4094
    %v4261 = vpop.f32.mrb[0].mxu0
    %v4262 = vadd.f32 0.0, %v4261
    %v4263 = vpop.f32.mrb[0].mxu0
    %v4264 = vpop.f32.mrb[0].mxu0
    %v4265 = vadd.f32 0.0, %v4264
    %v4266 = vpop.f32.mrb[0].mxu0
    %4267 = vmatprep.mubr.bf16.mxu0 0
    %4268 = vmatmul.mubr.bf16.gmra.mrb[0].mxu0 %v4097
    %v4269 = vpop.f32.mrb[0].mxu0
    %v4270 = vadd.f32 0.0, %v4269
    %v4271 = vpop.f32.mrb[0].mxu0
    %v4272 = vpop.f32.mrb[0].mxu0
    %v4273 = vadd.f32 0.0, %v4272
    %v4274 = vpop.f32.mrb[0].mxu0
    %4275 = vmatprep.mubr.bf16.mxu0 0
    %4276 = vmatmul.mubr.bf16.gmra.mrb[0].mxu0 %v4100
    %v4277 = vpop.f32.mrb[0].mxu0
    %v4278 = vadd.f32 0.0, %v4277
    %v4279 = vpop.f32.mrb[0].mxu0
    %v4280 = vpop.f32.mrb[0].mxu0
    %v4281 = vadd.f32 0.0, %v4280
    %v4282 = vpop.f32.mrb[0].mxu0
    %4283 = vmatprep.mubr.bf16.mxu0 0
    %4284 = vmatmul.mubr.bf16.gmra.mrb[0].mxu0 %v4103
    %v4285 = vpop.f32.mrb[0].mxu0
    %v4286 = vadd.f32 0.0, %v4285
    %v4287 = vpop.f32.mrb[0].mxu0
    %v4288 = vpop.f32.mrb[0].mxu0
    %v4289 = vadd.f32 0.0, %v4288
    %v4290 = vpop.f32.mrb[0].mxu0
    %4291 = vmatprep.mubr.bf16.mxu0 0
    %4292 = vmatmul.mubr.bf16.gmra.mrb[0].mxu0 %v4106
    %v4293 = vpop.f32.mrb[0].mxu0
    %v4294 = vadd.f32 0.0, %v4293
    %v4295 = vpop.f32.mrb[0].mxu0
    %v4296 = vpop.f32.mrb[0].mxu0
    %v4297 = vadd.f32 0.0, %v4296
    %v4298 = vpop.f32.mrb[0].mxu0
    %4299 = vmatprep.mubr.bf16.mxu0 0
    %4300 = vmatmul.mubr.bf16.gmra.mrb[0].mxu0 %v4109
    %v4301 = vpop.f32.mrb[0].mxu0
    %v4302 = vadd.f32 0.0, %v4301
    %v4303 = vpop.f32.mrb[0].mxu0
    %v4304 = vpop.f32.mrb[0].mxu0
    %v4305 = vadd.f32 0.0, %v4304
    %v4306 = vpop.f32.mrb[0].mxu0
    %4307 = vmatprep.mubr.bf16.mxu0 0
    %4308 = vmatmul.mubr.bf16.gmra.mrb[0].mxu0 %v4112
    %v4309 = vpop.f32.mrb[0].mxu0
    %v4310 = vadd.f32 0.0, %v4309
    %v4311 = vpop.f32.mrb[0].mxu0
    %v4312 = vpop.f32.mrb[0].mxu0
    %v4313 = vadd.f32 0.0, %v4312
    %v4314 = vpop.f32.mrb[0].mxu0
    %4315 = vmatprep.mubr.bf16.mxu0 0
    %4316 = vmatmul.mubr.bf16.gmra.mrb[0].mxu0 %v4115
    %v4317 = vpop.f32.mrb[0].mxu0
    %v4318 = vadd.f32 0.0, %v4317
    %v4319 = vpop.f32.mrb[0].mxu0
    %v4320 = vpop.f32.mrb[0].mxu0
    %v4321 = vadd.f32 0.0, %v4320
    %v4322 = vpop.f32.mrb[0].mxu0
    %4323 = vmatprep.mubr.bf16.mxu0 0
    %4324 = vmatmul.mubr.bf16.gmra.mrb[0].mxu0 %v4118
    %v4325 = vpop.f32.mrb[0].mxu0
    %v4326 = vadd.f32 0.0, %v4325
    %v4327 = vpop.f32.mrb[0].mxu0
    %v4328 = vpop.f32.mrb[0].mxu0
    %v4329 = vadd.f32 0.0, %v4328
    %v4330 = vpop.f32.mrb[0].mxu0
    %4331 = vmatprep.mubr.bf16.mxu0 0
    %4332 = vmatmul.mubr.bf16.gmra.mrb[0].mxu0 %v4121
    %v4333 = vpop.f32.mrb[0].mxu0
    %v4334 = vadd.f32 0.0, %v4333
    %v4335 = vpop.f32.mrb[0].mxu0
    %v4336 = vpop.f32.mrb[0].mxu0
    %v4337 = vadd.f32 0.0, %v4336
    %v4338 = vpop.f32.mrb[0].mxu0
    %4339 = vmatprep.mubr.bf16.mxu0 0
    %4340 = vmatmul.mubr.bf16.gmra.mrb[0].mxu0 %v4124
    %v4341 = vpop.f32.mrb[0].mxu0
    %v4342 = vadd.f32 0.0, %v4341
    %v4343 = vpop.f32.mrb[0].mxu0
    %v4344 = vpop.f32.mrb[0].mxu0
    %v4345 = vadd.f32 0.0, %v4344
    %v4346 = vpop.f32.mrb[0].mxu0
    %4347 = vmatprep.mubr.bf16.mxu0 0
    %4348 = vmatmul.mubr.bf16.gmra.mrb[0].mxu0 %v4127
    %v4349 = vpop.f32.mrb[0].mxu0
    %v4350 = vadd.f32 0.0, %v4349
    %v4351 = vpop.f32.mrb[0].mxu0
    %v4352 = vpop.f32.mrb[0].mxu0
    %v4353 = vadd.f32 0.0, %v4352
    %v4354 = vpop.f32.mrb[0].mxu0
    %4355 = vmatprep.mubr.bf16.mxu0 0
    %4356 = vmatmul.mubr.bf16.gmra.mrb[0].mxu0 %v4130
    %v4357 = vpop.f32.mrb[0].mxu0
    %v4358 = vadd.f32 0.0, %v4357
    %v4359 = vpop.f32.mrb[0].mxu0
    %v4360 = vpop.f32.mrb[0].mxu0
    %v4361 = vadd.f32 0.0, %v4360
    %v4362 = vpop.f32.mrb[0].mxu0
    %4363 = vmatprep.mubr.bf16.mxu0 0
    %4364 = vmatmul.mubr.bf16.gmra.mrb[0].mxu0 %v4133
    %v4365 = vpop.f32.mrb[0].mxu0
    %v4366 = vadd.f32 0.0, %v4365
    %v4367 = vpop.f32.mrb[0].mxu0
    %v4368 = vpop.f32.mrb[0].mxu0
    %v4369 = vadd.f32 0.0, %v4368
    %v4370 = vpop.f32.mrb[0].mxu0
    %4371 = vmatprep.mubr.bf16.mxu0 0
    %4372 = vmatmul.mubr.bf16.gmra.mrb[0].mxu0 %v4136
    %v4373 = vpop.f32.mrb[0].mxu0
    %v4374 = vadd.f32 0.0, %v4373
    %v4375 = vpop.f32.mrb[0].mxu0
    %v4376 = vpop.f32.mrb[0].mxu0
    %v4377 = vadd.f32 0.0, %v4376
    %v4378 = vpop.f32.mrb[0].mxu0
    %4379 = vmatprep.mubr.bf16.mxu0 0
    %4380 = vmatmul.mubr.bf16.gmra.mrb[0].mxu0 %v4139
    %v4381 = vpop.f32.mrb[0].mxu0
    %v4382 = vadd.f32 0.0, %v4381
    %v4383 = vpop.f32.mrb[0].mxu0
    %v4384 = vpop.f32.mrb[0].mxu0
    %v4385 = vadd.f32 0.0, %v4384
    %v4386 = vpop.f32.mrb[0].mxu0
    %4387 = vmatprep.mubr.bf16.mxu0 0
    %4388 = vmatmul.mubr.bf16.gmra.mrb[0].mxu0 %v4142
    %v4389 = vpop.f32.mrb[0].mxu0
    %v4390 = vadd.f32 0.0, %v4389
    %v4391 = vpop.f32.mrb[0].mxu0
    %v4392 = vpop.f32.mrb[0].mxu0
    %v4393 = vadd.f32 0.0, %v4392
    %v4394 = vpop.f32.mrb[0].mxu0
    %4395 = vmatprep.mubr.bf16.mxu0 0
    %4396 = vmatmul.mubr.bf16.gmra.mrb[0].mxu0 %v4145
    %v4397 = vpop.f32.mrb[0].mxu0
    %v4398 = vadd.f32 0.0, %v4397
    %v4399 = vpop.f32.mrb[0].mxu0
    %v4400 = vpop.f32.mrb[0].mxu0
    %v4401 = vadd.f32 0.0, %v4400
    %v4402 = vpop.f32.mrb[0].mxu0
    %4403 = vmatprep.mubr.bf16.mxu0 0
    %4404 = vmatmul.mubr.bf16.gmra.mrb[0].mxu0 %v4148
    %v4405 = vpop.f32.mrb[0].mxu0
    %v4406 = vadd.f32 0.0, %v4405
    %v4407 = vpop.f32.mrb[0].mxu0
    %v4408 = vpop.f32.mrb[0].mxu0
    %v4409 = vadd.f32 0.0, %v4408
    %v4410 = vpop.f32.mrb[0].mxu0
    %4411 = vmatprep.mubr.bf16.mxu0 0
    %4412 = vmatmul.mubr.bf16.gmra.mrb[0].mxu0 %v4151
    %v4413 = vpop.f32.mrb[0].mxu0
    %v4414 = vadd.f32 0.0, %v4413
    %v4415 = vpop.f32.mrb[0].mxu0
    %v4416 = vpop.f32.mrb[0].mxu0
    %v4417 = vadd.f32 0.0, %v4416
    %v4418 = vpop.f32.mrb[0].mxu0
    %4419 = vmatprep.mubr.bf16.mxu0 0
    %4420 = vmatmul.mubr.bf16.gmra.mrb[0].mxu0 %v4154
    %v4421 = vpop.f32.mrb[0].mxu0
    %v4422 = vadd.f32 0.0, %v4421
    %v4423 = vpop.f32.mrb[0].mxu0
    %v4424 = vpop.f32.mrb[0].mxu0
    %v4425 = vadd.f32 0.0, %v4424
    %v4426 = vpop.f32.mrb[0].mxu0
    %4427 = vmatprep.mubr.bf16.mxu0 0
    %4428 = vmatmul.mubr.bf16.gmra.mrb[0].mxu0 %v4157
    %v4429 = vpop.f32.mrb[0].mxu0
    %v4430 = vadd.f32 0.0, %v4429
    %v4431 = vpop.f32.mrb[0].mxu0
    %v4432 = vpop.f32.mrb[0].mxu0
    %v4433 = vadd.f32 0.0, %v4432
    %v4434 = vpop.f32.mrb[0].mxu0
    %4435 = vmatprep.mubr.bf16.mxu0 0
    %4436 = vmatmul.mubr.bf16.gmra.mrb[0].mxu0 %v4160
    %v4437 = vpop.f32.mrb[0].mxu0
    %v4438 = vadd.f32 0.0, %v4437
    %v4439 = vpop.f32.mrb[0].mxu0
    %v4440 = vpop.f32.mrb[0].mxu0
    %v4441 = vadd.f32 0.0, %v4440
    %v4442 = vpop.f32.mrb[0].mxu0
    %4443 = vmatprep.mubr.bf16.mxu0 0
    %4444 = vmatmul.mubr.bf16.gmra.mrb[0].mxu0 %v4163
    %v4445 = vpop.f32.mrb[0].mxu0
    %v4446 = vadd.f32 0.0, %v4445
    %v4447 = vpop.f32.mrb[0].mxu0
    %v4448 = vpop.f32.mrb[0].mxu0
    %v4449 = vadd.f32 0.0, %v4448
    %v4450 = vpop.f32.mrb[0].mxu0
    %4451 = vmatprep.mubr.bf16.mxu0 0
    %4452 = vmatmul.mubr.bf16.gmra.mrb[0].mxu0 %v4166
    %v4453 = vpop.f32.mrb[0].mxu0
    %v4454 = vadd.f32 0.0, %v4453
    %v4455 = vpop.f32.mrb[0].mxu0
    %v4456 = vpop.f32.mrb[0].mxu0
    %v4457 = vadd.f32 0.0, %v4456
    %v4458 = vpop.f32.mrb[0].mxu0
    %4459 = vdwg.mxu0
    %v4460 = vadd.f32 %v3551, %v4206
    %v4461 = vadd.f32 %v3552, %v4209
    %v4462 = vadd.f32 %v3553, %v4214
    %v4463 = vadd.f32 %v3554, %v4217
    %v4464 = vadd.f32 %v3555, %v4222
    %v4465 = vadd.f32 %v3556, %v4225
    %v4466 = vadd.f32 %v3557, %v4230
    %v4467 = vadd.f32 %v3558, %v4233
    %v4468 = vadd.f32 %v3559, %v4238
    %v4469 = vadd.f32 %v3560, %v4241
    %v4470 = vadd.f32 %v3561, %v4246
    %v4471 = vadd.f32 %v3562, %v4249
    %v4472 = vadd.f32 %v3563, %v4254
    %v4473 = vadd.f32 %v3564, %v4257
    %v4474 = vadd.f32 %v3565, %v4262
    %v4475 = vadd.f32 %v3566, %v4265
    %v4476 = vadd.f32 %v3567, %v4270
    %v4477 = vadd.f32 %v3568, %v4273
    %v4478 = vadd.f32 %v3569, %v4278
    %v4479 = vadd.f32 %v3570, %v4281
    %v4480 = vadd.f32 %v3571, %v4286
    %v4481 = vadd.f32 %v3572, %v4289
    %v4482 = vadd.f32 %v3573, %v4294
    %v4483 = vadd.f32 %v3574, %v4297
    %v4484 = vadd.f32 %v3575, %v4302
    %v4485 = vadd.f32 %v3576, %v4305
    %v4486 = vadd.f32 %v3577, %v4310
    %v4487 = vadd.f32 %v3578, %v4313
    %v4488 = vadd.f32 %v3579, %v4318
    %v4489 = vadd.f32 %v3580, %v4321
    %v4490 = vadd.f32 %v3581, %v4326
    %v4491 = vadd.f32 %v3582, %v4329
    %v4492 = vadd.f32 %v3583, %v4334
    %v4493 = vadd.f32 %v3584, %v4337
    %v4494 = vadd.f32 %v3585, %v4342
    %v4495 = vadd.f32 %v3586, %v4345
    %v4496 = vadd.f32 %v3587, %v4350
    %v4497 = vadd.f32 %v3588, %v4353
    %v4498 = vadd.f32 %v3589, %v4358
    %v4499 = vadd.f32 %v3590, %v4361
    %v4500 = vadd.f32 %v3591, %v4366
    %v4501 = vadd.f32 %v3592, %v4369
    %v4502 = vadd.f32 %v3593, %v4374
    %v4503 = vadd.f32 %v3594, %v4377
    %v4504 = vadd.f32 %v3595, %v4382
    %v4505 = vadd.f32 %v3596, %v4385
    %v4506 = vadd.f32 %v3597, %v4390
    %v4507 = vadd.f32 %v3598, %v4393
    %v4508 = vadd.f32 %v3599, %v4398
    %v4509 = vadd.f32 %v3600, %v4401
    %v4510 = vadd.f32 %v3601, %v4406
    %v4511 = vadd.f32 %v3602, %v4409
    %v4512 = vadd.f32 %v3603, %v4414
    %v4513 = vadd.f32 %v3604, %v4417
    %v4514 = vadd.f32 %v3605, %v4422
    %v4515 = vadd.f32 %v3606, %v4425
    %v4516 = vadd.f32 %v3607, %v4430
    %v4517 = vadd.f32 %v3608, %v4433
    %v4518 = vadd.f32 %v3609, %v4438
    %v4519 = vadd.f32 %v3610, %v4441
    %v4520 = vadd.f32 %v3611, %v4446
    %v4521 = vadd.f32 %v3612, %v4449
    %v4522 = vadd.f32 %v3613, %v4454
    %v4523 = vadd.f32 %v3614, %v4457
    %v4530 = vrot.slane %v3631, 5
    %v4531 = vrot.slane %v4530, 4
    %v4532 = vrot.slane %v1399, 5
    %v4533 = vsel %vm3749, %v4531, %v4532
    %v4534 = vrot.slane %v4532, 4
    %v4535 = vrot.slane %v1400, 5
    %v4536 = vsel %vm3749, %v4534, %v4535
    %v4537 = vrot.slane %v3649, 5
    %v4538 = vrot.slane %v4537, 4
    %v4539 = vrot.slane %v1453, 5
    %v4540 = vsel %vm3749, %v4538, %v4539
    %v4541 = vrot.slane %v4539, 4
    %v4542 = vrot.slane %v1454, 5
    %v4543 = vsel %vm3749, %v4541, %v4542
    %s4544 = scalar_lea.vmem %s1, 10
    %v4545 = vld [vmem:[%s4544] sm:$0x3]
    %v4546 = vunpack.c.l.b16 %v4533
    %v4547 = vunpack.c.l.b16 %v4536
    %v4548 = vunpack.c.l.b16 %v4540
    %v4549 = vunpack.c.l.b16 %v4543
    %v4550 = vpack.c.b16 %v4547, %v4546
    %v4551 = vpack.c.b16 %v4549, %v4548
    %v4553 = vsel %vm278, %v4550, 0
    %v4556 = vsel %vm278, %v4551, 0
    %v4559 = vsel %vm375, %v4545, 0
    %4561 = vmatprep.subr.bf16.mxu0 0
    %4562 = vmatpush1.bf16.msra.mxu0 %v4559
    %4563 = vmatprep.subr.bf16.mxu0 0
    %4564 = vmatpush1.bf16.msra.mxu0 0
    %4565 = vmatprep.subr.bf16.mxu0 0
    %4566 = vmatpush1.bf16.msra.mxu0 0
    %4567 = vmatprep.subr.bf16.mxu0 0
    %4568 = vmatpush1.bf16.msra.mxu0 0
    %4569 = vmatprep.subr.bf16.mxu0 0
    %4570 = vmatpush1.bf16.msra.mxu0 0
    %4571 = vmatprep.subr.bf16.mxu0 0
    %4572 = vmatpush1.bf16.msra.mxu0 0
    %4573 = vmatprep.subr.bf16.mxu0 0
    %4574 = vmatpush1.bf16.msra.mxu0 0
    %4575 = vmatprep.subr.bf16.mxu0 0
    %4576 = vmatpush1.bf16.msra.mxu0 0
    %4577 = vmatprep.subr.bf16.mxu0 0
    %4578 = vmatpush1.bf16.msra.mxu0 0
    %4579 = vmatprep.subr.bf16.mxu0 0
    %4580 = vmatpush1.bf16.msra.mxu0 0
    %4581 = vmatprep.subr.bf16.mxu0 0
    %4582 = vmatpush1.bf16.msra.mxu0 0
    %4583 = vmatprep.subr.bf16.mxu0 0
    %4584 = vmatpush1.bf16.msra.mxu0 0
    %4585 = vmatprep.subr.bf16.mxu0 0
    %4586 = vmatpush1.bf16.msra.mxu0 0
    %4587 = vmatprep.subr.bf16.mxu0 0
    %4588 = vmatpush1.bf16.msra.mxu0 0
    %4589 = vmatprep.subr.bf16.mxu0 0
    %4590 = vmatpush1.bf16.msra.mxu0 0
    %4591 = vmatprep.subr.bf16.mxu0 0
    %4592 = vmatpush1.bf16.msra.mxu0 0
    %4593 = vmatprep.mubr.bf16.mxu0 0
    %4594 = vmatmul.mubr.bf16.gmra.mrb[0].mxu0 %v4076
    %v4595 = vpop.f32.mrb[0].mxu0
    %v4596 = vadd.f32 0.0, %v4595
    %v4597 = vpop.f32.mrb[0].mxu0
    %v4598 = vpop.f32.mrb[0].mxu0
    %v4599 = vadd.f32 0.0, %v4598
    %v4600 = vpop.f32.mrb[0].mxu0
    %4601 = vmatprep.mubr.bf16.mxu0 0
    %4602 = vmatmul.mubr.bf16.gmra.mrb[0].mxu0 %v4079
    %v4603 = vpop.f32.mrb[0].mxu0
    %v4604 = vadd.f32 0.0, %v4603
    %v4605 = vpop.f32.mrb[0].mxu0
    %v4606 = vpop.f32.mrb[0].mxu0
    %v4607 = vadd.f32 0.0, %v4606
    %v4608 = vpop.f32.mrb[0].mxu0
    %4609 = vmatprep.mubr.bf16.mxu0 0
    %4610 = vmatmul.mubr.bf16.gmra.mrb[0].mxu0 %v4082
    %v4611 = vpop.f32.mrb[0].mxu0
    %v4612 = vadd.f32 0.0, %v4611
    %v4613 = vpop.f32.mrb[0].mxu0
    %v4614 = vpop.f32.mrb[0].mxu0
    %v4615 = vadd.f32 0.0, %v4614
    %v4616 = vpop.f32.mrb[0].mxu0
    %4617 = vmatprep.mubr.bf16.mxu0 0
    %4618 = vmatmul.mubr.bf16.gmra.mrb[0].mxu0 %v4085
    %v4619 = vpop.f32.mrb[0].mxu0
    %v4620 = vadd.f32 0.0, %v4619
    %v4621 = vpop.f32.mrb[0].mxu0
    %v4622 = vpop.f32.mrb[0].mxu0
    %v4623 = vadd.f32 0.0, %v4622
    %v4624 = vpop.f32.mrb[0].mxu0
    %4625 = vmatprep.mubr.bf16.mxu0 0
    %4626 = vmatmul.mubr.bf16.gmra.mrb[0].mxu0 %v4088
    %v4627 = vpop.f32.mrb[0].mxu0
    %v4628 = vadd.f32 0.0, %v4627
    %v4629 = vpop.f32.mrb[0].mxu0
    %v4630 = vpop.f32.mrb[0].mxu0
    %v4631 = vadd.f32 0.0, %v4630
    %v4632 = vpop.f32.mrb[0].mxu0
    %4633 = vmatprep.mubr.bf16.mxu0 0
    %4634 = vmatmul.mubr.bf16.gmra.mrb[0].mxu0 %v4091
    %v4635 = vpop.f32.mrb[0].mxu0
    %v4636 = vadd.f32 0.0, %v4635
    %v4637 = vpop.f32.mrb[0].mxu0
    %v4638 = vpop.f32.mrb[0].mxu0
    %v4639 = vadd.f32 0.0, %v4638
    %v4640 = vpop.f32.mrb[0].mxu0
    %4641 = vmatprep.mubr.bf16.mxu0 0
    %4642 = vmatmul.mubr.bf16.gmra.mrb[0].mxu0 %v4094
    %v4643 = vpop.f32.mrb[0].mxu0
    %v4644 = vadd.f32 0.0, %v4643
    %v4645 = vpop.f32.mrb[0].mxu0
    %v4646 = vpop.f32.mrb[0].mxu0
    %v4647 = vadd.f32 0.0, %v4646
    %v4648 = vpop.f32.mrb[0].mxu0
    %4649 = vmatprep.mubr.bf16.mxu0 0
    %4650 = vmatmul.mubr.bf16.gmra.mrb[0].mxu0 %v4097
    %v4651 = vpop.f32.mrb[0].mxu0
    %v4652 = vadd.f32 0.0, %v4651
    %v4653 = vpop.f32.mrb[0].mxu0
    %v4654 = vpop.f32.mrb[0].mxu0
    %v4655 = vadd.f32 0.0, %v4654
    %v4656 = vpop.f32.mrb[0].mxu0
    %4657 = vmatprep.mubr.bf16.mxu0 0
    %4658 = vmatmul.mubr.bf16.gmra.mrb[0].mxu0 %v4100
    %v4659 = vpop.f32.mrb[0].mxu0
    %v4660 = vadd.f32 0.0, %v4659
    %v4661 = vpop.f32.mrb[0].mxu0
    %v4662 = vpop.f32.mrb[0].mxu0
    %v4663 = vadd.f32 0.0, %v4662
    %v4664 = vpop.f32.mrb[0].mxu0
    %4665 = vmatprep.mubr.bf16.mxu0 0
    %4666 = vmatmul.mubr.bf16.gmra.mrb[0].mxu0 %v4103
    %v4667 = vpop.f32.mrb[0].mxu0
    %v4668 = vadd.f32 0.0, %v4667
    %v4669 = vpop.f32.mrb[0].mxu0
    %v4670 = vpop.f32.mrb[0].mxu0
    %v4671 = vadd.f32 0.0, %v4670
    %v4672 = vpop.f32.mrb[0].mxu0
    %4673 = vmatprep.mubr.bf16.mxu0 0
    %4674 = vmatmul.mubr.bf16.gmra.mrb[0].mxu0 %v4106
    %v4675 = vpop.f32.mrb[0].mxu0
    %v4676 = vadd.f32 0.0, %v4675
    %v4677 = vpop.f32.mrb[0].mxu0
    %v4678 = vpop.f32.mrb[0].mxu0
    %v4679 = vadd.f32 0.0, %v4678
    %v4680 = vpop.f32.mrb[0].mxu0
    %4681 = vmatprep.mubr.bf16.mxu0 0
    %4682 = vmatmul.mubr.bf16.gmra.mrb[0].mxu0 %v4109
    %v4683 = vpop.f32.mrb[0].mxu0
    %v4684 = vadd.f32 0.0, %v4683
    %v4685 = vpop.f32.mrb[0].mxu0
    %v4686 = vpop.f32.mrb[0].mxu0
    %v4687 = vadd.f32 0.0, %v4686
    %v4688 = vpop.f32.mrb[0].mxu0
    %4689 = vmatprep.mubr.bf16.mxu0 0
    %4690 = vmatmul.mubr.bf16.gmra.mrb[0].mxu0 %v4112
    %v4691 = vpop.f32.mrb[0].mxu0
    %v4692 = vadd.f32 0.0, %v4691
    %v4693 = vpop.f32.mrb[0].mxu0
    %v4694 = vpop.f32.mrb[0].mxu0
    %v4695 = vadd.f32 0.0, %v4694
    %v4696 = vpop.f32.mrb[0].mxu0
    %4697 = vmatprep.mubr.bf16.mxu0 0
    %4698 = vmatmul.mubr.bf16.gmra.mrb[0].mxu0 %v4115
    %v4699 = vpop.f32.mrb[0].mxu0
    %v4700 = vadd.f32 0.0, %v4699
    %v4701 = vpop.f32.mrb[0].mxu0
    %v4702 = vpop.f32.mrb[0].mxu0
    %v4703 = vadd.f32 0.0, %v4702
    %v4704 = vpop.f32.mrb[0].mxu0
    %4705 = vmatprep.mubr.bf16.mxu0 0
    %4706 = vmatmul.mubr.bf16.gmra.mrb[0].mxu0 %v4118
    %v4707 = vpop.f32.mrb[0].mxu0
    %v4708 = vadd.f32 0.0, %v4707
    %v4709 = vpop.f32.mrb[0].mxu0
    %v4710 = vpop.f32.mrb[0].mxu0
    %v4711 = vadd.f32 0.0, %v4710
    %v4712 = vpop.f32.mrb[0].mxu0
    %4713 = vmatprep.mubr.bf16.mxu0 0
    %4714 = vmatmul.mubr.bf16.gmra.mrb[0].mxu0 %v4553
    %v4715 = vpop.f32.mrb[0].mxu0
    %v4716 = vadd.f32 0.0, %v4715
    %v4717 = vpop.f32.mrb[0].mxu0
    %v4718 = vpop.f32.mrb[0].mxu0
    %v4719 = vadd.f32 0.0, %v4718
    %v4720 = vpop.f32.mrb[0].mxu0
    %4721 = vmatprep.mubr.bf16.mxu0 0
    %4722 = vmatmul.mubr.bf16.gmra.mrb[0].mxu0 %v4124
    %v4723 = vpop.f32.mrb[0].mxu0
    %v4724 = vadd.f32 0.0, %v4723
    %v4725 = vpop.f32.mrb[0].mxu0
    %v4726 = vpop.f32.mrb[0].mxu0
    %v4727 = vadd.f32 0.0, %v4726
    %v4728 = vpop.f32.mrb[0].mxu0
    %4729 = vmatprep.mubr.bf16.mxu0 0
    %4730 = vmatmul.mubr.bf16.gmra.mrb[0].mxu0 %v4127
    %v4731 = vpop.f32.mrb[0].mxu0
    %v4732 = vadd.f32 0.0, %v4731
    %v4733 = vpop.f32.mrb[0].mxu0
    %v4734 = vpop.f32.mrb[0].mxu0
    %v4735 = vadd.f32 0.0, %v4734
    %v4736 = vpop.f32.mrb[0].mxu0
    %4737 = vmatprep.mubr.bf16.mxu0 0
    %4738 = vmatmul.mubr.bf16.gmra.mrb[0].mxu0 %v4130
    %v4739 = vpop.f32.mrb[0].mxu0
    %v4740 = vadd.f32 0.0, %v4739
    %v4741 = vpop.f32.mrb[0].mxu0
    %v4742 = vpop.f32.mrb[0].mxu0
    %v4743 = vadd.f32 0.0, %v4742
    %v4744 = vpop.f32.mrb[0].mxu0
    %4745 = vmatprep.mubr.bf16.mxu0 0
    %4746 = vmatmul.mubr.bf16.gmra.mrb[0].mxu0 %v4133
    %v4747 = vpop.f32.mrb[0].mxu0
    %v4748 = vadd.f32 0.0, %v4747
    %v4749 = vpop.f32.mrb[0].mxu0
    %v4750 = vpop.f32.mrb[0].mxu0
    %v4751 = vadd.f32 0.0, %v4750
    %v4752 = vpop.f32.mrb[0].mxu0
    %4753 = vmatprep.mubr.bf16.mxu0 0
    %4754 = vmatmul.mubr.bf16.gmra.mrb[0].mxu0 %v4136
    %v4755 = vpop.f32.mrb[0].mxu0
    %v4756 = vadd.f32 0.0, %v4755
    %v4757 = vpop.f32.mrb[0].mxu0
    %v4758 = vpop.f32.mrb[0].mxu0
    %v4759 = vadd.f32 0.0, %v4758
    %v4760 = vpop.f32.mrb[0].mxu0
    %4761 = vmatprep.mubr.bf16.mxu0 0
    %4762 = vmatmul.mubr.bf16.gmra.mrb[0].mxu0 %v4139
    %v4763 = vpop.f32.mrb[0].mxu0
    %v4764 = vadd.f32 0.0, %v4763
    %v4765 = vpop.f32.mrb[0].mxu0
    %v4766 = vpop.f32.mrb[0].mxu0
    %v4767 = vadd.f32 0.0, %v4766
    %v4768 = vpop.f32.mrb[0].mxu0
    %4769 = vmatprep.mubr.bf16.mxu0 0
    %4770 = vmatmul.mubr.bf16.gmra.mrb[0].mxu0 %v4142
    %v4771 = vpop.f32.mrb[0].mxu0
    %v4772 = vadd.f32 0.0, %v4771
    %v4773 = vpop.f32.mrb[0].mxu0
    %v4774 = vpop.f32.mrb[0].mxu0
    %v4775 = vadd.f32 0.0, %v4774
    %v4776 = vpop.f32.mrb[0].mxu0
    %4777 = vmatprep.mubr.bf16.mxu0 0
    %4778 = vmatmul.mubr.bf16.gmra.mrb[0].mxu0 %v4145
    %v4779 = vpop.f32.mrb[0].mxu0
    %v4780 = vadd.f32 0.0, %v4779
    %v4781 = vpop.f32.mrb[0].mxu0
    %v4782 = vpop.f32.mrb[0].mxu0
    %v4783 = vadd.f32 0.0, %v4782
    %v4784 = vpop.f32.mrb[0].mxu0
    %4785 = vmatprep.mubr.bf16.mxu0 0
    %4786 = vmatmul.mubr.bf16.gmra.mrb[0].mxu0 %v4148
    %v4787 = vpop.f32.mrb[0].mxu0
    %v4788 = vadd.f32 0.0, %v4787
    %v4789 = vpop.f32.mrb[0].mxu0
    %v4790 = vpop.f32.mrb[0].mxu0
    %v4791 = vadd.f32 0.0, %v4790
    %v4792 = vpop.f32.mrb[0].mxu0
    %4793 = vmatprep.mubr.bf16.mxu0 0
    %4794 = vmatmul.mubr.bf16.gmra.mrb[0].mxu0 %v4151
    %v4795 = vpop.f32.mrb[0].mxu0
    %v4796 = vadd.f32 0.0, %v4795
    %v4797 = vpop.f32.mrb[0].mxu0
    %v4798 = vpop.f32.mrb[0].mxu0
    %v4799 = vadd.f32 0.0, %v4798
    %v4800 = vpop.f32.mrb[0].mxu0
    %4801 = vmatprep.mubr.bf16.mxu0 0
    %4802 = vmatmul.mubr.bf16.gmra.mrb[0].mxu0 %v4154
    %v4803 = vpop.f32.mrb[0].mxu0
    %v4804 = vadd.f32 0.0, %v4803
    %v4805 = vpop.f32.mrb[0].mxu0
    %v4806 = vpop.f32.mrb[0].mxu0
    %v4807 = vadd.f32 0.0, %v4806
    %v4808 = vpop.f32.mrb[0].mxu0
    %4809 = vmatprep.mubr.bf16.mxu0 0
    %4810 = vmatmul.mubr.bf16.gmra.mrb[0].mxu0 %v4157
    %v4811 = vpop.f32.mrb[0].mxu0
    %v4812 = vadd.f32 0.0, %v4811
    %v4813 = vpop.f32.mrb[0].mxu0
    %v4814 = vpop.f32.mrb[0].mxu0
    %v4815 = vadd.f32 0.0, %v4814
    %v4816 = vpop.f32.mrb[0].mxu0
    %4817 = vmatprep.mubr.bf16.mxu0 0
    %4818 = vmatmul.mubr.bf16.gmra.mrb[0].mxu0 %v4160
    %v4819 = vpop.f32.mrb[0].mxu0
    %v4820 = vadd.f32 0.0, %v4819
    %v4821 = vpop.f32.mrb[0].mxu0
    %v4822 = vpop.f32.mrb[0].mxu0
    %v4823 = vadd.f32 0.0, %v4822
    %v4824 = vpop.f32.mrb[0].mxu0
    %4825 = vmatprep.mubr.bf16.mxu0 0
    %4826 = vmatmul.mubr.bf16.gmra.mrb[0].mxu0 %v4163
    %v4827 = vpop.f32.mrb[0].mxu0
    %v4828 = vadd.f32 0.0, %v4827
    %v4829 = vpop.f32.mrb[0].mxu0
    %v4830 = vpop.f32.mrb[0].mxu0
    %v4831 = vadd.f32 0.0, %v4830
    %v4832 = vpop.f32.mrb[0].mxu0
    %4833 = vmatprep.mubr.bf16.mxu0 0
    %4834 = vmatmul.mubr.bf16.gmra.mrb[0].mxu0 %v4166
    %v4835 = vpop.f32.mrb[0].mxu0
    %v4836 = vadd.f32 0.0, %v4835
    %v4837 = vpop.f32.mrb[0].mxu0
    %v4838 = vpop.f32.mrb[0].mxu0
    %v4839 = vadd.f32 0.0, %v4838
    %v4840 = vpop.f32.mrb[0].mxu0
    %4841 = vmatprep.mubr.bf16.mxu0 0
    %4842 = vmatmul.mubr.bf16.gmra.mrb[0].mxu0 %v4556
    %v4843 = vpop.f32.mrb[0].mxu0
    %v4844 = vadd.f32 0.0, %v4843
    %v4845 = vpop.f32.mrb[0].mxu0
    %v4846 = vpop.f32.mrb[0].mxu0
    %v4847 = vadd.f32 0.0, %v4846
    %v4848 = vpop.f32.mrb[0].mxu0
    %4849 = vdwg.mxu0
    %v4850 = vadd.f32 %v4460, %v4596
    %v4851 = vadd.f32 %v4461, %v4599
    %v4852 = vadd.f32 %v4462, %v4604
    %v4853 = vadd.f32 %v4463, %v4607
    %v4854 = vadd.f32 %v4464, %v4612
    %v4855 = vadd.f32 %v4465, %v4615
    %v4856 = vadd.f32 %v4466, %v4620
    %v4857 = vadd.f32 %v4467, %v4623
    %v4858 = vadd.f32 %v4468, %v4628
    %v4859 = vadd.f32 %v4469, %v4631
    %v4860 = vadd.f32 %v4470, %v4636
    %v4861 = vadd.f32 %v4471, %v4639
    %v4862 = vadd.f32 %v4472, %v4644
    %v4863 = vadd.f32 %v4473, %v4647
    %v4864 = vadd.f32 %v4474, %v4652
    %v4865 = vadd.f32 %v4475, %v4655
    %v4866 = vadd.f32 %v4476, %v4660
    %v4867 = vadd.f32 %v4477, %v4663
    %v4868 = vadd.f32 %v4478, %v4668
    %v4869 = vadd.f32 %v4479, %v4671
    %v4870 = vadd.f32 %v4480, %v4676
    %v4871 = vadd.f32 %v4481, %v4679
    %v4872 = vadd.f32 %v4482, %v4684
    %v4873 = vadd.f32 %v4483, %v4687
    %v4874 = vadd.f32 %v4484, %v4692
    %v4875 = vadd.f32 %v4485, %v4695
    %v4876 = vadd.f32 %v4486, %v4700
    %v4877 = vadd.f32 %v4487, %v4703
    %v4878 = vadd.f32 %v4488, %v4708
    %v4879 = vadd.f32 %v4489, %v4711
    %v4880 = vadd.f32 %v4490, %v4716
    %v4881 = vadd.f32 %v4491, %v4719
    %v4882 = vadd.f32 %v4492, %v4724
    %v4883 = vadd.f32 %v4493, %v4727
    %v4884 = vadd.f32 %v4494, %v4732
    %v4885 = vadd.f32 %v4495, %v4735
    %v4886 = vadd.f32 %v4496, %v4740
    %v4887 = vadd.f32 %v4497, %v4743
    %v4888 = vadd.f32 %v4498, %v4748
    %v4889 = vadd.f32 %v4499, %v4751
    %v4890 = vadd.f32 %v4500, %v4756
    %v4891 = vadd.f32 %v4501, %v4759
    %v4892 = vadd.f32 %v4502, %v4764
    %v4893 = vadd.f32 %v4503, %v4767
    %v4894 = vadd.f32 %v4504, %v4772
    %v4895 = vadd.f32 %v4505, %v4775
    %v4896 = vadd.f32 %v4506, %v4780
    %v4897 = vadd.f32 %v4507, %v4783
    %v4898 = vadd.f32 %v4508, %v4788
    %v4899 = vadd.f32 %v4509, %v4791
    %v4900 = vadd.f32 %v4510, %v4796
    %v4901 = vadd.f32 %v4511, %v4799
    %v4902 = vadd.f32 %v4512, %v4804
    %v4903 = vadd.f32 %v4513, %v4807
    %v4904 = vadd.f32 %v4514, %v4812
    %v4905 = vadd.f32 %v4515, %v4815
    %v4906 = vadd.f32 %v4516, %v4820
    %v4907 = vadd.f32 %v4517, %v4823
    %v4908 = vadd.f32 %v4518, %v4828
    %v4909 = vadd.f32 %v4519, %v4831
    %v4910 = vadd.f32 %v4520, %v4836
    %v4911 = vadd.f32 %v4521, %v4839
    %v4912 = vadd.f32 %v4522, %v4844
    %v4913 = vadd.f32 %v4523, %v4847
    %v4920 = vrot.slane %v3632, 5
    %v4921 = vrot.slane %v4920, 4
    %v4922 = vrot.slane %v1402, 5
    %v4923 = vsel %vm3749, %v4921, %v4922
    %v4924 = vrot.slane %v4922, 4
    %v4925 = vrot.slane %v1403, 5
    %v4926 = vsel %vm3749, %v4924, %v4925
    %v4927 = vrot.slane %v3650, 5
    %v4928 = vrot.slane %v4927, 4
    %v4929 = vrot.slane %v1456, 5
    %v4930 = vsel %vm3749, %v4928, %v4929
    %v4931 = vrot.slane %v4929, 4
    %v4932 = vrot.slane %v1457, 5
    %v4933 = vsel %vm3749, %v4931, %v4932
    %s4934 = scalar_lea.vmem %s1, 16
    %v4935 = vld [vmem:[%s4934] sm:$0x3]
    %v4936 = vunpack.c.l.b16 %v4923
    %v4937 = vunpack.c.l.b16 %v4926
    %v4938 = vunpack.c.l.b16 %v4930
    %v4939 = vunpack.c.l.b16 %v4933
    %v4940 = vpack.c.b16 %v4937, %v4936
    %v4941 = vpack.c.b16 %v4939, %v4938
    %v4943 = vsel %vm278, %v4940, 0
    %v4946 = vsel %vm278, %v4941, 0
    %v4949 = vsel %vm375, %v4935, 0
    %4951 = vmatprep.subr.bf16.mxu0 0
    %4952 = vmatpush1.bf16.msra.mxu0 %v4949
    %4953 = vmatprep.subr.bf16.mxu0 0
    %4954 = vmatpush1.bf16.msra.mxu0 0
    %4955 = vmatprep.subr.bf16.mxu0 0
    %4956 = vmatpush1.bf16.msra.mxu0 0
    %4957 = vmatprep.subr.bf16.mxu0 0
    %4958 = vmatpush1.bf16.msra.mxu0 0
    %4959 = vmatprep.subr.bf16.mxu0 0
    %4960 = vmatpush1.bf16.msra.mxu0 0
    %4961 = vmatprep.subr.bf16.mxu0 0
    %4962 = vmatpush1.bf16.msra.mxu0 0
    %4963 = vmatprep.subr.bf16.mxu0 0
    %4964 = vmatpush1.bf16.msra.mxu0 0
    %4965 = vmatprep.subr.bf16.mxu0 0
    %4966 = vmatpush1.bf16.msra.mxu0 0
    %4967 = vmatprep.subr.bf16.mxu0 0
    %4968 = vmatpush1.bf16.msra.mxu0 0
    %4969 = vmatprep.subr.bf16.mxu0 0
    %4970 = vmatpush1.bf16.msra.mxu0 0
    %4971 = vmatprep.subr.bf16.mxu0 0
    %4972 = vmatpush1.bf16.msra.mxu0 0
    %4973 = vmatprep.subr.bf16.mxu0 0
    %4974 = vmatpush1.bf16.msra.mxu0 0
    %4975 = vmatprep.subr.bf16.mxu0 0
    %4976 = vmatpush1.bf16.msra.mxu0 0
    %4977 = vmatprep.subr.bf16.mxu0 0
    %4978 = vmatpush1.bf16.msra.mxu0 0
    %4979 = vmatprep.subr.bf16.mxu0 0
    %4980 = vmatpush1.bf16.msra.mxu0 0
    %4981 = vmatprep.subr.bf16.mxu0 0
    %4982 = vmatpush1.bf16.msra.mxu0 0
    %4983 = vmatprep.mubr.bf16.mxu0 0
    %4984 = vmatmul.mubr.bf16.gmra.mrb[0].mxu0 %v4079
    %v4985 = vpop.f32.mrb[0].mxu0
    %v4986 = vadd.f32 0.0, %v4985
    %v4987 = vpop.f32.mrb[0].mxu0
    %v4988 = vpop.f32.mrb[0].mxu0
    %v4989 = vadd.f32 0.0, %v4988
    %v4990 = vpop.f32.mrb[0].mxu0
    %4991 = vmatprep.mubr.bf16.mxu0 0
    %4992 = vmatmul.mubr.bf16.gmra.mrb[0].mxu0 %v4082
    %v4993 = vpop.f32.mrb[0].mxu0
    %v4994 = vadd.f32 0.0, %v4993
    %v4995 = vpop.f32.mrb[0].mxu0
    %v4996 = vpop.f32.mrb[0].mxu0
    %v4997 = vadd.f32 0.0, %v4996
    %v4998 = vpop.f32.mrb[0].mxu0
    %4999 = vmatprep.mubr.bf16.mxu0 0
    %5000 = vmatmul.mubr.bf16.gmra.mrb[0].mxu0 %v4085
    %v5001 = vpop.f32.mrb[0].mxu0
    %v5002 = vadd.f32 0.0, %v5001
    %v5003 = vpop.f32.mrb[0].mxu0
    %v5004 = vpop.f32.mrb[0].mxu0
    %v5005 = vadd.f32 0.0, %v5004
    %v5006 = vpop.f32.mrb[0].mxu0
    %5007 = vmatprep.mubr.bf16.mxu0 0
    %5008 = vmatmul.mubr.bf16.gmra.mrb[0].mxu0 %v4088
    %v5009 = vpop.f32.mrb[0].mxu0
    %v5010 = vadd.f32 0.0, %v5009
    %v5011 = vpop.f32.mrb[0].mxu0
    %v5012 = vpop.f32.mrb[0].mxu0
    %v5013 = vadd.f32 0.0, %v5012
    %v5014 = vpop.f32.mrb[0].mxu0
    %5015 = vmatprep.mubr.bf16.mxu0 0
    %5016 = vmatmul.mubr.bf16.gmra.mrb[0].mxu0 %v4091
    %v5017 = vpop.f32.mrb[0].mxu0
    %v5018 = vadd.f32 0.0, %v5017
    %v5019 = vpop.f32.mrb[0].mxu0
    %v5020 = vpop.f32.mrb[0].mxu0
    %v5021 = vadd.f32 0.0, %v5020
    %v5022 = vpop.f32.mrb[0].mxu0
    %5023 = vmatprep.mubr.bf16.mxu0 0
    %5024 = vmatmul.mubr.bf16.gmra.mrb[0].mxu0 %v4094
    %v5025 = vpop.f32.mrb[0].mxu0
    %v5026 = vadd.f32 0.0, %v5025
    %v5027 = vpop.f32.mrb[0].mxu0
    %v5028 = vpop.f32.mrb[0].mxu0
    %v5029 = vadd.f32 0.0, %v5028
    %v5030 = vpop.f32.mrb[0].mxu0
    %5031 = vmatprep.mubr.bf16.mxu0 0
    %5032 = vmatmul.mubr.bf16.gmra.mrb[0].mxu0 %v4097
    %v5033 = vpop.f32.mrb[0].mxu0
    %v5034 = vadd.f32 0.0, %v5033
    %v5035 = vpop.f32.mrb[0].mxu0
    %v5036 = vpop.f32.mrb[0].mxu0
    %v5037 = vadd.f32 0.0, %v5036
    %v5038 = vpop.f32.mrb[0].mxu0
    %5039 = vmatprep.mubr.bf16.mxu0 0
    %5040 = vmatmul.mubr.bf16.gmra.mrb[0].mxu0 %v4100
    %v5041 = vpop.f32.mrb[0].mxu0
    %v5042 = vadd.f32 0.0, %v5041
    %v5043 = vpop.f32.mrb[0].mxu0
    %v5044 = vpop.f32.mrb[0].mxu0
    %v5045 = vadd.f32 0.0, %v5044
    %v5046 = vpop.f32.mrb[0].mxu0
    %5047 = vmatprep.mubr.bf16.mxu0 0
    %5048 = vmatmul.mubr.bf16.gmra.mrb[0].mxu0 %v4103
    %v5049 = vpop.f32.mrb[0].mxu0
    %v5050 = vadd.f32 0.0, %v5049
    %v5051 = vpop.f32.mrb[0].mxu0
    %v5052 = vpop.f32.mrb[0].mxu0
    %v5053 = vadd.f32 0.0, %v5052
    %v5054 = vpop.f32.mrb[0].mxu0
    %5055 = vmatprep.mubr.bf16.mxu0 0
    %5056 = vmatmul.mubr.bf16.gmra.mrb[0].mxu0 %v4106
    %v5057 = vpop.f32.mrb[0].mxu0
    %v5058 = vadd.f32 0.0, %v5057
    %v5059 = vpop.f32.mrb[0].mxu0
    %v5060 = vpop.f32.mrb[0].mxu0
    %v5061 = vadd.f32 0.0, %v5060
    %v5062 = vpop.f32.mrb[0].mxu0
    %5063 = vmatprep.mubr.bf16.mxu0 0
    %5064 = vmatmul.mubr.bf16.gmra.mrb[0].mxu0 %v4109
    %v5065 = vpop.f32.mrb[0].mxu0
    %v5066 = vadd.f32 0.0, %v5065
    %v5067 = vpop.f32.mrb[0].mxu0
    %v5068 = vpop.f32.mrb[0].mxu0
    %v5069 = vadd.f32 0.0, %v5068
    %v5070 = vpop.f32.mrb[0].mxu0
    %5071 = vmatprep.mubr.bf16.mxu0 0
    %5072 = vmatmul.mubr.bf16.gmra.mrb[0].mxu0 %v4112
    %v5073 = vpop.f32.mrb[0].mxu0
    %v5074 = vadd.f32 0.0, %v5073
    %v5075 = vpop.f32.mrb[0].mxu0
    %v5076 = vpop.f32.mrb[0].mxu0
    %v5077 = vadd.f32 0.0, %v5076
    %v5078 = vpop.f32.mrb[0].mxu0
    %5079 = vmatprep.mubr.bf16.mxu0 0
    %5080 = vmatmul.mubr.bf16.gmra.mrb[0].mxu0 %v4115
    %v5081 = vpop.f32.mrb[0].mxu0
    %v5082 = vadd.f32 0.0, %v5081
    %v5083 = vpop.f32.mrb[0].mxu0
    %v5084 = vpop.f32.mrb[0].mxu0
    %v5085 = vadd.f32 0.0, %v5084
    %v5086 = vpop.f32.mrb[0].mxu0
    %5087 = vmatprep.mubr.bf16.mxu0 0
    %5088 = vmatmul.mubr.bf16.gmra.mrb[0].mxu0 %v4118
    %v5089 = vpop.f32.mrb[0].mxu0
    %v5090 = vadd.f32 0.0, %v5089
    %v5091 = vpop.f32.mrb[0].mxu0
    %v5092 = vpop.f32.mrb[0].mxu0
    %v5093 = vadd.f32 0.0, %v5092
    %v5094 = vpop.f32.mrb[0].mxu0
    %5095 = vmatprep.mubr.bf16.mxu0 0
    %5096 = vmatmul.mubr.bf16.gmra.mrb[0].mxu0 %v4553
    %v5097 = vpop.f32.mrb[0].mxu0
    %v5098 = vadd.f32 0.0, %v5097
    %v5099 = vpop.f32.mrb[0].mxu0
    %v5100 = vpop.f32.mrb[0].mxu0
    %v5101 = vadd.f32 0.0, %v5100
    %v5102 = vpop.f32.mrb[0].mxu0
    %5103 = vmatprep.mubr.bf16.mxu0 0
    %5104 = vmatmul.mubr.bf16.gmra.mrb[0].mxu0 %v4943
    %v5105 = vpop.f32.mrb[0].mxu0
    %v5106 = vadd.f32 0.0, %v5105
    %v5107 = vpop.f32.mrb[0].mxu0
    %v5108 = vpop.f32.mrb[0].mxu0
    %v5109 = vadd.f32 0.0, %v5108
    %v5110 = vpop.f32.mrb[0].mxu0
    %5111 = vmatprep.mubr.bf16.mxu0 0
    %5112 = vmatmul.mubr.bf16.gmra.mrb[0].mxu0 %v4127
    %v5113 = vpop.f32.mrb[0].mxu0
    %v5114 = vadd.f32 0.0, %v5113
    %v5115 = vpop.f32.mrb[0].mxu0
    %v5116 = vpop.f32.mrb[0].mxu0
    %v5117 = vadd.f32 0.0, %v5116
    %v5118 = vpop.f32.mrb[0].mxu0
    %5119 = vmatprep.mubr.bf16.mxu0 0
    %5120 = vmatmul.mubr.bf16.gmra.mrb[0].mxu0 %v4130
    %v5121 = vpop.f32.mrb[0].mxu0
    %v5122 = vadd.f32 0.0, %v5121
    %v5123 = vpop.f32.mrb[0].mxu0
    %v5124 = vpop.f32.mrb[0].mxu0
    %v5125 = vadd.f32 0.0, %v5124
    %v5126 = vpop.f32.mrb[0].mxu0
    %5127 = vmatprep.mubr.bf16.mxu0 0
    %5128 = vmatmul.mubr.bf16.gmra.mrb[0].mxu0 %v4133
    %v5129 = vpop.f32.mrb[0].mxu0
    %v5130 = vadd.f32 0.0, %v5129
    %v5131 = vpop.f32.mrb[0].mxu0
    %v5132 = vpop.f32.mrb[0].mxu0
    %v5133 = vadd.f32 0.0, %v5132
    %v5134 = vpop.f32.mrb[0].mxu0
    %5135 = vmatprep.mubr.bf16.mxu0 0
    %5136 = vmatmul.mubr.bf16.gmra.mrb[0].mxu0 %v4136
    %v5137 = vpop.f32.mrb[0].mxu0
    %v5138 = vadd.f32 0.0, %v5137
    %v5139 = vpop.f32.mrb[0].mxu0
    %v5140 = vpop.f32.mrb[0].mxu0
    %v5141 = vadd.f32 0.0, %v5140
    %v5142 = vpop.f32.mrb[0].mxu0
    %5143 = vmatprep.mubr.bf16.mxu0 0
    %5144 = vmatmul.mubr.bf16.gmra.mrb[0].mxu0 %v4139
    %v5145 = vpop.f32.mrb[0].mxu0
    %v5146 = vadd.f32 0.0, %v5145
    %v5147 = vpop.f32.mrb[0].mxu0
    %v5148 = vpop.f32.mrb[0].mxu0
    %v5149 = vadd.f32 0.0, %v5148
    %v5150 = vpop.f32.mrb[0].mxu0
    %5151 = vmatprep.mubr.bf16.mxu0 0
    %5152 = vmatmul.mubr.bf16.gmra.mrb[0].mxu0 %v4142
    %v5153 = vpop.f32.mrb[0].mxu0
    %v5154 = vadd.f32 0.0, %v5153
    %v5155 = vpop.f32.mrb[0].mxu0
    %v5156 = vpop.f32.mrb[0].mxu0
    %v5157 = vadd.f32 0.0, %v5156
    %v5158 = vpop.f32.mrb[0].mxu0
    %5159 = vmatprep.mubr.bf16.mxu0 0
    %5160 = vmatmul.mubr.bf16.gmra.mrb[0].mxu0 %v4145
    %v5161 = vpop.f32.mrb[0].mxu0
    %v5162 = vadd.f32 0.0, %v5161
    %v5163 = vpop.f32.mrb[0].mxu0
    %v5164 = vpop.f32.mrb[0].mxu0
    %v5165 = vadd.f32 0.0, %v5164
    %v5166 = vpop.f32.mrb[0].mxu0
    %5167 = vmatprep.mubr.bf16.mxu0 0
    %5168 = vmatmul.mubr.bf16.gmra.mrb[0].mxu0 %v4148
    %v5169 = vpop.f32.mrb[0].mxu0
    %v5170 = vadd.f32 0.0, %v5169
    %v5171 = vpop.f32.mrb[0].mxu0
    %v5172 = vpop.f32.mrb[0].mxu0
    %v5173 = vadd.f32 0.0, %v5172
    %v5174 = vpop.f32.mrb[0].mxu0
    %5175 = vmatprep.mubr.bf16.mxu0 0
    %5176 = vmatmul.mubr.bf16.gmra.mrb[0].mxu0 %v4151
    %v5177 = vpop.f32.mrb[0].mxu0
    %v5178 = vadd.f32 0.0, %v5177
    %v5179 = vpop.f32.mrb[0].mxu0
    %v5180 = vpop.f32.mrb[0].mxu0
    %v5181 = vadd.f32 0.0, %v5180
    %v5182 = vpop.f32.mrb[0].mxu0
    %5183 = vmatprep.mubr.bf16.mxu0 0
    %5184 = vmatmul.mubr.bf16.gmra.mrb[0].mxu0 %v4154
    %v5185 = vpop.f32.mrb[0].mxu0
    %v5186 = vadd.f32 0.0, %v5185
    %v5187 = vpop.f32.mrb[0].mxu0
    %v5188 = vpop.f32.mrb[0].mxu0
    %v5189 = vadd.f32 0.0, %v5188
    %v5190 = vpop.f32.mrb[0].mxu0
    %5191 = vmatprep.mubr.bf16.mxu0 0
    %5192 = vmatmul.mubr.bf16.gmra.mrb[0].mxu0 %v4157
    %v5193 = vpop.f32.mrb[0].mxu0
    %v5194 = vadd.f32 0.0, %v5193
    %v5195 = vpop.f32.mrb[0].mxu0
    %v5196 = vpop.f32.mrb[0].mxu0
    %v5197 = vadd.f32 0.0, %v5196
    %v5198 = vpop.f32.mrb[0].mxu0
    %5199 = vmatprep.mubr.bf16.mxu0 0
    %5200 = vmatmul.mubr.bf16.gmra.mrb[0].mxu0 %v4160
    %v5201 = vpop.f32.mrb[0].mxu0
    %v5202 = vadd.f32 0.0, %v5201
    %v5203 = vpop.f32.mrb[0].mxu0
    %v5204 = vpop.f32.mrb[0].mxu0
    %v5205 = vadd.f32 0.0, %v5204
    %v5206 = vpop.f32.mrb[0].mxu0
    %5207 = vmatprep.mubr.bf16.mxu0 0
    %5208 = vmatmul.mubr.bf16.gmra.mrb[0].mxu0 %v4163
    %v5209 = vpop.f32.mrb[0].mxu0
    %v5210 = vadd.f32 0.0, %v5209
    %v5211 = vpop.f32.mrb[0].mxu0
    %v5212 = vpop.f32.mrb[0].mxu0
    %v5213 = vadd.f32 0.0, %v5212
    %v5214 = vpop.f32.mrb[0].mxu0
    %5215 = vmatprep.mubr.bf16.mxu0 0
    %5216 = vmatmul.mubr.bf16.gmra.mrb[0].mxu0 %v4166
    %v5217 = vpop.f32.mrb[0].mxu0
    %v5218 = vadd.f32 0.0, %v5217
    %v5219 = vpop.f32.mrb[0].mxu0
    %v5220 = vpop.f32.mrb[0].mxu0
    %v5221 = vadd.f32 0.0, %v5220
    %v5222 = vpop.f32.mrb[0].mxu0
    %5223 = vmatprep.mubr.bf16.mxu0 0
    %5224 = vmatmul.mubr.bf16.gmra.mrb[0].mxu0 %v4556
    %v5225 = vpop.f32.mrb[0].mxu0
    %v5226 = vadd.f32 0.0, %v5225
    %v5227 = vpop.f32.mrb[0].mxu0
    %v5228 = vpop.f32.mrb[0].mxu0
    %v5229 = vadd.f32 0.0, %v5228
    %v5230 = vpop.f32.mrb[0].mxu0
    %5231 = vmatprep.mubr.bf16.mxu0 0
    %5232 = vmatmul.mubr.bf16.gmra.mrb[0].mxu0 %v4946
    %v5233 = vpop.f32.mrb[0].mxu0
    %v5234 = vadd.f32 0.0, %v5233
    %v5235 = vpop.f32.mrb[0].mxu0
    %v5236 = vpop.f32.mrb[0].mxu0
    %v5237 = vadd.f32 0.0, %v5236
    %v5238 = vpop.f32.mrb[0].mxu0
    %5239 = vdwg.mxu0
    %v5240 = vadd.f32 %v4850, %v4986
    %v5241 = vadd.f32 %v4851, %v4989
    %v5242 = vadd.f32 %v4852, %v4994
    %v5243 = vadd.f32 %v4853, %v4997
    %v5244 = vadd.f32 %v4854, %v5002
    %v5245 = vadd.f32 %v4855, %v5005
    %v5246 = vadd.f32 %v4856, %v5010
    %v5247 = vadd.f32 %v4857, %v5013
    %v5248 = vadd.f32 %v4858, %v5018
    %v5249 = vadd.f32 %v4859, %v5021
    %v5250 = vadd.f32 %v4860, %v5026
    %v5251 = vadd.f32 %v4861, %v5029
    %v5252 = vadd.f32 %v4862, %v5034
    %v5253 = vadd.f32 %v4863, %v5037
    %v5254 = vadd.f32 %v4864, %v5042
    %v5255 = vadd.f32 %v4865, %v5045
    %v5256 = vadd.f32 %v4866, %v5050
    %v5257 = vadd.f32 %v4867, %v5053
    %v5258 = vadd.f32 %v4868, %v5058
    %v5259 = vadd.f32 %v4869, %v5061
    %v5260 = vadd.f32 %v4870, %v5066
    %v5261 = vadd.f32 %v4871, %v5069
    %v5262 = vadd.f32 %v4872, %v5074
    %v5263 = vadd.f32 %v4873, %v5077
    %v5264 = vadd.f32 %v4874, %v5082
    %v5265 = vadd.f32 %v4875, %v5085
    %v5266 = vadd.f32 %v4876, %v5090
    %v5267 = vadd.f32 %v4877, %v5093
    %v5268 = vadd.f32 %v4878, %v5098
    %v5269 = vadd.f32 %v4879, %v5101
    %v5270 = vadd.f32 %v4880, %v5106
    %v5271 = vadd.f32 %v4881, %v5109
    %v5272 = vadd.f32 %v4882, %v5114
    %v5273 = vadd.f32 %v4883, %v5117
    %v5274 = vadd.f32 %v4884, %v5122
    %v5275 = vadd.f32 %v4885, %v5125
    %v5276 = vadd.f32 %v4886, %v5130
    %v5277 = vadd.f32 %v4887, %v5133
    %v5278 = vadd.f32 %v4888, %v5138
    %v5279 = vadd.f32 %v4889, %v5141
    %v5280 = vadd.f32 %v4890, %v5146
    %v5281 = vadd.f32 %v4891, %v5149
    %v5282 = vadd.f32 %v4892, %v5154
    %v5283 = vadd.f32 %v4893, %v5157
    %v5284 = vadd.f32 %v4894, %v5162
    %v5285 = vadd.f32 %v4895, %v5165
    %v5286 = vadd.f32 %v4896, %v5170
    %v5287 = vadd.f32 %v4897, %v5173
    %v5288 = vadd.f32 %v4898, %v5178
    %v5289 = vadd.f32 %v4899, %v5181
    %v5290 = vadd.f32 %v4900, %v5186
    %v5291 = vadd.f32 %v4901, %v5189
    %v5292 = vadd.f32 %v4902, %v5194
    %v5293 = vadd.f32 %v4903, %v5197
    %v5294 = vadd.f32 %v4904, %v5202
    %v5295 = vadd.f32 %v4905, %v5205
    %v5296 = vadd.f32 %v4906, %v5210
    %v5297 = vadd.f32 %v4907, %v5213
    %v5298 = vadd.f32 %v4908, %v5218
    %v5299 = vadd.f32 %v4909, %v5221
    %v5300 = vadd.f32 %v4910, %v5226
    %v5301 = vadd.f32 %v4911, %v5229
    %v5302 = vadd.f32 %v4912, %v5234
    %v5303 = vadd.f32 %v4913, %v5237
    %v5304 = vld [vmem:[%s4] sm:$0x1]
    %v5305 = vld [vmem:[%s5] sm:$0x1]
    %vm5306 = vcmask 162816
    %v5307 = vsel %vm5306, %v5240, 0.0
    %v5308 = vsel %vm5306, %v5241, 0.0
    %v5309 = vadd.f32 %v5307, %v5308
    %v5310 = vsel %vm5306, %v5242, 0.0
    %v5311 = vadd.f32 %v5309, %v5310
    %v5312 = vsel %vm5306, %v5243, 0.0
    %v5313 = vadd.f32 %v5311, %v5312
    %v5314 = vsel %vm5306, %v5244, 0.0
    %v5315 = vadd.f32 %v5313, %v5314
    %v5316 = vsel %vm5306, %v5245, 0.0
    %v5317 = vadd.f32 %v5315, %v5316
    %v5318 = vsel %vm5306, %v5246, 0.0
    %v5319 = vadd.f32 %v5317, %v5318
    %v5320 = vsel %vm5306, %v5247, 0.0
    %v5321 = vadd.f32 %v5319, %v5320
    %v5322 = vsel %vm5306, %v5248, 0.0
    %v5323 = vadd.f32 %v5321, %v5322
    %v5324 = vsel %vm5306, %v5249, 0.0
    %v5325 = vadd.f32 %v5323, %v5324
    %v5326 = vsel %vm5306, %v5250, 0.0
    %v5327 = vadd.f32 %v5325, %v5326
    %v5328 = vsel %vm5306, %v5251, 0.0
    %v5329 = vadd.f32 %v5327, %v5328
    %v5330 = vsel %vm5306, %v5252, 0.0
    %v5331 = vadd.f32 %v5329, %v5330
    %v5332 = vsel %vm5306, %v5253, 0.0
    %v5333 = vadd.f32 %v5331, %v5332
    %v5334 = vsel %vm5306, %v5254, 0.0
    %v5335 = vadd.f32 %v5333, %v5334
    %v5336 = vsel %vm5306, %v5255, 0.0
    %v5337 = vadd.f32 %v5335, %v5336
    %v5338 = vsel %vm5306, %v5256, 0.0
    %v5339 = vadd.f32 %v5337, %v5338
    %v5340 = vsel %vm5306, %v5257, 0.0
    %v5341 = vadd.f32 %v5339, %v5340
    %v5342 = vsel %vm5306, %v5258, 0.0
    %v5343 = vadd.f32 %v5341, %v5342
    %v5344 = vsel %vm5306, %v5259, 0.0
    %v5345 = vadd.f32 %v5343, %v5344
    %v5346 = vsel %vm5306, %v5260, 0.0
    %v5347 = vadd.f32 %v5345, %v5346
    %v5348 = vsel %vm5306, %v5261, 0.0
    %v5349 = vadd.f32 %v5347, %v5348
    %v5350 = vsel %vm5306, %v5262, 0.0
    %v5351 = vadd.f32 %v5349, %v5350
    %v5352 = vsel %vm5306, %v5263, 0.0
    %v5353 = vadd.f32 %v5351, %v5352
    %v5354 = vsel %vm5306, %v5264, 0.0
    %v5355 = vadd.f32 %v5353, %v5354
    %v5356 = vsel %vm5306, %v5265, 0.0
    %v5357 = vadd.f32 %v5355, %v5356
    %v5358 = vsel %vm5306, %v5266, 0.0
    %v5359 = vadd.f32 %v5357, %v5358
    %v5360 = vsel %vm5306, %v5267, 0.0
    %v5361 = vadd.f32 %v5359, %v5360
    %v5362 = vsel %vm5306, %v5268, 0.0
    %v5363 = vadd.f32 %v5361, %v5362
    %v5364 = vsel %vm5306, %v5269, 0.0
    %v5365 = vadd.f32 %v5363, %v5364
    %v5366 = vsel %vm5306, %v5270, 0.0
    %v5367 = vadd.f32 %v5365, %v5366
    %v5368 = vsel %vm5306, %v5271, 0.0
    %v5369 = vadd.f32 %v5367, %v5368
    %v5370 = vsel %vm5306, %v5272, 0.0
    %v5371 = vadd.f32 %v5369, %v5370
    %v5372 = vsel %vm5306, %v5273, 0.0
    %v5373 = vadd.f32 %v5371, %v5372
    %v5374 = vsel %vm5306, %v5274, 0.0
    %v5375 = vadd.f32 %v5373, %v5374
    %v5376 = vsel %vm5306, %v5275, 0.0
    %v5377 = vadd.f32 %v5375, %v5376
    %v5378 = vsel %vm5306, %v5276, 0.0
    %v5379 = vadd.f32 %v5377, %v5378
    %v5380 = vsel %vm5306, %v5277, 0.0
    %v5381 = vadd.f32 %v5379, %v5380
    %v5382 = vsel %vm5306, %v5278, 0.0
    %v5383 = vadd.f32 %v5381, %v5382
    %v5384 = vsel %vm5306, %v5279, 0.0
    %v5385 = vadd.f32 %v5383, %v5384
    %v5386 = vsel %vm5306, %v5280, 0.0
    %v5387 = vadd.f32 %v5385, %v5386
    %v5388 = vsel %vm5306, %v5281, 0.0
    %v5389 = vadd.f32 %v5387, %v5388
    %v5390 = vsel %vm5306, %v5282, 0.0
    %v5391 = vadd.f32 %v5389, %v5390
    %v5392 = vsel %vm5306, %v5283, 0.0
    %v5393 = vadd.f32 %v5391, %v5392
    %v5394 = vsel %vm5306, %v5284, 0.0
    %v5395 = vadd.f32 %v5393, %v5394
    %v5396 = vsel %vm5306, %v5285, 0.0
    %v5397 = vadd.f32 %v5395, %v5396
    %v5398 = vsel %vm5306, %v5286, 0.0
    %v5399 = vadd.f32 %v5397, %v5398
    %v5400 = vsel %vm5306, %v5287, 0.0
    %v5401 = vadd.f32 %v5399, %v5400
    %v5402 = vsel %vm5306, %v5288, 0.0
    %v5403 = vadd.f32 %v5401, %v5402
    %v5404 = vsel %vm5306, %v5289, 0.0
    %v5405 = vadd.f32 %v5403, %v5404
    %v5406 = vsel %vm5306, %v5290, 0.0
    %v5407 = vadd.f32 %v5405, %v5406
    %v5408 = vsel %vm5306, %v5291, 0.0
    %v5409 = vadd.f32 %v5407, %v5408
    %v5410 = vsel %vm5306, %v5292, 0.0
    %v5411 = vadd.f32 %v5409, %v5410
    %v5412 = vsel %vm5306, %v5293, 0.0
    %v5413 = vadd.f32 %v5411, %v5412
    %v5414 = vsel %vm5306, %v5294, 0.0
    %v5415 = vadd.f32 %v5413, %v5414
    %v5416 = vsel %vm5306, %v5295, 0.0
    %v5417 = vadd.f32 %v5415, %v5416
    %v5418 = vsel %vm5306, %v5296, 0.0
    %v5419 = vadd.f32 %v5417, %v5418
    %v5420 = vsel %vm5306, %v5297, 0.0
    %v5421 = vadd.f32 %v5419, %v5420
    %v5422 = vsel %vm5306, %v5298, 0.0
    %v5423 = vadd.f32 %v5421, %v5422
    %v5424 = vsel %vm5306, %v5299, 0.0
    %v5425 = vadd.f32 %v5423, %v5424
    %v5426 = vsel %vm5306, %v5300, 0.0
    %v5427 = vadd.f32 %v5425, %v5426
    %v5428 = vsel %vm5306, %v5301, 0.0
    %v5429 = vadd.f32 %v5427, %v5428
    %v5430 = vsel %vm5306, %v5302, 0.0
    %v5431 = vadd.f32 %v5429, %v5430
    %v5432 = vsel %vm5306, %v5303, 0.0
    %v5433 = vadd.f32 %v5431, %v5432
    %v5434 = vrot.slane %v5433, 4
    %v5435 = vadd.f32 %v5433, %v5434
    %v5436 = vrot.slane %v5435, 2
    %v5437 = vadd.f32 %v5435, %v5436
    %v5438 = vrot.slane %v5437, 1
    %v5439 = vadd.f32 %v5437, %v5438
    %v5440 = vmul.f32 %v5439, 0.001953125
    %v5441 = vsub.f32 %v5240, %v5440
    %v5442 = vsub.f32 %v5241, %v5440
    %v5443 = vsub.f32 %v5242, %v5440
    %v5444 = vsub.f32 %v5243, %v5440
    %v5445 = vsub.f32 %v5244, %v5440
    %v5446 = vsub.f32 %v5245, %v5440
    %v5447 = vsub.f32 %v5246, %v5440
    %v5448 = vsub.f32 %v5247, %v5440
    %v5449 = vsub.f32 %v5248, %v5440
    %v5450 = vsub.f32 %v5249, %v5440
    %v5451 = vsub.f32 %v5250, %v5440
    %v5452 = vsub.f32 %v5251, %v5440
    %v5453 = vsub.f32 %v5252, %v5440
    %v5454 = vsub.f32 %v5253, %v5440
    %v5455 = vsub.f32 %v5254, %v5440
    %v5456 = vsub.f32 %v5255, %v5440
    %v5457 = vsub.f32 %v5256, %v5440
    %v5458 = vsub.f32 %v5257, %v5440
    %v5459 = vsub.f32 %v5258, %v5440
    %v5460 = vsub.f32 %v5259, %v5440
    %v5461 = vsub.f32 %v5260, %v5440
    %v5462 = vsub.f32 %v5261, %v5440
    %v5463 = vsub.f32 %v5262, %v5440
    %v5464 = vsub.f32 %v5263, %v5440
    %v5465 = vsub.f32 %v5264, %v5440
    %v5466 = vsub.f32 %v5265, %v5440
    %v5467 = vsub.f32 %v5266, %v5440
    %v5468 = vsub.f32 %v5267, %v5440
    %v5469 = vsub.f32 %v5268, %v5440
    %v5470 = vsub.f32 %v5269, %v5440
    %v5471 = vsub.f32 %v5270, %v5440
    %v5472 = vsub.f32 %v5271, %v5440
    %v5473 = vsub.f32 %v5272, %v5440
    %v5474 = vsub.f32 %v5273, %v5440
    %v5475 = vsub.f32 %v5274, %v5440
    %v5476 = vsub.f32 %v5275, %v5440
    %v5477 = vsub.f32 %v5276, %v5440
    %v5478 = vsub.f32 %v5277, %v5440
    %v5479 = vsub.f32 %v5278, %v5440
    %v5480 = vsub.f32 %v5279, %v5440
    %v5481 = vsub.f32 %v5280, %v5440
    %v5482 = vsub.f32 %v5281, %v5440
    %v5483 = vsub.f32 %v5282, %v5440
    %v5484 = vsub.f32 %v5283, %v5440
    %v5485 = vsub.f32 %v5284, %v5440
    %v5486 = vsub.f32 %v5285, %v5440
    %v5487 = vsub.f32 %v5286, %v5440
    %v5488 = vsub.f32 %v5287, %v5440
    %v5489 = vsub.f32 %v5288, %v5440
    %v5490 = vsub.f32 %v5289, %v5440
    %v5491 = vsub.f32 %v5290, %v5440
    %v5492 = vsub.f32 %v5291, %v5440
    %v5493 = vsub.f32 %v5292, %v5440
    %v5494 = vsub.f32 %v5293, %v5440
    %v5495 = vsub.f32 %v5294, %v5440
    %v5496 = vsub.f32 %v5295, %v5440
    %v5497 = vsub.f32 %v5296, %v5440
    %v5498 = vsub.f32 %v5297, %v5440
    %v5499 = vsub.f32 %v5298, %v5440
    %v5500 = vsub.f32 %v5299, %v5440
    %v5501 = vsub.f32 %v5300, %v5440
    %v5502 = vsub.f32 %v5301, %v5440
    %v5503 = vsub.f32 %v5302, %v5440
    %v5504 = vsub.f32 %v5303, %v5440
    %v5505 = vmul.f32 %v5441, %v5441
    %v5506 = vmul.f32 %v5442, %v5442
    %v5507 = vmul.f32 %v5443, %v5443
    %v5508 = vmul.f32 %v5444, %v5444
    %v5509 = vmul.f32 %v5445, %v5445
    %v5510 = vmul.f32 %v5446, %v5446
    %v5511 = vmul.f32 %v5447, %v5447
    %v5512 = vmul.f32 %v5448, %v5448
    %v5513 = vmul.f32 %v5449, %v5449
    %v5514 = vmul.f32 %v5450, %v5450
    %v5515 = vmul.f32 %v5451, %v5451
    %v5516 = vmul.f32 %v5452, %v5452
    %v5517 = vmul.f32 %v5453, %v5453
    %v5518 = vmul.f32 %v5454, %v5454
    %v5519 = vmul.f32 %v5455, %v5455
    %v5520 = vmul.f32 %v5456, %v5456
    %v5521 = vmul.f32 %v5457, %v5457
    %v5522 = vmul.f32 %v5458, %v5458
    %v5523 = vmul.f32 %v5459, %v5459
    %v5524 = vmul.f32 %v5460, %v5460
    %v5525 = vmul.f32 %v5461, %v5461
    %v5526 = vmul.f32 %v5462, %v5462
    %v5527 = vmul.f32 %v5463, %v5463
    %v5528 = vmul.f32 %v5464, %v5464
    %v5529 = vmul.f32 %v5465, %v5465
    %v5530 = vmul.f32 %v5466, %v5466
    %v5531 = vmul.f32 %v5467, %v5467
    %v5532 = vmul.f32 %v5468, %v5468
    %v5533 = vmul.f32 %v5469, %v5469
    %v5534 = vmul.f32 %v5470, %v5470
    %v5535 = vmul.f32 %v5471, %v5471
    %v5536 = vmul.f32 %v5472, %v5472
    %v5537 = vmul.f32 %v5473, %v5473
    %v5538 = vmul.f32 %v5474, %v5474
    %v5539 = vmul.f32 %v5475, %v5475
    %v5540 = vmul.f32 %v5476, %v5476
    %v5541 = vmul.f32 %v5477, %v5477
    %v5542 = vmul.f32 %v5478, %v5478
    %v5543 = vmul.f32 %v5479, %v5479
    %v5544 = vmul.f32 %v5480, %v5480
    %v5545 = vmul.f32 %v5481, %v5481
    %v5546 = vmul.f32 %v5482, %v5482
    %v5547 = vmul.f32 %v5483, %v5483
    %v5548 = vmul.f32 %v5484, %v5484
    %v5549 = vmul.f32 %v5485, %v5485
    %v5550 = vmul.f32 %v5486, %v5486
    %v5551 = vmul.f32 %v5487, %v5487
    %v5552 = vmul.f32 %v5488, %v5488
    %v5553 = vmul.f32 %v5489, %v5489
    %v5554 = vmul.f32 %v5490, %v5490
    %v5555 = vmul.f32 %v5491, %v5491
    %v5556 = vmul.f32 %v5492, %v5492
    %v5557 = vmul.f32 %v5493, %v5493
    %v5558 = vmul.f32 %v5494, %v5494
    %v5559 = vmul.f32 %v5495, %v5495
    %v5560 = vmul.f32 %v5496, %v5496
    %v5561 = vmul.f32 %v5497, %v5497
    %v5562 = vmul.f32 %v5498, %v5498
    %v5563 = vmul.f32 %v5499, %v5499
    %v5564 = vmul.f32 %v5500, %v5500
    %v5565 = vmul.f32 %v5501, %v5501
    %v5566 = vmul.f32 %v5502, %v5502
    %v5567 = vmul.f32 %v5503, %v5503
    %v5568 = vmul.f32 %v5504, %v5504
    %v5569 = vsel %vm5306, %v5505, 0.0
    %v5570 = vsel %vm5306, %v5506, 0.0
    %v5571 = vadd.f32 %v5569, %v5570
    %v5572 = vsel %vm5306, %v5507, 0.0
    %v5573 = vadd.f32 %v5571, %v5572
    %v5574 = vsel %vm5306, %v5508, 0.0
    %v5575 = vadd.f32 %v5573, %v5574
    %v5576 = vsel %vm5306, %v5509, 0.0
    %v5577 = vadd.f32 %v5575, %v5576
    %v5578 = vsel %vm5306, %v5510, 0.0
    %v5579 = vadd.f32 %v5577, %v5578
    %v5580 = vsel %vm5306, %v5511, 0.0
    %v5581 = vadd.f32 %v5579, %v5580
    %v5582 = vsel %vm5306, %v5512, 0.0
    %v5583 = vadd.f32 %v5581, %v5582
    %v5584 = vsel %vm5306, %v5513, 0.0
    %v5585 = vadd.f32 %v5583, %v5584
    %v5586 = vsel %vm5306, %v5514, 0.0
    %v5587 = vadd.f32 %v5585, %v5586
    %v5588 = vsel %vm5306, %v5515, 0.0
    %v5589 = vadd.f32 %v5587, %v5588
    %v5590 = vsel %vm5306, %v5516, 0.0
    %v5591 = vadd.f32 %v5589, %v5590
    %v5592 = vsel %vm5306, %v5517, 0.0
    %v5593 = vadd.f32 %v5591, %v5592
    %v5594 = vsel %vm5306, %v5518, 0.0
    %v5595 = vadd.f32 %v5593, %v5594
    %v5596 = vsel %vm5306, %v5519, 0.0
    %v5597 = vadd.f32 %v5595, %v5596
    %v5598 = vsel %vm5306, %v5520, 0.0
    %v5599 = vadd.f32 %v5597, %v5598
    %v5600 = vsel %vm5306, %v5521, 0.0
    %v5601 = vadd.f32 %v5599, %v5600
    %v5602 = vsel %vm5306, %v5522, 0.0
    %v5603 = vadd.f32 %v5601, %v5602
    %v5604 = vsel %vm5306, %v5523, 0.0
    %v5605 = vadd.f32 %v5603, %v5604
    %v5606 = vsel %vm5306, %v5524, 0.0
    %v5607 = vadd.f32 %v5605, %v5606
    %v5608 = vsel %vm5306, %v5525, 0.0
    %v5609 = vadd.f32 %v5607, %v5608
    %v5610 = vsel %vm5306, %v5526, 0.0
    %v5611 = vadd.f32 %v5609, %v5610
    %v5612 = vsel %vm5306, %v5527, 0.0
    %v5613 = vadd.f32 %v5611, %v5612
    %v5614 = vsel %vm5306, %v5528, 0.0
    %v5615 = vadd.f32 %v5613, %v5614
    %v5616 = vsel %vm5306, %v5529, 0.0
    %v5617 = vadd.f32 %v5615, %v5616
    %v5618 = vsel %vm5306, %v5530, 0.0
    %v5619 = vadd.f32 %v5617, %v5618
    %v5620 = vsel %vm5306, %v5531, 0.0
    %v5621 = vadd.f32 %v5619, %v5620
    %v5622 = vsel %vm5306, %v5532, 0.0
    %v5623 = vadd.f32 %v5621, %v5622
    %v5624 = vsel %vm5306, %v5533, 0.0
    %v5625 = vadd.f32 %v5623, %v5624
    %v5626 = vsel %vm5306, %v5534, 0.0
    %v5627 = vadd.f32 %v5625, %v5626
    %v5628 = vsel %vm5306, %v5535, 0.0
    %v5629 = vadd.f32 %v5627, %v5628
    %v5630 = vsel %vm5306, %v5536, 0.0
    %v5631 = vadd.f32 %v5629, %v5630
    %v5632 = vsel %vm5306, %v5537, 0.0
    %v5633 = vadd.f32 %v5631, %v5632
    %v5634 = vsel %vm5306, %v5538, 0.0
    %v5635 = vadd.f32 %v5633, %v5634
    %v5636 = vsel %vm5306, %v5539, 0.0
    %v5637 = vadd.f32 %v5635, %v5636
    %v5638 = vsel %vm5306, %v5540, 0.0
    %v5639 = vadd.f32 %v5637, %v5638
    %v5640 = vsel %vm5306, %v5541, 0.0
    %v5641 = vadd.f32 %v5639, %v5640
    %v5642 = vsel %vm5306, %v5542, 0.0
    %v5643 = vadd.f32 %v5641, %v5642
    %v5644 = vsel %vm5306, %v5543, 0.0
    %v5645 = vadd.f32 %v5643, %v5644
    %v5646 = vsel %vm5306, %v5544, 0.0
    %v5647 = vadd.f32 %v5645, %v5646
    %v5648 = vsel %vm5306, %v5545, 0.0
    %v5649 = vadd.f32 %v5647, %v5648
    %v5650 = vsel %vm5306, %v5546, 0.0
    %v5651 = vadd.f32 %v5649, %v5650
    %v5652 = vsel %vm5306, %v5547, 0.0
    %v5653 = vadd.f32 %v5651, %v5652
    %v5654 = vsel %vm5306, %v5548, 0.0
    %v5655 = vadd.f32 %v5653, %v5654
    %v5656 = vsel %vm5306, %v5549, 0.0
    %v5657 = vadd.f32 %v5655, %v5656
    %v5658 = vsel %vm5306, %v5550, 0.0
    %v5659 = vadd.f32 %v5657, %v5658
    %v5660 = vsel %vm5306, %v5551, 0.0
    %v5661 = vadd.f32 %v5659, %v5660
    %v5662 = vsel %vm5306, %v5552, 0.0
    %v5663 = vadd.f32 %v5661, %v5662
    %v5664 = vsel %vm5306, %v5553, 0.0
    %v5665 = vadd.f32 %v5663, %v5664
    %v5666 = vsel %vm5306, %v5554, 0.0
    %v5667 = vadd.f32 %v5665, %v5666
    %v5668 = vsel %vm5306, %v5555, 0.0
    %v5669 = vadd.f32 %v5667, %v5668
    %v5670 = vsel %vm5306, %v5556, 0.0
    %v5671 = vadd.f32 %v5669, %v5670
    %v5672 = vsel %vm5306, %v5557, 0.0
    %v5673 = vadd.f32 %v5671, %v5672
    %v5674 = vsel %vm5306, %v5558, 0.0
    %v5675 = vadd.f32 %v5673, %v5674
    %v5676 = vsel %vm5306, %v5559, 0.0
    %v5677 = vadd.f32 %v5675, %v5676
    %v5678 = vsel %vm5306, %v5560, 0.0
    %v5679 = vadd.f32 %v5677, %v5678
    %v5680 = vsel %vm5306, %v5561, 0.0
    %v5681 = vadd.f32 %v5679, %v5680
    %v5682 = vsel %vm5306, %v5562, 0.0
    %v5683 = vadd.f32 %v5681, %v5682
    %v5684 = vsel %vm5306, %v5563, 0.0
    %v5685 = vadd.f32 %v5683, %v5684
    %v5686 = vsel %vm5306, %v5564, 0.0
    %v5687 = vadd.f32 %v5685, %v5686
    %v5688 = vsel %vm5306, %v5565, 0.0
    %v5689 = vadd.f32 %v5687, %v5688
    %v5690 = vsel %vm5306, %v5566, 0.0
    %v5691 = vadd.f32 %v5689, %v5690
    %v5692 = vsel %vm5306, %v5567, 0.0
    %v5693 = vadd.f32 %v5691, %v5692
    %v5694 = vsel %vm5306, %v5568, 0.0
    %v5695 = vadd.f32 %v5693, %v5694
    %v5696 = vrot.slane %v5695, 4
    %v5697 = vadd.f32 %v5695, %v5696
    %v5698 = vrot.slane %v5697, 2
    %v5699 = vadd.f32 %v5697, %v5698
    %v5700 = vrot.slane %v5699, 1
    %v5701 = vadd.f32 %v5699, %v5700
    %v5702 = vmul.f32 %v5701, 0.001953125
    %v5703 = vadd.f32 %v5702, 1e-05
    %v5704 = vrsqrt.pop %v5703
    %v5705 = vmul.f32 %v5304, %v5704
    %v5706 = vmul.f32 %v5440, %v5705
    %v5707 = vsub.f32 %v5305, %v5706
    %v5709 = vlaneseq
    %v5710 = vshrl.u32 %v5709, 7
    %v5711 = vsub.s32 0, %v5710
    %v5712 = vrot.slane %v5705, %v5711
    %v5714 = vmul.f32 %v5240, %v5712
    %v5715 = vmul.f32 %v5241, %v5712
    %v5716 = vmul.f32 %v5242, %v5712
    %v5717 = vmul.f32 %v5243, %v5712
    %v5718 = vmul.f32 %v5244, %v5712
    %v5719 = vmul.f32 %v5245, %v5712
    %v5720 = vmul.f32 %v5246, %v5712
    %v5721 = vmul.f32 %v5247, %v5712
    %v5722 = vmul.f32 %v5248, %v5712
    %v5723 = vmul.f32 %v5249, %v5712
    %v5724 = vmul.f32 %v5250, %v5712
    %v5725 = vmul.f32 %v5251, %v5712
    %v5726 = vmul.f32 %v5252, %v5712
    %v5727 = vmul.f32 %v5253, %v5712
    %v5728 = vmul.f32 %v5254, %v5712
    %v5729 = vmul.f32 %v5255, %v5712
    %v5730 = vmul.f32 %v5256, %v5712
    %v5731 = vmul.f32 %v5257, %v5712
    %v5732 = vmul.f32 %v5258, %v5712
    %v5733 = vmul.f32 %v5259, %v5712
    %v5734 = vmul.f32 %v5260, %v5712
    %v5735 = vmul.f32 %v5261, %v5712
    %v5736 = vmul.f32 %v5262, %v5712
    %v5737 = vmul.f32 %v5263, %v5712
    %v5738 = vmul.f32 %v5264, %v5712
    %v5739 = vmul.f32 %v5265, %v5712
    %v5740 = vmul.f32 %v5266, %v5712
    %v5741 = vmul.f32 %v5267, %v5712
    %v5742 = vmul.f32 %v5268, %v5712
    %v5743 = vmul.f32 %v5269, %v5712
    %v5744 = vmul.f32 %v5270, %v5712
    %v5745 = vmul.f32 %v5271, %v5712
    %v5746 = vmul.f32 %v5272, %v5712
    %v5747 = vmul.f32 %v5273, %v5712
    %v5748 = vmul.f32 %v5274, %v5712
    %v5749 = vmul.f32 %v5275, %v5712
    %v5750 = vmul.f32 %v5276, %v5712
    %v5751 = vmul.f32 %v5277, %v5712
    %v5752 = vmul.f32 %v5278, %v5712
    %v5753 = vmul.f32 %v5279, %v5712
    %v5754 = vmul.f32 %v5280, %v5712
    %v5755 = vmul.f32 %v5281, %v5712
    %v5756 = vmul.f32 %v5282, %v5712
    %v5757 = vmul.f32 %v5283, %v5712
    %v5758 = vmul.f32 %v5284, %v5712
    %v5759 = vmul.f32 %v5285, %v5712
    %v5760 = vmul.f32 %v5286, %v5712
    %v5761 = vmul.f32 %v5287, %v5712
    %v5762 = vmul.f32 %v5288, %v5712
    %v5763 = vmul.f32 %v5289, %v5712
    %v5764 = vmul.f32 %v5290, %v5712
    %v5765 = vmul.f32 %v5291, %v5712
    %v5766 = vmul.f32 %v5292, %v5712
    %v5767 = vmul.f32 %v5293, %v5712
    %v5768 = vmul.f32 %v5294, %v5712
    %v5769 = vmul.f32 %v5295, %v5712
    %v5770 = vmul.f32 %v5296, %v5712
    %v5771 = vmul.f32 %v5297, %v5712
    %v5772 = vmul.f32 %v5298, %v5712
    %v5773 = vmul.f32 %v5299, %v5712
    %v5774 = vmul.f32 %v5300, %v5712
    %v5775 = vmul.f32 %v5301, %v5712
    %v5776 = vmul.f32 %v5302, %v5712
    %v5777 = vmul.f32 %v5303, %v5712
    %v5779 = vlaneseq
    %v5780 = vshrl.u32 %v5779, 7
    %v5781 = vsub.s32 0, %v5780
    %v5782 = vrot.slane %v5707, %v5781
    %v5784 = vadd.f32 %v5714, %v5782
    %v5785 = vadd.f32 %v5715, %v5782
    %v5786 = vadd.f32 %v5716, %v5782
    %v5787 = vadd.f32 %v5717, %v5782
    %v5788 = vadd.f32 %v5718, %v5782
    %v5789 = vadd.f32 %v5719, %v5782
    %v5790 = vadd.f32 %v5720, %v5782
    %v5791 = vadd.f32 %v5721, %v5782
    %v5792 = vadd.f32 %v5722, %v5782
    %v5793 = vadd.f32 %v5723, %v5782
    %v5794 = vadd.f32 %v5724, %v5782
    %v5795 = vadd.f32 %v5725, %v5782
    %v5796 = vadd.f32 %v5726, %v5782
    %v5797 = vadd.f32 %v5727, %v5782
    %v5798 = vadd.f32 %v5728, %v5782
    %v5799 = vadd.f32 %v5729, %v5782
    %v5800 = vadd.f32 %v5730, %v5782
    %v5801 = vadd.f32 %v5731, %v5782
    %v5802 = vadd.f32 %v5732, %v5782
    %v5803 = vadd.f32 %v5733, %v5782
    %v5804 = vadd.f32 %v5734, %v5782
    %v5805 = vadd.f32 %v5735, %v5782
    %v5806 = vadd.f32 %v5736, %v5782
    %v5807 = vadd.f32 %v5737, %v5782
    %v5808 = vadd.f32 %v5738, %v5782
    %v5809 = vadd.f32 %v5739, %v5782
    %v5810 = vadd.f32 %v5740, %v5782
    %v5811 = vadd.f32 %v5741, %v5782
    %v5812 = vadd.f32 %v5742, %v5782
    %v5813 = vadd.f32 %v5743, %v5782
    %v5814 = vadd.f32 %v5744, %v5782
    %v5815 = vadd.f32 %v5745, %v5782
    %v5816 = vadd.f32 %v5746, %v5782
    %v5817 = vadd.f32 %v5747, %v5782
    %v5818 = vadd.f32 %v5748, %v5782
    %v5819 = vadd.f32 %v5749, %v5782
    %v5820 = vadd.f32 %v5750, %v5782
    %v5821 = vadd.f32 %v5751, %v5782
    %v5822 = vadd.f32 %v5752, %v5782
    %v5823 = vadd.f32 %v5753, %v5782
    %v5824 = vadd.f32 %v5754, %v5782
    %v5825 = vadd.f32 %v5755, %v5782
    %v5826 = vadd.f32 %v5756, %v5782
    %v5827 = vadd.f32 %v5757, %v5782
    %v5828 = vadd.f32 %v5758, %v5782
    %v5829 = vadd.f32 %v5759, %v5782
    %v5830 = vadd.f32 %v5760, %v5782
    %v5831 = vadd.f32 %v5761, %v5782
    %v5832 = vadd.f32 %v5762, %v5782
    %v5833 = vadd.f32 %v5763, %v5782
    %v5834 = vadd.f32 %v5764, %v5782
    %v5835 = vadd.f32 %v5765, %v5782
    %v5836 = vadd.f32 %v5766, %v5782
    %v5837 = vadd.f32 %v5767, %v5782
    %v5838 = vadd.f32 %v5768, %v5782
    %v5839 = vadd.f32 %v5769, %v5782
    %v5840 = vadd.f32 %v5770, %v5782
    %v5841 = vadd.f32 %v5771, %v5782
    %v5842 = vadd.f32 %v5772, %v5782
    %v5843 = vadd.f32 %v5773, %v5782
    %v5844 = vadd.f32 %v5774, %v5782
    %v5845 = vadd.f32 %v5775, %v5782
    %v5846 = vadd.f32 %v5776, %v5782
    %v5847 = vadd.f32 %v5777, %v5782
    %v5848 = vmax.f32 %v5784, 0.0
    %v5849 = vmax.f32 %v5785, 0.0
    %v5850 = vmax.f32 %v5786, 0.0
    %v5851 = vmax.f32 %v5787, 0.0
    %v5852 = vmax.f32 %v5788, 0.0
    %v5853 = vmax.f32 %v5789, 0.0
    %v5854 = vmax.f32 %v5790, 0.0
    %v5855 = vmax.f32 %v5791, 0.0
    %v5856 = vmax.f32 %v5792, 0.0
    %v5857 = vmax.f32 %v5793, 0.0
    %v5858 = vmax.f32 %v5794, 0.0
    %v5859 = vmax.f32 %v5795, 0.0
    %v5860 = vmax.f32 %v5796, 0.0
    %v5861 = vmax.f32 %v5797, 0.0
    %v5862 = vmax.f32 %v5798, 0.0
    %v5863 = vmax.f32 %v5799, 0.0
    %v5864 = vmax.f32 %v5800, 0.0
    %v5865 = vmax.f32 %v5801, 0.0
    %v5866 = vmax.f32 %v5802, 0.0
    %v5867 = vmax.f32 %v5803, 0.0
    %v5868 = vmax.f32 %v5804, 0.0
    %v5869 = vmax.f32 %v5805, 0.0
    %v5870 = vmax.f32 %v5806, 0.0
    %v5871 = vmax.f32 %v5807, 0.0
    %v5872 = vmax.f32 %v5808, 0.0
    %v5873 = vmax.f32 %v5809, 0.0
    %v5874 = vmax.f32 %v5810, 0.0
    %v5875 = vmax.f32 %v5811, 0.0
    %v5876 = vmax.f32 %v5812, 0.0
    %v5877 = vmax.f32 %v5813, 0.0
    %v5878 = vmax.f32 %v5814, 0.0
    %v5879 = vmax.f32 %v5815, 0.0
    %v5880 = vmax.f32 %v5816, 0.0
    %v5881 = vmax.f32 %v5817, 0.0
    %v5882 = vmax.f32 %v5818, 0.0
    %v5883 = vmax.f32 %v5819, 0.0
    %v5884 = vmax.f32 %v5820, 0.0
    %v5885 = vmax.f32 %v5821, 0.0
    %v5886 = vmax.f32 %v5822, 0.0
    %v5887 = vmax.f32 %v5823, 0.0
    %v5888 = vmax.f32 %v5824, 0.0
    %v5889 = vmax.f32 %v5825, 0.0
    %v5890 = vmax.f32 %v5826, 0.0
    %v5891 = vmax.f32 %v5827, 0.0
    %v5892 = vmax.f32 %v5828, 0.0
    %v5893 = vmax.f32 %v5829, 0.0
    %v5894 = vmax.f32 %v5830, 0.0
    %v5895 = vmax.f32 %v5831, 0.0
    %v5896 = vmax.f32 %v5832, 0.0
    %v5897 = vmax.f32 %v5833, 0.0
    %v5898 = vmax.f32 %v5834, 0.0
    %v5899 = vmax.f32 %v5835, 0.0
    %v5900 = vmax.f32 %v5836, 0.0
    %v5901 = vmax.f32 %v5837, 0.0
    %v5902 = vmax.f32 %v5838, 0.0
    %v5903 = vmax.f32 %v5839, 0.0
    %v5904 = vmax.f32 %v5840, 0.0
    %v5905 = vmax.f32 %v5841, 0.0
    %v5906 = vmax.f32 %v5842, 0.0
    %v5907 = vmax.f32 %v5843, 0.0
    %v5908 = vmax.f32 %v5844, 0.0
    %v5909 = vmax.f32 %v5845, 0.0
    %v5910 = vmax.f32 %v5846, 0.0
    %v5911 = vmax.f32 %v5847, 0.0
    %v5912 = vmax.f32 %v5848, %v5850
    %v5913 = vmax.f32 %v5849, %v5851
    %v5914 = vmax.f32 %v5852, %v5854
    %v5915 = vmax.f32 %v5853, %v5855
    %v5916 = vmax.f32 %v5856, %v5858
    %v5917 = vmax.f32 %v5857, %v5859
    %v5918 = vmax.f32 %v5860, %v5862
    %v5919 = vmax.f32 %v5861, %v5863
    %v5920 = vmax.f32 %v5864, %v5866
    %v5921 = vmax.f32 %v5865, %v5867
    %v5922 = vmax.f32 %v5868, %v5870
    %v5923 = vmax.f32 %v5869, %v5871
    %v5924 = vmax.f32 %v5872, %v5874
    %v5925 = vmax.f32 %v5873, %v5875
    %v5926 = vmax.f32 %v5876, %v5878
    %v5927 = vmax.f32 %v5877, %v5879
    %v5928 = vmax.f32 %v5880, %v5882
    %v5929 = vmax.f32 %v5881, %v5883
    %v5930 = vmax.f32 %v5884, %v5886
    %v5931 = vmax.f32 %v5885, %v5887
    %v5932 = vmax.f32 %v5888, %v5890
    %v5933 = vmax.f32 %v5889, %v5891
    %v5934 = vmax.f32 %v5892, %v5894
    %v5935 = vmax.f32 %v5893, %v5895
    %v5936 = vmax.f32 %v5896, %v5898
    %v5937 = vmax.f32 %v5897, %v5899
    %v5938 = vmax.f32 %v5900, %v5902
    %v5939 = vmax.f32 %v5901, %v5903
    %v5940 = vmax.f32 %v5904, %v5906
    %v5941 = vmax.f32 %v5905, %v5907
    %v5942 = vmax.f32 %v5908, %v5910
    %v5943 = vmax.f32 %v5909, %v5911
    %v5960 = vrot.slane %v5912, 1
    %v5961 = vrot.slane %v5914, 1
    %v5962 = vrot.slane %v5916, 1
    %v5963 = vrot.slane %v5918, 1
    %v5964 = vrot.slane %v5920, 1
    %v5965 = vrot.slane %v5922, 1
    %v5966 = vrot.slane %v5924, 1
    %v5967 = vrot.slane %v5926, 1
    %v5968 = vrot.slane %v5928, 1
    %v5969 = vrot.slane %v5930, 1
    %v5970 = vrot.slane %v5932, 1
    %v5971 = vrot.slane %v5934, 1
    %v5972 = vrot.slane %v5936, 1
    %v5973 = vrot.slane %v5938, 1
    %v5974 = vrot.slane %v5940, 1
    %v5975 = vrot.slane %v5942, 1
    %v5992 = vmax.f32 %v5912, %v5960
    %v5993 = vmax.f32 %v5914, %v5961
    %v5994 = vmax.f32 %v5916, %v5962
    %v5995 = vmax.f32 %v5918, %v5963
    %v5996 = vmax.f32 %v5920, %v5964
    %v5997 = vmax.f32 %v5922, %v5965
    %v5998 = vmax.f32 %v5924, %v5966
    %v5999 = vmax.f32 %v5926, %v5967
    %v6000 = vmax.f32 %v5928, %v5968
    %v6001 = vmax.f32 %v5930, %v5969
    %v6002 = vmax.f32 %v5932, %v5970
    %v6003 = vmax.f32 %v5934, %v5971
    %v6004 = vmax.f32 %v5936, %v5972
    %v6005 = vmax.f32 %v5938, %v5973
    %v6006 = vmax.f32 %v5940, %v5974
    %v6007 = vmax.f32 %v5942, %v5975
    %v6024 = vrot.slane %v5913, 1
    %v6025 = vrot.slane %v5915, 1
    %v6026 = vrot.slane %v5917, 1
    %v6027 = vrot.slane %v5919, 1
    %v6028 = vrot.slane %v5921, 1
    %v6029 = vrot.slane %v5923, 1
    %v6030 = vrot.slane %v5925, 1
    %v6031 = vrot.slane %v5927, 1
    %v6032 = vrot.slane %v5929, 1
    %v6033 = vrot.slane %v5931, 1
    %v6034 = vrot.slane %v5933, 1
    %v6035 = vrot.slane %v5935, 1
    %v6036 = vrot.slane %v5937, 1
    %v6037 = vrot.slane %v5939, 1
    %v6038 = vrot.slane %v5941, 1
    %v6039 = vrot.slane %v5943, 1
    %v6056 = vmax.f32 %v5913, %v6024
    %v6057 = vmax.f32 %v5915, %v6025
    %v6058 = vmax.f32 %v5917, %v6026
    %v6059 = vmax.f32 %v5919, %v6027
    %v6060 = vmax.f32 %v5921, %v6028
    %v6061 = vmax.f32 %v5923, %v6029
    %v6062 = vmax.f32 %v5925, %v6030
    %v6063 = vmax.f32 %v5927, %v6031
    %v6064 = vmax.f32 %v5929, %v6032
    %v6065 = vmax.f32 %v5931, %v6033
    %v6066 = vmax.f32 %v5933, %v6034
    %v6067 = vmax.f32 %v5935, %v6035
    %v6068 = vmax.f32 %v5937, %v6036
    %v6069 = vmax.f32 %v5939, %v6037
    %v6070 = vmax.f32 %v5941, %v6038
    %v6071 = vmax.f32 %v5943, %v6039
    %v6088 = vrot.slane %v5992, 7
    %v6089 = vrot.slane %v5993, 7
    %v6090 = vrot.slane %v5994, 7
    %v6091 = vrot.slane %v5995, 7
    %v6092 = vrot.slane %v5996, 7
    %v6093 = vrot.slane %v5997, 7
    %v6094 = vrot.slane %v5998, 7
    %v6095 = vrot.slane %v5999, 7
    %v6096 = vrot.slane %v6000, 7
    %v6097 = vrot.slane %v6001, 7
    %v6098 = vrot.slane %v6002, 7
    %v6099 = vrot.slane %v6003, 7
    %v6100 = vrot.slane %v6004, 7
    %v6101 = vrot.slane %v6005, 7
    %v6102 = vrot.slane %v6006, 7
    %v6103 = vrot.slane %v6007, 7
    %v6120 = vrot.slane %v5992, 1
    %v6121 = vrot.slane %v5993, 1
    %v6122 = vrot.slane %v5994, 1
    %v6123 = vrot.slane %v5995, 1
    %v6124 = vrot.slane %v5996, 1
    %v6125 = vrot.slane %v5997, 1
    %v6126 = vrot.slane %v5998, 1
    %v6127 = vrot.slane %v5999, 1
    %v6128 = vrot.slane %v6000, 1
    %v6129 = vrot.slane %v6001, 1
    %v6130 = vrot.slane %v6002, 1
    %v6131 = vrot.slane %v6003, 1
    %v6132 = vrot.slane %v6004, 1
    %v6133 = vrot.slane %v6005, 1
    %v6134 = vrot.slane %v6006, 1
    %v6135 = vrot.slane %v6007, 1
    %v6152 = vrot.slane %v5992, 2
    %v6153 = vrot.slane %v5993, 2
    %v6154 = vrot.slane %v5994, 2
    %v6155 = vrot.slane %v5995, 2
    %v6156 = vrot.slane %v5996, 2
    %v6157 = vrot.slane %v5997, 2
    %v6158 = vrot.slane %v5998, 2
    %v6159 = vrot.slane %v5999, 2
    %v6160 = vrot.slane %v6000, 2
    %v6161 = vrot.slane %v6001, 2
    %v6162 = vrot.slane %v6002, 2
    %v6163 = vrot.slane %v6003, 2
    %v6164 = vrot.slane %v6004, 2
    %v6165 = vrot.slane %v6005, 2
    %v6166 = vrot.slane %v6006, 2
    %v6167 = vrot.slane %v6007, 2
    %v6200 = vrot.slane %v6056, 3
    %v6201 = vrot.slane %v6057, 3
    %v6202 = vrot.slane %v6058, 3
    %v6203 = vrot.slane %v6059, 3
    %v6204 = vrot.slane %v6060, 3
    %v6205 = vrot.slane %v6061, 3
    %v6206 = vrot.slane %v6062, 3
    %v6207 = vrot.slane %v6063, 3
    %v6208 = vrot.slane %v6064, 3
    %v6209 = vrot.slane %v6065, 3
    %v6210 = vrot.slane %v6066, 3
    %v6211 = vrot.slane %v6067, 3
    %v6212 = vrot.slane %v6068, 3
    %v6213 = vrot.slane %v6069, 3
    %v6214 = vrot.slane %v6070, 3
    %v6215 = vrot.slane %v6071, 3
    %v6232 = vrot.slane %v6056, 4
    %v6233 = vrot.slane %v6057, 4
    %v6234 = vrot.slane %v6058, 4
    %v6235 = vrot.slane %v6059, 4
    %v6236 = vrot.slane %v6060, 4
    %v6237 = vrot.slane %v6061, 4
    %v6238 = vrot.slane %v6062, 4
    %v6239 = vrot.slane %v6063, 4
    %v6240 = vrot.slane %v6064, 4
    %v6241 = vrot.slane %v6065, 4
    %v6242 = vrot.slane %v6066, 4
    %v6243 = vrot.slane %v6067, 4
    %v6244 = vrot.slane %v6068, 4
    %v6245 = vrot.slane %v6069, 4
    %v6246 = vrot.slane %v6070, 4
    %v6247 = vrot.slane %v6071, 4
    %v6264 = vrot.slane %v6056, 5
    %v6265 = vrot.slane %v6057, 5
    %v6266 = vrot.slane %v6058, 5
    %v6267 = vrot.slane %v6059, 5
    %v6268 = vrot.slane %v6060, 5
    %v6269 = vrot.slane %v6061, 5
    %v6270 = vrot.slane %v6062, 5
    %v6271 = vrot.slane %v6063, 5
    %v6272 = vrot.slane %v6064, 5
    %v6273 = vrot.slane %v6065, 5
    %v6274 = vrot.slane %v6066, 5
    %v6275 = vrot.slane %v6067, 5
    %v6276 = vrot.slane %v6068, 5
    %v6277 = vrot.slane %v6069, 5
    %v6278 = vrot.slane %v6070, 5
    %v6279 = vrot.slane %v6071, 5
    %v6296 = vrot.slane %v6056, 6
    %v6297 = vrot.slane %v6057, 6
    %v6298 = vrot.slane %v6058, 6
    %v6299 = vrot.slane %v6059, 6
    %v6300 = vrot.slane %v6060, 6
    %v6301 = vrot.slane %v6061, 6
    %v6302 = vrot.slane %v6062, 6
    %v6303 = vrot.slane %v6063, 6
    %v6304 = vrot.slane %v6064, 6
    %v6305 = vrot.slane %v6065, 6
    %v6306 = vrot.slane %v6066, 6
    %v6307 = vrot.slane %v6067, 6
    %v6308 = vrot.slane %v6068, 6
    %v6309 = vrot.slane %v6069, 6
    %v6310 = vrot.slane %v6070, 6
    %v6311 = vrot.slane %v6071, 6
    %vm6328 = vcmask 1040384
    %v6329 = vsel %vm6328, 0.0, %v6088
    %v6330 = vsel %vm6328, 0.0, %v6089
    %v6331 = vsel %vm6328, 0.0, %v6090
    %v6332 = vsel %vm6328, 0.0, %v6091
    %v6333 = vsel %vm6328, 0.0, %v6092
    %v6334 = vsel %vm6328, 0.0, %v6093
    %v6335 = vsel %vm6328, 0.0, %v6094
    %v6336 = vsel %vm6328, 0.0, %v6095
    %v6337 = vsel %vm6328, 0.0, %v6096
    %v6338 = vsel %vm6328, 0.0, %v6097
    %v6339 = vsel %vm6328, 0.0, %v6098
    %v6340 = vsel %vm6328, 0.0, %v6099
    %v6341 = vsel %vm6328, 0.0, %v6100
    %v6342 = vsel %vm6328, 0.0, %v6101
    %v6343 = vsel %vm6328, 0.0, %v6102
    %v6344 = vsel %vm6328, 0.0, %v6103
    %v6345 = vsel %vm375, %v6329, %v5992
    %v6346 = vsel %vm375, %v6330, %v5993
    %v6347 = vsel %vm375, %v6331, %v5994
    %v6348 = vsel %vm375, %v6332, %v5995
    %v6349 = vsel %vm375, %v6333, %v5996
    %v6350 = vsel %vm375, %v6334, %v5997
    %v6351 = vsel %vm375, %v6335, %v5998
    %v6352 = vsel %vm375, %v6336, %v5999
    %v6353 = vsel %vm375, %v6337, %v6000
    %v6354 = vsel %vm375, %v6338, %v6001
    %v6355 = vsel %vm375, %v6339, %v6002
    %v6356 = vsel %vm375, %v6340, %v6003
    %v6357 = vsel %vm375, %v6341, %v6004
    %v6358 = vsel %vm375, %v6342, %v6005
    %v6359 = vsel %vm375, %v6343, %v6006
    %v6360 = vsel %vm375, %v6344, %v6007
    %vm6361 = vcmask 1042432
    %v6362 = vsel %vm6361, %v6345, %v6120
    %v6363 = vsel %vm6361, %v6346, %v6121
    %v6364 = vsel %vm6361, %v6347, %v6122
    %v6365 = vsel %vm6361, %v6348, %v6123
    %v6366 = vsel %vm6361, %v6349, %v6124
    %v6367 = vsel %vm6361, %v6350, %v6125
    %v6368 = vsel %vm6361, %v6351, %v6126
    %v6369 = vsel %vm6361, %v6352, %v6127
    %v6370 = vsel %vm6361, %v6353, %v6128
    %v6371 = vsel %vm6361, %v6354, %v6129
    %v6372 = vsel %vm6361, %v6355, %v6130
    %v6373 = vsel %vm6361, %v6356, %v6131
    %v6374 = vsel %vm6361, %v6357, %v6132
    %v6375 = vsel %vm6361, %v6358, %v6133
    %v6376 = vsel %vm6361, %v6359, %v6134
    %v6377 = vsel %vm6361, %v6360, %v6135
    %vm6378 = vcmask 1043456
    %v6379 = vsel %vm6378, %v6362, %v6152
    %v6380 = vsel %vm6378, %v6363, %v6153
    %v6381 = vsel %vm6378, %v6364, %v6154
    %v6382 = vsel %vm6378, %v6365, %v6155
    %v6383 = vsel %vm6378, %v6366, %v6156
    %v6384 = vsel %vm6378, %v6367, %v6157
    %v6385 = vsel %vm6378, %v6368, %v6158
    %v6386 = vsel %vm6378, %v6369, %v6159
    %v6387 = vsel %vm6378, %v6370, %v6160
    %v6388 = vsel %vm6378, %v6371, %v6161
    %v6389 = vsel %vm6378, %v6372, %v6162
    %v6390 = vsel %vm6378, %v6373, %v6163
    %v6391 = vsel %vm6378, %v6374, %v6164
    %v6392 = vsel %vm6378, %v6375, %v6165
    %v6393 = vsel %vm6378, %v6376, %v6166
    %v6394 = vsel %vm6378, %v6377, %v6167
    %vm6395 = vcmask 1044480
    %v6396 = vsel %vm6395, %v6379, %v6200
    %v6397 = vsel %vm6395, %v6380, %v6201
    %v6398 = vsel %vm6395, %v6381, %v6202
    %v6399 = vsel %vm6395, %v6382, %v6203
    %v6400 = vsel %vm6395, %v6383, %v6204
    %v6401 = vsel %vm6395, %v6384, %v6205
    %v6402 = vsel %vm6395, %v6385, %v6206
    %v6403 = vsel %vm6395, %v6386, %v6207
    %v6404 = vsel %vm6395, %v6387, %v6208
    %v6405 = vsel %vm6395, %v6388, %v6209
    %v6406 = vsel %vm6395, %v6389, %v6210
    %v6407 = vsel %vm6395, %v6390, %v6211
    %v6408 = vsel %vm6395, %v6391, %v6212
    %v6409 = vsel %vm6395, %v6392, %v6213
    %v6410 = vsel %vm6395, %v6393, %v6214
    %v6411 = vsel %vm6395, %v6394, %v6215
    %vm6412 = vcmask 1045504
    %v6413 = vsel %vm6412, %v6396, %v6232
    %v6414 = vsel %vm6412, %v6397, %v6233
    %v6415 = vsel %vm6412, %v6398, %v6234
    %v6416 = vsel %vm6412, %v6399, %v6235
    %v6417 = vsel %vm6412, %v6400, %v6236
    %v6418 = vsel %vm6412, %v6401, %v6237
    %v6419 = vsel %vm6412, %v6402, %v6238
    %v6420 = vsel %vm6412, %v6403, %v6239
    %v6421 = vsel %vm6412, %v6404, %v6240
    %v6422 = vsel %vm6412, %v6405, %v6241
    %v6423 = vsel %vm6412, %v6406, %v6242
    %v6424 = vsel %vm6412, %v6407, %v6243
    %v6425 = vsel %vm6412, %v6408, %v6244
    %v6426 = vsel %vm6412, %v6409, %v6245
    %v6427 = vsel %vm6412, %v6410, %v6246
    %v6428 = vsel %vm6412, %v6411, %v6247
    %vm6429 = vcmask 1046528
    %v6430 = vsel %vm6429, %v6413, %v6264
    %v6431 = vsel %vm6429, %v6414, %v6265
    %v6432 = vsel %vm6429, %v6415, %v6266
    %v6433 = vsel %vm6429, %v6416, %v6267
    %v6434 = vsel %vm6429, %v6417, %v6268
    %v6435 = vsel %vm6429, %v6418, %v6269
    %v6436 = vsel %vm6429, %v6419, %v6270
    %v6437 = vsel %vm6429, %v6420, %v6271
    %v6438 = vsel %vm6429, %v6421, %v6272
    %v6439 = vsel %vm6429, %v6422, %v6273
    %v6440 = vsel %vm6429, %v6423, %v6274
    %v6441 = vsel %vm6429, %v6424, %v6275
    %v6442 = vsel %vm6429, %v6425, %v6276
    %v6443 = vsel %vm6429, %v6426, %v6277
    %v6444 = vsel %vm6429, %v6427, %v6278
    %v6445 = vsel %vm6429, %v6428, %v6279
    %v6446 = vsel %vm6328, %v6296, 0.0
    %v6447 = vsel %vm6328, %v6297, 0.0
    %v6448 = vsel %vm6328, %v6298, 0.0
    %v6449 = vsel %vm6328, %v6299, 0.0
    %v6450 = vsel %vm6328, %v6300, 0.0
    %v6451 = vsel %vm6328, %v6301, 0.0
    %v6452 = vsel %vm6328, %v6302, 0.0
    %v6453 = vsel %vm6328, %v6303, 0.0
    %v6454 = vsel %vm6328, %v6304, 0.0
    %v6455 = vsel %vm6328, %v6305, 0.0
    %v6456 = vsel %vm6328, %v6306, 0.0
    %v6457 = vsel %vm6328, %v6307, 0.0
    %v6458 = vsel %vm6328, %v6308, 0.0
    %v6459 = vsel %vm6328, %v6309, 0.0
    %v6460 = vsel %vm6328, %v6310, 0.0
    %v6461 = vsel %vm6328, %v6311, 0.0
    %v6462 = vpack.c.bf16 0.0, 0.0
    %v6463 = vpack.c.bf16 %v6446, %v6430
    %v6464 = vpack.c.bf16 %v6447, %v6431
    %v6465 = vpack.c.bf16 %v6448, %v6432
    %v6466 = vpack.c.bf16 %v6449, %v6433
    %v6467 = vpack.c.bf16 %v6450, %v6434
    %v6468 = vpack.c.bf16 %v6451, %v6435
    %v6469 = vpack.c.bf16 %v6452, %v6436
    %v6470 = vpack.c.bf16 %v6453, %v6437
    %v6471 = vpack.c.bf16 %v6454, %v6438
    %v6472 = vpack.c.bf16 %v6455, %v6439
    %v6473 = vpack.c.bf16 %v6456, %v6440
    %v6474 = vpack.c.bf16 %v6457, %v6441
    %v6475 = vpack.c.bf16 %v6458, %v6442
    %v6476 = vpack.c.bf16 %v6459, %v6443
    %v6477 = vpack.c.bf16 %v6460, %v6444
    %v6478 = vpack.c.bf16 %v6461, %v6445
    %v6496 = vunpack.c.l.b16 %v6462
    %v6497 = vunpack.c.h.b16 %v6462
    %v6498 = vunpack.c.l.b16 %v6463
    %v6499 = vunpack.c.h.b16 %v6463
    %v6500 = vunpack.c.l.b16 %v6464
    %v6501 = vunpack.c.h.b16 %v6464
    %v6502 = vunpack.c.l.b16 %v6465
    %v6503 = vunpack.c.h.b16 %v6465
    %v6504 = vunpack.c.l.b16 %v6466
    %v6505 = vunpack.c.h.b16 %v6466
    %v6506 = vunpack.c.l.b16 %v6467
    %v6507 = vunpack.c.h.b16 %v6467
    %v6508 = vunpack.c.l.b16 %v6468
    %v6509 = vunpack.c.h.b16 %v6468
    %v6510 = vunpack.c.l.b16 %v6469
    %v6511 = vunpack.c.h.b16 %v6469
    %v6512 = vunpack.c.l.b16 %v6470
    %v6513 = vunpack.c.h.b16 %v6470
    %v6514 = vunpack.c.l.b16 %v6471
    %v6515 = vunpack.c.h.b16 %v6471
    %v6516 = vunpack.c.l.b16 %v6472
    %v6517 = vunpack.c.h.b16 %v6472
    %v6518 = vunpack.c.l.b16 %v6473
    %v6519 = vunpack.c.h.b16 %v6473
    %v6520 = vunpack.c.l.b16 %v6474
    %v6521 = vunpack.c.h.b16 %v6474
    %v6522 = vunpack.c.l.b16 %v6475
    %v6523 = vunpack.c.h.b16 %v6475
    %v6524 = vunpack.c.l.b16 %v6476
    %v6525 = vunpack.c.h.b16 %v6476
    %v6526 = vunpack.c.l.b16 %v6477
    %v6527 = vunpack.c.h.b16 %v6477
    %v6528 = vunpack.c.l.b16 %v6478
    %v6529 = vunpack.c.h.b16 %v6478
    %v6530 = vpack.c.b16 %v6496, %v6496
    %v6531 = vpack.c.b16 %v6497, %v6497
    %v6532 = vpack.c.b16 %v6498, %v6498
    %v6533 = vpack.c.b16 %v6499, %v6499
    %v6534 = vpack.c.b16 %v6500, %v6500
    %v6535 = vpack.c.b16 %v6501, %v6501
    %v6536 = vpack.c.b16 %v6502, %v6502
    %v6537 = vpack.c.b16 %v6503, %v6503
    %v6538 = vpack.c.b16 %v6504, %v6504
    %v6539 = vpack.c.b16 %v6505, %v6505
    %v6540 = vpack.c.b16 %v6506, %v6506
    %v6541 = vpack.c.b16 %v6507, %v6507
    %v6542 = vpack.c.b16 %v6508, %v6508
    %v6543 = vpack.c.b16 %v6509, %v6509
    %v6544 = vpack.c.b16 %v6510, %v6510
    %v6545 = vpack.c.b16 %v6511, %v6511
    %v6546 = vpack.c.b16 %v6512, %v6512
    %v6547 = vpack.c.b16 %v6513, %v6513
    %v6548 = vpack.c.b16 %v6514, %v6514
    %v6549 = vpack.c.b16 %v6515, %v6515
    %v6550 = vpack.c.b16 %v6516, %v6516
    %v6551 = vpack.c.b16 %v6517, %v6517
    %v6552 = vpack.c.b16 %v6518, %v6518
    %v6553 = vpack.c.b16 %v6519, %v6519
    %v6554 = vpack.c.b16 %v6520, %v6520
    %v6555 = vpack.c.b16 %v6521, %v6521
    %v6556 = vpack.c.b16 %v6522, %v6522
    %v6557 = vpack.c.b16 %v6523, %v6523
    %v6558 = vpack.c.b16 %v6524, %v6524
    %v6559 = vpack.c.b16 %v6525, %v6525
    %v6560 = vpack.c.b16 %v6526, %v6526
    %v6561 = vpack.c.b16 %v6527, %v6527
    %v6562 = vpack.c.b16 %v6528, %v6528
    %v6563 = vpack.c.b16 %v6529, %v6529
    %vm6598 = vcmask 158720
    %6599 = vst.msk [vmem:[#allocation2] sm:$0xf] %vm6598, %v6530
    %vm6600 = vcmask 155648
    %6601 = vst.msk [vmem:[#allocation2 + $0x4] sm:$0x1] %vm6600, %v6531
    %6602 = vst.msk [vmem:[#allocation2 + $0x8] sm:$0xf] %vm6598, %v6532
    %6603 = vst.msk [vmem:[#allocation2 + $0xc] sm:$0x1] %vm6600, %v6533
    %6604 = vst.msk [vmem:[#allocation2 + $0x10] sm:$0xf] %vm6598, %v6534
    %6605 = vst.msk [vmem:[#allocation2 + $0x14] sm:$0x1] %vm6600, %v6535
    %6606 = vst.msk [vmem:[#allocation2 + $0x18] sm:$0xf] %vm6598, %v6536
    %6607 = vst.msk [vmem:[#allocation2 + $0x1c] sm:$0x1] %vm6600, %v6537
    %6608 = vst.msk [vmem:[#allocation2 + $0x20] sm:$0xf] %vm6598, %v6538
    %6609 = vst.msk [vmem:[#allocation2 + $0x24] sm:$0x1] %vm6600, %v6539
    %6610 = vst.msk [vmem:[#allocation2 + $0x28] sm:$0xf] %vm6598, %v6540
    %6611 = vst.msk [vmem:[#allocation2 + $0x2c] sm:$0x1] %vm6600, %v6541
    %6612 = vst.msk [vmem:[#allocation2 + $0x30] sm:$0xf] %vm6598, %v6542
    %6613 = vst.msk [vmem:[#allocation2 + $0x34] sm:$0x1] %vm6600, %v6543
    %6614 = vst.msk [vmem:[#allocation2 + $0x38] sm:$0xf] %vm6598, %v6544
    %6615 = vst.msk [vmem:[#allocation2 + $0x3c] sm:$0x1] %vm6600, %v6545
    %6616 = vst.msk [vmem:[#allocation2 + $0x40] sm:$0xf] %vm6598, %v6546
    %6617 = vst.msk [vmem:[#allocation2 + $0x44] sm:$0x1] %vm6600, %v6547
    %6618 = vst.msk [vmem:[#allocation2 + $0x48] sm:$0xf] %vm6598, %v6530
    %6619 = vst.msk [vmem:[#allocation2 + $0x4c] sm:$0x1] %vm6600, %v6531
    %6620 = vst.msk [vmem:[#allocation2 + $0x50] sm:$0xf] %vm6598, %v6530
    %6621 = vst.msk [vmem:[#allocation2 + $0x54] sm:$0x1] %vm6600, %v6531
    %6622 = vst.msk [vmem:[#allocation2 + $0x58] sm:$0xf] %vm6598, %v6548
    %6623 = vst.msk [vmem:[#allocation2 + $0x5c] sm:$0x1] %vm6600, %v6549
    %6624 = vst.msk [vmem:[#allocation2 + $0x60] sm:$0xf] %vm6598, %v6550
    %6625 = vst.msk [vmem:[#allocation2 + $0x64] sm:$0x1] %vm6600, %v6551
    %6626 = vst.msk [vmem:[#allocation2 + $0x68] sm:$0xf] %vm6598, %v6552
    %6627 = vst.msk [vmem:[#allocation2 + $0x6c] sm:$0x1] %vm6600, %v6553
    %6628 = vst.msk [vmem:[#allocation2 + $0x70] sm:$0xf] %vm6598, %v6554
    %6629 = vst.msk [vmem:[#allocation2 + $0x74] sm:$0x1] %vm6600, %v6555
    %6630 = vst.msk [vmem:[#allocation2 + $0x78] sm:$0xf] %vm6598, %v6556
    %6631 = vst.msk [vmem:[#allocation2 + $0x7c] sm:$0x1] %vm6600, %v6557
    %6632 = vst.msk [vmem:[#allocation2 + $0x80] sm:$0xf] %vm6598, %v6558
    %6633 = vst.msk [vmem:[#allocation2 + $0x84] sm:$0x1] %vm6600, %v6559
    %6634 = vst.msk [vmem:[#allocation2 + $0x88] sm:$0xf] %vm6598, %v6560
    %6635 = vst.msk [vmem:[#allocation2 + $0x8c] sm:$0x1] %vm6600, %v6561
    %6636 = vst.msk [vmem:[#allocation2 + $0x90] sm:$0xf] %vm6598, %v6562
    %6637 = vst.msk [vmem:[#allocation2 + $0x94] sm:$0x1] %vm6600, %v6563
    %6638 = vst.msk [vmem:[#allocation2 + $0x98] sm:$0xf] %vm6598, %v6530
    %6639 = vst.msk [vmem:[#allocation2 + $0x9c] sm:$0x1] %vm6600, %v6531
    %v6640 = vld [vmem:[#allocation2] sm:$0xf]
    %v6641 = vld [vmem:[#allocation2 + $0x8] sm:$0xf]
    %v6642 = vld [vmem:[#allocation2 + $0x10] sm:$0xf]
    %v6643 = vld [vmem:[#allocation2 + $0x18] sm:$0xf]
    %v6644 = vld [vmem:[#allocation2 + $0x20] sm:$0xf]
    %v6645 = vld [vmem:[#allocation2 + $0x28] sm:$0xf]
    %v6646 = vld [vmem:[#allocation2 + $0x30] sm:$0xf]
    %v6647 = vld [vmem:[#allocation2 + $0x38] sm:$0xf]
    %v6648 = vld [vmem:[#allocation2 + $0x40] sm:$0xf]
    %v6649 = vld [vmem:[#allocation2 + $0x48] sm:$0xf]
    %v6650 = vld [vmem:[#allocation2 + $0x50] sm:$0xf]
    %v6651 = vld [vmem:[#allocation2 + $0x58] sm:$0xf]
    %v6652 = vld [vmem:[#allocation2 + $0x60] sm:$0xf]
    %v6653 = vld [vmem:[#allocation2 + $0x68] sm:$0xf]
    %v6654 = vld [vmem:[#allocation2 + $0x70] sm:$0xf]
    %v6655 = vld [vmem:[#allocation2 + $0x78] sm:$0xf]
    %v6656 = vld [vmem:[#allocation2 + $0x80] sm:$0xf]
    %v6657 = vld [vmem:[#allocation2 + $0x88] sm:$0xf]
    %v6658 = vld [vmem:[#allocation2 + $0x90] sm:$0xf]
    %v6659 = vld [vmem:[#allocation2 + $0x98] sm:$0xf]
    %v6660 = vld [vmem:[%s2] sm:$0xf]
    %v6661 = vld [vmem:[%s2 + $0x4] sm:$0xf]
    %v6662 = vld [vmem:[%s2 + $0x8] sm:$0x3]
    %s6663 = scalar_lea.vmem %s2, 36
    %v6664 = vld [vmem:[%s6663] sm:$0xf]
    %v6665 = vld [vmem:[%s6663 + $0x4] sm:$0xf]
    %v6666 = vld [vmem:[%s6663 + $0x8] sm:$0x3]
    %v6683 = vunpack.c.l.b16 %v6641
    %v6684 = vunpack.c.l.b16 %v6642
    %v6685 = vunpack.c.l.b16 %v6643
    %v6686 = vunpack.c.l.b16 %v6644
    %v6687 = vunpack.c.l.b16 %v6645
    %v6688 = vunpack.c.l.b16 %v6646
    %v6689 = vunpack.c.l.b16 %v6647
    %v6690 = vunpack.c.l.b16 %v6648
    %v6691 = vunpack.c.l.b16 %v6651
    %v6692 = vunpack.c.l.b16 %v6652
    %v6693 = vunpack.c.l.b16 %v6653
    %v6694 = vunpack.c.l.b16 %v6654
    %v6695 = vunpack.c.l.b16 %v6655
    %v6696 = vunpack.c.l.b16 %v6656
    %v6697 = vunpack.c.l.b16 %v6657
    %v6698 = vunpack.c.l.b16 %v6658
    %v6699 = vpack.c.b16 %v6684, %v6683
    %v6700 = vpack.c.b16 %v6686, %v6685
    %v6701 = vpack.c.b16 %v6688, %v6687
    %v6702 = vpack.c.b16 %v6690, %v6689
    %v6703 = vpack.c.b16 %v6692, %v6691
    %v6704 = vpack.c.b16 %v6694, %v6693
    %v6705 = vpack.c.b16 %v6696, %v6695
    %v6706 = vpack.c.b16 %v6698, %v6697
    %v6710 = vunpack.c.l.b16 %v6664
    %v6711 = vunpack.c.l.b16 %v6665
    %v6712 = vunpack.c.l.b16 %v6666
    %v6713 = vpack.c.b16 %v6711, %v6710
    %v6714 = vpack.c.b16 %v6712, %v6712
    %v6717 = vsel %vm5306, %v6699, 0
    %v6720 = vsel %vm5306, %v6700, 0
    %v6723 = vsel %vm5306, %v6701, 0
    %v6726 = vsel %vm5306, %v6702, 0
    %v6729 = vsel %vm5306, %v6703, 0
    %v6732 = vsel %vm5306, %v6704, 0
    %v6735 = vsel %vm5306, %v6705, 0
    %v6738 = vsel %vm5306, %v6706, 0
    %v6741 = vsel %vm375, %v6714, 0
    %6743 = vmatprep.subr.bf16.mxu0 0
    %6744 = vmatpush1.bf16.msra.mxu0 %v6713
    %6745 = vmatprep.subr.bf16.mxu0 0
    %6746 = vmatpush1.bf16.msra.mxu0 %v6741
    %6747 = vmatprep.subr.bf16.mxu0 0
    %6748 = vmatpush1.bf16.msra.mxu0 0
    %6749 = vmatprep.subr.bf16.mxu0 0
    %6750 = vmatpush1.bf16.msra.mxu0 0
    %6751 = vmatprep.subr.bf16.mxu0 0
    %6752 = vmatpush1.bf16.msra.mxu0 0
    %6753 = vmatprep.subr.bf16.mxu0 0
    %6754 = vmatpush1.bf16.msra.mxu0 0
    %6755 = vmatprep.subr.bf16.mxu0 0
    %6756 = vmatpush1.bf16.msra.mxu0 0
    %6757 = vmatprep.subr.bf16.mxu0 0
    %6758 = vmatpush1.bf16.msra.mxu0 0
    %6759 = vmatprep.subr.bf16.mxu0 0
    %6760 = vmatpush1.bf16.msra.mxu0 0
    %6761 = vmatprep.subr.bf16.mxu0 0
    %6762 = vmatpush1.bf16.msra.mxu0 0
    %6763 = vmatprep.subr.bf16.mxu0 0
    %6764 = vmatpush1.bf16.msra.mxu0 0
    %6765 = vmatprep.subr.bf16.mxu0 0
    %6766 = vmatpush1.bf16.msra.mxu0 0
    %6767 = vmatprep.subr.bf16.mxu0 0
    %6768 = vmatpush1.bf16.msra.mxu0 0
    %6769 = vmatprep.subr.bf16.mxu0 0
    %6770 = vmatpush1.bf16.msra.mxu0 0
    %6771 = vmatprep.subr.bf16.mxu0 0
    %6772 = vmatpush1.bf16.msra.mxu0 0
    %6773 = vmatprep.subr.bf16.mxu0 0
    %6774 = vmatpush1.bf16.msra.mxu0 0
    %6775 = vmatprep.mubr.bf16.mxu0 0
    %6776 = vmatmul.mubr.bf16.gmra.mrb[0].mxu0 %v6717
    %v6777 = vpop.f32.mrb[0].mxu0
    %v6778 = vadd.f32 0.0, %v6777
    %v6779 = vpop.f32.mrb[0].mxu0
    %v6780 = vpop.f32.mrb[0].mxu0
    %v6781 = vadd.f32 0.0, %v6780
    %v6782 = vpop.f32.mrb[0].mxu0
    %6783 = vmatprep.mubr.bf16.mxu0 0
    %6784 = vmatmul.mubr.bf16.gmra.mrb[0].mxu0 %v6720
    %v6785 = vpop.f32.mrb[0].mxu0
    %v6786 = vadd.f32 0.0, %v6785
    %v6787 = vpop.f32.mrb[0].mxu0
    %v6788 = vpop.f32.mrb[0].mxu0
    %v6789 = vadd.f32 0.0, %v6788
    %v6790 = vpop.f32.mrb[0].mxu0
    %6791 = vmatprep.mubr.bf16.mxu0 0
    %6792 = vmatmul.mubr.bf16.gmra.mrb[0].mxu0 %v6723
    %v6793 = vpop.f32.mrb[0].mxu0
    %v6794 = vadd.f32 0.0, %v6793
    %v6795 = vpop.f32.mrb[0].mxu0
    %v6796 = vpop.f32.mrb[0].mxu0
    %v6797 = vadd.f32 0.0, %v6796
    %v6798 = vpop.f32.mrb[0].mxu0
    %6799 = vmatprep.mubr.bf16.mxu0 0
    %6800 = vmatmul.mubr.bf16.gmra.mrb[0].mxu0 %v6726
    %v6801 = vpop.f32.mrb[0].mxu0
    %v6802 = vadd.f32 0.0, %v6801
    %v6803 = vpop.f32.mrb[0].mxu0
    %v6804 = vpop.f32.mrb[0].mxu0
    %v6805 = vadd.f32 0.0, %v6804
    %v6806 = vpop.f32.mrb[0].mxu0
    %6807 = vmatprep.mubr.bf16.mxu0 0
    %6808 = vmatmul.mubr.bf16.gmra.mrb[0].mxu0 %v6729
    %v6809 = vpop.f32.mrb[0].mxu0
    %v6810 = vadd.f32 0.0, %v6809
    %v6811 = vpop.f32.mrb[0].mxu0
    %v6812 = vpop.f32.mrb[0].mxu0
    %v6813 = vadd.f32 0.0, %v6812
    %v6814 = vpop.f32.mrb[0].mxu0
    %6815 = vmatprep.mubr.bf16.mxu0 0
    %6816 = vmatmul.mubr.bf16.gmra.mrb[0].mxu0 %v6732
    %v6817 = vpop.f32.mrb[0].mxu0
    %v6818 = vadd.f32 0.0, %v6817
    %v6819 = vpop.f32.mrb[0].mxu0
    %v6820 = vpop.f32.mrb[0].mxu0
    %v6821 = vadd.f32 0.0, %v6820
    %v6822 = vpop.f32.mrb[0].mxu0
    %6823 = vmatprep.mubr.bf16.mxu0 0
    %6824 = vmatmul.mubr.bf16.gmra.mrb[0].mxu0 %v6735
    %v6825 = vpop.f32.mrb[0].mxu0
    %v6826 = vadd.f32 0.0, %v6825
    %v6827 = vpop.f32.mrb[0].mxu0
    %v6828 = vpop.f32.mrb[0].mxu0
    %v6829 = vadd.f32 0.0, %v6828
    %v6830 = vpop.f32.mrb[0].mxu0
    %6831 = vmatprep.mubr.bf16.mxu0 0
    %6832 = vmatmul.mubr.bf16.gmra.mrb[0].mxu0 %v6738
    %v6833 = vpop.f32.mrb[0].mxu0
    %v6834 = vadd.f32 0.0, %v6833
    %v6835 = vpop.f32.mrb[0].mxu0
    %v6836 = vpop.f32.mrb[0].mxu0
    %v6837 = vadd.f32 0.0, %v6836
    %v6838 = vpop.f32.mrb[0].mxu0
    %6839 = vdwg.mxu0
    %v6842 = vunpack.c.l.b16 %v6640
    %v6843 = vunpack.c.l.b16 %v6650
    %v6844 = vpack.c.b16 %v6683, %v6842
    %v6845 = vpack.c.b16 %v6685, %v6684
    %v6846 = vpack.c.b16 %v6687, %v6686
    %v6847 = vpack.c.b16 %v6689, %v6688
    %v6848 = vpack.c.b16 %v6691, %v6843
    %v6849 = vpack.c.b16 %v6693, %v6692
    %v6850 = vpack.c.b16 %v6695, %v6694
    %v6851 = vpack.c.b16 %v6697, %v6696
    %v6855 = vunpack.c.l.b16 %v6660
    %v6856 = vunpack.c.l.b16 %v6661
    %v6857 = vunpack.c.l.b16 %v6662
    %v6858 = vpack.c.b16 %v6856, %v6855
    %v6859 = vpack.c.b16 %v6857, %v6857
    %v6862 = vsel %vm5306, %v6844, 0
    %v6865 = vsel %vm5306, %v6845, 0
    %v6868 = vsel %vm5306, %v6846, 0
    %v6871 = vsel %vm5306, %v6847, 0
    %v6874 = vsel %vm5306, %v6848, 0
    %v6877 = vsel %vm5306, %v6849, 0
    %v6880 = vsel %vm5306, %v6850, 0
    %v6883 = vsel %vm5306, %v6851, 0
    %v6886 = vsel %vm375, %v6859, 0
    %6888 = vmatprep.subr.bf16.mxu0 0
    %6889 = vmatpush1.bf16.msra.mxu0 %v6858
    %6890 = vmatprep.subr.bf16.mxu0 0
    %6891 = vmatpush1.bf16.msra.mxu0 %v6886
    %6892 = vmatprep.subr.bf16.mxu0 0
    %6893 = vmatpush1.bf16.msra.mxu0 0
    %6894 = vmatprep.subr.bf16.mxu0 0
    %6895 = vmatpush1.bf16.msra.mxu0 0
    %6896 = vmatprep.subr.bf16.mxu0 0
    %6897 = vmatpush1.bf16.msra.mxu0 0
    %6898 = vmatprep.subr.bf16.mxu0 0
    %6899 = vmatpush1.bf16.msra.mxu0 0
    %6900 = vmatprep.subr.bf16.mxu0 0
    %6901 = vmatpush1.bf16.msra.mxu0 0
    %6902 = vmatprep.subr.bf16.mxu0 0
    %6903 = vmatpush1.bf16.msra.mxu0 0
    %6904 = vmatprep.subr.bf16.mxu0 0
    %6905 = vmatpush1.bf16.msra.mxu0 0
    %6906 = vmatprep.subr.bf16.mxu0 0
    %6907 = vmatpush1.bf16.msra.mxu0 0
    %6908 = vmatprep.subr.bf16.mxu0 0
    %6909 = vmatpush1.bf16.msra.mxu0 0
    %6910 = vmatprep.subr.bf16.mxu0 0
    %6911 = vmatpush1.bf16.msra.mxu0 0
    %6912 = vmatprep.subr.bf16.mxu0 0
    %6913 = vmatpush1.bf16.msra.mxu0 0
    %6914 = vmatprep.subr.bf16.mxu0 0
    %6915 = vmatpush1.bf16.msra.mxu0 0
    %6916 = vmatprep.subr.bf16.mxu0 0
    %6917 = vmatpush1.bf16.msra.mxu0 0
    %6918 = vmatprep.subr.bf16.mxu0 0
    %6919 = vmatpush1.bf16.msra.mxu0 0
    %6920 = vmatprep.mubr.bf16.mxu0 0
    %6921 = vmatmul.mubr.bf16.gmra.mrb[0].mxu0 %v6862
    %v6922 = vpop.f32.mrb[0].mxu0
    %v6923 = vadd.f32 %v6778, %v6922
    %v6924 = vpop.f32.mrb[0].mxu0
    %v6925 = vpop.f32.mrb[0].mxu0
    %v6926 = vadd.f32 %v6781, %v6925
    %v6927 = vpop.f32.mrb[0].mxu0
    %6928 = vmatprep.mubr.bf16.mxu0 0
    %6929 = vmatmul.mubr.bf16.gmra.mrb[0].mxu0 %v6865
    %v6930 = vpop.f32.mrb[0].mxu0
    %v6931 = vadd.f32 %v6786, %v6930
    %v6932 = vpop.f32.mrb[0].mxu0
    %v6933 = vpop.f32.mrb[0].mxu0
    %v6934 = vadd.f32 %v6789, %v6933
    %v6935 = vpop.f32.mrb[0].mxu0
    %6936 = vmatprep.mubr.bf16.mxu0 0
    %6937 = vmatmul.mubr.bf16.gmra.mrb[0].mxu0 %v6868
    %v6938 = vpop.f32.mrb[0].mxu0
    %v6939 = vadd.f32 %v6794, %v6938
    %v6940 = vpop.f32.mrb[0].mxu0
    %v6941 = vpop.f32.mrb[0].mxu0
    %v6942 = vadd.f32 %v6797, %v6941
    %v6943 = vpop.f32.mrb[0].mxu0
    %6944 = vmatprep.mubr.bf16.mxu0 0
    %6945 = vmatmul.mubr.bf16.gmra.mrb[0].mxu0 %v6871
    %v6946 = vpop.f32.mrb[0].mxu0
    %v6947 = vadd.f32 %v6802, %v6946
    %v6948 = vpop.f32.mrb[0].mxu0
    %v6949 = vpop.f32.mrb[0].mxu0
    %v6950 = vadd.f32 %v6805, %v6949
    %v6951 = vpop.f32.mrb[0].mxu0
    %6952 = vmatprep.mubr.bf16.mxu0 0
    %6953 = vmatmul.mubr.bf16.gmra.mrb[0].mxu0 %v6874
    %v6954 = vpop.f32.mrb[0].mxu0
    %v6955 = vadd.f32 %v6810, %v6954
    %v6956 = vpop.f32.mrb[0].mxu0
    %v6957 = vpop.f32.mrb[0].mxu0
    %v6958 = vadd.f32 %v6813, %v6957
    %v6959 = vpop.f32.mrb[0].mxu0
    %6960 = vmatprep.mubr.bf16.mxu0 0
    %6961 = vmatmul.mubr.bf16.gmra.mrb[0].mxu0 %v6877
    %v6962 = vpop.f32.mrb[0].mxu0
    %v6963 = vadd.f32 %v6818, %v6962
    %v6964 = vpop.f32.mrb[0].mxu0
    %v6965 = vpop.f32.mrb[0].mxu0
    %v6966 = vadd.f32 %v6821, %v6965
    %v6967 = vpop.f32.mrb[0].mxu0
    %6968 = vmatprep.mubr.bf16.mxu0 0
    %6969 = vmatmul.mubr.bf16.gmra.mrb[0].mxu0 %v6880
    %v6970 = vpop.f32.mrb[0].mxu0
    %v6971 = vadd.f32 %v6826, %v6970
    %v6972 = vpop.f32.mrb[0].mxu0
    %v6973 = vpop.f32.mrb[0].mxu0
    %v6974 = vadd.f32 %v6829, %v6973
    %v6975 = vpop.f32.mrb[0].mxu0
    %6976 = vmatprep.mubr.bf16.mxu0 0
    %6977 = vmatmul.mubr.bf16.gmra.mrb[0].mxu0 %v6883
    %v6978 = vpop.f32.mrb[0].mxu0
    %v6979 = vadd.f32 %v6834, %v6978
    %v6980 = vpop.f32.mrb[0].mxu0
    %v6981 = vpop.f32.mrb[0].mxu0
    %v6982 = vadd.f32 %v6837, %v6981
    %v6983 = vpop.f32.mrb[0].mxu0
    %6984 = vdwg.mxu0
    %s6985 = scalar_lea.vmem %s2, 72
    %v6986 = vld [vmem:[%s6985] sm:$0xf]
    %v6987 = vld [vmem:[%s6985 + $0x4] sm:$0xf]
    %v6988 = vld [vmem:[%s6985 + $0x8] sm:$0x3]
    %v6991 = vunpack.c.l.b16 %v6649
    %v6992 = vunpack.c.l.b16 %v6659
    %v6993 = vpack.c.b16 %v6991, %v6690
    %v6994 = vpack.c.b16 %v6992, %v6698
    %v6998 = vunpack.c.l.b16 %v6986
    %v6999 = vunpack.c.l.b16 %v6987
    %v7000 = vunpack.c.l.b16 %v6988
    %v7001 = vpack.c.b16 %v6999, %v6998
    %v7002 = vpack.c.b16 %v7000, %v7000
    %v7005 = vsel %vm5306, %v6993, 0
    %v7008 = vsel %vm5306, %v6994, 0
    %v7011 = vsel %vm375, %v7002, 0
    %7013 = vmatprep.subr.bf16.mxu0 0
    %7014 = vmatpush1.bf16.msra.mxu0 %v7001
    %7015 = vmatprep.subr.bf16.mxu0 0
    %7016 = vmatpush1.bf16.msra.mxu0 %v7011
    %7017 = vmatprep.subr.bf16.mxu0 0
    %7018 = vmatpush1.bf16.msra.mxu0 0
    %7019 = vmatprep.subr.bf16.mxu0 0
    %7020 = vmatpush1.bf16.msra.mxu0 0
    %7021 = vmatprep.subr.bf16.mxu0 0
    %7022 = vmatpush1.bf16.msra.mxu0 0
    %7023 = vmatprep.subr.bf16.mxu0 0
    %7024 = vmatpush1.bf16.msra.mxu0 0
    %7025 = vmatprep.subr.bf16.mxu0 0
    %7026 = vmatpush1.bf16.msra.mxu0 0
    %7027 = vmatprep.subr.bf16.mxu0 0
    %7028 = vmatpush1.bf16.msra.mxu0 0
    %7029 = vmatprep.subr.bf16.mxu0 0
    %7030 = vmatpush1.bf16.msra.mxu0 0
    %7031 = vmatprep.subr.bf16.mxu0 0
    %7032 = vmatpush1.bf16.msra.mxu0 0
    %7033 = vmatprep.subr.bf16.mxu0 0
    %7034 = vmatpush1.bf16.msra.mxu0 0
    %7035 = vmatprep.subr.bf16.mxu0 0
    %7036 = vmatpush1.bf16.msra.mxu0 0
    %7037 = vmatprep.subr.bf16.mxu0 0
    %7038 = vmatpush1.bf16.msra.mxu0 0
    %7039 = vmatprep.subr.bf16.mxu0 0
    %7040 = vmatpush1.bf16.msra.mxu0 0
    %7041 = vmatprep.subr.bf16.mxu0 0
    %7042 = vmatpush1.bf16.msra.mxu0 0
    %7043 = vmatprep.subr.bf16.mxu0 0
    %7044 = vmatpush1.bf16.msra.mxu0 0
    %7045 = vmatprep.mubr.bf16.mxu0 0
    %7046 = vmatmul.mubr.bf16.gmra.mrb[0].mxu0 %v6865
    %v7047 = vpop.f32.mrb[0].mxu0
    %v7048 = vadd.f32 0.0, %v7047
    %v7049 = vpop.f32.mrb[0].mxu0
    %v7050 = vpop.f32.mrb[0].mxu0
    %v7051 = vadd.f32 0.0, %v7050
    %v7052 = vpop.f32.mrb[0].mxu0
    %7053 = vmatprep.mubr.bf16.mxu0 0
    %7054 = vmatmul.mubr.bf16.gmra.mrb[0].mxu0 %v6868
    %v7055 = vpop.f32.mrb[0].mxu0
    %v7056 = vadd.f32 0.0, %v7055
    %v7057 = vpop.f32.mrb[0].mxu0
    %v7058 = vpop.f32.mrb[0].mxu0
    %v7059 = vadd.f32 0.0, %v7058
    %v7060 = vpop.f32.mrb[0].mxu0
    %7061 = vmatprep.mubr.bf16.mxu0 0
    %7062 = vmatmul.mubr.bf16.gmra.mrb[0].mxu0 %v6871
    %v7063 = vpop.f32.mrb[0].mxu0
    %v7064 = vadd.f32 0.0, %v7063
    %v7065 = vpop.f32.mrb[0].mxu0
    %v7066 = vpop.f32.mrb[0].mxu0
    %v7067 = vadd.f32 0.0, %v7066
    %v7068 = vpop.f32.mrb[0].mxu0
    %7069 = vmatprep.mubr.bf16.mxu0 0
    %7070 = vmatmul.mubr.bf16.gmra.mrb[0].mxu0 %v7005
    %v7071 = vpop.f32.mrb[0].mxu0
    %v7072 = vadd.f32 0.0, %v7071
    %v7073 = vpop.f32.mrb[0].mxu0
    %v7074 = vpop.f32.mrb[0].mxu0
    %v7075 = vadd.f32 0.0, %v7074
    %v7076 = vpop.f32.mrb[0].mxu0
    %7077 = vmatprep.mubr.bf16.mxu0 0
    %7078 = vmatmul.mubr.bf16.gmra.mrb[0].mxu0 %v6877
    %v7079 = vpop.f32.mrb[0].mxu0
    %v7080 = vadd.f32 0.0, %v7079
    %v7081 = vpop.f32.mrb[0].mxu0
    %v7082 = vpop.f32.mrb[0].mxu0
    %v7083 = vadd.f32 0.0, %v7082
    %v7084 = vpop.f32.mrb[0].mxu0
    %7085 = vmatprep.mubr.bf16.mxu0 0
    %7086 = vmatmul.mubr.bf16.gmra.mrb[0].mxu0 %v6880
    %v7087 = vpop.f32.mrb[0].mxu0
    %v7088 = vadd.f32 0.0, %v7087
    %v7089 = vpop.f32.mrb[0].mxu0
    %v7090 = vpop.f32.mrb[0].mxu0
    %v7091 = vadd.f32 0.0, %v7090
    %v7092 = vpop.f32.mrb[0].mxu0
    %7093 = vmatprep.mubr.bf16.mxu0 0
    %7094 = vmatmul.mubr.bf16.gmra.mrb[0].mxu0 %v6883
    %v7095 = vpop.f32.mrb[0].mxu0
    %v7096 = vadd.f32 0.0, %v7095
    %v7097 = vpop.f32.mrb[0].mxu0
    %v7098 = vpop.f32.mrb[0].mxu0
    %v7099 = vadd.f32 0.0, %v7098
    %v7100 = vpop.f32.mrb[0].mxu0
    %7101 = vmatprep.mubr.bf16.mxu0 0
    %7102 = vmatmul.mubr.bf16.gmra.mrb[0].mxu0 %v7008
    %v7103 = vpop.f32.mrb[0].mxu0
    %v7104 = vadd.f32 0.0, %v7103
    %v7105 = vpop.f32.mrb[0].mxu0
    %v7106 = vpop.f32.mrb[0].mxu0
    %v7107 = vadd.f32 0.0, %v7106
    %v7108 = vpop.f32.mrb[0].mxu0
    %7109 = vdwg.mxu0
    %v7110 = vadd.f32 %v6923, %v7048
    %v7111 = vadd.f32 %v6926, %v7051
    %v7112 = vadd.f32 %v6931, %v7056
    %v7113 = vadd.f32 %v6934, %v7059
    %v7114 = vadd.f32 %v6939, %v7064
    %v7115 = vadd.f32 %v6942, %v7067
    %v7116 = vadd.f32 %v6947, %v7072
    %v7117 = vadd.f32 %v6950, %v7075
    %v7118 = vadd.f32 %v6955, %v7080
    %v7119 = vadd.f32 %v6958, %v7083
    %v7120 = vadd.f32 %v6963, %v7088
    %v7121 = vadd.f32 %v6966, %v7091
    %v7122 = vadd.f32 %v6971, %v7096
    %v7123 = vadd.f32 %v6974, %v7099
    %v7124 = vadd.f32 %v6979, %v7104
    %v7125 = vadd.f32 %v6982, %v7107
    %v7126 = vld [vmem:[#allocation2] sm:$0xf]
    %v7127 = vld [vmem:[#allocation2 + $0x4] sm:$0x1]
    %v7128 = vld [vmem:[#allocation2 + $0x8] sm:$0xf]
    %v7129 = vld [vmem:[#allocation2 + $0xc] sm:$0x1]
    %v7130 = vld [vmem:[#allocation2 + $0x10] sm:$0xf]
    %v7131 = vld [vmem:[#allocation2 + $0x14] sm:$0x1]
    %v7132 = vld [vmem:[#allocation2 + $0x18] sm:$0xf]
    %v7133 = vld [vmem:[#allocation2 + $0x1c] sm:$0x1]
    %v7134 = vld [vmem:[#allocation2 + $0x20] sm:$0xf]
    %v7135 = vld [vmem:[#allocation2 + $0x24] sm:$0x1]
    %v7136 = vld [vmem:[#allocation2 + $0x28] sm:$0xf]
    %v7137 = vld [vmem:[#allocation2 + $0x2c] sm:$0x1]
    %v7138 = vld [vmem:[#allocation2 + $0x30] sm:$0xf]
    %v7139 = vld [vmem:[#allocation2 + $0x34] sm:$0x1]
    %v7140 = vld [vmem:[#allocation2 + $0x38] sm:$0xf]
    %v7141 = vld [vmem:[#allocation2 + $0x3c] sm:$0x1]
    %v7142 = vld [vmem:[#allocation2 + $0x40] sm:$0xf]
    %v7143 = vld [vmem:[#allocation2 + $0x44] sm:$0x1]
    %v7144 = vld [vmem:[#allocation2 + $0x48] sm:$0xf]
    %v7145 = vld [vmem:[#allocation2 + $0x4c] sm:$0x1]
    %v7146 = vld [vmem:[#allocation2 + $0x50] sm:$0xf]
    %v7147 = vld [vmem:[#allocation2 + $0x54] sm:$0x1]
    %v7148 = vld [vmem:[#allocation2 + $0x58] sm:$0xf]
    %v7149 = vld [vmem:[#allocation2 + $0x5c] sm:$0x1]
    %v7150 = vld [vmem:[#allocation2 + $0x60] sm:$0xf]
    %v7151 = vld [vmem:[#allocation2 + $0x64] sm:$0x1]
    %v7152 = vld [vmem:[#allocation2 + $0x68] sm:$0xf]
    %v7153 = vld [vmem:[#allocation2 + $0x6c] sm:$0x1]
    %v7154 = vld [vmem:[#allocation2 + $0x70] sm:$0xf]
    %v7155 = vld [vmem:[#allocation2 + $0x74] sm:$0x1]
    %v7156 = vld [vmem:[#allocation2 + $0x78] sm:$0xf]
    %v7157 = vld [vmem:[#allocation2 + $0x7c] sm:$0x1]
    %v7158 = vld [vmem:[#allocation2 + $0x80] sm:$0xf]
    %v7159 = vld [vmem:[#allocation2 + $0x84] sm:$0x1]
    %v7160 = vld [vmem:[#allocation2 + $0x88] sm:$0xf]
    %v7161 = vld [vmem:[#allocation2 + $0x8c] sm:$0x1]
    %v7162 = vld [vmem:[#allocation2 + $0x90] sm:$0xf]
    %v7163 = vld [vmem:[#allocation2 + $0x94] sm:$0x1]
    %v7164 = vld [vmem:[#allocation2 + $0x98] sm:$0xf]
    %v7165 = vld [vmem:[#allocation2 + $0x9c] sm:$0x1]
    %v7167 = vshrl.u32 %v7126, 16
    %v7169 = vrot.slane %v7167, 4
    %v7170 = vshll.u32 %v7126, 16
    %v7172 = vrot.slane %v7170, 5
    %v7173 = vor.u32 %v7169, %v7172
    %v7174 = vrot.slane %v7173, 4
    %v7176 = vshll.u32 %v7127, 16
    %v7178 = vrot.slane %v7176, 5
    %v7179 = vsel %vm1460, %v7174, %v7178
    %v7181 = vshrl.u32 %v7128, 16
    %v7183 = vrot.slane %v7181, 4
    %v7184 = vshll.u32 %v7128, 16
    %v7186 = vrot.slane %v7184, 5
    %v7187 = vor.u32 %v7183, %v7186
    %v7188 = vrot.slane %v7187, 4
    %v7190 = vshll.u32 %v7129, 16
    %v7192 = vrot.slane %v7190, 5
    %v7193 = vsel %vm1460, %v7188, %v7192
    %v7195 = vshrl.u32 %v7130, 16
    %v7197 = vrot.slane %v7195, 4
    %v7198 = vshll.u32 %v7130, 16
    %v7200 = vrot.slane %v7198, 5
    %v7201 = vor.u32 %v7197, %v7200
    %v7202 = vrot.slane %v7201, 4
    %v7204 = vshll.u32 %v7131, 16
    %v7206 = vrot.slane %v7204, 5
    %v7207 = vsel %vm1460, %v7202, %v7206
    %v7209 = vshrl.u32 %v7132, 16
    %v7211 = vrot.slane %v7209, 4
    %v7212 = vshll.u32 %v7132, 16
    %v7214 = vrot.slane %v7212, 5
    %v7215 = vor.u32 %v7211, %v7214
    %v7216 = vrot.slane %v7215, 4
    %v7218 = vshll.u32 %v7133, 16
    %v7220 = vrot.slane %v7218, 5
    %v7221 = vsel %vm1460, %v7216, %v7220
    %v7223 = vshrl.u32 %v7134, 16
    %v7225 = vrot.slane %v7223, 4
    %v7226 = vshll.u32 %v7134, 16
    %v7228 = vrot.slane %v7226, 5
    %v7229 = vor.u32 %v7225, %v7228
    %v7230 = vrot.slane %v7229, 4
    %v7232 = vshll.u32 %v7135, 16
    %v7234 = vrot.slane %v7232, 5
    %v7235 = vsel %vm1460, %v7230, %v7234
    %v7237 = vshrl.u32 %v7136, 16
    %v7239 = vrot.slane %v7237, 4
    %v7240 = vshll.u32 %v7136, 16
    %v7242 = vrot.slane %v7240, 5
    %v7243 = vor.u32 %v7239, %v7242
    %v7244 = vrot.slane %v7243, 4
    %v7246 = vshll.u32 %v7137, 16
    %v7248 = vrot.slane %v7246, 5
    %v7249 = vsel %vm1460, %v7244, %v7248
    %v7251 = vshrl.u32 %v7138, 16
    %v7253 = vrot.slane %v7251, 4
    %v7254 = vshll.u32 %v7138, 16
    %v7256 = vrot.slane %v7254, 5
    %v7257 = vor.u32 %v7253, %v7256
    %v7258 = vrot.slane %v7257, 4
    %v7260 = vshll.u32 %v7139, 16
    %v7262 = vrot.slane %v7260, 5
    %v7263 = vsel %vm1460, %v7258, %v7262
    %v7265 = vshrl.u32 %v7140, 16
    %v7267 = vrot.slane %v7265, 4
    %v7268 = vshll.u32 %v7140, 16
    %v7270 = vrot.slane %v7268, 5
    %v7271 = vor.u32 %v7267, %v7270
    %v7272 = vrot.slane %v7271, 4
    %v7274 = vshll.u32 %v7141, 16
    %v7276 = vrot.slane %v7274, 5
    %v7277 = vsel %vm1460, %v7272, %v7276
    %v7279 = vshrl.u32 %v7146, 16
    %v7281 = vrot.slane %v7279, 4
    %v7282 = vshll.u32 %v7146, 16
    %v7284 = vrot.slane %v7282, 5
    %v7285 = vor.u32 %v7281, %v7284
    %v7286 = vrot.slane %v7285, 4
    %v7288 = vshll.u32 %v7147, 16
    %v7290 = vrot.slane %v7288, 5
    %v7291 = vsel %vm1460, %v7286, %v7290
    %v7293 = vshrl.u32 %v7148, 16
    %v7295 = vrot.slane %v7293, 4
    %v7296 = vshll.u32 %v7148, 16
    %v7298 = vrot.slane %v7296, 5
    %v7299 = vor.u32 %v7295, %v7298
    %v7300 = vrot.slane %v7299, 4
    %v7302 = vshll.u32 %v7149, 16
    %v7304 = vrot.slane %v7302, 5
    %v7305 = vsel %vm1460, %v7300, %v7304
    %v7307 = vshrl.u32 %v7150, 16
    %v7309 = vrot.slane %v7307, 4
    %v7310 = vshll.u32 %v7150, 16
    %v7312 = vrot.slane %v7310, 5
    %v7313 = vor.u32 %v7309, %v7312
    %v7314 = vrot.slane %v7313, 4
    %v7316 = vshll.u32 %v7151, 16
    %v7318 = vrot.slane %v7316, 5
    %v7319 = vsel %vm1460, %v7314, %v7318
    %v7321 = vshrl.u32 %v7152, 16
    %v7323 = vrot.slane %v7321, 4
    %v7324 = vshll.u32 %v7152, 16
    %v7326 = vrot.slane %v7324, 5
    %v7327 = vor.u32 %v7323, %v7326
    %v7328 = vrot.slane %v7327, 4
    %v7330 = vshll.u32 %v7153, 16
    %v7332 = vrot.slane %v7330, 5
    %v7333 = vsel %vm1460, %v7328, %v7332
    %v7335 = vshrl.u32 %v7154, 16
    %v7337 = vrot.slane %v7335, 4
    %v7338 = vshll.u32 %v7154, 16
    %v7340 = vrot.slane %v7338, 5
    %v7341 = vor.u32 %v7337, %v7340
    %v7342 = vrot.slane %v7341, 4
    %v7344 = vshll.u32 %v7155, 16
    %v7346 = vrot.slane %v7344, 5
    %v7347 = vsel %vm1460, %v7342, %v7346
    %v7349 = vshrl.u32 %v7156, 16
    %v7351 = vrot.slane %v7349, 4
    %v7352 = vshll.u32 %v7156, 16
    %v7354 = vrot.slane %v7352, 5
    %v7355 = vor.u32 %v7351, %v7354
    %v7356 = vrot.slane %v7355, 4
    %v7358 = vshll.u32 %v7157, 16
    %v7360 = vrot.slane %v7358, 5
    %v7361 = vsel %vm1460, %v7356, %v7360
    %v7363 = vshrl.u32 %v7158, 16
    %v7365 = vrot.slane %v7363, 4
    %v7366 = vshll.u32 %v7158, 16
    %v7368 = vrot.slane %v7366, 5
    %v7369 = vor.u32 %v7365, %v7368
    %v7370 = vrot.slane %v7369, 4
    %v7372 = vshll.u32 %v7159, 16
    %v7374 = vrot.slane %v7372, 5
    %v7375 = vsel %vm1460, %v7370, %v7374
    %v7377 = vshrl.u32 %v7160, 16
    %v7379 = vrot.slane %v7377, 4
    %v7380 = vshll.u32 %v7160, 16
    %v7382 = vrot.slane %v7380, 5
    %v7383 = vor.u32 %v7379, %v7382
    %v7384 = vrot.slane %v7383, 4
    %v7386 = vshll.u32 %v7161, 16
    %v7388 = vrot.slane %v7386, 5
    %v7389 = vsel %vm1460, %v7384, %v7388
    %s7390 = scalar_lea.vmem %s2, 12
    %v7391 = vld [vmem:[%s7390] sm:$0xf]
    %v7392 = vld [vmem:[%s7390 + $0x4] sm:$0xf]
    %v7393 = vld [vmem:[%s7390 + $0x8] sm:$0x3]
    %v7394 = vunpack.c.l.b16 %v7179
    %v7395 = vunpack.c.l.b16 %v7193
    %v7396 = vunpack.c.l.b16 %v7207
    %v7397 = vunpack.c.l.b16 %v7221
    %v7398 = vunpack.c.l.b16 %v7235
    %v7399 = vunpack.c.l.b16 %v7249
    %v7400 = vunpack.c.l.b16 %v7263
    %v7401 = vunpack.c.l.b16 %v7277
    %v7402 = vunpack.c.l.b16 %v7291
    %v7403 = vunpack.c.l.b16 %v7305
    %v7404 = vunpack.c.l.b16 %v7319
    %v7405 = vunpack.c.l.b16 %v7333
    %v7406 = vunpack.c.l.b16 %v7347
    %v7407 = vunpack.c.l.b16 %v7361
    %v7408 = vunpack.c.l.b16 %v7375
    %v7409 = vunpack.c.l.b16 %v7389
    %v7410 = vpack.c.b16 %v7395, %v7394
    %v7411 = vpack.c.b16 %v7397, %v7396
    %v7412 = vpack.c.b16 %v7399, %v7398
    %v7413 = vpack.c.b16 %v7401, %v7400
    %v7414 = vpack.c.b16 %v7403, %v7402
    %v7415 = vpack.c.b16 %v7405, %v7404
    %v7416 = vpack.c.b16 %v7407, %v7406
    %v7417 = vpack.c.b16 %v7409, %v7408
    %v7421 = vunpack.c.l.b16 %v7391
    %v7422 = vunpack.c.l.b16 %v7392
    %v7423 = vunpack.c.l.b16 %v7393
    %v7424 = vpack.c.b16 %v7422, %v7421
    %v7425 = vpack.c.b16 %v7423, %v7423
    %v7428 = vsel %vm5306, %v7410, 0
    %v7431 = vsel %vm5306, %v7411, 0
    %v7434 = vsel %vm5306, %v7412, 0
    %v7437 = vsel %vm5306, %v7413, 0
    %v7440 = vsel %vm5306, %v7414, 0
    %v7443 = vsel %vm5306, %v7415, 0
    %v7446 = vsel %vm5306, %v7416, 0
    %v7449 = vsel %vm5306, %v7417, 0
    %v7452 = vsel %vm375, %v7425, 0
    %7454 = vmatprep.subr.bf16.mxu0 0
    %7455 = vmatpush1.bf16.msra.mxu0 %v7424
    %7456 = vmatprep.subr.bf16.mxu0 0
    %7457 = vmatpush1.bf16.msra.mxu0 %v7452
    %7458 = vmatprep.subr.bf16.mxu0 0
    %7459 = vmatpush1.bf16.msra.mxu0 0
    %7460 = vmatprep.subr.bf16.mxu0 0
    %7461 = vmatpush1.bf16.msra.mxu0 0
    %7462 = vmatprep.subr.bf16.mxu0 0
    %7463 = vmatpush1.bf16.msra.mxu0 0
    %7464 = vmatprep.subr.bf16.mxu0 0
    %7465 = vmatpush1.bf16.msra.mxu0 0
    %7466 = vmatprep.subr.bf16.mxu0 0
    %7467 = vmatpush1.bf16.msra.mxu0 0
    %7468 = vmatprep.subr.bf16.mxu0 0
    %7469 = vmatpush1.bf16.msra.mxu0 0
    %7470 = vmatprep.subr.bf16.mxu0 0
    %7471 = vmatpush1.bf16.msra.mxu0 0
    %7472 = vmatprep.subr.bf16.mxu0 0
    %7473 = vmatpush1.bf16.msra.mxu0 0
    %7474 = vmatprep.subr.bf16.mxu0 0
    %7475 = vmatpush1.bf16.msra.mxu0 0
    %7476 = vmatprep.subr.bf16.mxu0 0
    %7477 = vmatpush1.bf16.msra.mxu0 0
    %7478 = vmatprep.subr.bf16.mxu0 0
    %7479 = vmatpush1.bf16.msra.mxu0 0
    %7480 = vmatprep.subr.bf16.mxu0 0
    %7481 = vmatpush1.bf16.msra.mxu0 0
    %7482 = vmatprep.subr.bf16.mxu0 0
    %7483 = vmatpush1.bf16.msra.mxu0 0
    %7484 = vmatprep.subr.bf16.mxu0 0
    %7485 = vmatpush1.bf16.msra.mxu0 0
    %7486 = vmatprep.mubr.bf16.mxu0 0
    %7487 = vmatmul.mubr.bf16.gmra.mrb[0].mxu0 %v7428
    %v7488 = vpop.f32.mrb[0].mxu0
    %v7489 = vadd.f32 0.0, %v7488
    %v7490 = vpop.f32.mrb[0].mxu0
    %v7491 = vpop.f32.mrb[0].mxu0
    %v7492 = vadd.f32 0.0, %v7491
    %v7493 = vpop.f32.mrb[0].mxu0
    %7494 = vmatprep.mubr.bf16.mxu0 0
    %7495 = vmatmul.mubr.bf16.gmra.mrb[0].mxu0 %v7431
    %v7496 = vpop.f32.mrb[0].mxu0
    %v7497 = vadd.f32 0.0, %v7496
    %v7498 = vpop.f32.mrb[0].mxu0
    %v7499 = vpop.f32.mrb[0].mxu0
    %v7500 = vadd.f32 0.0, %v7499
    %v7501 = vpop.f32.mrb[0].mxu0
    %7502 = vmatprep.mubr.bf16.mxu0 0
    %7503 = vmatmul.mubr.bf16.gmra.mrb[0].mxu0 %v7434
    %v7504 = vpop.f32.mrb[0].mxu0
    %v7505 = vadd.f32 0.0, %v7504
    %v7506 = vpop.f32.mrb[0].mxu0
    %v7507 = vpop.f32.mrb[0].mxu0
    %v7508 = vadd.f32 0.0, %v7507
    %v7509 = vpop.f32.mrb[0].mxu0
    %7510 = vmatprep.mubr.bf16.mxu0 0
    %7511 = vmatmul.mubr.bf16.gmra.mrb[0].mxu0 %v7437
    %v7512 = vpop.f32.mrb[0].mxu0
    %v7513 = vadd.f32 0.0, %v7512
    %v7514 = vpop.f32.mrb[0].mxu0
    %v7515 = vpop.f32.mrb[0].mxu0
    %v7516 = vadd.f32 0.0, %v7515
    %v7517 = vpop.f32.mrb[0].mxu0
    %7518 = vmatprep.mubr.bf16.mxu0 0
    %7519 = vmatmul.mubr.bf16.gmra.mrb[0].mxu0 %v7440
    %v7520 = vpop.f32.mrb[0].mxu0
    %v7521 = vadd.f32 0.0, %v7520
    %v7522 = vpop.f32.mrb[0].mxu0
    %v7523 = vpop.f32.mrb[0].mxu0
    %v7524 = vadd.f32 0.0, %v7523
    %v7525 = vpop.f32.mrb[0].mxu0
    %7526 = vmatprep.mubr.bf16.mxu0 0
    %7527 = vmatmul.mubr.bf16.gmra.mrb[0].mxu0 %v7443
    %v7528 = vpop.f32.mrb[0].mxu0
    %v7529 = vadd.f32 0.0, %v7528
    %v7530 = vpop.f32.mrb[0].mxu0
    %v7531 = vpop.f32.mrb[0].mxu0
    %v7532 = vadd.f32 0.0, %v7531
    %v7533 = vpop.f32.mrb[0].mxu0
    %7534 = vmatprep.mubr.bf16.mxu0 0
    %7535 = vmatmul.mubr.bf16.gmra.mrb[0].mxu0 %v7446
    %v7536 = vpop.f32.mrb[0].mxu0
    %v7537 = vadd.f32 0.0, %v7536
    %v7538 = vpop.f32.mrb[0].mxu0
    %v7539 = vpop.f32.mrb[0].mxu0
    %v7540 = vadd.f32 0.0, %v7539
    %v7541 = vpop.f32.mrb[0].mxu0
    %7542 = vmatprep.mubr.bf16.mxu0 0
    %7543 = vmatmul.mubr.bf16.gmra.mrb[0].mxu0 %v7449
    %v7544 = vpop.f32.mrb[0].mxu0
    %v7545 = vadd.f32 0.0, %v7544
    %v7546 = vpop.f32.mrb[0].mxu0
    %v7547 = vpop.f32.mrb[0].mxu0
    %v7548 = vadd.f32 0.0, %v7547
    %v7549 = vpop.f32.mrb[0].mxu0
    %7550 = vdwg.mxu0
    %v7551 = vadd.f32 %v7110, %v7489
    %v7552 = vadd.f32 %v7111, %v7492
    %v7553 = vadd.f32 %v7112, %v7497
    %v7554 = vadd.f32 %v7113, %v7500
    %v7555 = vadd.f32 %v7114, %v7505
    %v7556 = vadd.f32 %v7115, %v7508
    %v7557 = vadd.f32 %v7116, %v7513
    %v7558 = vadd.f32 %v7117, %v7516
    %v7559 = vadd.f32 %v7118, %v7521
    %v7560 = vadd.f32 %v7119, %v7524
    %v7561 = vadd.f32 %v7120, %v7529
    %v7562 = vadd.f32 %v7121, %v7532
    %v7563 = vadd.f32 %v7122, %v7537
    %v7564 = vadd.f32 %v7123, %v7540
    %v7565 = vadd.f32 %v7124, %v7545
    %v7566 = vadd.f32 %v7125, %v7548
    %v7568 = vshrl.u32 %v7142, 16
    %v7570 = vrot.slane %v7568, 4
    %v7571 = vshll.u32 %v7142, 16
    %v7573 = vrot.slane %v7571, 5
    %v7574 = vor.u32 %v7570, %v7573
    %v7575 = vrot.slane %v7574, 4
    %v7577 = vshll.u32 %v7143, 16
    %v7579 = vrot.slane %v7577, 5
    %v7580 = vsel %vm1460, %v7575, %v7579
    %v7582 = vshrl.u32 %v7162, 16
    %v7584 = vrot.slane %v7582, 4
    %v7585 = vshll.u32 %v7162, 16
    %v7587 = vrot.slane %v7585, 5
    %v7588 = vor.u32 %v7584, %v7587
    %v7589 = vrot.slane %v7588, 4
    %v7591 = vshll.u32 %v7163, 16
    %v7593 = vrot.slane %v7591, 5
    %v7594 = vsel %vm1460, %v7589, %v7593
    %s7595 = scalar_lea.vmem %s2, 48
    %v7596 = vld [vmem:[%s7595] sm:$0xf]
    %v7597 = vld [vmem:[%s7595 + $0x4] sm:$0xf]
    %v7598 = vld [vmem:[%s7595 + $0x8] sm:$0x3]
    %v7599 = vunpack.c.l.b16 %v7580
    %v7600 = vunpack.c.l.b16 %v7594
    %v7601 = vpack.c.b16 %v7396, %v7395
    %v7602 = vpack.c.b16 %v7398, %v7397
    %v7603 = vpack.c.b16 %v7400, %v7399
    %v7604 = vpack.c.b16 %v7599, %v7401
    %v7605 = vpack.c.b16 %v7404, %v7403
    %v7606 = vpack.c.b16 %v7406, %v7405
    %v7607 = vpack.c.b16 %v7408, %v7407
    %v7608 = vpack.c.b16 %v7600, %v7409
    %v7612 = vunpack.c.l.b16 %v7596
    %v7613 = vunpack.c.l.b16 %v7597
    %v7614 = vunpack.c.l.b16 %v7598
    %v7615 = vpack.c.b16 %v7613, %v7612
    %v7616 = vpack.c.b16 %v7614, %v7614
    %v7619 = vsel %vm5306, %v7601, 0
    %v7622 = vsel %vm5306, %v7602, 0
    %v7625 = vsel %vm5306, %v7603, 0
    %v7628 = vsel %vm5306, %v7604, 0
    %v7631 = vsel %vm5306, %v7605, 0
    %v7634 = vsel %vm5306, %v7606, 0
    %v7637 = vsel %vm5306, %v7607, 0
    %v7640 = vsel %vm5306, %v7608, 0
    %v7643 = vsel %vm375, %v7616, 0
    %7645 = vmatprep.subr.bf16.mxu0 0
    %7646 = vmatpush1.bf16.msra.mxu0 %v7615
    %7647 = vmatprep.subr.bf16.mxu0 0
    %7648 = vmatpush1.bf16.msra.mxu0 %v7643
    %7649 = vmatprep.subr.bf16.mxu0 0
    %7650 = vmatpush1.bf16.msra.mxu0 0
    %7651 = vmatprep.subr.bf16.mxu0 0
    %7652 = vmatpush1.bf16.msra.mxu0 0
    %7653 = vmatprep.subr.bf16.mxu0 0
    %7654 = vmatpush1.bf16.msra.mxu0 0
    %7655 = vmatprep.subr.bf16.mxu0 0
    %7656 = vmatpush1.bf16.msra.mxu0 0
    %7657 = vmatprep.subr.bf16.mxu0 0
    %7658 = vmatpush1.bf16.msra.mxu0 0
    %7659 = vmatprep.subr.bf16.mxu0 0
    %7660 = vmatpush1.bf16.msra.mxu0 0
    %7661 = vmatprep.subr.bf16.mxu0 0
    %7662 = vmatpush1.bf16.msra.mxu0 0
    %7663 = vmatprep.subr.bf16.mxu0 0
    %7664 = vmatpush1.bf16.msra.mxu0 0
    %7665 = vmatprep.subr.bf16.mxu0 0
    %7666 = vmatpush1.bf16.msra.mxu0 0
    %7667 = vmatprep.subr.bf16.mxu0 0
    %7668 = vmatpush1.bf16.msra.mxu0 0
    %7669 = vmatprep.subr.bf16.mxu0 0
    %7670 = vmatpush1.bf16.msra.mxu0 0
    %7671 = vmatprep.subr.bf16.mxu0 0
    %7672 = vmatpush1.bf16.msra.mxu0 0
    %7673 = vmatprep.subr.bf16.mxu0 0
    %7674 = vmatpush1.bf16.msra.mxu0 0
    %7675 = vmatprep.subr.bf16.mxu0 0
    %7676 = vmatpush1.bf16.msra.mxu0 0
    %7677 = vmatprep.mubr.bf16.mxu0 0
    %7678 = vmatmul.mubr.bf16.gmra.mrb[0].mxu0 %v7619
    %v7679 = vpop.f32.mrb[0].mxu0
    %v7680 = vadd.f32 0.0, %v7679
    %v7681 = vpop.f32.mrb[0].mxu0
    %v7682 = vpop.f32.mrb[0].mxu0
    %v7683 = vadd.f32 0.0, %v7682
    %v7684 = vpop.f32.mrb[0].mxu0
    %7685 = vmatprep.mubr.bf16.mxu0 0
    %7686 = vmatmul.mubr.bf16.gmra.mrb[0].mxu0 %v7622
    %v7687 = vpop.f32.mrb[0].mxu0
    %v7688 = vadd.f32 0.0, %v7687
    %v7689 = vpop.f32.mrb[0].mxu0
    %v7690 = vpop.f32.mrb[0].mxu0
    %v7691 = vadd.f32 0.0, %v7690
    %v7692 = vpop.f32.mrb[0].mxu0
    %7693 = vmatprep.mubr.bf16.mxu0 0
    %7694 = vmatmul.mubr.bf16.gmra.mrb[0].mxu0 %v7625
    %v7695 = vpop.f32.mrb[0].mxu0
    %v7696 = vadd.f32 0.0, %v7695
    %v7697 = vpop.f32.mrb[0].mxu0
    %v7698 = vpop.f32.mrb[0].mxu0
    %v7699 = vadd.f32 0.0, %v7698
    %v7700 = vpop.f32.mrb[0].mxu0
    %7701 = vmatprep.mubr.bf16.mxu0 0
    %7702 = vmatmul.mubr.bf16.gmra.mrb[0].mxu0 %v7628
    %v7703 = vpop.f32.mrb[0].mxu0
    %v7704 = vadd.f32 0.0, %v7703
    %v7705 = vpop.f32.mrb[0].mxu0
    %v7706 = vpop.f32.mrb[0].mxu0
    %v7707 = vadd.f32 0.0, %v7706
    %v7708 = vpop.f32.mrb[0].mxu0
    %7709 = vmatprep.mubr.bf16.mxu0 0
    %7710 = vmatmul.mubr.bf16.gmra.mrb[0].mxu0 %v7631
    %v7711 = vpop.f32.mrb[0].mxu0
    %v7712 = vadd.f32 0.0, %v7711
    %v7713 = vpop.f32.mrb[0].mxu0
    %v7714 = vpop.f32.mrb[0].mxu0
    %v7715 = vadd.f32 0.0, %v7714
    %v7716 = vpop.f32.mrb[0].mxu0
    %7717 = vmatprep.mubr.bf16.mxu0 0
    %7718 = vmatmul.mubr.bf16.gmra.mrb[0].mxu0 %v7634
    %v7719 = vpop.f32.mrb[0].mxu0
    %v7720 = vadd.f32 0.0, %v7719
    %v7721 = vpop.f32.mrb[0].mxu0
    %v7722 = vpop.f32.mrb[0].mxu0
    %v7723 = vadd.f32 0.0, %v7722
    %v7724 = vpop.f32.mrb[0].mxu0
    %7725 = vmatprep.mubr.bf16.mxu0 0
    %7726 = vmatmul.mubr.bf16.gmra.mrb[0].mxu0 %v7637
    %v7727 = vpop.f32.mrb[0].mxu0
    %v7728 = vadd.f32 0.0, %v7727
    %v7729 = vpop.f32.mrb[0].mxu0
    %v7730 = vpop.f32.mrb[0].mxu0
    %v7731 = vadd.f32 0.0, %v7730
    %v7732 = vpop.f32.mrb[0].mxu0
    %7733 = vmatprep.mubr.bf16.mxu0 0
    %7734 = vmatmul.mubr.bf16.gmra.mrb[0].mxu0 %v7640
    %v7735 = vpop.f32.mrb[0].mxu0
    %v7736 = vadd.f32 0.0, %v7735
    %v7737 = vpop.f32.mrb[0].mxu0
    %v7738 = vpop.f32.mrb[0].mxu0
    %v7739 = vadd.f32 0.0, %v7738
    %v7740 = vpop.f32.mrb[0].mxu0
    %7741 = vdwg.mxu0
    %v7742 = vadd.f32 %v7551, %v7680
    %v7743 = vadd.f32 %v7552, %v7683
    %v7744 = vadd.f32 %v7553, %v7688
    %v7745 = vadd.f32 %v7554, %v7691
    %v7746 = vadd.f32 %v7555, %v7696
    %v7747 = vadd.f32 %v7556, %v7699
    %v7748 = vadd.f32 %v7557, %v7704
    %v7749 = vadd.f32 %v7558, %v7707
    %v7750 = vadd.f32 %v7559, %v7712
    %v7751 = vadd.f32 %v7560, %v7715
    %v7752 = vadd.f32 %v7561, %v7720
    %v7753 = vadd.f32 %v7562, %v7723
    %v7754 = vadd.f32 %v7563, %v7728
    %v7755 = vadd.f32 %v7564, %v7731
    %v7756 = vadd.f32 %v7565, %v7736
    %v7757 = vadd.f32 %v7566, %v7739
    %v7759 = vshrl.u32 %v7144, 16
    %v7761 = vrot.slane %v7759, 4
    %v7762 = vshll.u32 %v7144, 16
    %v7764 = vrot.slane %v7762, 5
    %v7765 = vor.u32 %v7761, %v7764
    %v7766 = vrot.slane %v7765, 4
    %v7768 = vshll.u32 %v7145, 16
    %v7770 = vrot.slane %v7768, 5
    %v7771 = vsel %vm1460, %v7766, %v7770
    %v7773 = vshrl.u32 %v7164, 16
    %v7775 = vrot.slane %v7773, 4
    %v7776 = vshll.u32 %v7164, 16
    %v7778 = vrot.slane %v7776, 5
    %v7779 = vor.u32 %v7775, %v7778
    %v7780 = vrot.slane %v7779, 4
    %v7782 = vshll.u32 %v7165, 16
    %v7784 = vrot.slane %v7782, 5
    %v7785 = vsel %vm1460, %v7780, %v7784
    %s7786 = scalar_lea.vmem %s2, 84
    %v7787 = vld [vmem:[%s7786] sm:$0xf]
    %v7788 = vld [vmem:[%s7786 + $0x4] sm:$0xf]
    %v7789 = vld [vmem:[%s7786 + $0x8] sm:$0x3]
    %v7790 = vunpack.c.l.b16 %v7771
    %v7791 = vunpack.c.l.b16 %v7785
    %v7792 = vpack.c.b16 %v7790, %v7599
    %v7793 = vpack.c.b16 %v7791, %v7600
    %v7797 = vunpack.c.l.b16 %v7787
    %v7798 = vunpack.c.l.b16 %v7788
    %v7799 = vunpack.c.l.b16 %v7789
    %v7800 = vpack.c.b16 %v7798, %v7797
    %v7801 = vpack.c.b16 %v7799, %v7799
    %v7804 = vsel %vm5306, %v7792, 0
    %v7807 = vsel %vm5306, %v7793, 0
    %v7810 = vsel %vm375, %v7801, 0
    %7812 = vmatprep.subr.bf16.mxu0 0
    %7813 = vmatpush1.bf16.msra.mxu0 %v7800
    %7814 = vmatprep.subr.bf16.mxu0 0
    %7815 = vmatpush1.bf16.msra.mxu0 %v7810
    %7816 = vmatprep.subr.bf16.mxu0 0
    %7817 = vmatpush1.bf16.msra.mxu0 0
    %7818 = vmatprep.subr.bf16.mxu0 0
    %7819 = vmatpush1.bf16.msra.mxu0 0
    %7820 = vmatprep.subr.bf16.mxu0 0
    %7821 = vmatpush1.bf16.msra.mxu0 0
    %7822 = vmatprep.subr.bf16.mxu0 0
    %7823 = vmatpush1.bf16.msra.mxu0 0
    %7824 = vmatprep.subr.bf16.mxu0 0
    %7825 = vmatpush1.bf16.msra.mxu0 0
    %7826 = vmatprep.subr.bf16.mxu0 0
    %7827 = vmatpush1.bf16.msra.mxu0 0
    %7828 = vmatprep.subr.bf16.mxu0 0
    %7829 = vmatpush1.bf16.msra.mxu0 0
    %7830 = vmatprep.subr.bf16.mxu0 0
    %7831 = vmatpush1.bf16.msra.mxu0 0
    %7832 = vmatprep.subr.bf16.mxu0 0
    %7833 = vmatpush1.bf16.msra.mxu0 0
    %7834 = vmatprep.subr.bf16.mxu0 0
    %7835 = vmatpush1.bf16.msra.mxu0 0
    %7836 = vmatprep.subr.bf16.mxu0 0
    %7837 = vmatpush1.bf16.msra.mxu0 0
    %7838 = vmatprep.subr.bf16.mxu0 0
    %7839 = vmatpush1.bf16.msra.mxu0 0
    %7840 = vmatprep.subr.bf16.mxu0 0
    %7841 = vmatpush1.bf16.msra.mxu0 0
    %7842 = vmatprep.subr.bf16.mxu0 0
    %7843 = vmatpush1.bf16.msra.mxu0 0
    %7844 = vmatprep.mubr.bf16.mxu0 0
    %7845 = vmatmul.mubr.bf16.gmra.mrb[0].mxu0 %v7431
    %v7846 = vpop.f32.mrb[0].mxu0
    %v7847 = vadd.f32 0.0, %v7846
    %v7848 = vpop.f32.mrb[0].mxu0
    %v7849 = vpop.f32.mrb[0].mxu0
    %v7850 = vadd.f32 0.0, %v7849
    %v7851 = vpop.f32.mrb[0].mxu0
    %7852 = vmatprep.mubr.bf16.mxu0 0
    %7853 = vmatmul.mubr.bf16.gmra.mrb[0].mxu0 %v7434
    %v7854 = vpop.f32.mrb[0].mxu0
    %v7855 = vadd.f32 0.0, %v7854
    %v7856 = vpop.f32.mrb[0].mxu0
    %v7857 = vpop.f32.mrb[0].mxu0
    %v7858 = vadd.f32 0.0, %v7857
    %v7859 = vpop.f32.mrb[0].mxu0
    %7860 = vmatprep.mubr.bf16.mxu0 0
    %7861 = vmatmul.mubr.bf16.gmra.mrb[0].mxu0 %v7437
    %v7862 = vpop.f32.mrb[0].mxu0
    %v7863 = vadd.f32 0.0, %v7862
    %v7864 = vpop.f32.mrb[0].mxu0
    %v7865 = vpop.f32.mrb[0].mxu0
    %v7866 = vadd.f32 0.0, %v7865
    %v7867 = vpop.f32.mrb[0].mxu0
    %7868 = vmatprep.mubr.bf16.mxu0 0
    %7869 = vmatmul.mubr.bf16.gmra.mrb[0].mxu0 %v7804
    %v7870 = vpop.f32.mrb[0].mxu0
    %v7871 = vadd.f32 0.0, %v7870
    %v7872 = vpop.f32.mrb[0].mxu0
    %v7873 = vpop.f32.mrb[0].mxu0
    %v7874 = vadd.f32 0.0, %v7873
    %v7875 = vpop.f32.mrb[0].mxu0
    %7876 = vmatprep.mubr.bf16.mxu0 0
    %7877 = vmatmul.mubr.bf16.gmra.mrb[0].mxu0 %v7443
    %v7878 = vpop.f32.mrb[0].mxu0
    %v7879 = vadd.f32 0.0, %v7878
    %v7880 = vpop.f32.mrb[0].mxu0
    %v7881 = vpop.f32.mrb[0].mxu0
    %v7882 = vadd.f32 0.0, %v7881
    %v7883 = vpop.f32.mrb[0].mxu0
    %7884 = vmatprep.mubr.bf16.mxu0 0
    %7885 = vmatmul.mubr.bf16.gmra.mrb[0].mxu0 %v7446
    %v7886 = vpop.f32.mrb[0].mxu0
    %v7887 = vadd.f32 0.0, %v7886
    %v7888 = vpop.f32.mrb[0].mxu0
    %v7889 = vpop.f32.mrb[0].mxu0
    %v7890 = vadd.f32 0.0, %v7889
    %v7891 = vpop.f32.mrb[0].mxu0
    %7892 = vmatprep.mubr.bf16.mxu0 0
    %7893 = vmatmul.mubr.bf16.gmra.mrb[0].mxu0 %v7449
    %v7894 = vpop.f32.mrb[0].mxu0
    %v7895 = vadd.f32 0.0, %v7894
    %v7896 = vpop.f32.mrb[0].mxu0
    %v7897 = vpop.f32.mrb[0].mxu0
    %v7898 = vadd.f32 0.0, %v7897
    %v7899 = vpop.f32.mrb[0].mxu0
    %7900 = vmatprep.mubr.bf16.mxu0 0
    %7901 = vmatmul.mubr.bf16.gmra.mrb[0].mxu0 %v7807
    %v7902 = vpop.f32.mrb[0].mxu0
    %v7903 = vadd.f32 0.0, %v7902
    %v7904 = vpop.f32.mrb[0].mxu0
    %v7905 = vpop.f32.mrb[0].mxu0
    %v7906 = vadd.f32 0.0, %v7905
    %v7907 = vpop.f32.mrb[0].mxu0
    %7908 = vdwg.mxu0
    %v7909 = vadd.f32 %v7742, %v7847
    %v7910 = vadd.f32 %v7743, %v7850
    %v7911 = vadd.f32 %v7744, %v7855
    %v7912 = vadd.f32 %v7745, %v7858
    %v7913 = vadd.f32 %v7746, %v7863
    %v7914 = vadd.f32 %v7747, %v7866
    %v7915 = vadd.f32 %v7748, %v7871
    %v7916 = vadd.f32 %v7749, %v7874
    %v7917 = vadd.f32 %v7750, %v7879
    %v7918 = vadd.f32 %v7751, %v7882
    %v7919 = vadd.f32 %v7752, %v7887
    %v7920 = vadd.f32 %v7753, %v7890
    %v7921 = vadd.f32 %v7754, %v7895
    %v7922 = vadd.f32 %v7755, %v7898
    %v7923 = vadd.f32 %v7756, %v7903
    %v7924 = vadd.f32 %v7757, %v7906
    %v7925 = vld [vmem:[#allocation2] sm:$0xe]
    %v7926 = vld [vmem:[#allocation2 + $0x8] sm:$0xe]
    %v7927 = vld [vmem:[#allocation2 + $0x10] sm:$0xe]
    %v7928 = vld [vmem:[#allocation2 + $0x18] sm:$0xe]
    %v7929 = vld [vmem:[#allocation2 + $0x20] sm:$0xe]
    %v7930 = vld [vmem:[#allocation2 + $0x28] sm:$0xe]
    %v7931 = vld [vmem:[#allocation2 + $0x30] sm:$0xe]
    %v7932 = vld [vmem:[#allocation2 + $0x38] sm:$0xe]
    %v7933 = vld [vmem:[#allocation2 + $0x40] sm:$0xe]
    %v7934 = vld [vmem:[#allocation2 + $0x48] sm:$0xe]
    %v7935 = vld [vmem:[#allocation2 + $0x50] sm:$0xe]
    %v7936 = vld [vmem:[#allocation2 + $0x58] sm:$0xe]
    %v7937 = vld [vmem:[#allocation2 + $0x60] sm:$0xe]
    %v7938 = vld [vmem:[#allocation2 + $0x68] sm:$0xe]
    %v7939 = vld [vmem:[#allocation2 + $0x70] sm:$0xe]
    %v7940 = vld [vmem:[#allocation2 + $0x78] sm:$0xe]
    %v7941 = vld [vmem:[#allocation2 + $0x80] sm:$0xe]
    %v7942 = vld [vmem:[#allocation2 + $0x88] sm:$0xe]
    %v7943 = vld [vmem:[#allocation2 + $0x90] sm:$0xe]
    %v7944 = vld [vmem:[#allocation2 + $0x98] sm:$0xe]
    %v7977 = vrot.slane %v7925, 5
    %v7978 = vrot.slane %v7977, 4
    %v7979 = vrot.slane %v7127, 5
    %v7980 = vsel %vm3749, %v7978, %v7979
    %v7981 = vrot.slane %v7926, 5
    %v7982 = vrot.slane %v7981, 4
    %v7983 = vrot.slane %v7129, 5
    %v7984 = vsel %vm3749, %v7982, %v7983
    %v7985 = vrot.slane %v7927, 5
    %v7986 = vrot.slane %v7985, 4
    %v7987 = vrot.slane %v7131, 5
    %v7988 = vsel %vm3749, %v7986, %v7987
    %v7989 = vrot.slane %v7928, 5
    %v7990 = vrot.slane %v7989, 4
    %v7991 = vrot.slane %v7133, 5
    %v7992 = vsel %vm3749, %v7990, %v7991
    %v7993 = vrot.slane %v7929, 5
    %v7994 = vrot.slane %v7993, 4
    %v7995 = vrot.slane %v7135, 5
    %v7996 = vsel %vm3749, %v7994, %v7995
    %v7997 = vrot.slane %v7930, 5
    %v7998 = vrot.slane %v7997, 4
    %v7999 = vrot.slane %v7137, 5
    %v8000 = vsel %vm3749, %v7998, %v7999
    %v8001 = vrot.slane %v7931, 5
    %v8002 = vrot.slane %v8001, 4
    %v8003 = vrot.slane %v7139, 5
    %v8004 = vsel %vm3749, %v8002, %v8003
    %v8005 = vrot.slane %v7932, 5
    %v8006 = vrot.slane %v8005, 4
    %v8007 = vrot.slane %v7141, 5
    %v8008 = vsel %vm3749, %v8006, %v8007
    %v8009 = vrot.slane %v7935, 5
    %v8010 = vrot.slane %v8009, 4
    %v8011 = vrot.slane %v7147, 5
    %v8012 = vsel %vm3749, %v8010, %v8011
    %v8013 = vrot.slane %v7936, 5
    %v8014 = vrot.slane %v8013, 4
    %v8015 = vrot.slane %v7149, 5
    %v8016 = vsel %vm3749, %v8014, %v8015
    %v8017 = vrot.slane %v7937, 5
    %v8018 = vrot.slane %v8017, 4
    %v8019 = vrot.slane %v7151, 5
    %v8020 = vsel %vm3749, %v8018, %v8019
    %v8021 = vrot.slane %v7938, 5
    %v8022 = vrot.slane %v8021, 4
    %v8023 = vrot.slane %v7153, 5
    %v8024 = vsel %vm3749, %v8022, %v8023
    %v8025 = vrot.slane %v7939, 5
    %v8026 = vrot.slane %v8025, 4
    %v8027 = vrot.slane %v7155, 5
    %v8028 = vsel %vm3749, %v8026, %v8027
    %v8029 = vrot.slane %v7940, 5
    %v8030 = vrot.slane %v8029, 4
    %v8031 = vrot.slane %v7157, 5
    %v8032 = vsel %vm3749, %v8030, %v8031
    %v8033 = vrot.slane %v7941, 5
    %v8034 = vrot.slane %v8033, 4
    %v8035 = vrot.slane %v7159, 5
    %v8036 = vsel %vm3749, %v8034, %v8035
    %v8037 = vrot.slane %v7942, 5
    %v8038 = vrot.slane %v8037, 4
    %v8039 = vrot.slane %v7161, 5
    %v8040 = vsel %vm3749, %v8038, %v8039
    %s8041 = scalar_lea.vmem %s2, 24
    %v8042 = vld [vmem:[%s8041] sm:$0xf]
    %v8043 = vld [vmem:[%s8041 + $0x4] sm:$0xf]
    %v8044 = vld [vmem:[%s8041 + $0x8] sm:$0x3]
    %v8045 = vunpack.c.l.b16 %v7980
    %v8046 = vunpack.c.l.b16 %v7984
    %v8047 = vunpack.c.l.b16 %v7988
    %v8048 = vunpack.c.l.b16 %v7992
    %v8049 = vunpack.c.l.b16 %v7996
    %v8050 = vunpack.c.l.b16 %v8000
    %v8051 = vunpack.c.l.b16 %v8004
    %v8052 = vunpack.c.l.b16 %v8008
    %v8053 = vunpack.c.l.b16 %v8012
    %v8054 = vunpack.c.l.b16 %v8016
    %v8055 = vunpack.c.l.b16 %v8020
    %v8056 = vunpack.c.l.b16 %v8024
    %v8057 = vunpack.c.l.b16 %v8028
    %v8058 = vunpack.c.l.b16 %v8032
    %v8059 = vunpack.c.l.b16 %v8036
    %v8060 = vunpack.c.l.b16 %v8040
    %v8061 = vpack.c.b16 %v8046, %v8045
    %v8062 = vpack.c.b16 %v8048, %v8047
    %v8063 = vpack.c.b16 %v8050, %v8049
    %v8064 = vpack.c.b16 %v8052, %v8051
    %v8065 = vpack.c.b16 %v8054, %v8053
    %v8066 = vpack.c.b16 %v8056, %v8055
    %v8067 = vpack.c.b16 %v8058, %v8057
    %v8068 = vpack.c.b16 %v8060, %v8059
    %v8072 = vunpack.c.l.b16 %v8042
    %v8073 = vunpack.c.l.b16 %v8043
    %v8074 = vunpack.c.l.b16 %v8044
    %v8075 = vpack.c.b16 %v8073, %v8072
    %v8076 = vpack.c.b16 %v8074, %v8074
    %v8079 = vsel %vm5306, %v8061, 0
    %v8082 = vsel %vm5306, %v8062, 0
    %v8085 = vsel %vm5306, %v8063, 0
    %v8088 = vsel %vm5306, %v8064, 0
    %v8091 = vsel %vm5306, %v8065, 0
    %v8094 = vsel %vm5306, %v8066, 0
    %v8097 = vsel %vm5306, %v8067, 0
    %v8100 = vsel %vm5306, %v8068, 0
    %v8103 = vsel %vm375, %v8076, 0
    %8105 = vmatprep.subr.bf16.mxu0 0
    %8106 = vmatpush1.bf16.msra.mxu0 %v8075
    %8107 = vmatprep.subr.bf16.mxu0 0
    %8108 = vmatpush1.bf16.msra.mxu0 %v8103
    %8109 = vmatprep.subr.bf16.mxu0 0
    %8110 = vmatpush1.bf16.msra.mxu0 0
    %8111 = vmatprep.subr.bf16.mxu0 0
    %8112 = vmatpush1.bf16.msra.mxu0 0
    %8113 = vmatprep.subr.bf16.mxu0 0
    %8114 = vmatpush1.bf16.msra.mxu0 0
    %8115 = vmatprep.subr.bf16.mxu0 0
    %8116 = vmatpush1.bf16.msra.mxu0 0
    %8117 = vmatprep.subr.bf16.mxu0 0
    %8118 = vmatpush1.bf16.msra.mxu0 0
    %8119 = vmatprep.subr.bf16.mxu0 0
    %8120 = vmatpush1.bf16.msra.mxu0 0
    %8121 = vmatprep.subr.bf16.mxu0 0
    %8122 = vmatpush1.bf16.msra.mxu0 0
    %8123 = vmatprep.subr.bf16.mxu0 0
    %8124 = vmatpush1.bf16.msra.mxu0 0
    %8125 = vmatprep.subr.bf16.mxu0 0
    %8126 = vmatpush1.bf16.msra.mxu0 0
    %8127 = vmatprep.subr.bf16.mxu0 0
    %8128 = vmatpush1.bf16.msra.mxu0 0
    %8129 = vmatprep.subr.bf16.mxu0 0
    %8130 = vmatpush1.bf16.msra.mxu0 0
    %8131 = vmatprep.subr.bf16.mxu0 0
    %8132 = vmatpush1.bf16.msra.mxu0 0
    %8133 = vmatprep.subr.bf16.mxu0 0
    %8134 = vmatpush1.bf16.msra.mxu0 0
    %8135 = vmatprep.subr.bf16.mxu0 0
    %8136 = vmatpush1.bf16.msra.mxu0 0
    %8137 = vmatprep.mubr.bf16.mxu0 0
    %8138 = vmatmul.mubr.bf16.gmra.mrb[0].mxu0 %v8079
    %v8139 = vpop.f32.mrb[0].mxu0
    %v8140 = vadd.f32 0.0, %v8139
    %v8141 = vpop.f32.mrb[0].mxu0
    %v8142 = vpop.f32.mrb[0].mxu0
    %v8143 = vadd.f32 0.0, %v8142
    %v8144 = vpop.f32.mrb[0].mxu0
    %8145 = vmatprep.mubr.bf16.mxu0 0
    %8146 = vmatmul.mubr.bf16.gmra.mrb[0].mxu0 %v8082
    %v8147 = vpop.f32.mrb[0].mxu0
    %v8148 = vadd.f32 0.0, %v8147
    %v8149 = vpop.f32.mrb[0].mxu0
    %v8150 = vpop.f32.mrb[0].mxu0
    %v8151 = vadd.f32 0.0, %v8150
    %v8152 = vpop.f32.mrb[0].mxu0
    %8153 = vmatprep.mubr.bf16.mxu0 0
    %8154 = vmatmul.mubr.bf16.gmra.mrb[0].mxu0 %v8085
    %v8155 = vpop.f32.mrb[0].mxu0
    %v8156 = vadd.f32 0.0, %v8155
    %v8157 = vpop.f32.mrb[0].mxu0
    %v8158 = vpop.f32.mrb[0].mxu0
    %v8159 = vadd.f32 0.0, %v8158
    %v8160 = vpop.f32.mrb[0].mxu0
    %8161 = vmatprep.mubr.bf16.mxu0 0
    %8162 = vmatmul.mubr.bf16.gmra.mrb[0].mxu0 %v8088
    %v8163 = vpop.f32.mrb[0].mxu0
    %v8164 = vadd.f32 0.0, %v8163
    %v8165 = vpop.f32.mrb[0].mxu0
    %v8166 = vpop.f32.mrb[0].mxu0
    %v8167 = vadd.f32 0.0, %v8166
    %v8168 = vpop.f32.mrb[0].mxu0
    %8169 = vmatprep.mubr.bf16.mxu0 0
    %8170 = vmatmul.mubr.bf16.gmra.mrb[0].mxu0 %v8091
    %v8171 = vpop.f32.mrb[0].mxu0
    %v8172 = vadd.f32 0.0, %v8171
    %v8173 = vpop.f32.mrb[0].mxu0
    %v8174 = vpop.f32.mrb[0].mxu0
    %v8175 = vadd.f32 0.0, %v8174
    %v8176 = vpop.f32.mrb[0].mxu0
    %8177 = vmatprep.mubr.bf16.mxu0 0
    %8178 = vmatmul.mubr.bf16.gmra.mrb[0].mxu0 %v8094
    %v8179 = vpop.f32.mrb[0].mxu0
    %v8180 = vadd.f32 0.0, %v8179
    %v8181 = vpop.f32.mrb[0].mxu0
    %v8182 = vpop.f32.mrb[0].mxu0
    %v8183 = vadd.f32 0.0, %v8182
    %v8184 = vpop.f32.mrb[0].mxu0
    %8185 = vmatprep.mubr.bf16.mxu0 0
    %8186 = vmatmul.mubr.bf16.gmra.mrb[0].mxu0 %v8097
    %v8187 = vpop.f32.mrb[0].mxu0
    %v8188 = vadd.f32 0.0, %v8187
    %v8189 = vpop.f32.mrb[0].mxu0
    %v8190 = vpop.f32.mrb[0].mxu0
    %v8191 = vadd.f32 0.0, %v8190
    %v8192 = vpop.f32.mrb[0].mxu0
    %8193 = vmatprep.mubr.bf16.mxu0 0
    %8194 = vmatmul.mubr.bf16.gmra.mrb[0].mxu0 %v8100
    %v8195 = vpop.f32.mrb[0].mxu0
    %v8196 = vadd.f32 0.0, %v8195
    %v8197 = vpop.f32.mrb[0].mxu0
    %v8198 = vpop.f32.mrb[0].mxu0
    %v8199 = vadd.f32 0.0, %v8198
    %v8200 = vpop.f32.mrb[0].mxu0
    %8201 = vdwg.mxu0
    %v8202 = vadd.f32 %v7909, %v8140
    %v8203 = vadd.f32 %v7910, %v8143
    %v8204 = vadd.f32 %v7911, %v8148
    %v8205 = vadd.f32 %v7912, %v8151
    %v8206 = vadd.f32 %v7913, %v8156
    %v8207 = vadd.f32 %v7914, %v8159
    %v8208 = vadd.f32 %v7915, %v8164
    %v8209 = vadd.f32 %v7916, %v8167
    %v8210 = vadd.f32 %v7917, %v8172
    %v8211 = vadd.f32 %v7918, %v8175
    %v8212 = vadd.f32 %v7919, %v8180
    %v8213 = vadd.f32 %v7920, %v8183
    %v8214 = vadd.f32 %v7921, %v8188
    %v8215 = vadd.f32 %v7922, %v8191
    %v8216 = vadd.f32 %v7923, %v8196
    %v8217 = vadd.f32 %v7924, %v8199
    %v8222 = vrot.slane %v7933, 5
    %v8223 = vrot.slane %v8222, 4
    %v8224 = vrot.slane %v7143, 5
    %v8225 = vsel %vm3749, %v8223, %v8224
    %v8226 = vrot.slane %v7943, 5
    %v8227 = vrot.slane %v8226, 4
    %v8228 = vrot.slane %v7163, 5
    %v8229 = vsel %vm3749, %v8227, %v8228
    %s8230 = scalar_lea.vmem %s2, 60
    %v8231 = vld [vmem:[%s8230] sm:$0xf]
    %v8232 = vld [vmem:[%s8230 + $0x4] sm:$0xf]
    %v8233 = vld [vmem:[%s8230 + $0x8] sm:$0x3]
    %v8234 = vunpack.c.l.b16 %v8225
    %v8235 = vunpack.c.l.b16 %v8229
    %v8236 = vpack.c.b16 %v8047, %v8046
    %v8237 = vpack.c.b16 %v8049, %v8048
    %v8238 = vpack.c.b16 %v8051, %v8050
    %v8239 = vpack.c.b16 %v8234, %v8052
    %v8240 = vpack.c.b16 %v8055, %v8054
    %v8241 = vpack.c.b16 %v8057, %v8056
    %v8242 = vpack.c.b16 %v8059, %v8058
    %v8243 = vpack.c.b16 %v8235, %v8060
    %v8247 = vunpack.c.l.b16 %v8231
    %v8248 = vunpack.c.l.b16 %v8232
    %v8249 = vunpack.c.l.b16 %v8233
    %v8250 = vpack.c.b16 %v8248, %v8247
    %v8251 = vpack.c.b16 %v8249, %v8249
    %v8254 = vsel %vm5306, %v8236, 0
    %v8257 = vsel %vm5306, %v8237, 0
    %v8260 = vsel %vm5306, %v8238, 0
    %v8263 = vsel %vm5306, %v8239, 0
    %v8266 = vsel %vm5306, %v8240, 0
    %v8269 = vsel %vm5306, %v8241, 0
    %v8272 = vsel %vm5306, %v8242, 0
    %v8275 = vsel %vm5306, %v8243, 0
    %v8278 = vsel %vm375, %v8251, 0
    %8280 = vmatprep.subr.bf16.mxu0 0
    %8281 = vmatpush1.bf16.msra.mxu0 %v8250
    %8282 = vmatprep.subr.bf16.mxu0 0
    %8283 = vmatpush1.bf16.msra.mxu0 %v8278
    %8284 = vmatprep.subr.bf16.mxu0 0
    %8285 = vmatpush1.bf16.msra.mxu0 0
    %8286 = vmatprep.subr.bf16.mxu0 0
    %8287 = vmatpush1.bf16.msra.mxu0 0
    %8288 = vmatprep.subr.bf16.mxu0 0
    %8289 = vmatpush1.bf16.msra.mxu0 0
    %8290 = vmatprep.subr.bf16.mxu0 0
    %8291 = vmatpush1.bf16.msra.mxu0 0
    %8292 = vmatprep.subr.bf16.mxu0 0
    %8293 = vmatpush1.bf16.msra.mxu0 0
    %8294 = vmatprep.subr.bf16.mxu0 0
    %8295 = vmatpush1.bf16.msra.mxu0 0
    %8296 = vmatprep.subr.bf16.mxu0 0
    %8297 = vmatpush1.bf16.msra.mxu0 0
    %8298 = vmatprep.subr.bf16.mxu0 0
    %8299 = vmatpush1.bf16.msra.mxu0 0
    %8300 = vmatprep.subr.bf16.mxu0 0
    %8301 = vmatpush1.bf16.msra.mxu0 0
    %8302 = vmatprep.subr.bf16.mxu0 0
    %8303 = vmatpush1.bf16.msra.mxu0 0
    %8304 = vmatprep.subr.bf16.mxu0 0
    %8305 = vmatpush1.bf16.msra.mxu0 0
    %8306 = vmatprep.subr.bf16.mxu0 0
    %8307 = vmatpush1.bf16.msra.mxu0 0
    %8308 = vmatprep.subr.bf16.mxu0 0
    %8309 = vmatpush1.bf16.msra.mxu0 0
    %8310 = vmatprep.subr.bf16.mxu0 0
    %8311 = vmatpush1.bf16.msra.mxu0 0
    %8312 = vmatprep.mubr.bf16.mxu0 0
    %8313 = vmatmul.mubr.bf16.gmra.mrb[0].mxu0 %v8254
    %v8314 = vpop.f32.mrb[0].mxu0
    %v8315 = vadd.f32 0.0, %v8314
    %v8316 = vpop.f32.mrb[0].mxu0
    %v8317 = vpop.f32.mrb[0].mxu0
    %v8318 = vadd.f32 0.0, %v8317
    %v8319 = vpop.f32.mrb[0].mxu0
    %8320 = vmatprep.mubr.bf16.mxu0 0
    %8321 = vmatmul.mubr.bf16.gmra.mrb[0].mxu0 %v8257
    %v8322 = vpop.f32.mrb[0].mxu0
    %v8323 = vadd.f32 0.0, %v8322
    %v8324 = vpop.f32.mrb[0].mxu0
    %v8325 = vpop.f32.mrb[0].mxu0
    %v8326 = vadd.f32 0.0, %v8325
    %v8327 = vpop.f32.mrb[0].mxu0
    %8328 = vmatprep.mubr.bf16.mxu0 0
    %8329 = vmatmul.mubr.bf16.gmra.mrb[0].mxu0 %v8260
    %v8330 = vpop.f32.mrb[0].mxu0
    %v8331 = vadd.f32 0.0, %v8330
    %v8332 = vpop.f32.mrb[0].mxu0
    %v8333 = vpop.f32.mrb[0].mxu0
    %v8334 = vadd.f32 0.0, %v8333
    %v8335 = vpop.f32.mrb[0].mxu0
    %8336 = vmatprep.mubr.bf16.mxu0 0
    %8337 = vmatmul.mubr.bf16.gmra.mrb[0].mxu0 %v8263
    %v8338 = vpop.f32.mrb[0].mxu0
    %v8339 = vadd.f32 0.0, %v8338
    %v8340 = vpop.f32.mrb[0].mxu0
    %v8341 = vpop.f32.mrb[0].mxu0
    %v8342 = vadd.f32 0.0, %v8341
    %v8343 = vpop.f32.mrb[0].mxu0
    %8344 = vmatprep.mubr.bf16.mxu0 0
    %8345 = vmatmul.mubr.bf16.gmra.mrb[0].mxu0 %v8266
    %v8346 = vpop.f32.mrb[0].mxu0
    %v8347 = vadd.f32 0.0, %v8346
    %v8348 = vpop.f32.mrb[0].mxu0
    %v8349 = vpop.f32.mrb[0].mxu0
    %v8350 = vadd.f32 0.0, %v8349
    %v8351 = vpop.f32.mrb[0].mxu0
    %8352 = vmatprep.mubr.bf16.mxu0 0
    %8353 = vmatmul.mubr.bf16.gmra.mrb[0].mxu0 %v8269
    %v8354 = vpop.f32.mrb[0].mxu0
    %v8355 = vadd.f32 0.0, %v8354
    %v8356 = vpop.f32.mrb[0].mxu0
    %v8357 = vpop.f32.mrb[0].mxu0
    %v8358 = vadd.f32 0.0, %v8357
    %v8359 = vpop.f32.mrb[0].mxu0
    %8360 = vmatprep.mubr.bf16.mxu0 0
    %8361 = vmatmul.mubr.bf16.gmra.mrb[0].mxu0 %v8272
    %v8362 = vpop.f32.mrb[0].mxu0
    %v8363 = vadd.f32 0.0, %v8362
    %v8364 = vpop.f32.mrb[0].mxu0
    %v8365 = vpop.f32.mrb[0].mxu0
    %v8366 = vadd.f32 0.0, %v8365
    %v8367 = vpop.f32.mrb[0].mxu0
    %8368 = vmatprep.mubr.bf16.mxu0 0
    %8369 = vmatmul.mubr.bf16.gmra.mrb[0].mxu0 %v8275
    %v8370 = vpop.f32.mrb[0].mxu0
    %v8371 = vadd.f32 0.0, %v8370
    %v8372 = vpop.f32.mrb[0].mxu0
    %v8373 = vpop.f32.mrb[0].mxu0
    %v8374 = vadd.f32 0.0, %v8373
    %v8375 = vpop.f32.mrb[0].mxu0
    %8376 = vdwg.mxu0
    %v8377 = vadd.f32 %v8202, %v8315
    %v8378 = vadd.f32 %v8203, %v8318
    %v8379 = vadd.f32 %v8204, %v8323
    %v8380 = vadd.f32 %v8205, %v8326
    %v8381 = vadd.f32 %v8206, %v8331
    %v8382 = vadd.f32 %v8207, %v8334
    %v8383 = vadd.f32 %v8208, %v8339
    %v8384 = vadd.f32 %v8209, %v8342
    %v8385 = vadd.f32 %v8210, %v8347
    %v8386 = vadd.f32 %v8211, %v8350
    %v8387 = vadd.f32 %v8212, %v8355
    %v8388 = vadd.f32 %v8213, %v8358
    %v8389 = vadd.f32 %v8214, %v8363
    %v8390 = vadd.f32 %v8215, %v8366
    %v8391 = vadd.f32 %v8216, %v8371
    %v8392 = vadd.f32 %v8217, %v8374
    %v8397 = vrot.slane %v7934, 5
    %v8398 = vrot.slane %v8397, 4
    %v8399 = vrot.slane %v7145, 5
    %v8400 = vsel %vm3749, %v8398, %v8399
    %v8401 = vrot.slane %v7944, 5
    %v8402 = vrot.slane %v8401, 4
    %v8403 = vrot.slane %v7165, 5
    %v8404 = vsel %vm3749, %v8402, %v8403
    %s8405 = scalar_lea.vmem %s2, 96
    %v8406 = vld [vmem:[%s8405] sm:$0xf]
    %v8407 = vld [vmem:[%s8405 + $0x4] sm:$0xf]
    %v8408 = vld [vmem:[%s8405 + $0x8] sm:$0x3]
    %v8409 = vunpack.c.l.b16 %v8400
    %v8410 = vunpack.c.l.b16 %v8404
    %v8411 = vpack.c.b16 %v8409, %v8234
    %v8412 = vpack.c.b16 %v8410, %v8235
    %v8416 = vunpack.c.l.b16 %v8406
    %v8417 = vunpack.c.l.b16 %v8407
    %v8418 = vunpack.c.l.b16 %v8408
    %v8419 = vpack.c.b16 %v8417, %v8416
    %v8420 = vpack.c.b16 %v8418, %v8418
    %v8423 = vsel %vm5306, %v8411, 0
    %v8426 = vsel %vm5306, %v8412, 0
    %v8429 = vsel %vm375, %v8420, 0
    %8431 = vmatprep.subr.bf16.mxu0 0
    %8432 = vmatpush1.bf16.msra.mxu0 %v8419
    %8433 = vmatprep.subr.bf16.mxu0 0
    %8434 = vmatpush1.bf16.msra.mxu0 %v8429
    %8435 = vmatprep.subr.bf16.mxu0 0
    %8436 = vmatpush1.bf16.msra.mxu0 0
    %8437 = vmatprep.subr.bf16.mxu0 0
    %8438 = vmatpush1.bf16.msra.mxu0 0
    %8439 = vmatprep.subr.bf16.mxu0 0
    %8440 = vmatpush1.bf16.msra.mxu0 0
    %8441 = vmatprep.subr.bf16.mxu0 0
    %8442 = vmatpush1.bf16.msra.mxu0 0
    %8443 = vmatprep.subr.bf16.mxu0 0
    %8444 = vmatpush1.bf16.msra.mxu0 0
    %8445 = vmatprep.subr.bf16.mxu0 0
    %8446 = vmatpush1.bf16.msra.mxu0 0
    %8447 = vmatprep.subr.bf16.mxu0 0
    %8448 = vmatpush1.bf16.msra.mxu0 0
    %8449 = vmatprep.subr.bf16.mxu0 0
    %8450 = vmatpush1.bf16.msra.mxu0 0
    %8451 = vmatprep.subr.bf16.mxu0 0
    %8452 = vmatpush1.bf16.msra.mxu0 0
    %8453 = vmatprep.subr.bf16.mxu0 0
    %8454 = vmatpush1.bf16.msra.mxu0 0
    %8455 = vmatprep.subr.bf16.mxu0 0
    %8456 = vmatpush1.bf16.msra.mxu0 0
    %8457 = vmatprep.subr.bf16.mxu0 0
    %8458 = vmatpush1.bf16.msra.mxu0 0
    %8459 = vmatprep.subr.bf16.mxu0 0
    %8460 = vmatpush1.bf16.msra.mxu0 0
    %8461 = vmatprep.subr.bf16.mxu0 0
    %8462 = vmatpush1.bf16.msra.mxu0 0
    %8463 = vmatprep.mubr.bf16.mxu0 0
    %8464 = vmatmul.mubr.bf16.gmra.mrb[0].mxu0 %v8082
    %v8465 = vpop.f32.mrb[0].mxu0
    %v8466 = vadd.f32 0.0, %v8465
    %v8467 = vpop.f32.mrb[0].mxu0
    %v8468 = vpop.f32.mrb[0].mxu0
    %v8469 = vadd.f32 0.0, %v8468
    %v8470 = vpop.f32.mrb[0].mxu0
    %8471 = vmatprep.mubr.bf16.mxu0 0
    %8472 = vmatmul.mubr.bf16.gmra.mrb[0].mxu0 %v8085
    %v8473 = vpop.f32.mrb[0].mxu0
    %v8474 = vadd.f32 0.0, %v8473
    %v8475 = vpop.f32.mrb[0].mxu0
    %v8476 = vpop.f32.mrb[0].mxu0
    %v8477 = vadd.f32 0.0, %v8476
    %v8478 = vpop.f32.mrb[0].mxu0
    %8479 = vmatprep.mubr.bf16.mxu0 0
    %8480 = vmatmul.mubr.bf16.gmra.mrb[0].mxu0 %v8088
    %v8481 = vpop.f32.mrb[0].mxu0
    %v8482 = vadd.f32 0.0, %v8481
    %v8483 = vpop.f32.mrb[0].mxu0
    %v8484 = vpop.f32.mrb[0].mxu0
    %v8485 = vadd.f32 0.0, %v8484
    %v8486 = vpop.f32.mrb[0].mxu0
    %8487 = vmatprep.mubr.bf16.mxu0 0
    %8488 = vmatmul.mubr.bf16.gmra.mrb[0].mxu0 %v8423
    %v8489 = vpop.f32.mrb[0].mxu0
    %v8490 = vadd.f32 0.0, %v8489
    %v8491 = vpop.f32.mrb[0].mxu0
    %v8492 = vpop.f32.mrb[0].mxu0
    %v8493 = vadd.f32 0.0, %v8492
    %v8494 = vpop.f32.mrb[0].mxu0
    %8495 = vmatprep.mubr.bf16.mxu0 0
    %8496 = vmatmul.mubr.bf16.gmra.mrb[0].mxu0 %v8094
    %v8497 = vpop.f32.mrb[0].mxu0
    %v8498 = vadd.f32 0.0, %v8497
    %v8499 = vpop.f32.mrb[0].mxu0
    %v8500 = vpop.f32.mrb[0].mxu0
    %v8501 = vadd.f32 0.0, %v8500
    %v8502 = vpop.f32.mrb[0].mxu0
    %8503 = vmatprep.mubr.bf16.mxu0 0
    %8504 = vmatmul.mubr.bf16.gmra.mrb[0].mxu0 %v8097
    %v8505 = vpop.f32.mrb[0].mxu0
    %v8506 = vadd.f32 0.0, %v8505
    %v8507 = vpop.f32.mrb[0].mxu0
    %v8508 = vpop.f32.mrb[0].mxu0
    %v8509 = vadd.f32 0.0, %v8508
    %v8510 = vpop.f32.mrb[0].mxu0
    %8511 = vmatprep.mubr.bf16.mxu0 0
    %8512 = vmatmul.mubr.bf16.gmra.mrb[0].mxu0 %v8100
    %v8513 = vpop.f32.mrb[0].mxu0
    %v8514 = vadd.f32 0.0, %v8513
    %v8515 = vpop.f32.mrb[0].mxu0
    %v8516 = vpop.f32.mrb[0].mxu0
    %v8517 = vadd.f32 0.0, %v8516
    %v8518 = vpop.f32.mrb[0].mxu0
    %8519 = vmatprep.mubr.bf16.mxu0 0
    %8520 = vmatmul.mubr.bf16.gmra.mrb[0].mxu0 %v8426
    %v8521 = vpop.f32.mrb[0].mxu0
    %v8522 = vadd.f32 0.0, %v8521
    %v8523 = vpop.f32.mrb[0].mxu0
    %v8524 = vpop.f32.mrb[0].mxu0
    %v8525 = vadd.f32 0.0, %v8524
    %v8526 = vpop.f32.mrb[0].mxu0
    %8527 = vdwg.mxu0
    %v8528 = vadd.f32 %v8377, %v8466
    %v8529 = vadd.f32 %v8378, %v8469
    %v8530 = vadd.f32 %v8379, %v8474
    %v8531 = vadd.f32 %v8380, %v8477
    %v8532 = vadd.f32 %v8381, %v8482
    %v8533 = vadd.f32 %v8382, %v8485
    %v8534 = vadd.f32 %v8383, %v8490
    %v8535 = vadd.f32 %v8384, %v8493
    %v8536 = vadd.f32 %v8385, %v8498
    %v8537 = vadd.f32 %v8386, %v8501
    %v8538 = vadd.f32 %v8387, %v8506
    %v8539 = vadd.f32 %v8388, %v8509
    %v8540 = vadd.f32 %v8389, %v8514
    %v8541 = vadd.f32 %v8390, %v8517
    %v8542 = vadd.f32 %v8391, %v8522
    %v8543 = vadd.f32 %v8392, %v8525
    %v8544 = vld [vmem:[%s6] sm:$0x1]
    %v8545 = vld [vmem:[%s7] sm:$0x1]
    %vm8546 = vcmask 244736
    %v8547 = vsel %vm8546, %v8528, 0.0
    %v8548 = vsel %vm8546, %v8529, 0.0
    %v8549 = vadd.f32 %v8547, %v8548
    %v8550 = vsel %vm8546, %v8530, 0.0
    %v8551 = vadd.f32 %v8549, %v8550
    %v8552 = vsel %vm8546, %v8531, 0.0
    %v8553 = vadd.f32 %v8551, %v8552
    %v8554 = vsel %vm8546, %v8532, 0.0
    %v8555 = vadd.f32 %v8553, %v8554
    %v8556 = vsel %vm8546, %v8533, 0.0
    %v8557 = vadd.f32 %v8555, %v8556
    %v8558 = vsel %vm8546, %v8534, 0.0
    %v8559 = vadd.f32 %v8557, %v8558
    %v8560 = vsel %vm8546, %v8535, 0.0
    %v8561 = vadd.f32 %v8559, %v8560
    %v8562 = vsel %vm8546, %v8536, 0.0
    %v8563 = vadd.f32 %v8561, %v8562
    %v8564 = vsel %vm8546, %v8537, 0.0
    %v8565 = vadd.f32 %v8563, %v8564
    %v8566 = vsel %vm8546, %v8538, 0.0
    %v8567 = vadd.f32 %v8565, %v8566
    %v8568 = vsel %vm8546, %v8539, 0.0
    %v8569 = vadd.f32 %v8567, %v8568
    %v8570 = vsel %vm8546, %v8540, 0.0
    %v8571 = vadd.f32 %v8569, %v8570
    %v8572 = vsel %vm8546, %v8541, 0.0
    %v8573 = vadd.f32 %v8571, %v8572
    %v8574 = vsel %vm8546, %v8542, 0.0
    %v8575 = vadd.f32 %v8573, %v8574
    %v8576 = vsel %vm8546, %v8543, 0.0
    %v8577 = vadd.f32 %v8575, %v8576
    %v8578 = vrot.slane %v8577, 4
    %v8579 = vadd.f32 %v8577, %v8578
    %v8580 = vrot.slane %v8579, 2
    %v8581 = vadd.f32 %v8579, %v8580
    %v8582 = vrot.slane %v8581, 1
    %v8583 = vadd.f32 %v8581, %v8582
    %v8584 = vmul.f32 %v8583, 0.0078125
    %v8585 = vsub.f32 %v8528, %v8584
    %v8586 = vsub.f32 %v8529, %v8584
    %v8587 = vsub.f32 %v8530, %v8584
    %v8588 = vsub.f32 %v8531, %v8584
    %v8589 = vsub.f32 %v8532, %v8584
    %v8590 = vsub.f32 %v8533, %v8584
    %v8591 = vsub.f32 %v8534, %v8584
    %v8592 = vsub.f32 %v8535, %v8584
    %v8593 = vsub.f32 %v8536, %v8584
    %v8594 = vsub.f32 %v8537, %v8584
    %v8595 = vsub.f32 %v8538, %v8584
    %v8596 = vsub.f32 %v8539, %v8584
    %v8597 = vsub.f32 %v8540, %v8584
    %v8598 = vsub.f32 %v8541, %v8584
    %v8599 = vsub.f32 %v8542, %v8584
    %v8600 = vsub.f32 %v8543, %v8584
    %v8601 = vmul.f32 %v8585, %v8585
    %v8602 = vmul.f32 %v8586, %v8586
    %v8603 = vmul.f32 %v8587, %v8587
    %v8604 = vmul.f32 %v8588, %v8588
    %v8605 = vmul.f32 %v8589, %v8589
    %v8606 = vmul.f32 %v8590, %v8590
    %v8607 = vmul.f32 %v8591, %v8591
    %v8608 = vmul.f32 %v8592, %v8592
    %v8609 = vmul.f32 %v8593, %v8593
    %v8610 = vmul.f32 %v8594, %v8594
    %v8611 = vmul.f32 %v8595, %v8595
    %v8612 = vmul.f32 %v8596, %v8596
    %v8613 = vmul.f32 %v8597, %v8597
    %v8614 = vmul.f32 %v8598, %v8598
    %v8615 = vmul.f32 %v8599, %v8599
    %v8616 = vmul.f32 %v8600, %v8600
    %v8617 = vsel %vm8546, %v8601, 0.0
    %v8618 = vsel %vm8546, %v8602, 0.0
    %v8619 = vadd.f32 %v8617, %v8618
    %v8620 = vsel %vm8546, %v8603, 0.0
    %v8621 = vadd.f32 %v8619, %v8620
    %v8622 = vsel %vm8546, %v8604, 0.0
    %v8623 = vadd.f32 %v8621, %v8622
    %v8624 = vsel %vm8546, %v8605, 0.0
    %v8625 = vadd.f32 %v8623, %v8624
    %v8626 = vsel %vm8546, %v8606, 0.0
    %v8627 = vadd.f32 %v8625, %v8626
    %v8628 = vsel %vm8546, %v8607, 0.0
    %v8629 = vadd.f32 %v8627, %v8628
    %v8630 = vsel %vm8546, %v8608, 0.0
    %v8631 = vadd.f32 %v8629, %v8630
    %v8632 = vsel %vm8546, %v8609, 0.0
    %v8633 = vadd.f32 %v8631, %v8632
    %v8634 = vsel %vm8546, %v8610, 0.0
    %v8635 = vadd.f32 %v8633, %v8634
    %v8636 = vsel %vm8546, %v8611, 0.0
    %v8637 = vadd.f32 %v8635, %v8636
    %v8638 = vsel %vm8546, %v8612, 0.0
    %v8639 = vadd.f32 %v8637, %v8638
    %v8640 = vsel %vm8546, %v8613, 0.0
    %v8641 = vadd.f32 %v8639, %v8640
    %v8642 = vsel %vm8546, %v8614, 0.0
    %v8643 = vadd.f32 %v8641, %v8642
    %v8644 = vsel %vm8546, %v8615, 0.0
    %v8645 = vadd.f32 %v8643, %v8644
    %v8646 = vsel %vm8546, %v8616, 0.0
    %v8647 = vadd.f32 %v8645, %v8646
    %v8648 = vrot.slane %v8647, 4
    %v8649 = vadd.f32 %v8647, %v8648
    %v8650 = vrot.slane %v8649, 2
    %v8651 = vadd.f32 %v8649, %v8650
    %v8652 = vrot.slane %v8651, 1
    %v8653 = vadd.f32 %v8651, %v8652
    %v8654 = vmul.f32 %v8653, 0.0078125
    %v8655 = vadd.f32 %v8654, 1e-05
    %v8656 = vrsqrt.pop %v8655
    %v8657 = vmul.f32 %v8544, %v8656
    %v8658 = vmul.f32 %v8584, %v8657
    %v8659 = vsub.f32 %v8545, %v8658
    %v8661 = vlaneseq
    %v8662 = vshrl.u32 %v8661, 7
    %v8663 = vsub.s32 0, %v8662
    %v8664 = vrot.slane %v8657, %v8663
    %v8666 = vmul.f32 %v8528, %v8664
    %v8667 = vmul.f32 %v8529, %v8664
    %v8668 = vmul.f32 %v8530, %v8664
    %v8669 = vmul.f32 %v8531, %v8664
    %v8670 = vmul.f32 %v8532, %v8664
    %v8671 = vmul.f32 %v8533, %v8664
    %v8672 = vmul.f32 %v8534, %v8664
    %v8673 = vmul.f32 %v8535, %v8664
    %v8674 = vmul.f32 %v8536, %v8664
    %v8675 = vmul.f32 %v8537, %v8664
    %v8676 = vmul.f32 %v8538, %v8664
    %v8677 = vmul.f32 %v8539, %v8664
    %v8678 = vmul.f32 %v8540, %v8664
    %v8679 = vmul.f32 %v8541, %v8664
    %v8680 = vmul.f32 %v8542, %v8664
    %v8681 = vmul.f32 %v8543, %v8664
    %v8683 = vlaneseq
    %v8684 = vshrl.u32 %v8683, 7
    %v8685 = vsub.s32 0, %v8684
    %v8686 = vrot.slane %v8659, %v8685
    %v8688 = vadd.f32 %v8666, %v8686
    %v8689 = vadd.f32 %v8667, %v8686
    %v8690 = vadd.f32 %v8668, %v8686
    %v8691 = vadd.f32 %v8669, %v8686
    %v8692 = vadd.f32 %v8670, %v8686
    %v8693 = vadd.f32 %v8671, %v8686
    %v8694 = vadd.f32 %v8672, %v8686
    %v8695 = vadd.f32 %v8673, %v8686
    %v8696 = vadd.f32 %v8674, %v8686
    %v8697 = vadd.f32 %v8675, %v8686
    %v8698 = vadd.f32 %v8676, %v8686
    %v8699 = vadd.f32 %v8677, %v8686
    %v8700 = vadd.f32 %v8678, %v8686
    %v8701 = vadd.f32 %v8679, %v8686
    %v8702 = vadd.f32 %v8680, %v8686
    %v8703 = vadd.f32 %v8681, %v8686
    %v8704 = vmax.f32 %v8688, 0.0
    %v8705 = vmax.f32 %v8689, 0.0
    %v8706 = vmax.f32 %v8690, 0.0
    %v8707 = vmax.f32 %v8691, 0.0
    %v8708 = vmax.f32 %v8692, 0.0
    %v8709 = vmax.f32 %v8693, 0.0
    %v8710 = vmax.f32 %v8694, 0.0
    %v8711 = vmax.f32 %v8695, 0.0
    %v8712 = vmax.f32 %v8696, 0.0
    %v8713 = vmax.f32 %v8697, 0.0
    %v8714 = vmax.f32 %v8698, 0.0
    %v8715 = vmax.f32 %v8699, 0.0
    %v8716 = vmax.f32 %v8700, 0.0
    %v8717 = vmax.f32 %v8701, 0.0
    %v8718 = vmax.f32 %v8702, 0.0
    %v8719 = vmax.f32 %v8703, 0.0
    %v8720 = vmax.f32 %v8704, %v8705
    %v8721 = vmax.f32 %v8706, %v8707
    %v8722 = vmax.f32 %v8708, %v8709
    %v8723 = vmax.f32 %v8710, %v8711
    %v8724 = vmax.f32 %v8712, %v8713
    %v8725 = vmax.f32 %v8714, %v8715
    %v8726 = vmax.f32 %v8716, %v8717
    %v8727 = vmax.f32 %v8718, %v8719
    %v8736 = vrot.slane %v8720, 1
    %v8737 = vrot.slane %v8721, 1
    %v8738 = vrot.slane %v8722, 1
    %v8739 = vrot.slane %v8723, 1
    %v8740 = vrot.slane %v8724, 1
    %v8741 = vrot.slane %v8725, 1
    %v8742 = vrot.slane %v8726, 1
    %v8743 = vrot.slane %v8727, 1
    %v8752 = vmax.f32 %v8720, %v8736
    %v8753 = vmax.f32 %v8721, %v8737
    %v8754 = vmax.f32 %v8722, %v8738
    %v8755 = vmax.f32 %v8723, %v8739
    %v8756 = vmax.f32 %v8724, %v8740
    %v8757 = vmax.f32 %v8725, %v8741
    %v8758 = vmax.f32 %v8726, %v8742
    %v8759 = vmax.f32 %v8727, %v8743
    %v8768 = vrot.slane %v8752, 7
    %v8769 = vrot.slane %v8753, 7
    %v8770 = vrot.slane %v8754, 7
    %v8771 = vrot.slane %v8755, 7
    %v8772 = vrot.slane %v8756, 7
    %v8773 = vrot.slane %v8757, 7
    %v8774 = vrot.slane %v8758, 7
    %v8775 = vrot.slane %v8759, 7
    %v8784 = vrot.slane %v8752, 1
    %v8785 = vrot.slane %v8753, 1
    %v8786 = vrot.slane %v8754, 1
    %v8787 = vrot.slane %v8755, 1
    %v8788 = vrot.slane %v8756, 1
    %v8789 = vrot.slane %v8757, 1
    %v8790 = vrot.slane %v8758, 1
    %v8791 = vrot.slane %v8759, 1
    %v8800 = vrot.slane %v8752, 2
    %v8801 = vrot.slane %v8753, 2
    %v8802 = vrot.slane %v8754, 2
    %v8803 = vrot.slane %v8755, 2
    %v8804 = vrot.slane %v8756, 2
    %v8805 = vrot.slane %v8757, 2
    %v8806 = vrot.slane %v8758, 2
    %v8807 = vrot.slane %v8759, 2
    %v8816 = vsel %vm6328, 0.0, %v8768
    %v8817 = vsel %vm6328, 0.0, %v8769
    %v8818 = vsel %vm6328, 0.0, %v8770
    %v8819 = vsel %vm6328, 0.0, %v8771
    %v8820 = vsel %vm6328, 0.0, %v8772
    %v8821 = vsel %vm6328, 0.0, %v8773
    %v8822 = vsel %vm6328, 0.0, %v8774
    %v8823 = vsel %vm6328, 0.0, %v8775
    %v8824 = vsel %vm375, %v8816, %v8752
    %v8825 = vsel %vm375, %v8817, %v8753
    %v8826 = vsel %vm375, %v8818, %v8754
    %v8827 = vsel %vm375, %v8819, %v8755
    %v8828 = vsel %vm375, %v8820, %v8756
    %v8829 = vsel %vm375, %v8821, %v8757
    %v8830 = vsel %vm375, %v8822, %v8758
    %v8831 = vsel %vm375, %v8823, %v8759
    %v8832 = vsel %vm6361, %v8824, %v8784
    %v8833 = vsel %vm6361, %v8825, %v8785
    %v8834 = vsel %vm6361, %v8826, %v8786
    %v8835 = vsel %vm6361, %v8827, %v8787
    %v8836 = vsel %vm6361, %v8828, %v8788
    %v8837 = vsel %vm6361, %v8829, %v8789
    %v8838 = vsel %vm6361, %v8830, %v8790
    %v8839 = vsel %vm6361, %v8831, %v8791
    %v8840 = vsel %vm6378, %v8832, %v8800
    %v8841 = vsel %vm6378, %v8833, %v8801
    %v8842 = vsel %vm6378, %v8834, %v8802
    %v8843 = vsel %vm6378, %v8835, %v8803
    %v8844 = vsel %vm6378, %v8836, %v8804
    %v8845 = vsel %vm6378, %v8837, %v8805
    %v8846 = vsel %vm6378, %v8838, %v8806
    %v8847 = vsel %vm6378, %v8839, %v8807
    %v8848 = vsel %vm6395, %v8840, 0.0
    %v8849 = vsel %vm6395, %v8841, 0.0
    %v8850 = vsel %vm6395, %v8842, 0.0
    %v8851 = vsel %vm6395, %v8843, 0.0
    %v8852 = vsel %vm6395, %v8844, 0.0
    %v8853 = vsel %vm6395, %v8845, 0.0
    %v8854 = vsel %vm6395, %v8846, 0.0
    %v8855 = vsel %vm6395, %v8847, 0.0
    %v8856 = vpack.c.bf16 0.0, %v8848
    %v8857 = vpack.c.bf16 0.0, %v8849
    %v8858 = vpack.c.bf16 0.0, %v8850
    %v8859 = vpack.c.bf16 0.0, %v8851
    %v8860 = vpack.c.bf16 0.0, %v8852
    %v8861 = vpack.c.bf16 0.0, %v8853
    %v8862 = vpack.c.bf16 0.0, %v8854
    %v8863 = vpack.c.bf16 0.0, %v8855
    %v8872 = vunpack.c.l.b16 %v8856
    %v8873 = vunpack.c.h.b16 %v8856
    %v8874 = vunpack.c.l.b16 %v8857
    %v8875 = vunpack.c.h.b16 %v8857
    %v8876 = vunpack.c.l.b16 %v8858
    %v8877 = vunpack.c.h.b16 %v8858
    %v8878 = vunpack.c.l.b16 %v8859
    %v8879 = vunpack.c.h.b16 %v8859
    %v8880 = vunpack.c.l.b16 %v8860
    %v8881 = vunpack.c.h.b16 %v8860
    %v8882 = vunpack.c.l.b16 %v8861
    %v8883 = vunpack.c.h.b16 %v8861
    %v8884 = vunpack.c.l.b16 %v8862
    %v8885 = vunpack.c.h.b16 %v8862
    %v8886 = vunpack.c.l.b16 %v8863
    %v8887 = vunpack.c.h.b16 %v8863
    %v8888 = vpack.c.b16 %v8872, %v8872
    %v8889 = vpack.c.b16 %v8873, %v8873
    %v8890 = vpack.c.b16 %v8874, %v8874
    %v8891 = vpack.c.b16 %v8875, %v8875
    %v8892 = vpack.c.b16 %v8876, %v8876
    %v8893 = vpack.c.b16 %v8877, %v8877
    %v8894 = vpack.c.b16 %v8878, %v8878
    %v8895 = vpack.c.b16 %v8879, %v8879
    %v8896 = vpack.c.b16 %v8880, %v8880
    %v8897 = vpack.c.b16 %v8881, %v8881
    %v8898 = vpack.c.b16 %v8882, %v8882
    %v8899 = vpack.c.b16 %v8883, %v8883
    %v8900 = vpack.c.b16 %v8884, %v8884
    %v8901 = vpack.c.b16 %v8885, %v8885
    %v8902 = vpack.c.b16 %v8886, %v8886
    %v8903 = vpack.c.b16 %v8887, %v8887
    %vm8920 = vcmask 240640
    %8921 = vst.msk [vmem:[#allocation3] sm:$0xf] %vm8920, %v6530
    %vm8922 = vcmask 237568
    %8923 = vst.msk [vmem:[#allocation3 + $0x4] sm:$0x1] %vm8922, %v6531
    %8924 = vst.msk [vmem:[#allocation3 + $0x8] sm:$0xf] %vm8920, %v8888
    %8925 = vst.msk [vmem:[#allocation3 + $0xc] sm:$0x1] %vm8922, %v8889
    %8926 = vst.msk [vmem:[#allocation3 + $0x10] sm:$0xf] %vm8920, %v8890
    %8927 = vst.msk [vmem:[#allocation3 + $0x14] sm:$0x1] %vm8922, %v8891
    %8928 = vst.msk [vmem:[#allocation3 + $0x18] sm:$0xf] %vm8920, %v8892
    %8929 = vst.msk [vmem:[#allocation3 + $0x1c] sm:$0x1] %vm8922, %v8893
    %8930 = vst.msk [vmem:[#allocation3 + $0x20] sm:$0xf] %vm8920, %v8894
    %8931 = vst.msk [vmem:[#allocation3 + $0x24] sm:$0x1] %vm8922, %v8895
    %8932 = vst.msk [vmem:[#allocation3 + $0x28] sm:$0xf] %vm8920, %v6530
    %8933 = vst.msk [vmem:[#allocation3 + $0x2c] sm:$0x1] %vm8922, %v6531
    %8934 = vst.msk [vmem:[#allocation3 + $0x30] sm:$0xf] %vm8920, %v6530
    %8935 = vst.msk [vmem:[#allocation3 + $0x34] sm:$0x1] %vm8922, %v6531
    %8936 = vst.msk [vmem:[#allocation3 + $0x38] sm:$0xf] %vm8920, %v8896
    %8937 = vst.msk [vmem:[#allocation3 + $0x3c] sm:$0x1] %vm8922, %v8897
    %8938 = vst.msk [vmem:[#allocation3 + $0x40] sm:$0xf] %vm8920, %v8898
    %8939 = vst.msk [vmem:[#allocation3 + $0x44] sm:$0x1] %vm8922, %v8899
    %8940 = vst.msk [vmem:[#allocation3 + $0x48] sm:$0xf] %vm8920, %v8900
    %8941 = vst.msk [vmem:[#allocation3 + $0x4c] sm:$0x1] %vm8922, %v8901
    %8942 = vst.msk [vmem:[#allocation3 + $0x50] sm:$0xf] %vm8920, %v8902
    %8943 = vst.msk [vmem:[#allocation3 + $0x54] sm:$0x1] %vm8922, %v8903
    %8944 = vst.msk [vmem:[#allocation3 + $0x58] sm:$0xf] %vm8920, %v6530
    %8945 = vst.msk [vmem:[#allocation3 + $0x5c] sm:$0x1] %vm8922, %v6531
    %v8946 = vld [vmem:[#allocation3] sm:$0xf]
    %v8947 = vld [vmem:[#allocation3 + $0x8] sm:$0xf]
    %v8948 = vld [vmem:[#allocation3 + $0x10] sm:$0xf]
    %v8949 = vld [vmem:[#allocation3 + $0x18] sm:$0xf]
    %v8950 = vld [vmem:[#allocation3 + $0x20] sm:$0xf]
    %v8951 = vld [vmem:[#allocation3 + $0x28] sm:$0xf]
    %v8952 = vld [vmem:[#allocation3 + $0x30] sm:$0xf]
    %v8953 = vld [vmem:[#allocation3 + $0x38] sm:$0xf]
    %v8954 = vld [vmem:[#allocation3 + $0x40] sm:$0xf]
    %v8955 = vld [vmem:[#allocation3 + $0x48] sm:$0xf]
    %v8956 = vld [vmem:[#allocation3 + $0x50] sm:$0xf]
    %v8957 = vld [vmem:[#allocation3 + $0x58] sm:$0xf]
    %v8958 = vld [vmem:[%s3] sm:$0xf]
    %v8959 = vld [vmem:[%s3 + $0x4] sm:$0xf]
    %v8960 = vld [vmem:[%s3 + $0x8] sm:$0xf]
    %v8961 = vld [vmem:[%s3 + $0xc] sm:$0x7]
    %s8962 = scalar_lea.vmem %s3, 48
    %v8963 = vld [vmem:[%s8962] sm:$0xf]
    %v8964 = vld [vmem:[%s8962 + $0x4] sm:$0xf]
    %v8965 = vld [vmem:[%s8962 + $0x8] sm:$0xf]
    %v8966 = vld [vmem:[%s8962 + $0xc] sm:$0x7]
    %v8975 = vunpack.c.l.b16 %v8947
    %v8976 = vunpack.c.l.b16 %v8948
    %v8977 = vunpack.c.l.b16 %v8949
    %v8978 = vunpack.c.l.b16 %v8950
    %v8979 = vunpack.c.l.b16 %v8953
    %v8980 = vunpack.c.l.b16 %v8954
    %v8981 = vunpack.c.l.b16 %v8955
    %v8982 = vunpack.c.l.b16 %v8956
    %v8983 = vpack.c.b16 %v8976, %v8975
    %v8984 = vpack.c.b16 %v8978, %v8977
    %v8985 = vpack.c.b16 %v8980, %v8979
    %v8986 = vpack.c.b16 %v8982, %v8981
    %v8991 = vunpack.c.l.b16 %v8963
    %v8992 = vunpack.c.l.b16 %v8964
    %v8993 = vunpack.c.l.b16 %v8965
    %v8994 = vunpack.c.l.b16 %v8966
    %v8995 = vpack.c.b16 %v8992, %v8991
    %v8996 = vpack.c.b16 %v8994, %v8993
    %v8999 = vsel %vm8546, %v8983, 0
    %v9002 = vsel %vm8546, %v8984, 0
    %v9005 = vsel %vm8546, %v8985, 0
    %v9008 = vsel %vm8546, %v8986, 0
    %v9011 = vsel %vm6429, %v8996, 0
    %9013 = vmatprep.subr.bf16.mxu0 0
    %9014 = vmatpush1.bf16.msra.mxu0 %v8995
    %9015 = vmatprep.subr.bf16.mxu0 0
    %9016 = vmatpush1.bf16.msra.mxu0 %v9011
    %9017 = vmatprep.subr.bf16.mxu0 0
    %9018 = vmatpush1.bf16.msra.mxu0 0
    %9019 = vmatprep.subr.bf16.mxu0 0
    %9020 = vmatpush1.bf16.msra.mxu0 0
    %9021 = vmatprep.subr.bf16.mxu0 0
    %9022 = vmatpush1.bf16.msra.mxu0 0
    %9023 = vmatprep.subr.bf16.mxu0 0
    %9024 = vmatpush1.bf16.msra.mxu0 0
    %9025 = vmatprep.subr.bf16.mxu0 0
    %9026 = vmatpush1.bf16.msra.mxu0 0
    %9027 = vmatprep.subr.bf16.mxu0 0
    %9028 = vmatpush1.bf16.msra.mxu0 0
    %9029 = vmatprep.subr.bf16.mxu0 0
    %9030 = vmatpush1.bf16.msra.mxu0 0
    %9031 = vmatprep.subr.bf16.mxu0 0
    %9032 = vmatpush1.bf16.msra.mxu0 0
    %9033 = vmatprep.subr.bf16.mxu0 0
    %9034 = vmatpush1.bf16.msra.mxu0 0
    %9035 = vmatprep.subr.bf16.mxu0 0
    %9036 = vmatpush1.bf16.msra.mxu0 0
    %9037 = vmatprep.subr.bf16.mxu0 0
    %9038 = vmatpush1.bf16.msra.mxu0 0
    %9039 = vmatprep.subr.bf16.mxu0 0
    %9040 = vmatpush1.bf16.msra.mxu0 0
    %9041 = vmatprep.subr.bf16.mxu0 0
    %9042 = vmatpush1.bf16.msra.mxu0 0
    %9043 = vmatprep.subr.bf16.mxu0 0
    %9044 = vmatpush1.bf16.msra.mxu0 0
    %9045 = vmatprep.mubr.bf16.mxu0 0
    %9046 = vmatmul.mubr.bf16.gmra.mrb[0].mxu0 %v8999
    %v9047 = vpop.f32.mrb[0].mxu0
    %v9048 = vadd.f32 0.0, %v9047
    %v9049 = vpop.f32.mrb[0].mxu0
    %v9050 = vpop.f32.mrb[0].mxu0
    %v9051 = vadd.f32 0.0, %v9050
    %v9052 = vpop.f32.mrb[0].mxu0
    %9053 = vmatprep.mubr.bf16.mxu0 0
    %9054 = vmatmul.mubr.bf16.gmra.mrb[0].mxu0 %v9002
    %v9055 = vpop.f32.mrb[0].mxu0
    %v9056 = vadd.f32 0.0, %v9055
    %v9057 = vpop.f32.mrb[0].mxu0
    %v9058 = vpop.f32.mrb[0].mxu0
    %v9059 = vadd.f32 0.0, %v9058
    %v9060 = vpop.f32.mrb[0].mxu0
    %9061 = vmatprep.mubr.bf16.mxu0 0
    %9062 = vmatmul.mubr.bf16.gmra.mrb[0].mxu0 %v9005
    %v9063 = vpop.f32.mrb[0].mxu0
    %v9064 = vadd.f32 0.0, %v9063
    %v9065 = vpop.f32.mrb[0].mxu0
    %v9066 = vpop.f32.mrb[0].mxu0
    %v9067 = vadd.f32 0.0, %v9066
    %v9068 = vpop.f32.mrb[0].mxu0
    %9069 = vmatprep.mubr.bf16.mxu0 0
    %9070 = vmatmul.mubr.bf16.gmra.mrb[0].mxu0 %v9008
    %v9071 = vpop.f32.mrb[0].mxu0
    %v9072 = vadd.f32 0.0, %v9071
    %v9073 = vpop.f32.mrb[0].mxu0
    %v9074 = vpop.f32.mrb[0].mxu0
    %v9075 = vadd.f32 0.0, %v9074
    %v9076 = vpop.f32.mrb[0].mxu0
    %9077 = vdwg.mxu0
    %v9080 = vunpack.c.l.b16 %v8946
    %v9081 = vunpack.c.l.b16 %v8952
    %v9082 = vpack.c.b16 %v8975, %v9080
    %v9083 = vpack.c.b16 %v8977, %v8976
    %v9084 = vpack.c.b16 %v8979, %v9081
    %v9085 = vpack.c.b16 %v8981, %v8980
    %v9090 = vunpack.c.l.b16 %v8958
    %v9091 = vunpack.c.l.b16 %v8959
    %v9092 = vunpack.c.l.b16 %v8960
    %v9093 = vunpack.c.l.b16 %v8961
    %v9094 = vpack.c.b16 %v9091, %v9090
    %v9095 = vpack.c.b16 %v9093, %v9092
    %v9098 = vsel %vm8546, %v9082, 0
    %v9101 = vsel %vm8546, %v9083, 0
    %v9104 = vsel %vm8546, %v9084, 0
    %v9107 = vsel %vm8546, %v9085, 0
    %v9110 = vsel %vm6429, %v9095, 0
    %9112 = vmatprep.subr.bf16.mxu0 0
    %9113 = vmatpush1.bf16.msra.mxu0 %v9094
    %9114 = vmatprep.subr.bf16.mxu0 0
    %9115 = vmatpush1.bf16.msra.mxu0 %v9110
    %9116 = vmatprep.subr.bf16.mxu0 0
    %9117 = vmatpush1.bf16.msra.mxu0 0
    %9118 = vmatprep.subr.bf16.mxu0 0
    %9119 = vmatpush1.bf16.msra.mxu0 0
    %9120 = vmatprep.subr.bf16.mxu0 0
    %9121 = vmatpush1.bf16.msra.mxu0 0
    %9122 = vmatprep.subr.bf16.mxu0 0
    %9123 = vmatpush1.bf16.msra.mxu0 0
    %9124 = vmatprep.subr.bf16.mxu0 0
    %9125 = vmatpush1.bf16.msra.mxu0 0
    %9126 = vmatprep.subr.bf16.mxu0 0
    %9127 = vmatpush1.bf16.msra.mxu0 0
    %9128 = vmatprep.subr.bf16.mxu0 0
    %9129 = vmatpush1.bf16.msra.mxu0 0
    %9130 = vmatprep.subr.bf16.mxu0 0
    %9131 = vmatpush1.bf16.msra.mxu0 0
    %9132 = vmatprep.subr.bf16.mxu0 0
    %9133 = vmatpush1.bf16.msra.mxu0 0
    %9134 = vmatprep.subr.bf16.mxu0 0
    %9135 = vmatpush1.bf16.msra.mxu0 0
    %9136 = vmatprep.subr.bf16.mxu0 0
    %9137 = vmatpush1.bf16.msra.mxu0 0
    %9138 = vmatprep.subr.bf16.mxu0 0
    %9139 = vmatpush1.bf16.msra.mxu0 0
    %9140 = vmatprep.subr.bf16.mxu0 0
    %9141 = vmatpush1.bf16.msra.mxu0 0
    %9142 = vmatprep.subr.bf16.mxu0 0
    %9143 = vmatpush1.bf16.msra.mxu0 0
    %9144 = vmatprep.mubr.bf16.mxu0 0
    %9145 = vmatmul.mubr.bf16.gmra.mrb[0].mxu0 %v9098
    %v9146 = vpop.f32.mrb[0].mxu0
    %v9147 = vadd.f32 %v9048, %v9146
    %v9148 = vpop.f32.mrb[0].mxu0
    %v9149 = vpop.f32.mrb[0].mxu0
    %v9150 = vadd.f32 %v9051, %v9149
    %v9151 = vpop.f32.mrb[0].mxu0
    %9152 = vmatprep.mubr.bf16.mxu0 0
    %9153 = vmatmul.mubr.bf16.gmra.mrb[0].mxu0 %v9101
    %v9154 = vpop.f32.mrb[0].mxu0
    %v9155 = vadd.f32 %v9056, %v9154
    %v9156 = vpop.f32.mrb[0].mxu0
    %v9157 = vpop.f32.mrb[0].mxu0
    %v9158 = vadd.f32 %v9059, %v9157
    %v9159 = vpop.f32.mrb[0].mxu0
    %9160 = vmatprep.mubr.bf16.mxu0 0
    %9161 = vmatmul.mubr.bf16.gmra.mrb[0].mxu0 %v9104
    %v9162 = vpop.f32.mrb[0].mxu0
    %v9163 = vadd.f32 %v9064, %v9162
    %v9164 = vpop.f32.mrb[0].mxu0
    %v9165 = vpop.f32.mrb[0].mxu0
    %v9166 = vadd.f32 %v9067, %v9165
    %v9167 = vpop.f32.mrb[0].mxu0
    %9168 = vmatprep.mubr.bf16.mxu0 0
    %9169 = vmatmul.mubr.bf16.gmra.mrb[0].mxu0 %v9107
    %v9170 = vpop.f32.mrb[0].mxu0
    %v9171 = vadd.f32 %v9072, %v9170
    %v9172 = vpop.f32.mrb[0].mxu0
    %v9173 = vpop.f32.mrb[0].mxu0
    %v9174 = vadd.f32 %v9075, %v9173
    %v9175 = vpop.f32.mrb[0].mxu0
    %9176 = vdwg.mxu0
    %s9177 = scalar_lea.vmem %s3, 96
    %v9178 = vld [vmem:[%s9177] sm:$0xf]
    %v9179 = vld [vmem:[%s9177 + $0x4] sm:$0xf]
    %v9180 = vld [vmem:[%s9177 + $0x8] sm:$0xf]
    %v9181 = vld [vmem:[%s9177 + $0xc] sm:$0x7]
    %v9184 = vunpack.c.l.b16 %v8951
    %v9185 = vunpack.c.l.b16 %v8957
    %v9186 = vpack.c.b16 %v9184, %v8978
    %v9187 = vpack.c.b16 %v9185, %v8982
    %v9192 = vunpack.c.l.b16 %v9178
    %v9193 = vunpack.c.l.b16 %v9179
    %v9194 = vunpack.c.l.b16 %v9180
    %v9195 = vunpack.c.l.b16 %v9181
    %v9196 = vpack.c.b16 %v9193, %v9192
    %v9197 = vpack.c.b16 %v9195, %v9194
    %v9200 = vsel %vm8546, %v9186, 0
    %v9203 = vsel %vm8546, %v9187, 0
    %v9206 = vsel %vm6429, %v9197, 0
    %9208 = vmatprep.subr.bf16.mxu0 0
    %9209 = vmatpush1.bf16.msra.mxu0 %v9196
    %9210 = vmatprep.subr.bf16.mxu0 0
    %9211 = vmatpush1.bf16.msra.mxu0 %v9206
    %9212 = vmatprep.subr.bf16.mxu0 0
    %9213 = vmatpush1.bf16.msra.mxu0 0
    %9214 = vmatprep.subr.bf16.mxu0 0
    %9215 = vmatpush1.bf16.msra.mxu0 0
    %9216 = vmatprep.subr.bf16.mxu0 0
    %9217 = vmatpush1.bf16.msra.mxu0 0
    %9218 = vmatprep.subr.bf16.mxu0 0
    %9219 = vmatpush1.bf16.msra.mxu0 0
    %9220 = vmatprep.subr.bf16.mxu0 0
    %9221 = vmatpush1.bf16.msra.mxu0 0
    %9222 = vmatprep.subr.bf16.mxu0 0
    %9223 = vmatpush1.bf16.msra.mxu0 0
    %9224 = vmatprep.subr.bf16.mxu0 0
    %9225 = vmatpush1.bf16.msra.mxu0 0
    %9226 = vmatprep.subr.bf16.mxu0 0
    %9227 = vmatpush1.bf16.msra.mxu0 0
    %9228 = vmatprep.subr.bf16.mxu0 0
    %9229 = vmatpush1.bf16.msra.mxu0 0
    %9230 = vmatprep.subr.bf16.mxu0 0
    %9231 = vmatpush1.bf16.msra.mxu0 0
    %9232 = vmatprep.subr.bf16.mxu0 0
    %9233 = vmatpush1.bf16.msra.mxu0 0
    %9234 = vmatprep.subr.bf16.mxu0 0
    %9235 = vmatpush1.bf16.msra.mxu0 0
    %9236 = vmatprep.subr.bf16.mxu0 0
    %9237 = vmatpush1.bf16.msra.mxu0 0
    %9238 = vmatprep.subr.bf16.mxu0 0
    %9239 = vmatpush1.bf16.msra.mxu0 0
    %9240 = vmatprep.mubr.bf16.mxu0 0
    %9241 = vmatmul.mubr.bf16.gmra.mrb[0].mxu0 %v9101
    %v9242 = vpop.f32.mrb[0].mxu0
    %v9243 = vadd.f32 0.0, %v9242
    %v9244 = vpop.f32.mrb[0].mxu0
    %v9245 = vpop.f32.mrb[0].mxu0
    %v9246 = vadd.f32 0.0, %v9245
    %v9247 = vpop.f32.mrb[0].mxu0
    %9248 = vmatprep.mubr.bf16.mxu0 0
    %9249 = vmatmul.mubr.bf16.gmra.mrb[0].mxu0 %v9200
    %v9250 = vpop.f32.mrb[0].mxu0
    %v9251 = vadd.f32 0.0, %v9250
    %v9252 = vpop.f32.mrb[0].mxu0
    %v9253 = vpop.f32.mrb[0].mxu0
    %v9254 = vadd.f32 0.0, %v9253
    %v9255 = vpop.f32.mrb[0].mxu0
    %9256 = vmatprep.mubr.bf16.mxu0 0
    %9257 = vmatmul.mubr.bf16.gmra.mrb[0].mxu0 %v9107
    %v9258 = vpop.f32.mrb[0].mxu0
    %v9259 = vadd.f32 0.0, %v9258
    %v9260 = vpop.f32.mrb[0].mxu0
    %v9261 = vpop.f32.mrb[0].mxu0
    %v9262 = vadd.f32 0.0, %v9261
    %v9263 = vpop.f32.mrb[0].mxu0
    %9264 = vmatprep.mubr.bf16.mxu0 0
    %9265 = vmatmul.mubr.bf16.gmra.mrb[0].mxu0 %v9203
    %v9266 = vpop.f32.mrb[0].mxu0
    %v9267 = vadd.f32 0.0, %v9266
    %v9268 = vpop.f32.mrb[0].mxu0
    %v9269 = vpop.f32.mrb[0].mxu0
    %v9270 = vadd.f32 0.0, %v9269
    %v9271 = vpop.f32.mrb[0].mxu0
    %9272 = vdwg.mxu0
    %v9273 = vadd.f32 %v9147, %v9243
    %v9274 = vadd.f32 %v9150, %v9246
    %v9275 = vadd.f32 %v9155, %v9251
    %v9276 = vadd.f32 %v9158, %v9254
    %v9277 = vadd.f32 %v9163, %v9259
    %v9278 = vadd.f32 %v9166, %v9262
    %v9279 = vadd.f32 %v9171, %v9267
    %v9280 = vadd.f32 %v9174, %v9270
    %v9281 = vld [vmem:[#allocation3] sm:$0xf]
    %v9282 = vld [vmem:[#allocation3 + $0x4] sm:$0x1]
    %v9283 = vld [vmem:[#allocation3 + $0x8] sm:$0xf]
    %v9284 = vld [vmem:[#allocation3 + $0xc] sm:$0x1]
    %v9285 = vld [vmem:[#allocation3 + $0x10] sm:$0xf]
    %v9286 = vld [vmem:[#allocation3 + $0x14] sm:$0x1]
    %v9287 = vld [vmem:[#allocation3 + $0x18] sm:$0xf]
    %v9288 = vld [vmem:[#allocation3 + $0x1c] sm:$0x1]
    %v9289 = vld [vmem:[#allocation3 + $0x20] sm:$0xf]
    %v9290 = vld [vmem:[#allocation3 + $0x24] sm:$0x1]
    %v9291 = vld [vmem:[#allocation3 + $0x28] sm:$0xf]
    %v9292 = vld [vmem:[#allocation3 + $0x2c] sm:$0x1]
    %v9293 = vld [vmem:[#allocation3 + $0x30] sm:$0xf]
    %v9294 = vld [vmem:[#allocation3 + $0x34] sm:$0x1]
    %v9295 = vld [vmem:[#allocation3 + $0x38] sm:$0xf]
    %v9296 = vld [vmem:[#allocation3 + $0x3c] sm:$0x1]
    %v9297 = vld [vmem:[#allocation3 + $0x40] sm:$0xf]
    %v9298 = vld [vmem:[#allocation3 + $0x44] sm:$0x1]
    %v9299 = vld [vmem:[#allocation3 + $0x48] sm:$0xf]
    %v9300 = vld [vmem:[#allocation3 + $0x4c] sm:$0x1]
    %v9301 = vld [vmem:[#allocation3 + $0x50] sm:$0xf]
    %v9302 = vld [vmem:[#allocation3 + $0x54] sm:$0x1]
    %v9303 = vld [vmem:[#allocation3 + $0x58] sm:$0xf]
    %v9304 = vld [vmem:[#allocation3 + $0x5c] sm:$0x1]
    %v9306 = vshrl.u32 %v9281, 16
    %v9308 = vrot.slane %v9306, 4
    %v9309 = vshll.u32 %v9281, 16
    %v9311 = vrot.slane %v9309, 5
    %v9312 = vor.u32 %v9308, %v9311
    %v9313 = vrot.slane %v9312, 4
    %v9315 = vshll.u32 %v9282, 16
    %v9317 = vrot.slane %v9315, 5
    %v9318 = vsel %vm1460, %v9313, %v9317
    %v9320 = vshrl.u32 %v9283, 16
    %v9322 = vrot.slane %v9320, 4
    %v9323 = vshll.u32 %v9283, 16
    %v9325 = vrot.slane %v9323, 5
    %v9326 = vor.u32 %v9322, %v9325
    %v9327 = vrot.slane %v9326, 4
    %v9329 = vshll.u32 %v9284, 16
    %v9331 = vrot.slane %v9329, 5
    %v9332 = vsel %vm1460, %v9327, %v9331
    %v9334 = vshrl.u32 %v9285, 16
    %v9336 = vrot.slane %v9334, 4
    %v9337 = vshll.u32 %v9285, 16
    %v9339 = vrot.slane %v9337, 5
    %v9340 = vor.u32 %v9336, %v9339
    %v9341 = vrot.slane %v9340, 4
    %v9343 = vshll.u32 %v9286, 16
    %v9345 = vrot.slane %v9343, 5
    %v9346 = vsel %vm1460, %v9341, %v9345
    %v9348 = vshrl.u32 %v9287, 16
    %v9350 = vrot.slane %v9348, 4
    %v9351 = vshll.u32 %v9287, 16
    %v9353 = vrot.slane %v9351, 5
    %v9354 = vor.u32 %v9350, %v9353
    %v9355 = vrot.slane %v9354, 4
    %v9357 = vshll.u32 %v9288, 16
    %v9359 = vrot.slane %v9357, 5
    %v9360 = vsel %vm1460, %v9355, %v9359
    %v9362 = vshrl.u32 %v9293, 16
    %v9364 = vrot.slane %v9362, 4
    %v9365 = vshll.u32 %v9293, 16
    %v9367 = vrot.slane %v9365, 5
    %v9368 = vor.u32 %v9364, %v9367
    %v9369 = vrot.slane %v9368, 4
    %v9371 = vshll.u32 %v9294, 16
    %v9373 = vrot.slane %v9371, 5
    %v9374 = vsel %vm1460, %v9369, %v9373
    %v9376 = vshrl.u32 %v9295, 16
    %v9378 = vrot.slane %v9376, 4
    %v9379 = vshll.u32 %v9295, 16
    %v9381 = vrot.slane %v9379, 5
    %v9382 = vor.u32 %v9378, %v9381
    %v9383 = vrot.slane %v9382, 4
    %v9385 = vshll.u32 %v9296, 16
    %v9387 = vrot.slane %v9385, 5
    %v9388 = vsel %vm1460, %v9383, %v9387
    %v9390 = vshrl.u32 %v9297, 16
    %v9392 = vrot.slane %v9390, 4
    %v9393 = vshll.u32 %v9297, 16
    %v9395 = vrot.slane %v9393, 5
    %v9396 = vor.u32 %v9392, %v9395
    %v9397 = vrot.slane %v9396, 4
    %v9399 = vshll.u32 %v9298, 16
    %v9401 = vrot.slane %v9399, 5
    %v9402 = vsel %vm1460, %v9397, %v9401
    %v9404 = vshrl.u32 %v9299, 16
    %v9406 = vrot.slane %v9404, 4
    %v9407 = vshll.u32 %v9299, 16
    %v9409 = vrot.slane %v9407, 5
    %v9410 = vor.u32 %v9406, %v9409
    %v9411 = vrot.slane %v9410, 4
    %v9413 = vshll.u32 %v9300, 16
    %v9415 = vrot.slane %v9413, 5
    %v9416 = vsel %vm1460, %v9411, %v9415
    %s9417 = scalar_lea.vmem %s3, 16
    %v9418 = vld [vmem:[%s9417] sm:$0xf]
    %v9419 = vld [vmem:[%s9417 + $0x4] sm:$0xf]
    %v9420 = vld [vmem:[%s9417 + $0x8] sm:$0xf]
    %v9421 = vld [vmem:[%s9417 + $0xc] sm:$0x7]
    %v9422 = vunpack.c.l.b16 %v9318
    %v9423 = vunpack.c.l.b16 %v9332
    %v9424 = vunpack.c.l.b16 %v9346
    %v9425 = vunpack.c.l.b16 %v9360
    %v9426 = vunpack.c.l.b16 %v9374
    %v9427 = vunpack.c.l.b16 %v9388
    %v9428 = vunpack.c.l.b16 %v9402
    %v9429 = vunpack.c.l.b16 %v9416
    %v9430 = vpack.c.b16 %v9423, %v9422
    %v9431 = vpack.c.b16 %v9425, %v9424
    %v9432 = vpack.c.b16 %v9427, %v9426
    %v9433 = vpack.c.b16 %v9429, %v9428
    %v9438 = vunpack.c.l.b16 %v9418
    %v9439 = vunpack.c.l.b16 %v9419
    %v9440 = vunpack.c.l.b16 %v9420
    %v9441 = vunpack.c.l.b16 %v9421
    %v9442 = vpack.c.b16 %v9439, %v9438
    %v9443 = vpack.c.b16 %v9441, %v9440
    %v9446 = vsel %vm8546, %v9430, 0
    %v9449 = vsel %vm8546, %v9431, 0
    %v9452 = vsel %vm8546, %v9432, 0
    %v9455 = vsel %vm8546, %v9433, 0
    %v9458 = vsel %vm6429, %v9443, 0
    %9460 = vmatprep.subr.bf16.mxu0 0
    %9461 = vmatpush1.bf16.msra.mxu0 %v9442
    %9462 = vmatprep.subr.bf16.mxu0 0
    %9463 = vmatpush1.bf16.msra.mxu0 %v9458
    %9464 = vmatprep.subr.bf16.mxu0 0
    %9465 = vmatpush1.bf16.msra.mxu0 0
    %9466 = vmatprep.subr.bf16.mxu0 0
    %9467 = vmatpush1.bf16.msra.mxu0 0
    %9468 = vmatprep.subr.bf16.mxu0 0
    %9469 = vmatpush1.bf16.msra.mxu0 0
    %9470 = vmatprep.subr.bf16.mxu0 0
    %9471 = vmatpush1.bf16.msra.mxu0 0
    %9472 = vmatprep.subr.bf16.mxu0 0
    %9473 = vmatpush1.bf16.msra.mxu0 0
    %9474 = vmatprep.subr.bf16.mxu0 0
    %9475 = vmatpush1.bf16.msra.mxu0 0
    %9476 = vmatprep.subr.bf16.mxu0 0
    %9477 = vmatpush1.bf16.msra.mxu0 0
    %9478 = vmatprep.subr.bf16.mxu0 0
    %9479 = vmatpush1.bf16.msra.mxu0 0
    %9480 = vmatprep.subr.bf16.mxu0 0
    %9481 = vmatpush1.bf16.msra.mxu0 0
    %9482 = vmatprep.subr.bf16.mxu0 0
    %9483 = vmatpush1.bf16.msra.mxu0 0
    %9484 = vmatprep.subr.bf16.mxu0 0
    %9485 = vmatpush1.bf16.msra.mxu0 0
    %9486 = vmatprep.subr.bf16.mxu0 0
    %9487 = vmatpush1.bf16.msra.mxu0 0
    %9488 = vmatprep.subr.bf16.mxu0 0
    %9489 = vmatpush1.bf16.msra.mxu0 0
    %9490 = vmatprep.subr.bf16.mxu0 0
    %9491 = vmatpush1.bf16.msra.mxu0 0
    %9492 = vmatprep.mubr.bf16.mxu0 0
    %9493 = vmatmul.mubr.bf16.gmra.mrb[0].mxu0 %v9446
    %v9494 = vpop.f32.mrb[0].mxu0
    %v9495 = vadd.f32 0.0, %v9494
    %v9496 = vpop.f32.mrb[0].mxu0
    %v9497 = vpop.f32.mrb[0].mxu0
    %v9498 = vadd.f32 0.0, %v9497
    %v9499 = vpop.f32.mrb[0].mxu0
    %9500 = vmatprep.mubr.bf16.mxu0 0
    %9501 = vmatmul.mubr.bf16.gmra.mrb[0].mxu0 %v9449
    %v9502 = vpop.f32.mrb[0].mxu0
    %v9503 = vadd.f32 0.0, %v9502
    %v9504 = vpop.f32.mrb[0].mxu0
    %v9505 = vpop.f32.mrb[0].mxu0
    %v9506 = vadd.f32 0.0, %v9505
    %v9507 = vpop.f32.mrb[0].mxu0
    %9508 = vmatprep.mubr.bf16.mxu0 0
    %9509 = vmatmul.mubr.bf16.gmra.mrb[0].mxu0 %v9452
    %v9510 = vpop.f32.mrb[0].mxu0
    %v9511 = vadd.f32 0.0, %v9510
    %v9512 = vpop.f32.mrb[0].mxu0
    %v9513 = vpop.f32.mrb[0].mxu0
    %v9514 = vadd.f32 0.0, %v9513
    %v9515 = vpop.f32.mrb[0].mxu0
    %9516 = vmatprep.mubr.bf16.mxu0 0
    %9517 = vmatmul.mubr.bf16.gmra.mrb[0].mxu0 %v9455
    %v9518 = vpop.f32.mrb[0].mxu0
    %v9519 = vadd.f32 0.0, %v9518
    %v9520 = vpop.f32.mrb[0].mxu0
    %v9521 = vpop.f32.mrb[0].mxu0
    %v9522 = vadd.f32 0.0, %v9521
    %v9523 = vpop.f32.mrb[0].mxu0
    %9524 = vdwg.mxu0
    %v9525 = vadd.f32 %v9273, %v9495
    %v9526 = vadd.f32 %v9274, %v9498
    %v9527 = vadd.f32 %v9275, %v9503
    %v9528 = vadd.f32 %v9276, %v9506
    %v9529 = vadd.f32 %v9277, %v9511
    %v9530 = vadd.f32 %v9278, %v9514
    %v9531 = vadd.f32 %v9279, %v9519
    %v9532 = vadd.f32 %v9280, %v9522
    %v9534 = vshrl.u32 %v9289, 16
    %v9536 = vrot.slane %v9534, 4
    %v9537 = vshll.u32 %v9289, 16
    %v9539 = vrot.slane %v9537, 5
    %v9540 = vor.u32 %v9536, %v9539
    %v9541 = vrot.slane %v9540, 4
    %v9543 = vshll.u32 %v9290, 16
    %v9545 = vrot.slane %v9543, 5
    %v9546 = vsel %vm1460, %v9541, %v9545
    %v9548 = vshrl.u32 %v9301, 16
    %v9550 = vrot.slane %v9548, 4
    %v9551 = vshll.u32 %v9301, 16
    %v9553 = vrot.slane %v9551, 5
    %v9554 = vor.u32 %v9550, %v9553
    %v9555 = vrot.slane %v9554, 4
    %v9557 = vshll.u32 %v9302, 16
    %v9559 = vrot.slane %v9557, 5
    %v9560 = vsel %vm1460, %v9555, %v9559
    %s9561 = scalar_lea.vmem %s3, 64
    %v9562 = vld [vmem:[%s9561] sm:$0xf]
    %v9563 = vld [vmem:[%s9561 + $0x4] sm:$0xf]
    %v9564 = vld [vmem:[%s9561 + $0x8] sm:$0xf]
    %v9565 = vld [vmem:[%s9561 + $0xc] sm:$0x7]
    %v9566 = vunpack.c.l.b16 %v9546
    %v9567 = vunpack.c.l.b16 %v9560
    %v9568 = vpack.c.b16 %v9424, %v9423
    %v9569 = vpack.c.b16 %v9566, %v9425
    %v9570 = vpack.c.b16 %v9428, %v9427
    %v9571 = vpack.c.b16 %v9567, %v9429
    %v9576 = vunpack.c.l.b16 %v9562
    %v9577 = vunpack.c.l.b16 %v9563
    %v9578 = vunpack.c.l.b16 %v9564
    %v9579 = vunpack.c.l.b16 %v9565
    %v9580 = vpack.c.b16 %v9577, %v9576
    %v9581 = vpack.c.b16 %v9579, %v9578
    %v9584 = vsel %vm8546, %v9568, 0
    %v9587 = vsel %vm8546, %v9569, 0
    %v9590 = vsel %vm8546, %v9570, 0
    %v9593 = vsel %vm8546, %v9571, 0
    %v9596 = vsel %vm6429, %v9581, 0
    %9598 = vmatprep.subr.bf16.mxu0 0
    %9599 = vmatpush1.bf16.msra.mxu0 %v9580
    %9600 = vmatprep.subr.bf16.mxu0 0
    %9601 = vmatpush1.bf16.msra.mxu0 %v9596
    %9602 = vmatprep.subr.bf16.mxu0 0
    %9603 = vmatpush1.bf16.msra.mxu0 0
    %9604 = vmatprep.subr.bf16.mxu0 0
    %9605 = vmatpush1.bf16.msra.mxu0 0
    %9606 = vmatprep.subr.bf16.mxu0 0
    %9607 = vmatpush1.bf16.msra.mxu0 0
    %9608 = vmatprep.subr.bf16.mxu0 0
    %9609 = vmatpush1.bf16.msra.mxu0 0
    %9610 = vmatprep.subr.bf16.mxu0 0
    %9611 = vmatpush1.bf16.msra.mxu0 0
    %9612 = vmatprep.subr.bf16.mxu0 0
    %9613 = vmatpush1.bf16.msra.mxu0 0
    %9614 = vmatprep.subr.bf16.mxu0 0
    %9615 = vmatpush1.bf16.msra.mxu0 0
    %9616 = vmatprep.subr.bf16.mxu0 0
    %9617 = vmatpush1.bf16.msra.mxu0 0
    %9618 = vmatprep.subr.bf16.mxu0 0
    %9619 = vmatpush1.bf16.msra.mxu0 0
    %9620 = vmatprep.subr.bf16.mxu0 0
    %9621 = vmatpush1.bf16.msra.mxu0 0
    %9622 = vmatprep.subr.bf16.mxu0 0
    %9623 = vmatpush1.bf16.msra.mxu0 0
    %9624 = vmatprep.subr.bf16.mxu0 0
    %9625 = vmatpush1.bf16.msra.mxu0 0
    %9626 = vmatprep.subr.bf16.mxu0 0
    %9627 = vmatpush1.bf16.msra.mxu0 0
    %9628 = vmatprep.subr.bf16.mxu0 0
    %9629 = vmatpush1.bf16.msra.mxu0 0
    %9630 = vmatprep.mubr.bf16.mxu0 0
    %9631 = vmatmul.mubr.bf16.gmra.mrb[0].mxu0 %v9584
    %v9632 = vpop.f32.mrb[0].mxu0
    %v9633 = vadd.f32 0.0, %v9632
    %v9634 = vpop.f32.mrb[0].mxu0
    %v9635 = vpop.f32.mrb[0].mxu0
    %v9636 = vadd.f32 0.0, %v9635
    %v9637 = vpop.f32.mrb[0].mxu0
    %9638 = vmatprep.mubr.bf16.mxu0 0
    %9639 = vmatmul.mubr.bf16.gmra.mrb[0].mxu0 %v9587
    %v9640 = vpop.f32.mrb[0].mxu0
    %v9641 = vadd.f32 0.0, %v9640
    %v9642 = vpop.f32.mrb[0].mxu0
    %v9643 = vpop.f32.mrb[0].mxu0
    %v9644 = vadd.f32 0.0, %v9643
    %v9645 = vpop.f32.mrb[0].mxu0
    %9646 = vmatprep.mubr.bf16.mxu0 0
    %9647 = vmatmul.mubr.bf16.gmra.mrb[0].mxu0 %v9590
    %v9648 = vpop.f32.mrb[0].mxu0
    %v9649 = vadd.f32 0.0, %v9648
    %v9650 = vpop.f32.mrb[0].mxu0
    %v9651 = vpop.f32.mrb[0].mxu0
    %v9652 = vadd.f32 0.0, %v9651
    %v9653 = vpop.f32.mrb[0].mxu0
    %9654 = vmatprep.mubr.bf16.mxu0 0
    %9655 = vmatmul.mubr.bf16.gmra.mrb[0].mxu0 %v9593
    %v9656 = vpop.f32.mrb[0].mxu0
    %v9657 = vadd.f32 0.0, %v9656
    %v9658 = vpop.f32.mrb[0].mxu0
    %v9659 = vpop.f32.mrb[0].mxu0
    %v9660 = vadd.f32 0.0, %v9659
    %v9661 = vpop.f32.mrb[0].mxu0
    %9662 = vdwg.mxu0
    %v9663 = vadd.f32 %v9525, %v9633
    %v9664 = vadd.f32 %v9526, %v9636
    %v9665 = vadd.f32 %v9527, %v9641
    %v9666 = vadd.f32 %v9528, %v9644
    %v9667 = vadd.f32 %v9529, %v9649
    %v9668 = vadd.f32 %v9530, %v9652
    %v9669 = vadd.f32 %v9531, %v9657
    %v9670 = vadd.f32 %v9532, %v9660
    %v9672 = vshrl.u32 %v9291, 16
    %v9674 = vrot.slane %v9672, 4
    %v9675 = vshll.u32 %v9291, 16
    %v9677 = vrot.slane %v9675, 5
    %v9678 = vor.u32 %v9674, %v9677
    %v9679 = vrot.slane %v9678, 4
    %v9681 = vshll.u32 %v9292, 16
    %v9683 = vrot.slane %v9681, 5
    %v9684 = vsel %vm1460, %v9679, %v9683
    %v9686 = vshrl.u32 %v9303, 16
    %v9688 = vrot.slane %v9686, 4
    %v9689 = vshll.u32 %v9303, 16
    %v9691 = vrot.slane %v9689, 5
    %v9692 = vor.u32 %v9688, %v9691
    %v9693 = vrot.slane %v9692, 4
    %v9695 = vshll.u32 %v9304, 16
    %v9697 = vrot.slane %v9695, 5
    %v9698 = vsel %vm1460, %v9693, %v9697
    %s9699 = scalar_lea.vmem %s3, 112
    %v9700 = vld [vmem:[%s9699] sm:$0xf]
    %v9701 = vld [vmem:[%s9699 + $0x4] sm:$0xf]
    %v9702 = vld [vmem:[%s9699 + $0x8] sm:$0xf]
    %v9703 = vld [vmem:[%s9699 + $0xc] sm:$0x7]
    %v9704 = vunpack.c.l.b16 %v9684
    %v9705 = vunpack.c.l.b16 %v9698
    %v9706 = vpack.c.b16 %v9704, %v9566
    %v9707 = vpack.c.b16 %v9705, %v9567
    %v9712 = vunpack.c.l.b16 %v9700
    %v9713 = vunpack.c.l.b16 %v9701
    %v9714 = vunpack.c.l.b16 %v9702
    %v9715 = vunpack.c.l.b16 %v9703
    %v9716 = vpack.c.b16 %v9713, %v9712
    %v9717 = vpack.c.b16 %v9715, %v9714
    %v9720 = vsel %vm8546, %v9706, 0
    %v9723 = vsel %vm8546, %v9707, 0
    %v9726 = vsel %vm6429, %v9717, 0
    %9728 = vmatprep.subr.bf16.mxu0 0
    %9729 = vmatpush1.bf16.msra.mxu0 %v9716
    %9730 = vmatprep.subr.bf16.mxu0 0
    %9731 = vmatpush1.bf16.msra.mxu0 %v9726
    %9732 = vmatprep.subr.bf16.mxu0 0
    %9733 = vmatpush1.bf16.msra.mxu0 0
    %9734 = vmatprep.subr.bf16.mxu0 0
    %9735 = vmatpush1.bf16.msra.mxu0 0
    %9736 = vmatprep.subr.bf16.mxu0 0
    %9737 = vmatpush1.bf16.msra.mxu0 0
    %9738 = vmatprep.subr.bf16.mxu0 0
    %9739 = vmatpush1.bf16.msra.mxu0 0
    %9740 = vmatprep.subr.bf16.mxu0 0
    %9741 = vmatpush1.bf16.msra.mxu0 0
    %9742 = vmatprep.subr.bf16.mxu0 0
    %9743 = vmatpush1.bf16.msra.mxu0 0
    %9744 = vmatprep.subr.bf16.mxu0 0
    %9745 = vmatpush1.bf16.msra.mxu0 0
    %9746 = vmatprep.subr.bf16.mxu0 0
    %9747 = vmatpush1.bf16.msra.mxu0 0
    %9748 = vmatprep.subr.bf16.mxu0 0
    %9749 = vmatpush1.bf16.msra.mxu0 0
    %9750 = vmatprep.subr.bf16.mxu0 0
    %9751 = vmatpush1.bf16.msra.mxu0 0
    %9752 = vmatprep.subr.bf16.mxu0 0
    %9753 = vmatpush1.bf16.msra.mxu0 0
    %9754 = vmatprep.subr.bf16.mxu0 0
    %9755 = vmatpush1.bf16.msra.mxu0 0
    %9756 = vmatprep.subr.bf16.mxu0 0
    %9757 = vmatpush1.bf16.msra.mxu0 0
    %9758 = vmatprep.subr.bf16.mxu0 0
    %9759 = vmatpush1.bf16.msra.mxu0 0
    %9760 = vmatprep.mubr.bf16.mxu0 0
    %9761 = vmatmul.mubr.bf16.gmra.mrb[0].mxu0 %v9449
    %v9762 = vpop.f32.mrb[0].mxu0
    %v9763 = vadd.f32 0.0, %v9762
    %v9764 = vpop.f32.mrb[0].mxu0
    %v9765 = vpop.f32.mrb[0].mxu0
    %v9766 = vadd.f32 0.0, %v9765
    %v9767 = vpop.f32.mrb[0].mxu0
    %9768 = vmatprep.mubr.bf16.mxu0 0
    %9769 = vmatmul.mubr.bf16.gmra.mrb[0].mxu0 %v9720
    %v9770 = vpop.f32.mrb[0].mxu0
    %v9771 = vadd.f32 0.0, %v9770
    %v9772 = vpop.f32.mrb[0].mxu0
    %v9773 = vpop.f32.mrb[0].mxu0
    %v9774 = vadd.f32 0.0, %v9773
    %v9775 = vpop.f32.mrb[0].mxu0
    %9776 = vmatprep.mubr.bf16.mxu0 0
    %9777 = vmatmul.mubr.bf16.gmra.mrb[0].mxu0 %v9455
    %v9778 = vpop.f32.mrb[0].mxu0
    %v9779 = vadd.f32 0.0, %v9778
    %v9780 = vpop.f32.mrb[0].mxu0
    %v9781 = vpop.f32.mrb[0].mxu0
    %v9782 = vadd.f32 0.0, %v9781
    %v9783 = vpop.f32.mrb[0].mxu0
    %9784 = vmatprep.mubr.bf16.mxu0 0
    %9785 = vmatmul.mubr.bf16.gmra.mrb[0].mxu0 %v9723
    %v9786 = vpop.f32.mrb[0].mxu0
    %v9787 = vadd.f32 0.0, %v9786
    %v9788 = vpop.f32.mrb[0].mxu0
    %v9789 = vpop.f32.mrb[0].mxu0
    %v9790 = vadd.f32 0.0, %v9789
    %v9791 = vpop.f32.mrb[0].mxu0
    %9792 = vdwg.mxu0
    %v9793 = vadd.f32 %v9663, %v9763
    %v9794 = vadd.f32 %v9664, %v9766
    %v9795 = vadd.f32 %v9665, %v9771
    %v9796 = vadd.f32 %v9666, %v9774
    %v9797 = vadd.f32 %v9667, %v9779
    %v9798 = vadd.f32 %v9668, %v9782
    %v9799 = vadd.f32 %v9669, %v9787
    %v9800 = vadd.f32 %v9670, %v9790
    %v9801 = vld [vmem:[#allocation3] sm:$0xe]
    %v9802 = vld [vmem:[#allocation3 + $0x8] sm:$0xe]
    %v9803 = vld [vmem:[#allocation3 + $0x10] sm:$0xe]
    %v9804 = vld [vmem:[#allocation3 + $0x18] sm:$0xe]
    %v9805 = vld [vmem:[#allocation3 + $0x20] sm:$0xe]
    %v9806 = vld [vmem:[#allocation3 + $0x28] sm:$0xe]
    %v9807 = vld [vmem:[#allocation3 + $0x30] sm:$0xe]
    %v9808 = vld [vmem:[#allocation3 + $0x38] sm:$0xe]
    %v9809 = vld [vmem:[#allocation3 + $0x40] sm:$0xe]
    %v9810 = vld [vmem:[#allocation3 + $0x48] sm:$0xe]
    %v9811 = vld [vmem:[#allocation3 + $0x50] sm:$0xe]
    %v9812 = vld [vmem:[#allocation3 + $0x58] sm:$0xe]
    %v9829 = vrot.slane %v9801, 5
    %v9830 = vrot.slane %v9829, 4
    %v9831 = vrot.slane %v9282, 5
    %v9832 = vsel %vm3749, %v9830, %v9831
    %v9833 = vrot.slane %v9802, 5
    %v9834 = vrot.slane %v9833, 4
    %v9835 = vrot.slane %v9284, 5
    %v9836 = vsel %vm3749, %v9834, %v9835
    %v9837 = vrot.slane %v9803, 5
    %v9838 = vrot.slane %v9837, 4
    %v9839 = vrot.slane %v9286, 5
    %v9840 = vsel %vm3749, %v9838, %v9839
    %v9841 = vrot.slane %v9804, 5
    %v9842 = vrot.slane %v9841, 4
    %v9843 = vrot.slane %v9288, 5
    %v9844 = vsel %vm3749, %v9842, %v9843
    %v9845 = vrot.slane %v9807, 5
    %v9846 = vrot.slane %v9845, 4
    %v9847 = vrot.slane %v9294, 5
    %v9848 = vsel %vm3749, %v9846, %v9847
    %v9849 = vrot.slane %v9808, 5
    %v9850 = vrot.slane %v9849, 4
    %v9851 = vrot.slane %v9296, 5
    %v9852 = vsel %vm3749, %v9850, %v9851
    %v9853 = vrot.slane %v9809, 5
    %v9854 = vrot.slane %v9853, 4
    %v9855 = vrot.slane %v9298, 5
    %v9856 = vsel %vm3749, %v9854, %v9855
    %v9857 = vrot.slane %v9810, 5
    %v9858 = vrot.slane %v9857, 4
    %v9859 = vrot.slane %v9300, 5
    %v9860 = vsel %vm3749, %v9858, %v9859
    %s9861 = scalar_lea.vmem %s3, 32
    %v9862 = vld [vmem:[%s9861] sm:$0xf]
    %v9863 = vld [vmem:[%s9861 + $0x4] sm:$0xf]
    %v9864 = vld [vmem:[%s9861 + $0x8] sm:$0xf]
    %v9865 = vld [vmem:[%s9861 + $0xc] sm:$0x7]
    %v9866 = vunpack.c.l.b16 %v9832
    %v9867 = vunpack.c.l.b16 %v9836
    %v9868 = vunpack.c.l.b16 %v9840
    %v9869 = vunpack.c.l.b16 %v9844
    %v9870 = vunpack.c.l.b16 %v9848
    %v9871 = vunpack.c.l.b16 %v9852
    %v9872 = vunpack.c.l.b16 %v9856
    %v9873 = vunpack.c.l.b16 %v9860
    %v9874 = vpack.c.b16 %v9867, %v9866
    %v9875 = vpack.c.b16 %v9869, %v9868
    %v9876 = vpack.c.b16 %v9871, %v9870
    %v9877 = vpack.c.b16 %v9873, %v9872
    %v9882 = vunpack.c.l.b16 %v9862
    %v9883 = vunpack.c.l.b16 %v9863
    %v9884 = vunpack.c.l.b16 %v9864
    %v9885 = vunpack.c.l.b16 %v9865
    %v9886 = vpack.c.b16 %v9883, %v9882
    %v9887 = vpack.c.b16 %v9885, %v9884
    %v9890 = vsel %vm8546, %v9874, 0
    %v9893 = vsel %vm8546, %v9875, 0
    %v9896 = vsel %vm8546, %v9876, 0
    %v9899 = vsel %vm8546, %v9877, 0
    %v9902 = vsel %vm6429, %v9887, 0
    %9904 = vmatprep.subr.bf16.mxu0 0
    %9905 = vmatpush1.bf16.msra.mxu0 %v9886
    %9906 = vmatprep.subr.bf16.mxu0 0
    %9907 = vmatpush1.bf16.msra.mxu0 %v9902
    %9908 = vmatprep.subr.bf16.mxu0 0
    %9909 = vmatpush1.bf16.msra.mxu0 0
    %9910 = vmatprep.subr.bf16.mxu0 0
    %9911 = vmatpush1.bf16.msra.mxu0 0
    %9912 = vmatprep.subr.bf16.mxu0 0
    %9913 = vmatpush1.bf16.msra.mxu0 0
    %9914 = vmatprep.subr.bf16.mxu0 0
    %9915 = vmatpush1.bf16.msra.mxu0 0
    %9916 = vmatprep.subr.bf16.mxu0 0
    %9917 = vmatpush1.bf16.msra.mxu0 0
    %9918 = vmatprep.subr.bf16.mxu0 0
    %9919 = vmatpush1.bf16.msra.mxu0 0
    %9920 = vmatprep.subr.bf16.mxu0 0
    %9921 = vmatpush1.bf16.msra.mxu0 0
    %9922 = vmatprep.subr.bf16.mxu0 0
    %9923 = vmatpush1.bf16.msra.mxu0 0
    %9924 = vmatprep.subr.bf16.mxu0 0
    %9925 = vmatpush1.bf16.msra.mxu0 0
    %9926 = vmatprep.subr.bf16.mxu0 0
    %9927 = vmatpush1.bf16.msra.mxu0 0
    %9928 = vmatprep.subr.bf16.mxu0 0
    %9929 = vmatpush1.bf16.msra.mxu0 0
    %9930 = vmatprep.subr.bf16.mxu0 0
    %9931 = vmatpush1.bf16.msra.mxu0 0
    %9932 = vmatprep.subr.bf16.mxu0 0
    %9933 = vmatpush1.bf16.msra.mxu0 0
    %9934 = vmatprep.subr.bf16.mxu0 0
    %9935 = vmatpush1.bf16.msra.mxu0 0
    %9936 = vmatprep.mubr.bf16.mxu0 0
    %9937 = vmatmul.mubr.bf16.gmra.mrb[0].mxu0 %v9890
    %v9938 = vpop.f32.mrb[0].mxu0
    %v9939 = vadd.f32 0.0, %v9938
    %v9940 = vpop.f32.mrb[0].mxu0
    %v9941 = vpop.f32.mrb[0].mxu0
    %v9942 = vadd.f32 0.0, %v9941
    %v9943 = vpop.f32.mrb[0].mxu0
    %9944 = vmatprep.mubr.bf16.mxu0 0
    %9945 = vmatmul.mubr.bf16.gmra.mrb[0].mxu0 %v9893
    %v9946 = vpop.f32.mrb[0].mxu0
    %v9947 = vadd.f32 0.0, %v9946
    %v9948 = vpop.f32.mrb[0].mxu0
    %v9949 = vpop.f32.mrb[0].mxu0
    %v9950 = vadd.f32 0.0, %v9949
    %v9951 = vpop.f32.mrb[0].mxu0
    %9952 = vmatprep.mubr.bf16.mxu0 0
    %9953 = vmatmul.mubr.bf16.gmra.mrb[0].mxu0 %v9896
    %v9954 = vpop.f32.mrb[0].mxu0
    %v9955 = vadd.f32 0.0, %v9954
    %v9956 = vpop.f32.mrb[0].mxu0
    %v9957 = vpop.f32.mrb[0].mxu0
    %v9958 = vadd.f32 0.0, %v9957
    %v9959 = vpop.f32.mrb[0].mxu0
    %9960 = vmatprep.mubr.bf16.mxu0 0
    %9961 = vmatmul.mubr.bf16.gmra.mrb[0].mxu0 %v9899
    %v9962 = vpop.f32.mrb[0].mxu0
    %v9963 = vadd.f32 0.0, %v9962
    %v9964 = vpop.f32.mrb[0].mxu0
    %v9965 = vpop.f32.mrb[0].mxu0
    %v9966 = vadd.f32 0.0, %v9965
    %v9967 = vpop.f32.mrb[0].mxu0
    %9968 = vdwg.mxu0
    %v9969 = vadd.f32 %v9793, %v9939
    %v9970 = vadd.f32 %v9794, %v9942
    %v9971 = vadd.f32 %v9795, %v9947
    %v9972 = vadd.f32 %v9796, %v9950
    %v9973 = vadd.f32 %v9797, %v9955
    %v9974 = vadd.f32 %v9798, %v9958
    %v9975 = vadd.f32 %v9799, %v9963
    %v9976 = vadd.f32 %v9800, %v9966
    %v9981 = vrot.slane %v9805, 5
    %v9982 = vrot.slane %v9981, 4
    %v9983 = vrot.slane %v9290, 5
    %v9984 = vsel %vm3749, %v9982, %v9983
    %v9985 = vrot.slane %v9811, 5
    %v9986 = vrot.slane %v9985, 4
    %v9987 = vrot.slane %v9302, 5
    %v9988 = vsel %vm3749, %v9986, %v9987
    %s9989 = scalar_lea.vmem %s3, 80
    %v9990 = vld [vmem:[%s9989] sm:$0xf]
    %v9991 = vld [vmem:[%s9989 + $0x4] sm:$0xf]
    %v9992 = vld [vmem:[%s9989 + $0x8] sm:$0xf]
    %v9993 = vld [vmem:[%s9989 + $0xc] sm:$0x7]
    %v9994 = vunpack.c.l.b16 %v9984
    %v9995 = vunpack.c.l.b16 %v9988
    %v9996 = vpack.c.b16 %v9868, %v9867
    %v9997 = vpack.c.b16 %v9994, %v9869
    %v9998 = vpack.c.b16 %v9872, %v9871
    %v9999 = vpack.c.b16 %v9995, %v9873
    %v10004 = vunpack.c.l.b16 %v9990
    %v10005 = vunpack.c.l.b16 %v9991
    %v10006 = vunpack.c.l.b16 %v9992
    %v10007 = vunpack.c.l.b16 %v9993
    %v10008 = vpack.c.b16 %v10005, %v10004
    %v10009 = vpack.c.b16 %v10007, %v10006
    %v10012 = vsel %vm8546, %v9996, 0
    %v10015 = vsel %vm8546, %v9997, 0
    %v10018 = vsel %vm8546, %v9998, 0
    %v10021 = vsel %vm8546, %v9999, 0
    %v10024 = vsel %vm6429, %v10009, 0
    %10026 = vmatprep.subr.bf16.mxu0 0
    %10027 = vmatpush1.bf16.msra.mxu0 %v10008
    %10028 = vmatprep.subr.bf16.mxu0 0
    %10029 = vmatpush1.bf16.msra.mxu0 %v10024
    %10030 = vmatprep.subr.bf16.mxu0 0
    %10031 = vmatpush1.bf16.msra.mxu0 0
    %10032 = vmatprep.subr.bf16.mxu0 0
    %10033 = vmatpush1.bf16.msra.mxu0 0
    %10034 = vmatprep.subr.bf16.mxu0 0
    %10035 = vmatpush1.bf16.msra.mxu0 0
    %10036 = vmatprep.subr.bf16.mxu0 0
    %10037 = vmatpush1.bf16.msra.mxu0 0
    %10038 = vmatprep.subr.bf16.mxu0 0
    %10039 = vmatpush1.bf16.msra.mxu0 0
    %10040 = vmatprep.subr.bf16.mxu0 0
    %10041 = vmatpush1.bf16.msra.mxu0 0
    %10042 = vmatprep.subr.bf16.mxu0 0
    %10043 = vmatpush1.bf16.msra.mxu0 0
    %10044 = vmatprep.subr.bf16.mxu0 0
    %10045 = vmatpush1.bf16.msra.mxu0 0
    %10046 = vmatprep.subr.bf16.mxu0 0
    %10047 = vmatpush1.bf16.msra.mxu0 0
    %10048 = vmatprep.subr.bf16.mxu0 0
    %10049 = vmatpush1.bf16.msra.mxu0 0
    %10050 = vmatprep.subr.bf16.mxu0 0
    %10051 = vmatpush1.bf16.msra.mxu0 0
    %10052 = vmatprep.subr.bf16.mxu0 0
    %10053 = vmatpush1.bf16.msra.mxu0 0
    %10054 = vmatprep.subr.bf16.mxu0 0
    %10055 = vmatpush1.bf16.msra.mxu0 0
    %10056 = vmatprep.subr.bf16.mxu0 0
    %10057 = vmatpush1.bf16.msra.mxu0 0
    %10058 = vmatprep.mubr.bf16.mxu0 0
    %10059 = vmatmul.mubr.bf16.gmra.mrb[0].mxu0 %v10012
    %v10060 = vpop.f32.mrb[0].mxu0
    %v10061 = vadd.f32 0.0, %v10060
    %v10062 = vpop.f32.mrb[0].mxu0
    %v10063 = vpop.f32.mrb[0].mxu0
    %v10064 = vadd.f32 0.0, %v10063
    %v10065 = vpop.f32.mrb[0].mxu0
    %10066 = vmatprep.mubr.bf16.mxu0 0
    %10067 = vmatmul.mubr.bf16.gmra.mrb[0].mxu0 %v10015
    %v10068 = vpop.f32.mrb[0].mxu0
    %v10069 = vadd.f32 0.0, %v10068
    %v10070 = vpop.f32.mrb[0].mxu0
    %v10071 = vpop.f32.mrb[0].mxu0
    %v10072 = vadd.f32 0.0, %v10071
    %v10073 = vpop.f32.mrb[0].mxu0
    %10074 = vmatprep.mubr.bf16.mxu0 0
    %10075 = vmatmul.mubr.bf16.gmra.mrb[0].mxu0 %v10018
    %v10076 = vpop.f32.mrb[0].mxu0
    %v10077 = vadd.f32 0.0, %v10076
    %v10078 = vpop.f32.mrb[0].mxu0
    %v10079 = vpop.f32.mrb[0].mxu0
    %v10080 = vadd.f32 0.0, %v10079
    %v10081 = vpop.f32.mrb[0].mxu0
    %10082 = vmatprep.mubr.bf16.mxu0 0
    %10083 = vmatmul.mubr.bf16.gmra.mrb[0].mxu0 %v10021
    %v10084 = vpop.f32.mrb[0].mxu0
    %v10085 = vadd.f32 0.0, %v10084
    %v10086 = vpop.f32.mrb[0].mxu0
    %v10087 = vpop.f32.mrb[0].mxu0
    %v10088 = vadd.f32 0.0, %v10087
    %v10089 = vpop.f32.mrb[0].mxu0
    %10090 = vdwg.mxu0
    %v10091 = vadd.f32 %v9969, %v10061
    %v10092 = vadd.f32 %v9970, %v10064
    %v10093 = vadd.f32 %v9971, %v10069
    %v10094 = vadd.f32 %v9972, %v10072
    %v10095 = vadd.f32 %v9973, %v10077
    %v10096 = vadd.f32 %v9974, %v10080
    %v10097 = vadd.f32 %v9975, %v10085
    %v10098 = vadd.f32 %v9976, %v10088
    %v10103 = vrot.slane %v9806, 5
    %v10104 = vrot.slane %v10103, 4
    %v10105 = vrot.slane %v9292, 5
    %v10106 = vsel %vm3749, %v10104, %v10105
    %v10107 = vrot.slane %v9812, 5
    %v10108 = vrot.slane %v10107, 4
    %v10109 = vrot.slane %v9304, 5
    %v10110 = vsel %vm3749, %v10108, %v10109
    %s10111 = scalar_lea.vmem %s3, 128
    %v10112 = vld [vmem:[%s10111] sm:$0xf]
    %v10113 = vld [vmem:[%s10111 + $0x4] sm:$0xf]
    %v10114 = vld [vmem:[%s10111 + $0x8] sm:$0xf]
    %v10115 = vld [vmem:[%s10111 + $0xc] sm:$0x7]
    %v10116 = vunpack.c.l.b16 %v10106
    %v10117 = vunpack.c.l.b16 %v10110
    %v10118 = vpack.c.b16 %v10116, %v9994
    %v10119 = vpack.c.b16 %v10117, %v9995
    %v10124 = vunpack.c.l.b16 %v10112
    %v10125 = vunpack.c.l.b16 %v10113
    %v10126 = vunpack.c.l.b16 %v10114
    %v10127 = vunpack.c.l.b16 %v10115
    %v10128 = vpack.c.b16 %v10125, %v10124
    %v10129 = vpack.c.b16 %v10127, %v10126
    %v10132 = vsel %vm8546, %v10118, 0
    %v10135 = vsel %vm8546, %v10119, 0
    %v10138 = vsel %vm6429, %v10129, 0
    %10140 = vmatprep.subr.bf16.mxu0 0
    %10141 = vmatpush1.bf16.msra.mxu0 %v10128
    %10142 = vmatprep.subr.bf16.mxu0 0
    %10143 = vmatpush1.bf16.msra.mxu0 %v10138
    %10144 = vmatprep.subr.bf16.mxu0 0
    %10145 = vmatpush1.bf16.msra.mxu0 0
    %10146 = vmatprep.subr.bf16.mxu0 0
    %10147 = vmatpush1.bf16.msra.mxu0 0
    %10148 = vmatprep.subr.bf16.mxu0 0
    %10149 = vmatpush1.bf16.msra.mxu0 0
    %10150 = vmatprep.subr.bf16.mxu0 0
    %10151 = vmatpush1.bf16.msra.mxu0 0
    %10152 = vmatprep.subr.bf16.mxu0 0
    %10153 = vmatpush1.bf16.msra.mxu0 0
    %10154 = vmatprep.subr.bf16.mxu0 0
    %10155 = vmatpush1.bf16.msra.mxu0 0
    %10156 = vmatprep.subr.bf16.mxu0 0
    %10157 = vmatpush1.bf16.msra.mxu0 0
    %10158 = vmatprep.subr.bf16.mxu0 0
    %10159 = vmatpush1.bf16.msra.mxu0 0
    %10160 = vmatprep.subr.bf16.mxu0 0
    %10161 = vmatpush1.bf16.msra.mxu0 0
    %10162 = vmatprep.subr.bf16.mxu0 0
    %10163 = vmatpush1.bf16.msra.mxu0 0
    %10164 = vmatprep.subr.bf16.mxu0 0
    %10165 = vmatpush1.bf16.msra.mxu0 0
    %10166 = vmatprep.subr.bf16.mxu0 0
    %10167 = vmatpush1.bf16.msra.mxu0 0
    %10168 = vmatprep.subr.bf16.mxu0 0
    %10169 = vmatpush1.bf16.msra.mxu0 0
    %10170 = vmatprep.subr.bf16.mxu0 0
    %10171 = vmatpush1.bf16.msra.mxu0 0
    %10172 = vmatprep.mubr.bf16.mxu0 0
    %10173 = vmatmul.mubr.bf16.gmra.mrb[0].mxu0 %v9893
    %v10174 = vpop.f32.mrb[0].mxu0
    %v10175 = vadd.f32 0.0, %v10174
    %v10176 = vpop.f32.mrb[0].mxu0
    %v10177 = vpop.f32.mrb[0].mxu0
    %v10178 = vadd.f32 0.0, %v10177
    %v10179 = vpop.f32.mrb[0].mxu0
    %10180 = vmatprep.mubr.bf16.mxu0 0
    %10181 = vmatmul.mubr.bf16.gmra.mrb[0].mxu0 %v10132
    %v10182 = vpop.f32.mrb[0].mxu0
    %v10183 = vadd.f32 0.0, %v10182
    %v10184 = vpop.f32.mrb[0].mxu0
    %v10185 = vpop.f32.mrb[0].mxu0
    %v10186 = vadd.f32 0.0, %v10185
    %v10187 = vpop.f32.mrb[0].mxu0
    %10188 = vmatprep.mubr.bf16.mxu0 0
    %10189 = vmatmul.mubr.bf16.gmra.mrb[0].mxu0 %v9899
    %v10190 = vpop.f32.mrb[0].mxu0
    %v10191 = vadd.f32 0.0, %v10190
    %v10192 = vpop.f32.mrb[0].mxu0
    %v10193 = vpop.f32.mrb[0].mxu0
    %v10194 = vadd.f32 0.0, %v10193
    %v10195 = vpop.f32.mrb[0].mxu0
    %10196 = vmatprep.mubr.bf16.mxu0 0
    %10197 = vmatmul.mubr.bf16.gmra.mrb[0].mxu0 %v10135
    %v10198 = vpop.f32.mrb[0].mxu0
    %v10199 = vadd.f32 0.0, %v10198
    %v10200 = vpop.f32.mrb[0].mxu0
    %v10201 = vpop.f32.mrb[0].mxu0
    %v10202 = vadd.f32 0.0, %v10201
    %v10203 = vpop.f32.mrb[0].mxu0
    %10204 = vdwg.mxu0
    %v10205 = vadd.f32 %v10091, %v10175
    %v10206 = vadd.f32 %v10092, %v10178
    %v10207 = vadd.f32 %v10093, %v10183
    %v10208 = vadd.f32 %v10094, %v10186
    %v10209 = vadd.f32 %v10095, %v10191
    %v10210 = vadd.f32 %v10096, %v10194
    %v10211 = vadd.f32 %v10097, %v10199
    %v10212 = vadd.f32 %v10098, %v10202
    %v10213 = vlaneseq
    %v10214 = vshrl.u32 %v10213, 7
    %v10215 = vadd.s32 %v10214, 8
    %v10216 = vadd.s32 %v10214, 16
    %v10217 = vadd.s32 %v10214, 24
    %v10218 = vadd.s32 %v10214, 32
    %v10219 = vadd.s32 %v10214, 40
    %v10220 = vadd.s32 %v10214, 48
    %v10221 = vadd.s32 %v10214, 56
    %vm10222 = vcmp.lt.s32.totalorder %v10214, 0
    %v10223 = vsub.s32 0, %v10214
    %v10224 = vsel %vm10222, %v10223, %v10214
    %v10225 = vshrl.u32 %v10224, 3
    %v10226 = vand.u32 %v10224, 7
    %v10227 = vsub.s32 0, %v10226
    %v10228 = vsel %vm10222, %v10227, %v10226
    %vm10229 = vcmp.lt.s32.totalorder %v10215, 0
    %v10230 = vsub.s32 0, %v10215
    %v10231 = vsel %vm10229, %v10230, %v10215
    %v10232 = vshrl.u32 %v10231, 3
    %v10233 = vand.u32 %v10231, 7
    %v10234 = vsub.s32 0, %v10233
    %v10235 = vsel %vm10229, %v10234, %v10233
    %vm10236 = vcmp.lt.s32.totalorder %v10216, 0
    %v10237 = vsub.s32 0, %v10216
    %v10238 = vsel %vm10236, %v10237, %v10216
    %v10239 = vshrl.u32 %v10238, 3
    %v10240 = vand.u32 %v10238, 7
    %v10241 = vsub.s32 0, %v10240
    %v10242 = vsel %vm10236, %v10241, %v10240
    %vm10243 = vcmp.lt.s32.totalorder %v10217, 0
    %v10244 = vsub.s32 0, %v10217
    %v10245 = vsel %vm10243, %v10244, %v10217
    %v10246 = vshrl.u32 %v10245, 3
    %v10247 = vand.u32 %v10245, 7
    %v10248 = vsub.s32 0, %v10247
    %v10249 = vsel %vm10243, %v10248, %v10247
    %vm10250 = vcmp.lt.s32.totalorder %v10218, 0
    %v10251 = vsub.s32 0, %v10218
    %v10252 = vsel %vm10250, %v10251, %v10218
    %v10253 = vshrl.u32 %v10252, 3
    %v10254 = vand.u32 %v10252, 7
    %v10255 = vsub.s32 0, %v10254
    %v10256 = vsel %vm10250, %v10255, %v10254
    %vm10257 = vcmp.lt.s32.totalorder %v10219, 0
    %v10258 = vsub.s32 0, %v10219
    %v10259 = vsel %vm10257, %v10258, %v10219
    %v10260 = vshrl.u32 %v10259, 3
    %v10261 = vand.u32 %v10259, 7
    %v10262 = vsub.s32 0, %v10261
    %v10263 = vsel %vm10257, %v10262, %v10261
    %vm10264 = vcmp.lt.s32.totalorder %v10220, 0
    %v10265 = vsub.s32 0, %v10220
    %v10266 = vsel %vm10264, %v10265, %v10220
    %v10267 = vshrl.u32 %v10266, 3
    %v10268 = vand.u32 %v10266, 7
    %v10269 = vsub.s32 0, %v10268
    %v10270 = vsel %vm10264, %v10269, %v10268
    %vm10271 = vcmp.lt.s32.totalorder %v10221, 0
    %v10272 = vsub.s32 0, %v10221
    %v10273 = vsel %vm10271, %v10272, %v10221
    %v10274 = vshrl.u32 %v10273, 3
    %v10275 = vand.u32 %v10273, 7
    %v10276 = vsub.s32 0, %v10275
    %v10277 = vsel %vm10271, %v10276, %v10275
    %vm10278 = vcmp.ne.s32.totalorder %v10228, 0
    %vm10279 = vcmp.ne.s32.totalorder %v10235, 0
    %vm10280 = vcmp.ne.s32.totalorder %v10242, 0
    %vm10281 = vcmp.ne.s32.totalorder %v10249, 0
    %vm10282 = vcmp.ne.s32.totalorder %v10256, 0
    %vm10283 = vcmp.ne.s32.totalorder %v10263, 0
    %vm10284 = vcmp.ne.s32.totalorder %v10270, 0
    %vm10285 = vcmp.ne.s32.totalorder %v10277, 0
    %vm10286 = vcmp.lt.s32.totalorder %v10228, 0
    %vm10287 = vcmp.lt.s32.totalorder %v10235, 0
    %vm10288 = vcmp.lt.s32.totalorder %v10242, 0
    %vm10289 = vcmp.lt.s32.totalorder %v10249, 0
    %vm10290 = vcmp.lt.s32.totalorder %v10256, 0
    %vm10291 = vcmp.lt.s32.totalorder %v10263, 0
    %vm10292 = vcmp.lt.s32.totalorder %v10270, 0
    %vm10293 = vcmp.lt.s32.totalorder %v10277, 0
    %vm10294 = vmand %vm10286, %vm10278
    %vm10295 = vmand %vm10287, %vm10279
    %vm10296 = vmand %vm10288, %vm10280
    %vm10297 = vmand %vm10289, %vm10281
    %vm10298 = vmand %vm10290, %vm10282
    %vm10299 = vmand %vm10291, %vm10283
    %vm10300 = vmand %vm10292, %vm10284
    %vm10301 = vmand %vm10293, %vm10285
    %v10302 = vadd.s32 %v10228, 8
    %v10303 = vadd.s32 %v10235, 8
    %v10304 = vadd.s32 %v10242, 8
    %v10305 = vadd.s32 %v10249, 8
    %v10306 = vadd.s32 %v10256, 8
    %v10307 = vadd.s32 %v10263, 8
    %v10308 = vadd.s32 %v10270, 8
    %v10309 = vadd.s32 %v10277, 8
    %v10310 = vsel %vm10294, %v10302, %v10228
    %v10311 = vsel %vm10295, %v10303, %v10235
    %v10312 = vsel %vm10296, %v10304, %v10242
    %v10313 = vsel %vm10297, %v10305, %v10249
    %v10314 = vsel %vm10298, %v10306, %v10256
    %v10315 = vsel %vm10299, %v10307, %v10263
    %v10316 = vsel %vm10300, %v10308, %v10270
    %v10317 = vsel %vm10301, %v10309, %v10277
    %vm10318 = vcmp.lt.s32.totalorder %v10310, 4
    %vm10319 = vcmp.lt.s32.totalorder %v10311, 4
    %vm10320 = vcmp.lt.s32.totalorder %v10312, 4
    %vm10321 = vcmp.lt.s32.totalorder %v10313, 4
    %vm10322 = vcmp.lt.s32.totalorder %v10314, 4
    %vm10323 = vcmp.lt.s32.totalorder %v10315, 4
    %vm10324 = vcmp.lt.s32.totalorder %v10316, 4
    %vm10325 = vcmp.lt.s32.totalorder %v10317, 4
    %v10326 = vsel %vm10318, 1, 0
    %v10327 = vsel %vm10319, 1, 0
    %v10328 = vsel %vm10320, 1, 0
    %v10329 = vsel %vm10321, 1, 0
    %v10330 = vsel %vm10322, 1, 0
    %v10331 = vsel %vm10323, 1, 0
    %v10332 = vsel %vm10324, 1, 0
    %v10333 = vsel %vm10325, 1, 0
    %v10334 = vcvt.s32.f32 %v10326
    %v10335 = vcvt.s32.f32 %v10327
    %v10336 = vcvt.s32.f32 %v10328
    %v10337 = vcvt.s32.f32 %v10329
    %v10338 = vcvt.s32.f32 %v10330
    %v10339 = vcvt.s32.f32 %v10331
    %v10340 = vcvt.s32.f32 %v10332
    %v10341 = vcvt.s32.f32 %v10333
    %v10342 = vmul.f32 %v10205, %v10334
    %v10343 = vmul.f32 %v10206, %v10335
    %v10344 = vmul.f32 %v10207, %v10336
    %v10345 = vmul.f32 %v10208, %v10337
    %v10346 = vmul.f32 %v10209, %v10338
    %v10347 = vmul.f32 %v10210, %v10339
    %v10348 = vmul.f32 %v10211, %v10340
    %v10349 = vmul.f32 %v10212, %v10341
    %vm10350 = vcmask 408576
    %v10351 = vsel %vm10350, %v10342, 0.0
    %v10352 = vsel %vm10350, %v10343, 0.0
    %v10353 = vadd.f32 %v10351, %v10352
    %v10354 = vsel %vm10350, %v10344, 0.0
    %v10355 = vadd.f32 %v10353, %v10354
    %v10356 = vsel %vm10350, %v10345, 0.0
    %v10357 = vadd.f32 %v10355, %v10356
    %v10358 = vsel %vm10350, %v10346, 0.0
    %v10359 = vadd.f32 %v10357, %v10358
    %v10360 = vsel %vm10350, %v10347, 0.0
    %v10361 = vadd.f32 %v10359, %v10360
    %v10362 = vsel %vm10350, %v10348, 0.0
    %v10363 = vadd.f32 %v10361, %v10362
    %v10364 = vsel %vm10350, %v10349, 0.0
    %v10365 = vadd.f32 %v10363, %v10364
    %v10366 = vrot.slane %v10365, 4
    %v10367 = vadd.f32 %v10365, %v10366
    %v10368 = vrot.slane %v10367, 2
    %v10369 = vadd.f32 %v10367, %v10368
    %v10370 = vrot.slane %v10369, 1
    %v10371 = vadd.f32 %v10369, %v10370
    %v10372 = vmul.f32 %v10371, 0.03125
    %v10373 = vsub.f32 %v10205, %v10372
    %v10374 = vsub.f32 %v10206, %v10372
    %v10375 = vsub.f32 %v10207, %v10372
    %v10376 = vsub.f32 %v10208, %v10372
    %v10377 = vsub.f32 %v10209, %v10372
    %v10378 = vsub.f32 %v10210, %v10372
    %v10379 = vsub.f32 %v10211, %v10372
    %v10380 = vsub.f32 %v10212, %v10372
    %v10381 = vmul.f32 %v10373, %v10334
    %v10382 = vmul.f32 %v10374, %v10335
    %v10383 = vmul.f32 %v10375, %v10336
    %v10384 = vmul.f32 %v10376, %v10337
    %v10385 = vmul.f32 %v10377, %v10338
    %v10386 = vmul.f32 %v10378, %v10339
    %v10387 = vmul.f32 %v10379, %v10340
    %v10388 = vmul.f32 %v10380, %v10341
    %v10389 = vmul.f32 %v10381, %v10381
    %v10390 = vmul.f32 %v10382, %v10382
    %v10391 = vmul.f32 %v10383, %v10383
    %v10392 = vmul.f32 %v10384, %v10384
    %v10393 = vmul.f32 %v10385, %v10385
    %v10394 = vmul.f32 %v10386, %v10386
    %v10395 = vmul.f32 %v10387, %v10387
    %v10396 = vmul.f32 %v10388, %v10388
    %v10397 = vsel %vm10350, %v10389, 0.0
    %v10398 = vsel %vm10350, %v10390, 0.0
    %v10399 = vadd.f32 %v10397, %v10398
    %v10400 = vsel %vm10350, %v10391, 0.0
    %v10401 = vadd.f32 %v10399, %v10400
    %v10402 = vsel %vm10350, %v10392, 0.0
    %v10403 = vadd.f32 %v10401, %v10402
    %v10404 = vsel %vm10350, %v10393, 0.0
    %v10405 = vadd.f32 %v10403, %v10404
    %v10406 = vsel %vm10350, %v10394, 0.0
    %v10407 = vadd.f32 %v10405, %v10406
    %v10408 = vsel %vm10350, %v10395, 0.0
    %v10409 = vadd.f32 %v10407, %v10408
    %v10410 = vsel %vm10350, %v10396, 0.0
    %v10411 = vadd.f32 %v10409, %v10410
    %v10412 = vrot.slane %v10411, 4
    %v10413 = vadd.f32 %v10411, %v10412
    %v10414 = vrot.slane %v10413, 2
    %v10415 = vadd.f32 %v10413, %v10414
    %v10416 = vrot.slane %v10415, 1
    %v10417 = vadd.f32 %v10415, %v10416
    %v10418 = vmul.f32 %v10417, 0.03125
    %v10419 = vld [vmem:[%s8] sm:$0x1]
    %v10420 = vadd.f32 %v10418, 1e-05
    %v10421 = vrsqrt.pop %v10420
    %v10422 = vmul.f32 %v10419, %v10421
    %v10423 = vld [vmem:[%s9] sm:$0x1]
    %v10424 = vmul.f32 %v10372, %v10422
    %v10425 = vsub.f32 %v10423, %v10424
    %v10427 = vlaneseq
    %v10428 = vshrl.u32 %v10427, 7
    %v10429 = vsub.s32 0, %v10428
    %v10430 = vrot.slane %v10422, %v10429
    %v10432 = vmul.f32 %v10205, %v10430
    %v10433 = vmul.f32 %v10206, %v10430
    %v10434 = vmul.f32 %v10207, %v10430
    %v10435 = vmul.f32 %v10208, %v10430
    %v10436 = vmul.f32 %v10209, %v10430
    %v10437 = vmul.f32 %v10210, %v10430
    %v10438 = vmul.f32 %v10211, %v10430
    %v10439 = vmul.f32 %v10212, %v10430
    %v10441 = vlaneseq
    %v10442 = vshrl.u32 %v10441, 7
    %v10443 = vsub.s32 0, %v10442
    %v10444 = vrot.slane %v10425, %v10443
    %v10446 = vadd.f32 %v10432, %v10444
    %v10447 = vadd.f32 %v10433, %v10444
    %v10448 = vadd.f32 %v10434, %v10444
    %v10449 = vadd.f32 %v10435, %v10444
    %v10450 = vadd.f32 %v10436, %v10444
    %v10451 = vadd.f32 %v10437, %v10444
    %v10452 = vadd.f32 %v10438, %v10444
    %v10453 = vadd.f32 %v10439, %v10444
    %v10454 = vmax.f32 %v10446, 0.0
    %v10455 = vmax.f32 %v10447, 0.0
    %v10456 = vmax.f32 %v10448, 0.0
    %v10457 = vmax.f32 %v10449, 0.0
    %v10458 = vmax.f32 %v10450, 0.0
    %v10459 = vmax.f32 %v10451, 0.0
    %v10460 = vmax.f32 %v10452, 0.0
    %v10461 = vmax.f32 %v10453, 0.0
    %v10462 = vpack.c.bf16 %v10455, %v10454
    %v10463 = vpack.c.bf16 %v10457, %v10456
    %v10464 = vpack.c.bf16 %v10459, %v10458
    %v10465 = vpack.c.bf16 %v10461, %v10460
    %v10470 = vunpack.c.l.b16 %v10462
    %v10471 = vunpack.c.h.b16 %v10462
    %v10472 = vunpack.c.l.b16 %v10463
    %v10473 = vunpack.c.h.b16 %v10463
    %v10474 = vunpack.c.l.b16 %v10464
    %v10475 = vunpack.c.h.b16 %v10464
    %v10476 = vunpack.c.l.b16 %v10465
    %v10477 = vunpack.c.h.b16 %v10465
    %v10478 = vld [vmem:[%s10] sm:$0xf]
    %v10479 = vld [vmem:[%s10 + $0x4] sm:$0xf]
    %v10480 = vld [vmem:[%s10 + $0x8] sm:$0xf]
    %v10481 = vld [vmem:[%s10 + $0xc] sm:$0xf]
    %v10482 = vld [vmem:[%s10 + $0x10] sm:$0xf]
    %v10483 = vld [vmem:[%s10 + $0x14] sm:$0xf]
    %v10484 = vld [vmem:[%s10 + $0x18] sm:$0x1]
    %s10485 = scalar_lea.vmem %s10, 28
    %v10486 = vld [vmem:[%s10485] sm:$0xf]
    %v10487 = vld [vmem:[%s10485 + $0x4] sm:$0xf]
    %v10488 = vld [vmem:[%s10485 + $0x8] sm:$0xf]
    %v10489 = vld [vmem:[%s10485 + $0xc] sm:$0xf]
    %v10490 = vld [vmem:[%s10485 + $0x10] sm:$0xf]
    %v10491 = vld [vmem:[%s10485 + $0x14] sm:$0xf]
    %v10492 = vld [vmem:[%s10485 + $0x18] sm:$0x1]
    %v10493 = vpack.c.b16 %v10470, %v10470
    %v10494 = vpack.c.b16 %v10474, %v10474
    %v10495 = vunpack.c.l.b16 %v10493
    %v10496 = vunpack.c.l.b16 %v10494
    %v10497 = vrot.slane %v10495, 1
    %vm10498 = vcmask 1041409
    %v10499 = vsel %vm10498, %v10496, %v10497
    %v10500 = vpack.c.b16 %v10499, %v10499
    %v10508 = vunpack.c.l.b16 %v10486
    %v10509 = vunpack.c.l.b16 %v10487
    %v10510 = vunpack.c.l.b16 %v10488
    %v10511 = vunpack.c.l.b16 %v10489
    %v10512 = vunpack.c.l.b16 %v10490
    %v10513 = vunpack.c.l.b16 %v10491
    %v10514 = vunpack.c.l.b16 %v10492
    %v10515 = vpack.c.b16 %v10509, %v10508
    %v10516 = vpack.c.b16 %v10511, %v10510
    %v10517 = vpack.c.b16 %v10513, %v10512
    %v10518 = vpack.c.b16 %v10514, %v10514
    %v10523 = vsel %vm10350, %v10500, 0
    %v10526 = vsel %vm6328, %v10518, 0
    %10528 = vmatprep.subr.bf16.mxu0 0
    %10529 = vmatpush1.bf16.msra.mxu0 %v10515
    %10530 = vmatprep.subr.bf16.mxu0 0
    %10531 = vmatpush1.bf16.msra.mxu0 %v10516
    %10532 = vmatprep.subr.bf16.mxu0 0
    %10533 = vmatpush1.bf16.msra.mxu0 %v10517
    %10534 = vmatprep.subr.bf16.mxu0 0
    %10535 = vmatpush1.bf16.msra.mxu0 %v10526
    %10536 = vmatprep.subr.bf16.mxu0 0
    %10537 = vmatpush1.bf16.msra.mxu0 0
    %10538 = vmatprep.subr.bf16.mxu0 0
    %10539 = vmatpush1.bf16.msra.mxu0 0
    %10540 = vmatprep.subr.bf16.mxu0 0
    %10541 = vmatpush1.bf16.msra.mxu0 0
    %10542 = vmatprep.subr.bf16.mxu0 0
    %10543 = vmatpush1.bf16.msra.mxu0 0
    %10544 = vmatprep.subr.bf16.mxu0 0
    %10545 = vmatpush1.bf16.msra.mxu0 0
    %10546 = vmatprep.subr.bf16.mxu0 0
    %10547 = vmatpush1.bf16.msra.mxu0 0
    %10548 = vmatprep.subr.bf16.mxu0 0
    %10549 = vmatpush1.bf16.msra.mxu0 0
    %10550 = vmatprep.subr.bf16.mxu0 0
    %10551 = vmatpush1.bf16.msra.mxu0 0
    %10552 = vmatprep.subr.bf16.mxu0 0
    %10553 = vmatpush1.bf16.msra.mxu0 0
    %10554 = vmatprep.subr.bf16.mxu0 0
    %10555 = vmatpush1.bf16.msra.mxu0 0
    %10556 = vmatprep.subr.bf16.mxu0 0
    %10557 = vmatpush1.bf16.msra.mxu0 0
    %10558 = vmatprep.subr.bf16.mxu0 0
    %10559 = vmatpush1.bf16.msra.mxu0 0
    %10560 = vmatprep.mubr.bf16.mxu0 0
    %10561 = vmatmul.mubr.bf16.gmra.mrb[0].mxu0 %v10523
    %v10562 = vpop.f32.mrb[0].mxu0
    %v10563 = vadd.f32 0.0, %v10562
    %v10564 = vpop.f32.mrb[0].mxu0
    %v10565 = vpop.f32.mrb[0].mxu0
    %v10566 = vpop.f32.mrb[0].mxu0
    %10567 = vdwg.mxu0
    %v10568 = vrot.slane %v10496, 7
    %v10569 = vsel %vm10498, %v10568, %v10495
    %v10570 = vpack.c.b16 %v10569, %v10569
    %v10578 = vunpack.c.l.b16 %v10478
    %v10579 = vunpack.c.l.b16 %v10479
    %v10580 = vunpack.c.l.b16 %v10480
    %v10581 = vunpack.c.l.b16 %v10481
    %v10582 = vunpack.c.l.b16 %v10482
    %v10583 = vunpack.c.l.b16 %v10483
    %v10584 = vunpack.c.l.b16 %v10484
    %v10585 = vpack.c.b16 %v10579, %v10578
    %v10586 = vpack.c.b16 %v10581, %v10580
    %v10587 = vpack.c.b16 %v10583, %v10582
    %v10588 = vpack.c.b16 %v10584, %v10584
    %v10593 = vsel %vm10350, %v10570, 0
    %v10596 = vsel %vm6328, %v10588, 0
    %10598 = vmatprep.subr.bf16.mxu0 0
    %10599 = vmatpush1.bf16.msra.mxu0 %v10585
    %10600 = vmatprep.subr.bf16.mxu0 0
    %10601 = vmatpush1.bf16.msra.mxu0 %v10586
    %10602 = vmatprep.subr.bf16.mxu0 0
    %10603 = vmatpush1.bf16.msra.mxu0 %v10587
    %10604 = vmatprep.subr.bf16.mxu0 0
    %10605 = vmatpush1.bf16.msra.mxu0 %v10596
    %10606 = vmatprep.subr.bf16.mxu0 0
    %10607 = vmatpush1.bf16.msra.mxu0 0
    %10608 = vmatprep.subr.bf16.mxu0 0
    %10609 = vmatpush1.bf16.msra.mxu0 0
    %10610 = vmatprep.subr.bf16.mxu0 0
    %10611 = vmatpush1.bf16.msra.mxu0 0
    %10612 = vmatprep.subr.bf16.mxu0 0
    %10613 = vmatpush1.bf16.msra.mxu0 0
    %10614 = vmatprep.subr.bf16.mxu0 0
    %10615 = vmatpush1.bf16.msra.mxu0 0
    %10616 = vmatprep.subr.bf16.mxu0 0
    %10617 = vmatpush1.bf16.msra.mxu0 0
    %10618 = vmatprep.subr.bf16.mxu0 0
    %10619 = vmatpush1.bf16.msra.mxu0 0
    %10620 = vmatprep.subr.bf16.mxu0 0
    %10621 = vmatpush1.bf16.msra.mxu0 0
    %10622 = vmatprep.subr.bf16.mxu0 0
    %10623 = vmatpush1.bf16.msra.mxu0 0
    %10624 = vmatprep.subr.bf16.mxu0 0
    %10625 = vmatpush1.bf16.msra.mxu0 0
    %10626 = vmatprep.subr.bf16.mxu0 0
    %10627 = vmatpush1.bf16.msra.mxu0 0
    %10628 = vmatprep.subr.bf16.mxu0 0
    %10629 = vmatpush1.bf16.msra.mxu0 0
    %10630 = vmatprep.mubr.bf16.mxu0 0
    %10631 = vmatmul.mubr.bf16.gmra.mrb[0].mxu0 %v10593
    %v10632 = vpop.f32.mrb[0].mxu0
    %v10633 = vadd.f32 %v10563, %v10632
    %v10634 = vpop.f32.mrb[0].mxu0
    %v10635 = vpop.f32.mrb[0].mxu0
    %v10636 = vpop.f32.mrb[0].mxu0
    %10637 = vdwg.mxu0
    %s10638 = scalar_lea.vmem %s10, 56
    %v10639 = vld [vmem:[%s10638] sm:$0xf]
    %v10640 = vld [vmem:[%s10638 + $0x4] sm:$0xf]
    %v10641 = vld [vmem:[%s10638 + $0x8] sm:$0xf]
    %v10642 = vld [vmem:[%s10638 + $0xc] sm:$0xf]
    %v10643 = vld [vmem:[%s10638 + $0x10] sm:$0xf]
    %v10644 = vld [vmem:[%s10638 + $0x14] sm:$0xf]
    %v10645 = vld [vmem:[%s10638 + $0x18] sm:$0x1]
    %v10646 = vrot.slane %v10495, 2
    %v10647 = vrot.slane %v10496, 1
    %v10648 = vsel %vm10498, %v10647, %v10646
    %v10649 = vpack.c.b16 %v10648, %v10648
    %v10657 = vunpack.c.l.b16 %v10639
    %v10658 = vunpack.c.l.b16 %v10640
    %v10659 = vunpack.c.l.b16 %v10641
    %v10660 = vunpack.c.l.b16 %v10642
    %v10661 = vunpack.c.l.b16 %v10643
    %v10662 = vunpack.c.l.b16 %v10644
    %v10663 = vunpack.c.l.b16 %v10645
    %v10664 = vpack.c.b16 %v10658, %v10657
    %v10665 = vpack.c.b16 %v10660, %v10659
    %v10666 = vpack.c.b16 %v10662, %v10661
    %v10667 = vpack.c.b16 %v10663, %v10663
    %v10672 = vsel %vm10350, %v10649, 0
    %v10675 = vsel %vm6328, %v10667, 0
    %10677 = vmatprep.subr.bf16.mxu0 0
    %10678 = vmatpush1.bf16.msra.mxu0 %v10664
    %10679 = vmatprep.subr.bf16.mxu0 0
    %10680 = vmatpush1.bf16.msra.mxu0 %v10665
    %10681 = vmatprep.subr.bf16.mxu0 0
    %10682 = vmatpush1.bf16.msra.mxu0 %v10666
    %10683 = vmatprep.subr.bf16.mxu0 0
    %10684 = vmatpush1.bf16.msra.mxu0 %v10675
    %10685 = vmatprep.subr.bf16.mxu0 0
    %10686 = vmatpush1.bf16.msra.mxu0 0
    %10687 = vmatprep.subr.bf16.mxu0 0
    %10688 = vmatpush1.bf16.msra.mxu0 0
    %10689 = vmatprep.subr.bf16.mxu0 0
    %10690 = vmatpush1.bf16.msra.mxu0 0
    %10691 = vmatprep.subr.bf16.mxu0 0
    %10692 = vmatpush1.bf16.msra.mxu0 0
    %10693 = vmatprep.subr.bf16.mxu0 0
    %10694 = vmatpush1.bf16.msra.mxu0 0
    %10695 = vmatprep.subr.bf16.mxu0 0
    %10696 = vmatpush1.bf16.msra.mxu0 0
    %10697 = vmatprep.subr.bf16.mxu0 0
    %10698 = vmatpush1.bf16.msra.mxu0 0
    %10699 = vmatprep.subr.bf16.mxu0 0
    %10700 = vmatpush1.bf16.msra.mxu0 0
    %10701 = vmatprep.subr.bf16.mxu0 0
    %10702 = vmatpush1.bf16.msra.mxu0 0
    %10703 = vmatprep.subr.bf16.mxu0 0
    %10704 = vmatpush1.bf16.msra.mxu0 0
    %10705 = vmatprep.subr.bf16.mxu0 0
    %10706 = vmatpush1.bf16.msra.mxu0 0
    %10707 = vmatprep.subr.bf16.mxu0 0
    %10708 = vmatpush1.bf16.msra.mxu0 0
    %10709 = vmatprep.mubr.bf16.mxu0 0
    %10710 = vmatmul.mubr.bf16.gmra.mrb[0].mxu0 %v10672
    %v10711 = vpop.f32.mrb[0].mxu0
    %v10712 = vadd.f32 0.0, %v10711
    %v10713 = vpop.f32.mrb[0].mxu0
    %v10714 = vpop.f32.mrb[0].mxu0
    %v10715 = vpop.f32.mrb[0].mxu0
    %10716 = vdwg.mxu0
    %v10717 = vadd.f32 %v10633, %v10712
    %s10718 = scalar_lea.vmem %s10, 84
    %v10719 = vld [vmem:[%s10718] sm:$0xf]
    %v10720 = vld [vmem:[%s10718 + $0x4] sm:$0xf]
    %v10721 = vld [vmem:[%s10718 + $0x8] sm:$0xf]
    %v10722 = vld [vmem:[%s10718 + $0xc] sm:$0xf]
    %v10723 = vld [vmem:[%s10718 + $0x10] sm:$0xf]
    %v10724 = vld [vmem:[%s10718 + $0x14] sm:$0xf]
    %v10725 = vld [vmem:[%s10718 + $0x18] sm:$0x1]
    %v10726 = vrot.slane %v10495, 3
    %v10727 = vrot.slane %v10496, 2
    %v10728 = vsel %vm10498, %v10727, %v10726
    %v10729 = vpack.c.b16 %v10728, %v10728
    %v10737 = vunpack.c.l.b16 %v10719
    %v10738 = vunpack.c.l.b16 %v10720
    %v10739 = vunpack.c.l.b16 %v10721
    %v10740 = vunpack.c.l.b16 %v10722
    %v10741 = vunpack.c.l.b16 %v10723
    %v10742 = vunpack.c.l.b16 %v10724
    %v10743 = vunpack.c.l.b16 %v10725
    %v10744 = vpack.c.b16 %v10738, %v10737
    %v10745 = vpack.c.b16 %v10740, %v10739
    %v10746 = vpack.c.b16 %v10742, %v10741
    %v10747 = vpack.c.b16 %v10743, %v10743
    %v10752 = vsel %vm10350, %v10729, 0
    %v10755 = vsel %vm6328, %v10747, 0
    %10757 = vmatprep.subr.bf16.mxu0 0
    %10758 = vmatpush1.bf16.msra.mxu0 %v10744
    %10759 = vmatprep.subr.bf16.mxu0 0
    %10760 = vmatpush1.bf16.msra.mxu0 %v10745
    %10761 = vmatprep.subr.bf16.mxu0 0
    %10762 = vmatpush1.bf16.msra.mxu0 %v10746
    %10763 = vmatprep.subr.bf16.mxu0 0
    %10764 = vmatpush1.bf16.msra.mxu0 %v10755
    %10765 = vmatprep.subr.bf16.mxu0 0
    %10766 = vmatpush1.bf16.msra.mxu0 0
    %10767 = vmatprep.subr.bf16.mxu0 0
    %10768 = vmatpush1.bf16.msra.mxu0 0
    %10769 = vmatprep.subr.bf16.mxu0 0
    %10770 = vmatpush1.bf16.msra.mxu0 0
    %10771 = vmatprep.subr.bf16.mxu0 0
    %10772 = vmatpush1.bf16.msra.mxu0 0
    %10773 = vmatprep.subr.bf16.mxu0 0
    %10774 = vmatpush1.bf16.msra.mxu0 0
    %10775 = vmatprep.subr.bf16.mxu0 0
    %10776 = vmatpush1.bf16.msra.mxu0 0
    %10777 = vmatprep.subr.bf16.mxu0 0
    %10778 = vmatpush1.bf16.msra.mxu0 0
    %10779 = vmatprep.subr.bf16.mxu0 0
    %10780 = vmatpush1.bf16.msra.mxu0 0
    %10781 = vmatprep.subr.bf16.mxu0 0
    %10782 = vmatpush1.bf16.msra.mxu0 0
    %10783 = vmatprep.subr.bf16.mxu0 0
    %10784 = vmatpush1.bf16.msra.mxu0 0
    %10785 = vmatprep.subr.bf16.mxu0 0
    %10786 = vmatpush1.bf16.msra.mxu0 0
    %10787 = vmatprep.subr.bf16.mxu0 0
    %10788 = vmatpush1.bf16.msra.mxu0 0
    %10789 = vmatprep.mubr.bf16.mxu0 0
    %10790 = vmatmul.mubr.bf16.gmra.mrb[0].mxu0 %v10752
    %v10791 = vpop.f32.mrb[0].mxu0
    %v10792 = vadd.f32 0.0, %v10791
    %v10793 = vpop.f32.mrb[0].mxu0
    %v10794 = vpop.f32.mrb[0].mxu0
    %v10795 = vpop.f32.mrb[0].mxu0
    %10796 = vdwg.mxu0
    %v10797 = vadd.f32 %v10717, %v10792
    %s10798 = scalar_lea.vmem %s10, 112
    %v10799 = vld [vmem:[%s10798] sm:$0xf]
    %v10800 = vld [vmem:[%s10798 + $0x4] sm:$0xf]
    %v10801 = vld [vmem:[%s10798 + $0x8] sm:$0xf]
    %v10802 = vld [vmem:[%s10798 + $0xc] sm:$0xf]
    %v10803 = vld [vmem:[%s10798 + $0x10] sm:$0xf]
    %v10804 = vld [vmem:[%s10798 + $0x14] sm:$0xf]
    %v10805 = vld [vmem:[%s10798 + $0x18] sm:$0x1]
    %v10806 = vpack.c.b16 %v10471, %v10471
    %v10807 = vpack.c.b16 %v10475, %v10475
    %v10808 = vunpack.c.l.b16 %v10806
    %v10809 = vunpack.c.l.b16 %v10807
    %v10810 = vrot.slane %v10809, 7
    %v10811 = vsel %vm10498, %v10810, %v10808
    %v10812 = vpack.c.b16 %v10811, %v10811
    %v10820 = vunpack.c.l.b16 %v10799
    %v10821 = vunpack.c.l.b16 %v10800
    %v10822 = vunpack.c.l.b16 %v10801
    %v10823 = vunpack.c.l.b16 %v10802
    %v10824 = vunpack.c.l.b16 %v10803
    %v10825 = vunpack.c.l.b16 %v10804
    %v10826 = vunpack.c.l.b16 %v10805
    %v10827 = vpack.c.b16 %v10821, %v10820
    %v10828 = vpack.c.b16 %v10823, %v10822
    %v10829 = vpack.c.b16 %v10825, %v10824
    %v10830 = vpack.c.b16 %v10826, %v10826
    %v10835 = vsel %vm10350, %v10812, 0
    %v10838 = vsel %vm6328, %v10830, 0
    %10840 = vmatprep.subr.bf16.mxu0 0
    %10841 = vmatpush1.bf16.msra.mxu0 %v10827
    %10842 = vmatprep.subr.bf16.mxu0 0
    %10843 = vmatpush1.bf16.msra.mxu0 %v10828
    %10844 = vmatprep.subr.bf16.mxu0 0
    %10845 = vmatpush1.bf16.msra.mxu0 %v10829
    %10846 = vmatprep.subr.bf16.mxu0 0
    %10847 = vmatpush1.bf16.msra.mxu0 %v10838
    %10848 = vmatprep.subr.bf16.mxu0 0
    %10849 = vmatpush1.bf16.msra.mxu0 0
    %10850 = vmatprep.subr.bf16.mxu0 0
    %10851 = vmatpush1.bf16.msra.mxu0 0
    %10852 = vmatprep.subr.bf16.mxu0 0
    %10853 = vmatpush1.bf16.msra.mxu0 0
    %10854 = vmatprep.subr.bf16.mxu0 0
    %10855 = vmatpush1.bf16.msra.mxu0 0
    %10856 = vmatprep.subr.bf16.mxu0 0
    %10857 = vmatpush1.bf16.msra.mxu0 0
    %10858 = vmatprep.subr.bf16.mxu0 0
    %10859 = vmatpush1.bf16.msra.mxu0 0
    %10860 = vmatprep.subr.bf16.mxu0 0
    %10861 = vmatpush1.bf16.msra.mxu0 0
    %10862 = vmatprep.subr.bf16.mxu0 0
    %10863 = vmatpush1.bf16.msra.mxu0 0
    %10864 = vmatprep.subr.bf16.mxu0 0
    %10865 = vmatpush1.bf16.msra.mxu0 0
    %10866 = vmatprep.subr.bf16.mxu0 0
    %10867 = vmatpush1.bf16.msra.mxu0 0
    %10868 = vmatprep.subr.bf16.mxu0 0
    %10869 = vmatpush1.bf16.msra.mxu0 0
    %10870 = vmatprep.subr.bf16.mxu0 0
    %10871 = vmatpush1.bf16.msra.mxu0 0
    %10872 = vmatprep.mubr.bf16.mxu0 0
    %10873 = vmatmul.mubr.bf16.gmra.mrb[0].mxu0 %v10835
    %v10874 = vpop.f32.mrb[0].mxu0
    %v10875 = vadd.f32 0.0, %v10874
    %v10876 = vpop.f32.mrb[0].mxu0
    %v10877 = vpop.f32.mrb[0].mxu0
    %v10878 = vpop.f32.mrb[0].mxu0
    %10879 = vdwg.mxu0
    %v10880 = vadd.f32 %v10797, %v10875
    %s10881 = scalar_lea.vmem %s10, 140
    %v10882 = vld [vmem:[%s10881] sm:$0xf]
    %v10883 = vld [vmem:[%s10881 + $0x4] sm:$0xf]
    %v10884 = vld [vmem:[%s10881 + $0x8] sm:$0xf]
    %v10885 = vld [vmem:[%s10881 + $0xc] sm:$0xf]
    %v10886 = vld [vmem:[%s10881 + $0x10] sm:$0xf]
    %v10887 = vld [vmem:[%s10881 + $0x14] sm:$0xf]
    %v10888 = vld [vmem:[%s10881 + $0x18] sm:$0x1]
    %v10889 = vrot.slane %v10808, 1
    %v10890 = vsel %vm10498, %v10809, %v10889
    %v10891 = vpack.c.b16 %v10890, %v10890
    %v10899 = vunpack.c.l.b16 %v10882
    %v10900 = vunpack.c.l.b16 %v10883
    %v10901 = vunpack.c.l.b16 %v10884
    %v10902 = vunpack.c.l.b16 %v10885
    %v10903 = vunpack.c.l.b16 %v10886
    %v10904 = vunpack.c.l.b16 %v10887
    %v10905 = vunpack.c.l.b16 %v10888
    %v10906 = vpack.c.b16 %v10900, %v10899
    %v10907 = vpack.c.b16 %v10902, %v10901
    %v10908 = vpack.c.b16 %v10904, %v10903
    %v10909 = vpack.c.b16 %v10905, %v10905
    %v10914 = vsel %vm10350, %v10891, 0
    %v10917 = vsel %vm6328, %v10909, 0
    %10919 = vmatprep.subr.bf16.mxu0 0
    %10920 = vmatpush1.bf16.msra.mxu0 %v10906
    %10921 = vmatprep.subr.bf16.mxu0 0
    %10922 = vmatpush1.bf16.msra.mxu0 %v10907
    %10923 = vmatprep.subr.bf16.mxu0 0
    %10924 = vmatpush1.bf16.msra.mxu0 %v10908
    %10925 = vmatprep.subr.bf16.mxu0 0
    %10926 = vmatpush1.bf16.msra.mxu0 %v10917
    %10927 = vmatprep.subr.bf16.mxu0 0
    %10928 = vmatpush1.bf16.msra.mxu0 0
    %10929 = vmatprep.subr.bf16.mxu0 0
    %10930 = vmatpush1.bf16.msra.mxu0 0
    %10931 = vmatprep.subr.bf16.mxu0 0
    %10932 = vmatpush1.bf16.msra.mxu0 0
    %10933 = vmatprep.subr.bf16.mxu0 0
    %10934 = vmatpush1.bf16.msra.mxu0 0
    %10935 = vmatprep.subr.bf16.mxu0 0
    %10936 = vmatpush1.bf16.msra.mxu0 0
    %10937 = vmatprep.subr.bf16.mxu0 0
    %10938 = vmatpush1.bf16.msra.mxu0 0
    %10939 = vmatprep.subr.bf16.mxu0 0
    %10940 = vmatpush1.bf16.msra.mxu0 0
    %10941 = vmatprep.subr.bf16.mxu0 0
    %10942 = vmatpush1.bf16.msra.mxu0 0
    %10943 = vmatprep.subr.bf16.mxu0 0
    %10944 = vmatpush1.bf16.msra.mxu0 0
    %10945 = vmatprep.subr.bf16.mxu0 0
    %10946 = vmatpush1.bf16.msra.mxu0 0
    %10947 = vmatprep.subr.bf16.mxu0 0
    %10948 = vmatpush1.bf16.msra.mxu0 0
    %10949 = vmatprep.subr.bf16.mxu0 0
    %10950 = vmatpush1.bf16.msra.mxu0 0
    %10951 = vmatprep.mubr.bf16.mxu0 0
    %10952 = vmatmul.mubr.bf16.gmra.mrb[0].mxu0 %v10914
    %v10953 = vpop.f32.mrb[0].mxu0
    %v10954 = vadd.f32 0.0, %v10953
    %v10955 = vpop.f32.mrb[0].mxu0
    %v10956 = vpop.f32.mrb[0].mxu0
    %v10957 = vpop.f32.mrb[0].mxu0
    %10958 = vdwg.mxu0
    %v10959 = vadd.f32 %v10880, %v10954
    %s10960 = scalar_lea.vmem %s10, 168
    %v10961 = vld [vmem:[%s10960] sm:$0xf]
    %v10962 = vld [vmem:[%s10960 + $0x4] sm:$0xf]
    %v10963 = vld [vmem:[%s10960 + $0x8] sm:$0xf]
    %v10964 = vld [vmem:[%s10960 + $0xc] sm:$0xf]
    %v10965 = vld [vmem:[%s10960 + $0x10] sm:$0xf]
    %v10966 = vld [vmem:[%s10960 + $0x14] sm:$0xf]
    %v10967 = vld [vmem:[%s10960 + $0x18] sm:$0x1]
    %v10968 = vrot.slane %v10808, 2
    %v10969 = vrot.slane %v10809, 1
    %v10970 = vsel %vm10498, %v10969, %v10968
    %v10971 = vpack.c.b16 %v10970, %v10970
    %v10979 = vunpack.c.l.b16 %v10961
    %v10980 = vunpack.c.l.b16 %v10962
    %v10981 = vunpack.c.l.b16 %v10963
    %v10982 = vunpack.c.l.b16 %v10964
    %v10983 = vunpack.c.l.b16 %v10965
    %v10984 = vunpack.c.l.b16 %v10966
    %v10985 = vunpack.c.l.b16 %v10967
    %v10986 = vpack.c.b16 %v10980, %v10979
    %v10987 = vpack.c.b16 %v10982, %v10981
    %v10988 = vpack.c.b16 %v10984, %v10983
    %v10989 = vpack.c.b16 %v10985, %v10985
    %v10994 = vsel %vm10350, %v10971, 0
    %v10997 = vsel %vm6328, %v10989, 0
    %10999 = vmatprep.subr.bf16.mxu0 0
    %11000 = vmatpush1.bf16.msra.mxu0 %v10986
    %11001 = vmatprep.subr.bf16.mxu0 0
    %11002 = vmatpush1.bf16.msra.mxu0 %v10987
    %11003 = vmatprep.subr.bf16.mxu0 0
    %11004 = vmatpush1.bf16.msra.mxu0 %v10988
    %11005 = vmatprep.subr.bf16.mxu0 0
    %11006 = vmatpush1.bf16.msra.mxu0 %v10997
    %11007 = vmatprep.subr.bf16.mxu0 0
    %11008 = vmatpush1.bf16.msra.mxu0 0
    %11009 = vmatprep.subr.bf16.mxu0 0
    %11010 = vmatpush1.bf16.msra.mxu0 0
    %11011 = vmatprep.subr.bf16.mxu0 0
    %11012 = vmatpush1.bf16.msra.mxu0 0
    %11013 = vmatprep.subr.bf16.mxu0 0
    %11014 = vmatpush1.bf16.msra.mxu0 0
    %11015 = vmatprep.subr.bf16.mxu0 0
    %11016 = vmatpush1.bf16.msra.mxu0 0
    %11017 = vmatprep.subr.bf16.mxu0 0
    %11018 = vmatpush1.bf16.msra.mxu0 0
    %11019 = vmatprep.subr.bf16.mxu0 0
    %11020 = vmatpush1.bf16.msra.mxu0 0
    %11021 = vmatprep.subr.bf16.mxu0 0
    %11022 = vmatpush1.bf16.msra.mxu0 0
    %11023 = vmatprep.subr.bf16.mxu0 0
    %11024 = vmatpush1.bf16.msra.mxu0 0
    %11025 = vmatprep.subr.bf16.mxu0 0
    %11026 = vmatpush1.bf16.msra.mxu0 0
    %11027 = vmatprep.subr.bf16.mxu0 0
    %11028 = vmatpush1.bf16.msra.mxu0 0
    %11029 = vmatprep.subr.bf16.mxu0 0
    %11030 = vmatpush1.bf16.msra.mxu0 0
    %11031 = vmatprep.mubr.bf16.mxu0 0
    %11032 = vmatmul.mubr.bf16.gmra.mrb[0].mxu0 %v10994
    %v11033 = vpop.f32.mrb[0].mxu0
    %v11034 = vadd.f32 0.0, %v11033
    %v11035 = vpop.f32.mrb[0].mxu0
    %v11036 = vpop.f32.mrb[0].mxu0
    %v11037 = vpop.f32.mrb[0].mxu0
    %11038 = vdwg.mxu0
    %v11039 = vadd.f32 %v10959, %v11034
    %s11040 = scalar_lea.vmem %s10, 196
    %v11041 = vld [vmem:[%s11040] sm:$0xf]
    %v11042 = vld [vmem:[%s11040 + $0x4] sm:$0xf]
    %v11043 = vld [vmem:[%s11040 + $0x8] sm:$0xf]
    %v11044 = vld [vmem:[%s11040 + $0xc] sm:$0xf]
    %v11045 = vld [vmem:[%s11040 + $0x10] sm:$0xf]
    %v11046 = vld [vmem:[%s11040 + $0x14] sm:$0xf]
    %v11047 = vld [vmem:[%s11040 + $0x18] sm:$0x1]
    %v11048 = vrot.slane %v10808, 3
    %v11049 = vrot.slane %v10809, 2
    %v11050 = vsel %vm10498, %v11049, %v11048
    %v11051 = vpack.c.b16 %v11050, %v11050
    %v11059 = vunpack.c.l.b16 %v11041
    %v11060 = vunpack.c.l.b16 %v11042
    %v11061 = vunpack.c.l.b16 %v11043
    %v11062 = vunpack.c.l.b16 %v11044
    %v11063 = vunpack.c.l.b16 %v11045
    %v11064 = vunpack.c.l.b16 %v11046
    %v11065 = vunpack.c.l.b16 %v11047
    %v11066 = vpack.c.b16 %v11060, %v11059
    %v11067 = vpack.c.b16 %v11062, %v11061
    %v11068 = vpack.c.b16 %v11064, %v11063
    %v11069 = vpack.c.b16 %v11065, %v11065
    %v11074 = vsel %vm10350, %v11051, 0
    %v11077 = vsel %vm6328, %v11069, 0
    %11079 = vmatprep.subr.bf16.mxu0 0
    %11080 = vmatpush1.bf16.msra.mxu0 %v11066
    %11081 = vmatprep.subr.bf16.mxu0 0
    %11082 = vmatpush1.bf16.msra.mxu0 %v11067
    %11083 = vmatprep.subr.bf16.mxu0 0
    %11084 = vmatpush1.bf16.msra.mxu0 %v11068
    %11085 = vmatprep.subr.bf16.mxu0 0
    %11086 = vmatpush1.bf16.msra.mxu0 %v11077
    %11087 = vmatprep.subr.bf16.mxu0 0
    %11088 = vmatpush1.bf16.msra.mxu0 0
    %11089 = vmatprep.subr.bf16.mxu0 0
    %11090 = vmatpush1.bf16.msra.mxu0 0
    %11091 = vmatprep.subr.bf16.mxu0 0
    %11092 = vmatpush1.bf16.msra.mxu0 0
    %11093 = vmatprep.subr.bf16.mxu0 0
    %11094 = vmatpush1.bf16.msra.mxu0 0
    %11095 = vmatprep.subr.bf16.mxu0 0
    %11096 = vmatpush1.bf16.msra.mxu0 0
    %11097 = vmatprep.subr.bf16.mxu0 0
    %11098 = vmatpush1.bf16.msra.mxu0 0
    %11099 = vmatprep.subr.bf16.mxu0 0
    %11100 = vmatpush1.bf16.msra.mxu0 0
    %11101 = vmatprep.subr.bf16.mxu0 0
    %11102 = vmatpush1.bf16.msra.mxu0 0
    %11103 = vmatprep.subr.bf16.mxu0 0
    %11104 = vmatpush1.bf16.msra.mxu0 0
    %11105 = vmatprep.subr.bf16.mxu0 0
    %11106 = vmatpush1.bf16.msra.mxu0 0
    %11107 = vmatprep.subr.bf16.mxu0 0
    %11108 = vmatpush1.bf16.msra.mxu0 0
    %11109 = vmatprep.subr.bf16.mxu0 0
    %11110 = vmatpush1.bf16.msra.mxu0 0
    %11111 = vmatprep.mubr.bf16.mxu0 0
    %11112 = vmatmul.mubr.bf16.gmra.mrb[0].mxu0 %v11074
    %v11113 = vpop.f32.mrb[0].mxu0
    %v11114 = vadd.f32 0.0, %v11113
    %v11115 = vpop.f32.mrb[0].mxu0
    %v11116 = vpop.f32.mrb[0].mxu0
    %v11117 = vpop.f32.mrb[0].mxu0
    %11118 = vdwg.mxu0
    %v11119 = vadd.f32 %v11039, %v11114
    %s11120 = scalar_lea.vmem %s10, 224
    %v11121 = vld [vmem:[%s11120] sm:$0xf]
    %v11122 = vld [vmem:[%s11120 + $0x4] sm:$0xf]
    %v11123 = vld [vmem:[%s11120 + $0x8] sm:$0xf]
    %v11124 = vld [vmem:[%s11120 + $0xc] sm:$0xf]
    %v11125 = vld [vmem:[%s11120 + $0x10] sm:$0xf]
    %v11126 = vld [vmem:[%s11120 + $0x14] sm:$0xf]
    %v11127 = vld [vmem:[%s11120 + $0x18] sm:$0x1]
    %v11128 = vpack.c.b16 %v10472, %v10472
    %v11129 = vpack.c.b16 %v10476, %v10476
    %v11130 = vunpack.c.l.b16 %v11128
    %v11131 = vunpack.c.l.b16 %v11129
    %v11132 = vrot.slane %v11131, 7
    %v11133 = vsel %vm10498, %v11132, %v11130
    %v11134 = vpack.c.b16 %v11133, %v11133
    %v11142 = vunpack.c.l.b16 %v11121
    %v11143 = vunpack.c.l.b16 %v11122
    %v11144 = vunpack.c.l.b16 %v11123
    %v11145 = vunpack.c.l.b16 %v11124
    %v11146 = vunpack.c.l.b16 %v11125
    %v11147 = vunpack.c.l.b16 %v11126
    %v11148 = vunpack.c.l.b16 %v11127
    %v11149 = vpack.c.b16 %v11143, %v11142
    %v11150 = vpack.c.b16 %v11145, %v11144
    %v11151 = vpack.c.b16 %v11147, %v11146
    %v11152 = vpack.c.b16 %v11148, %v11148
    %v11157 = vsel %vm10350, %v11134, 0
    %v11160 = vsel %vm6328, %v11152, 0
    %11162 = vmatprep.subr.bf16.mxu0 0
    %11163 = vmatpush1.bf16.msra.mxu0 %v11149
    %11164 = vmatprep.subr.bf16.mxu0 0
    %11165 = vmatpush1.bf16.msra.mxu0 %v11150
    %11166 = vmatprep.subr.bf16.mxu0 0
    %11167 = vmatpush1.bf16.msra.mxu0 %v11151
    %11168 = vmatprep.subr.bf16.mxu0 0
    %11169 = vmatpush1.bf16.msra.mxu0 %v11160
    %11170 = vmatprep.subr.bf16.mxu0 0
    %11171 = vmatpush1.bf16.msra.mxu0 0
    %11172 = vmatprep.subr.bf16.mxu0 0
    %11173 = vmatpush1.bf16.msra.mxu0 0
    %11174 = vmatprep.subr.bf16.mxu0 0
    %11175 = vmatpush1.bf16.msra.mxu0 0
    %11176 = vmatprep.subr.bf16.mxu0 0
    %11177 = vmatpush1.bf16.msra.mxu0 0
    %11178 = vmatprep.subr.bf16.mxu0 0
    %11179 = vmatpush1.bf16.msra.mxu0 0
    %11180 = vmatprep.subr.bf16.mxu0 0
    %11181 = vmatpush1.bf16.msra.mxu0 0
    %11182 = vmatprep.subr.bf16.mxu0 0
    %11183 = vmatpush1.bf16.msra.mxu0 0
    %11184 = vmatprep.subr.bf16.mxu0 0
    %11185 = vmatpush1.bf16.msra.mxu0 0
    %11186 = vmatprep.subr.bf16.mxu0 0
    %11187 = vmatpush1.bf16.msra.mxu0 0
    %11188 = vmatprep.subr.bf16.mxu0 0
    %11189 = vmatpush1.bf16.msra.mxu0 0
    %11190 = vmatprep.subr.bf16.mxu0 0
    %11191 = vmatpush1.bf16.msra.mxu0 0
    %11192 = vmatprep.subr.bf16.mxu0 0
    %11193 = vmatpush1.bf16.msra.mxu0 0
    %11194 = vmatprep.mubr.bf16.mxu0 0
    %11195 = vmatmul.mubr.bf16.gmra.mrb[0].mxu0 %v11157
    %v11196 = vpop.f32.mrb[0].mxu0
    %v11197 = vadd.f32 0.0, %v11196
    %v11198 = vpop.f32.mrb[0].mxu0
    %v11199 = vpop.f32.mrb[0].mxu0
    %v11200 = vpop.f32.mrb[0].mxu0
    %11201 = vdwg.mxu0
    %v11202 = vadd.f32 %v11119, %v11197
    %s11203 = scalar_lea.vmem %s10, 252
    %v11204 = vld [vmem:[%s11203] sm:$0xf]
    %v11205 = vld [vmem:[%s11203 + $0x4] sm:$0xf]
    %v11206 = vld [vmem:[%s11203 + $0x8] sm:$0xf]
    %v11207 = vld [vmem:[%s11203 + $0xc] sm:$0xf]
    %v11208 = vld [vmem:[%s11203 + $0x10] sm:$0xf]
    %v11209 = vld [vmem:[%s11203 + $0x14] sm:$0xf]
    %v11210 = vld [vmem:[%s11203 + $0x18] sm:$0x1]
    %v11211 = vrot.slane %v11130, 1
    %v11212 = vsel %vm10498, %v11131, %v11211
    %v11213 = vpack.c.b16 %v11212, %v11212
    %v11221 = vunpack.c.l.b16 %v11204
    %v11222 = vunpack.c.l.b16 %v11205
    %v11223 = vunpack.c.l.b16 %v11206
    %v11224 = vunpack.c.l.b16 %v11207
    %v11225 = vunpack.c.l.b16 %v11208
    %v11226 = vunpack.c.l.b16 %v11209
    %v11227 = vunpack.c.l.b16 %v11210
    %v11228 = vpack.c.b16 %v11222, %v11221
    %v11229 = vpack.c.b16 %v11224, %v11223
    %v11230 = vpack.c.b16 %v11226, %v11225
    %v11231 = vpack.c.b16 %v11227, %v11227
    %v11236 = vsel %vm10350, %v11213, 0
    %v11239 = vsel %vm6328, %v11231, 0
    %11241 = vmatprep.subr.bf16.mxu0 0
    %11242 = vmatpush1.bf16.msra.mxu0 %v11228
    %11243 = vmatprep.subr.bf16.mxu0 0
    %11244 = vmatpush1.bf16.msra.mxu0 %v11229
    %11245 = vmatprep.subr.bf16.mxu0 0
    %11246 = vmatpush1.bf16.msra.mxu0 %v11230
    %11247 = vmatprep.subr.bf16.mxu0 0
    %11248 = vmatpush1.bf16.msra.mxu0 %v11239
    %11249 = vmatprep.subr.bf16.mxu0 0
    %11250 = vmatpush1.bf16.msra.mxu0 0
    %11251 = vmatprep.subr.bf16.mxu0 0
    %11252 = vmatpush1.bf16.msra.mxu0 0
    %11253 = vmatprep.subr.bf16.mxu0 0
    %11254 = vmatpush1.bf16.msra.mxu0 0
    %11255 = vmatprep.subr.bf16.mxu0 0
    %11256 = vmatpush1.bf16.msra.mxu0 0
    %11257 = vmatprep.subr.bf16.mxu0 0
    %11258 = vmatpush1.bf16.msra.mxu0 0
    %11259 = vmatprep.subr.bf16.mxu0 0
    %11260 = vmatpush1.bf16.msra.mxu0 0
    %11261 = vmatprep.subr.bf16.mxu0 0
    %11262 = vmatpush1.bf16.msra.mxu0 0
    %11263 = vmatprep.subr.bf16.mxu0 0
    %11264 = vmatpush1.bf16.msra.mxu0 0
    %11265 = vmatprep.subr.bf16.mxu0 0
    %11266 = vmatpush1.bf16.msra.mxu0 0
    %11267 = vmatprep.subr.bf16.mxu0 0
    %11268 = vmatpush1.bf16.msra.mxu0 0
    %11269 = vmatprep.subr.bf16.mxu0 0
    %11270 = vmatpush1.bf16.msra.mxu0 0
    %11271 = vmatprep.subr.bf16.mxu0 0
    %11272 = vmatpush1.bf16.msra.mxu0 0
    %11273 = vmatprep.mubr.bf16.mxu0 0
    %11274 = vmatmul.mubr.bf16.gmra.mrb[0].mxu0 %v11236
    %v11275 = vpop.f32.mrb[0].mxu0
    %v11276 = vadd.f32 0.0, %v11275
    %v11277 = vpop.f32.mrb[0].mxu0
    %v11278 = vpop.f32.mrb[0].mxu0
    %v11279 = vpop.f32.mrb[0].mxu0
    %11280 = vdwg.mxu0
    %v11281 = vadd.f32 %v11202, %v11276
    %s11282 = scalar_lea.vmem %s10, 280
    %v11283 = vld [vmem:[%s11282] sm:$0xf]
    %v11284 = vld [vmem:[%s11282 + $0x4] sm:$0xf]
    %v11285 = vld [vmem:[%s11282 + $0x8] sm:$0xf]
    %v11286 = vld [vmem:[%s11282 + $0xc] sm:$0xf]
    %v11287 = vld [vmem:[%s11282 + $0x10] sm:$0xf]
    %v11288 = vld [vmem:[%s11282 + $0x14] sm:$0xf]
    %v11289 = vld [vmem:[%s11282 + $0x18] sm:$0x1]
    %v11290 = vrot.slane %v11130, 2
    %v11291 = vrot.slane %v11131, 1
    %v11292 = vsel %vm10498, %v11291, %v11290
    %v11293 = vpack.c.b16 %v11292, %v11292
    %v11301 = vunpack.c.l.b16 %v11283
    %v11302 = vunpack.c.l.b16 %v11284
    %v11303 = vunpack.c.l.b16 %v11285
    %v11304 = vunpack.c.l.b16 %v11286
    %v11305 = vunpack.c.l.b16 %v11287
    %v11306 = vunpack.c.l.b16 %v11288
    %v11307 = vunpack.c.l.b16 %v11289
    %v11308 = vpack.c.b16 %v11302, %v11301
    %v11309 = vpack.c.b16 %v11304, %v11303
    %v11310 = vpack.c.b16 %v11306, %v11305
    %v11311 = vpack.c.b16 %v11307, %v11307
    %v11316 = vsel %vm10350, %v11293, 0
    %v11319 = vsel %vm6328, %v11311, 0
    %11321 = vmatprep.subr.bf16.mxu0 0
    %11322 = vmatpush1.bf16.msra.mxu0 %v11308
    %11323 = vmatprep.subr.bf16.mxu0 0
    %11324 = vmatpush1.bf16.msra.mxu0 %v11309
    %11325 = vmatprep.subr.bf16.mxu0 0
    %11326 = vmatpush1.bf16.msra.mxu0 %v11310
    %11327 = vmatprep.subr.bf16.mxu0 0
    %11328 = vmatpush1.bf16.msra.mxu0 %v11319
    %11329 = vmatprep.subr.bf16.mxu0 0
    %11330 = vmatpush1.bf16.msra.mxu0 0
    %11331 = vmatprep.subr.bf16.mxu0 0
    %11332 = vmatpush1.bf16.msra.mxu0 0
    %11333 = vmatprep.subr.bf16.mxu0 0
    %11334 = vmatpush1.bf16.msra.mxu0 0
    %11335 = vmatprep.subr.bf16.mxu0 0
    %11336 = vmatpush1.bf16.msra.mxu0 0
    %11337 = vmatprep.subr.bf16.mxu0 0
    %11338 = vmatpush1.bf16.msra.mxu0 0
    %11339 = vmatprep.subr.bf16.mxu0 0
    %11340 = vmatpush1.bf16.msra.mxu0 0
    %11341 = vmatprep.subr.bf16.mxu0 0
    %11342 = vmatpush1.bf16.msra.mxu0 0
    %11343 = vmatprep.subr.bf16.mxu0 0
    %11344 = vmatpush1.bf16.msra.mxu0 0
    %11345 = vmatprep.subr.bf16.mxu0 0
    %11346 = vmatpush1.bf16.msra.mxu0 0
    %11347 = vmatprep.subr.bf16.mxu0 0
    %11348 = vmatpush1.bf16.msra.mxu0 0
    %11349 = vmatprep.subr.bf16.mxu0 0
    %11350 = vmatpush1.bf16.msra.mxu0 0
    %11351 = vmatprep.subr.bf16.mxu0 0
    %11352 = vmatpush1.bf16.msra.mxu0 0
    %11353 = vmatprep.mubr.bf16.mxu0 0
    %11354 = vmatmul.mubr.bf16.gmra.mrb[0].mxu0 %v11316
    %v11355 = vpop.f32.mrb[0].mxu0
    %v11356 = vadd.f32 0.0, %v11355
    %v11357 = vpop.f32.mrb[0].mxu0
    %v11358 = vpop.f32.mrb[0].mxu0
    %v11359 = vpop.f32.mrb[0].mxu0
    %11360 = vdwg.mxu0
    %v11361 = vadd.f32 %v11281, %v11356
    %s11362 = scalar_lea.vmem %s10, 308
    %v11363 = vld [vmem:[%s11362] sm:$0xf]
    %v11364 = vld [vmem:[%s11362 + $0x4] sm:$0xf]
    %v11365 = vld [vmem:[%s11362 + $0x8] sm:$0xf]
    %v11366 = vld [vmem:[%s11362 + $0xc] sm:$0xf]
    %v11367 = vld [vmem:[%s11362 + $0x10] sm:$0xf]
    %v11368 = vld [vmem:[%s11362 + $0x14] sm:$0xf]
    %v11369 = vld [vmem:[%s11362 + $0x18] sm:$0x1]
    %v11370 = vrot.slane %v11130, 3
    %v11371 = vrot.slane %v11131, 2
    %v11372 = vsel %vm10498, %v11371, %v11370
    %v11373 = vpack.c.b16 %v11372, %v11372
    %v11381 = vunpack.c.l.b16 %v11363
    %v11382 = vunpack.c.l.b16 %v11364
    %v11383 = vunpack.c.l.b16 %v11365
    %v11384 = vunpack.c.l.b16 %v11366
    %v11385 = vunpack.c.l.b16 %v11367
    %v11386 = vunpack.c.l.b16 %v11368
    %v11387 = vunpack.c.l.b16 %v11369
    %v11388 = vpack.c.b16 %v11382, %v11381
    %v11389 = vpack.c.b16 %v11384, %v11383
    %v11390 = vpack.c.b16 %v11386, %v11385
    %v11391 = vpack.c.b16 %v11387, %v11387
    %v11396 = vsel %vm10350, %v11373, 0
    %v11399 = vsel %vm6328, %v11391, 0
    %11401 = vmatprep.subr.bf16.mxu0 0
    %11402 = vmatpush1.bf16.msra.mxu0 %v11388
    %11403 = vmatprep.subr.bf16.mxu0 0
    %11404 = vmatpush1.bf16.msra.mxu0 %v11389
    %11405 = vmatprep.subr.bf16.mxu0 0
    %11406 = vmatpush1.bf16.msra.mxu0 %v11390
    %11407 = vmatprep.subr.bf16.mxu0 0
    %11408 = vmatpush1.bf16.msra.mxu0 %v11399
    %11409 = vmatprep.subr.bf16.mxu0 0
    %11410 = vmatpush1.bf16.msra.mxu0 0
    %11411 = vmatprep.subr.bf16.mxu0 0
    %11412 = vmatpush1.bf16.msra.mxu0 0
    %11413 = vmatprep.subr.bf16.mxu0 0
    %11414 = vmatpush1.bf16.msra.mxu0 0
    %11415 = vmatprep.subr.bf16.mxu0 0
    %11416 = vmatpush1.bf16.msra.mxu0 0
    %11417 = vmatprep.subr.bf16.mxu0 0
    %11418 = vmatpush1.bf16.msra.mxu0 0
    %11419 = vmatprep.subr.bf16.mxu0 0
    %11420 = vmatpush1.bf16.msra.mxu0 0
    %11421 = vmatprep.subr.bf16.mxu0 0
    %11422 = vmatpush1.bf16.msra.mxu0 0
    %11423 = vmatprep.subr.bf16.mxu0 0
    %11424 = vmatpush1.bf16.msra.mxu0 0
    %11425 = vmatprep.subr.bf16.mxu0 0
    %11426 = vmatpush1.bf16.msra.mxu0 0
    %11427 = vmatprep.subr.bf16.mxu0 0
    %11428 = vmatpush1.bf16.msra.mxu0 0
    %11429 = vmatprep.subr.bf16.mxu0 0
    %11430 = vmatpush1.bf16.msra.mxu0 0
    %11431 = vmatprep.subr.bf16.mxu0 0
    %11432 = vmatpush1.bf16.msra.mxu0 0
    %11433 = vmatprep.mubr.bf16.mxu0 0
    %11434 = vmatmul.mubr.bf16.gmra.mrb[0].mxu0 %v11396
    %v11435 = vpop.f32.mrb[0].mxu0
    %v11436 = vadd.f32 0.0, %v11435
    %v11437 = vpop.f32.mrb[0].mxu0
    %v11438 = vpop.f32.mrb[0].mxu0
    %v11439 = vpop.f32.mrb[0].mxu0
    %11440 = vdwg.mxu0
    %v11441 = vadd.f32 %v11361, %v11436
    %s11442 = scalar_lea.vmem %s10, 336
    %v11443 = vld [vmem:[%s11442] sm:$0xf]
    %v11444 = vld [vmem:[%s11442 + $0x4] sm:$0xf]
    %v11445 = vld [vmem:[%s11442 + $0x8] sm:$0xf]
    %v11446 = vld [vmem:[%s11442 + $0xc] sm:$0xf]
    %v11447 = vld [vmem:[%s11442 + $0x10] sm:$0xf]
    %v11448 = vld [vmem:[%s11442 + $0x14] sm:$0xf]
    %v11449 = vld [vmem:[%s11442 + $0x18] sm:$0x1]
    %v11450 = vpack.c.b16 %v10473, %v10473
    %v11451 = vpack.c.b16 %v10477, %v10477
    %v11452 = vunpack.c.l.b16 %v11450
    %v11453 = vunpack.c.l.b16 %v11451
    %v11454 = vrot.slane %v11453, 7
    %v11455 = vsel %vm10498, %v11454, %v11452
    %v11456 = vpack.c.b16 %v11455, %v11455
    %v11464 = vunpack.c.l.b16 %v11443
    %v11465 = vunpack.c.l.b16 %v11444
    %v11466 = vunpack.c.l.b16 %v11445
    %v11467 = vunpack.c.l.b16 %v11446
    %v11468 = vunpack.c.l.b16 %v11447
    %v11469 = vunpack.c.l.b16 %v11448
    %v11470 = vunpack.c.l.b16 %v11449
    %v11471 = vpack.c.b16 %v11465, %v11464
    %v11472 = vpack.c.b16 %v11467, %v11466
    %v11473 = vpack.c.b16 %v11469, %v11468
    %v11474 = vpack.c.b16 %v11470, %v11470
    %v11479 = vsel %vm10350, %v11456, 0
    %v11482 = vsel %vm6328, %v11474, 0
    %11484 = vmatprep.subr.bf16.mxu0 0
    %11485 = vmatpush1.bf16.msra.mxu0 %v11471
    %11486 = vmatprep.subr.bf16.mxu0 0
    %11487 = vmatpush1.bf16.msra.mxu0 %v11472
    %11488 = vmatprep.subr.bf16.mxu0 0
    %11489 = vmatpush1.bf16.msra.mxu0 %v11473
    %11490 = vmatprep.subr.bf16.mxu0 0
    %11491 = vmatpush1.bf16.msra.mxu0 %v11482
    %11492 = vmatprep.subr.bf16.mxu0 0
    %11493 = vmatpush1.bf16.msra.mxu0 0
    %11494 = vmatprep.subr.bf16.mxu0 0
    %11495 = vmatpush1.bf16.msra.mxu0 0
    %11496 = vmatprep.subr.bf16.mxu0 0
    %11497 = vmatpush1.bf16.msra.mxu0 0
    %11498 = vmatprep.subr.bf16.mxu0 0
    %11499 = vmatpush1.bf16.msra.mxu0 0
    %11500 = vmatprep.subr.bf16.mxu0 0
    %11501 = vmatpush1.bf16.msra.mxu0 0
    %11502 = vmatprep.subr.bf16.mxu0 0
    %11503 = vmatpush1.bf16.msra.mxu0 0
    %11504 = vmatprep.subr.bf16.mxu0 0
    %11505 = vmatpush1.bf16.msra.mxu0 0
    %11506 = vmatprep.subr.bf16.mxu0 0
    %11507 = vmatpush1.bf16.msra.mxu0 0
    %11508 = vmatprep.subr.bf16.mxu0 0
    %11509 = vmatpush1.bf16.msra.mxu0 0
    %11510 = vmatprep.subr.bf16.mxu0 0
    %11511 = vmatpush1.bf16.msra.mxu0 0
    %11512 = vmatprep.subr.bf16.mxu0 0
    %11513 = vmatpush1.bf16.msra.mxu0 0
    %11514 = vmatprep.subr.bf16.mxu0 0
    %11515 = vmatpush1.bf16.msra.mxu0 0
    %11516 = vmatprep.mubr.bf16.mxu0 0
    %11517 = vmatmul.mubr.bf16.gmra.mrb[0].mxu0 %v11479
    %v11518 = vpop.f32.mrb[0].mxu0
    %v11519 = vadd.f32 0.0, %v11518
    %v11520 = vpop.f32.mrb[0].mxu0
    %v11521 = vpop.f32.mrb[0].mxu0
    %v11522 = vpop.f32.mrb[0].mxu0
    %11523 = vdwg.mxu0
    %v11524 = vadd.f32 %v11441, %v11519
    %s11525 = scalar_lea.vmem %s10, 364
    %v11526 = vld [vmem:[%s11525] sm:$0xf]
    %v11527 = vld [vmem:[%s11525 + $0x4] sm:$0xf]
    %v11528 = vld [vmem:[%s11525 + $0x8] sm:$0xf]
    %v11529 = vld [vmem:[%s11525 + $0xc] sm:$0xf]
    %v11530 = vld [vmem:[%s11525 + $0x10] sm:$0xf]
    %v11531 = vld [vmem:[%s11525 + $0x14] sm:$0xf]
    %v11532 = vld [vmem:[%s11525 + $0x18] sm:$0x1]
    %v11533 = vrot.slane %v11452, 1
    %v11534 = vsel %vm10498, %v11453, %v11533
    %v11535 = vpack.c.b16 %v11534, %v11534
    %v11543 = vunpack.c.l.b16 %v11526
    %v11544 = vunpack.c.l.b16 %v11527
    %v11545 = vunpack.c.l.b16 %v11528
    %v11546 = vunpack.c.l.b16 %v11529
    %v11547 = vunpack.c.l.b16 %v11530
    %v11548 = vunpack.c.l.b16 %v11531
    %v11549 = vunpack.c.l.b16 %v11532
    %v11550 = vpack.c.b16 %v11544, %v11543
    %v11551 = vpack.c.b16 %v11546, %v11545
    %v11552 = vpack.c.b16 %v11548, %v11547
    %v11553 = vpack.c.b16 %v11549, %v11549
    %v11558 = vsel %vm10350, %v11535, 0
    %v11561 = vsel %vm6328, %v11553, 0
    %11563 = vmatprep.subr.bf16.mxu0 0
    %11564 = vmatpush1.bf16.msra.mxu0 %v11550
    %11565 = vmatprep.subr.bf16.mxu0 0
    %11566 = vmatpush1.bf16.msra.mxu0 %v11551
    %11567 = vmatprep.subr.bf16.mxu0 0
    %11568 = vmatpush1.bf16.msra.mxu0 %v11552
    %11569 = vmatprep.subr.bf16.mxu0 0
    %11570 = vmatpush1.bf16.msra.mxu0 %v11561
    %11571 = vmatprep.subr.bf16.mxu0 0
    %11572 = vmatpush1.bf16.msra.mxu0 0
    %11573 = vmatprep.subr.bf16.mxu0 0
    %11574 = vmatpush1.bf16.msra.mxu0 0
    %11575 = vmatprep.subr.bf16.mxu0 0
    %11576 = vmatpush1.bf16.msra.mxu0 0
    %11577 = vmatprep.subr.bf16.mxu0 0
    %11578 = vmatpush1.bf16.msra.mxu0 0
    %11579 = vmatprep.subr.bf16.mxu0 0
    %11580 = vmatpush1.bf16.msra.mxu0 0
    %11581 = vmatprep.subr.bf16.mxu0 0
    %11582 = vmatpush1.bf16.msra.mxu0 0
    %11583 = vmatprep.subr.bf16.mxu0 0
    %11584 = vmatpush1.bf16.msra.mxu0 0
    %11585 = vmatprep.subr.bf16.mxu0 0
    %11586 = vmatpush1.bf16.msra.mxu0 0
    %11587 = vmatprep.subr.bf16.mxu0 0
    %11588 = vmatpush1.bf16.msra.mxu0 0
    %11589 = vmatprep.subr.bf16.mxu0 0
    %11590 = vmatpush1.bf16.msra.mxu0 0
    %11591 = vmatprep.subr.bf16.mxu0 0
    %11592 = vmatpush1.bf16.msra.mxu0 0
    %11593 = vmatprep.subr.bf16.mxu0 0
    %11594 = vmatpush1.bf16.msra.mxu0 0
    %11595 = vmatprep.mubr.bf16.mxu0 0
    %11596 = vmatmul.mubr.bf16.gmra.mrb[0].mxu0 %v11558
    %v11597 = vpop.f32.mrb[0].mxu0
    %v11598 = vadd.f32 0.0, %v11597
    %v11599 = vpop.f32.mrb[0].mxu0
    %v11600 = vpop.f32.mrb[0].mxu0
    %v11601 = vpop.f32.mrb[0].mxu0
    %11602 = vdwg.mxu0
    %v11603 = vadd.f32 %v11524, %v11598
    %s11604 = scalar_lea.vmem %s10, 392
    %v11605 = vld [vmem:[%s11604] sm:$0xf]
    %v11606 = vld [vmem:[%s11604 + $0x4] sm:$0xf]
    %v11607 = vld [vmem:[%s11604 + $0x8] sm:$0xf]
    %v11608 = vld [vmem:[%s11604 + $0xc] sm:$0xf]
    %v11609 = vld [vmem:[%s11604 + $0x10] sm:$0xf]
    %v11610 = vld [vmem:[%s11604 + $0x14] sm:$0xf]
    %v11611 = vld [vmem:[%s11604 + $0x18] sm:$0x1]
    %v11612 = vrot.slane %v11452, 2
    %v11613 = vrot.slane %v11453, 1
    %v11614 = vsel %vm10498, %v11613, %v11612
    %v11615 = vpack.c.b16 %v11614, %v11614
    %v11623 = vunpack.c.l.b16 %v11605
    %v11624 = vunpack.c.l.b16 %v11606
    %v11625 = vunpack.c.l.b16 %v11607
    %v11626 = vunpack.c.l.b16 %v11608
    %v11627 = vunpack.c.l.b16 %v11609
    %v11628 = vunpack.c.l.b16 %v11610
    %v11629 = vunpack.c.l.b16 %v11611
    %v11630 = vpack.c.b16 %v11624, %v11623
    %v11631 = vpack.c.b16 %v11626, %v11625
    %v11632 = vpack.c.b16 %v11628, %v11627
    %v11633 = vpack.c.b16 %v11629, %v11629
    %v11638 = vsel %vm10350, %v11615, 0
    %v11641 = vsel %vm6328, %v11633, 0
    %11643 = vmatprep.subr.bf16.mxu0 0
    %11644 = vmatpush1.bf16.msra.mxu0 %v11630
    %11645 = vmatprep.subr.bf16.mxu0 0
    %11646 = vmatpush1.bf16.msra.mxu0 %v11631
    %11647 = vmatprep.subr.bf16.mxu0 0
    %11648 = vmatpush1.bf16.msra.mxu0 %v11632
    %11649 = vmatprep.subr.bf16.mxu0 0
    %11650 = vmatpush1.bf16.msra.mxu0 %v11641
    %11651 = vmatprep.subr.bf16.mxu0 0
    %11652 = vmatpush1.bf16.msra.mxu0 0
    %11653 = vmatprep.subr.bf16.mxu0 0
    %11654 = vmatpush1.bf16.msra.mxu0 0
    %11655 = vmatprep.subr.bf16.mxu0 0
    %11656 = vmatpush1.bf16.msra.mxu0 0
    %11657 = vmatprep.subr.bf16.mxu0 0
    %11658 = vmatpush1.bf16.msra.mxu0 0
    %11659 = vmatprep.subr.bf16.mxu0 0
    %11660 = vmatpush1.bf16.msra.mxu0 0
    %11661 = vmatprep.subr.bf16.mxu0 0
    %11662 = vmatpush1.bf16.msra.mxu0 0
    %11663 = vmatprep.subr.bf16.mxu0 0
    %11664 = vmatpush1.bf16.msra.mxu0 0
    %11665 = vmatprep.subr.bf16.mxu0 0
    %11666 = vmatpush1.bf16.msra.mxu0 0
    %11667 = vmatprep.subr.bf16.mxu0 0
    %11668 = vmatpush1.bf16.msra.mxu0 0
    %11669 = vmatprep.subr.bf16.mxu0 0
    %11670 = vmatpush1.bf16.msra.mxu0 0
    %11671 = vmatprep.subr.bf16.mxu0 0
    %11672 = vmatpush1.bf16.msra.mxu0 0
    %11673 = vmatprep.subr.bf16.mxu0 0
    %11674 = vmatpush1.bf16.msra.mxu0 0
    %11675 = vmatprep.mubr.bf16.mxu0 0
    %11676 = vmatmul.mubr.bf16.gmra.mrb[0].mxu0 %v11638
    %v11677 = vpop.f32.mrb[0].mxu0
    %v11678 = vadd.f32 0.0, %v11677
    %v11679 = vpop.f32.mrb[0].mxu0
    %v11680 = vpop.f32.mrb[0].mxu0
    %v11681 = vpop.f32.mrb[0].mxu0
    %11682 = vdwg.mxu0
    %v11683 = vadd.f32 %v11603, %v11678
    %s11684 = scalar_lea.vmem %s10, 420
    %v11685 = vld [vmem:[%s11684] sm:$0xf]
    %v11686 = vld [vmem:[%s11684 + $0x4] sm:$0xf]
    %v11687 = vld [vmem:[%s11684 + $0x8] sm:$0xf]
    %v11688 = vld [vmem:[%s11684 + $0xc] sm:$0xf]
    %v11689 = vld [vmem:[%s11684 + $0x10] sm:$0xf]
    %v11690 = vld [vmem:[%s11684 + $0x14] sm:$0xf]
    %v11691 = vld [vmem:[%s11684 + $0x18] sm:$0x1]
    %v11692 = vrot.slane %v11452, 3
    %v11693 = vrot.slane %v11453, 2
    %v11694 = vsel %vm10498, %v11693, %v11692
    %v11695 = vpack.c.b16 %v11694, %v11694
    %v11703 = vunpack.c.l.b16 %v11685
    %v11704 = vunpack.c.l.b16 %v11686
    %v11705 = vunpack.c.l.b16 %v11687
    %v11706 = vunpack.c.l.b16 %v11688
    %v11707 = vunpack.c.l.b16 %v11689
    %v11708 = vunpack.c.l.b16 %v11690
    %v11709 = vunpack.c.l.b16 %v11691
    %v11710 = vpack.c.b16 %v11704, %v11703
    %v11711 = vpack.c.b16 %v11706, %v11705
    %v11712 = vpack.c.b16 %v11708, %v11707
    %v11713 = vpack.c.b16 %v11709, %v11709
    %v11718 = vsel %vm10350, %v11695, 0
    %v11721 = vsel %vm6328, %v11713, 0
    %11723 = vmatprep.subr.bf16.mxu0 0
    %11724 = vmatpush1.bf16.msra.mxu0 %v11710
    %11725 = vmatprep.subr.bf16.mxu0 0
    %11726 = vmatpush1.bf16.msra.mxu0 %v11711
    %11727 = vmatprep.subr.bf16.mxu0 0
    %11728 = vmatpush1.bf16.msra.mxu0 %v11712
    %11729 = vmatprep.subr.bf16.mxu0 0
    %11730 = vmatpush1.bf16.msra.mxu0 %v11721
    %11731 = vmatprep.subr.bf16.mxu0 0
    %11732 = vmatpush1.bf16.msra.mxu0 0
    %11733 = vmatprep.subr.bf16.mxu0 0
    %11734 = vmatpush1.bf16.msra.mxu0 0
    %11735 = vmatprep.subr.bf16.mxu0 0
    %11736 = vmatpush1.bf16.msra.mxu0 0
    %11737 = vmatprep.subr.bf16.mxu0 0
    %11738 = vmatpush1.bf16.msra.mxu0 0
    %11739 = vmatprep.subr.bf16.mxu0 0
    %11740 = vmatpush1.bf16.msra.mxu0 0
    %11741 = vmatprep.subr.bf16.mxu0 0
    %11742 = vmatpush1.bf16.msra.mxu0 0
    %11743 = vmatprep.subr.bf16.mxu0 0
    %11744 = vmatpush1.bf16.msra.mxu0 0
    %11745 = vmatprep.subr.bf16.mxu0 0
    %11746 = vmatpush1.bf16.msra.mxu0 0
    %11747 = vmatprep.subr.bf16.mxu0 0
    %11748 = vmatpush1.bf16.msra.mxu0 0
    %11749 = vmatprep.subr.bf16.mxu0 0
    %11750 = vmatpush1.bf16.msra.mxu0 0
    %11751 = vmatprep.subr.bf16.mxu0 0
    %11752 = vmatpush1.bf16.msra.mxu0 0
    %11753 = vmatprep.subr.bf16.mxu0 0
    %11754 = vmatpush1.bf16.msra.mxu0 0
    %11755 = vmatprep.mubr.bf16.mxu0 0
    %11756 = vmatmul.mubr.bf16.gmra.mrb[0].mxu0 %v11718
    %v11757 = vpop.f32.mrb[0].mxu0
    %v11758 = vadd.f32 0.0, %v11757
    %v11759 = vpop.f32.mrb[0].mxu0
    %v11760 = vpop.f32.mrb[0].mxu0
    %v11761 = vpop.f32.mrb[0].mxu0
    %11762 = vdwg.mxu0
    %v11763 = vadd.f32 %v11683, %v11758
    %v11764 = vld [vmem:[%s11] sm:$0x1]
    %v11766 = vlaneseq
    %v11767 = vshrl.u32 %v11766, 7
    %v11768 = vsub.s32 0, %v11767
    %v11769 = vrot.slane %v11764, %v11768
    %v11771 = vadd.f32 %v11763, %v11769
    %vm11772 = vcmask 74752
    %v11773 = vsel %vm11772, %v11771, -inf
    %11774 = vmax.xlane.f32.xlu0 %v11773
    %v11775 = vpop.xlane.xlu0 %11774
    %v11776 = vsub.f32 %v11771, %v11775
    %v11777 = vmul.f32 %v11776, 1.442695
    %v11778 = vpow.pop %v11777
    %v11779 = vsel %vm11772, %v11778, 0.0
    %11780 = vadd.xlane.f32.xlu0 %v11779
    %v11781 = vpop.xlane.xlu0 %11780
    %v11782 = vlog2.pop %v11781
    %v11783 = vmul.f32 %v11782, 0.6931472
    %v11784 = vsub.f32 %v11776, %v11783
    %11785 = vst.msk [vmem:[#allocation4] sm:$0x3] %vm11772, %v11784
    // Predicated region
    $region50: #{model_two_forward.1} parent=1 // pred_check
      _
    $region51: #{model_two_forward.1} parent=1 // pred_check_branch
      %11787 = sbr.rel (0) target = $region53
    $region52: #{model_two_forward.1} parent=1 // pred_region
      %s11789 = ssub.s32 32, 32
      %11790 = vsyncadd [#allocation5], %s11789
      %s11792 = sshll.u32 [#allocation4], 4
      %s11793 = int_to_ptr.vmem [resolvable:$true] %s11792
      %11795 = dma.vmem_to_hbm [thread:$0]  %s11793, 32, %s12, [#allocation5]
    $region53: #{model_two_forward.1} parent=1 // pred_fallthru
      _
    // Predicated region
    $region54: #{model_two_forward.1} parent=1 // pred_check
      _
    $region55: #{model_two_forward.1} parent=1 // pred_check_branch
      %11797 = sbr.rel (0) target = $region57
    $region56: #{model_two_forward.1} parent=1 // pred_region
      %11798 = dma.done [#allocation5], 32
    $region57: #{model_two_forward.1} parent=1 // pred_fallthru
      _
    %11799 = vsyncpa [#allocation5], 1

</llo_original>
